<compile_context>
chip_gen: v6e
topology: v6e:2x2x1
jax: 0.10.0
libtpu: 0.0.40
codegen_flags: <defaults>
</compile_context>

<pallas_src>
import functools

import jax
import jax.numpy as jnp
from jax import lax
from jax.experimental import pallas as pl
from jax.experimental.pallas import tpu as pltpu


def _round_up(x, m):
    return (x + m - 1) // m * m


def _apply_activation(v, activation):
    if activation is None:
        return v
    if activation == "ReLU":
        return jnp.maximum(v, 0.0)
    if activation == "Sigmoid":
        return jax.nn.sigmoid(v)
    if activation == "Tanh":
        return jnp.tanh(v)
    # TODO(synk): other torch.nn activation names are not mapped to Pallas ops.
    raise NotImplementedError(f"activation {activation!r} not supported")


def _conv_run_kernel(*refs, layers, L_MAT, activation):
    """Fused run of Conv3d(+activation) layers on one sample.

    Layout: every activation is (C, Dp*Hp*Wp) with the flattened padded volume
    on the lane axis.  Each layer is a single stacked MXU matmul
        (C_out, K) @ (K, L_MAT),   K = kd*kh*kw*C_in  (zero-padded to k_pad)
    whose RHS is an im2col stack of lane-shifted windows.  The inter-layer
    activation stays in VMEM (bf16) already laid out as the next layer's padded
    input (pure lane offset; junk/halo lanes are zeroed via a precomputed mask).
    """
    n_layers = len(layers)
    idx = 0
    x_ref = refs[idx]; idx += 1
    w_refs, b_refs = [], []
    for _ in range(n_layers):
        w_refs.append(refs[idx]); idx += 1
        b_refs.append(refs[idx]); idx += 1
    mask_refs = []
    for _ in range(n_layers - 1):
        mask_refs.append(refs[idx]); idx += 1
    o_ref = refs[idx]; idx += 1
    stack_ref = refs[idx]; idx += 1
    act_ref = refs[idx] if n_layers > 1 else None

    # Zero-padded weight columns (K -> k_pad) must multiply finite values, and
    # the inter-layer buffer's halo region must be genuine zero padding.
    stack_ref[...] = jnp.zeros_like(stack_ref)
    if act_ref is not None:
        act_ref[...] = jnp.zeros_like(act_ref)

    for li, lp in enumerate(layers):
        c_in, c_out = lp["c_in"], lp["c_out"]
        src = x_ref if li == 0 else act_ref
        # im2col on the sublane/contraction axis: one lane-shifted window per
        # filter tap (static shifts), stacked along the matmul K dim.
        for t, shift in enumerate(lp["shifts"]):
            stack_ref[pl.ds(t * c_in, c_in), :] = src[pl.ds(0, c_in),
                                                      pl.ds(shift, L_MAT)]
        # One stacked matmul per layer: bf16 operands, f32 accumulation.
        acc = jnp.dot(w_refs[li][...], stack_ref[pl.ds(0, lp["k_pad"]), :],
                      preferred_element_type=jnp.float32)
        acc = _apply_activation(acc + b_refs[li][...], activation)
        if li < n_layers - 1:
            # Write as the next layer's padded input: a pure lane-offset store;
            # junk lanes (row/slice tails) become the zero halo.
            keep = mask_refs[li][...] != 0.0
            vals = jnp.where(keep, acc, 0.0).astype(act_ref.dtype)
            act_ref[pl.ds(0, c_out), pl.ds(lp["off_next"], L_MAT)] = vals
        else:
            o_ref[...] = acc.astype(o_ref.dtype)


def _conv_run(y, ws, bs, kss, pads, activation):
    """Run a sequence of geometry-compatible Conv3d layers in ONE pallas_call.

    y: (N, C_in, D, H, W)  ->  (N, C_out_last, Do, Ho, Wo)
    """
    n_layers = len(ws)
    N, C0, D, H, W = y.shape
    pd0, ph0, pw0 = pads[0]
    Dp, Hp, Wp = D + 2 * pd0, H + 2 * ph0, W + 2 * pw0
    HpWp = Hp * Wp

    # Static per-layer geometry.
    layers = []
    Di, Hi, Wi = D, H, W
    c_in = C0
    max_shift = 0
    max_k_pad = 0
    max_do_lanes = 0
    max_cmid = 1
    for li in range(n_layers):
        kd, kh, kw = kss[li]
        pd, ph, pw = pads[li]
        wt = ws[li]
        c_out = int(wt.shape[0])
        assert int(wt.shape[1]) == c_in, (wt.shape, c_in)
        # Geometry compatibility inside a run (guaranteed by the grouping loop).
        assert (Di + 2 * pd, Hi + 2 * ph, Wi + 2 * pw) == (Dp, Hp, Wp)
        Do, Ho, Wo = Dp - kd + 1, Hp - kh + 1, Wp - kw + 1
        assert Do > 0 and Ho > 0 and Wo > 0
        shifts = [jz * HpWp + jh * Wp + jw
                  for jz in range(kd) for jh in range(kh) for jw in range(kw)]
        K = kd * kh * kw * c_in
        k_pad = _round_up(K, 16)
        off_next = None
        if li + 1 < n_layers:
            pdn, phn, pwn = pads[li + 1]
            off_next = pdn * HpWp + phn * Wp + pwn
            max_cmid = max(max_cmid, c_out)
        layers.append(dict(c_in=c_in, c_out=c_out, K=K, k_pad=k_pad,
                           shifts=shifts, Do=Do, Ho=Ho, Wo=Wo,
                           off_next=off_next))
        max_shift = max(max_shift, shifts[-1])
        max_k_pad = max(max_k_pad, k_pad)
        max_do_lanes = max(max_do_lanes, Do * HpWp)
        c_in = c_out
        Di, Hi, Wi = Do, Ho, Wo

    # Lane geometry: matmul width is a multiple of 128 (lane-dense stores).
    L_MAT = _round_up(max_do_lanes, 128)
    X_LANES = _round_up(max(Dp * HpWp, max_shift + L_MAT), 128)
    c_last = layers[-1]["c_out"]
    Do_l, Ho_l, Wo_l = layers[-1]["Do"], layers[-1]["Ho"], layers[-1]["Wo"]

    # ---- wrapper-side layout plumbing (XLA, not compute) ----
    xp = jnp.pad(y, ((0, 0), (0, 0), (pd0, pd0), (ph0, ph0), (pw0, pw0)))
    xf = xp.reshape(N, C0, Dp * HpWp)
    xf = jnp.pad(xf, ((0, 0), (0, 0), (0, X_LANES - Dp * HpWp)))
    xf = xf.astype(jnp.bfloat16)

    operands = [xf]
    in_specs = [pl.BlockSpec((None, C0, X_LANES), lambda i: (i, 0, 0))]
    for li in range(n_layers):
        lp = layers[li]
        wt = ws[li]
        # (C_out, C_in, kd, kh, kw) -> (C_out, kd, kh, kw, C_in) -> (C_out, K),
        # matching the tap-major / channel-minor packing of the im2col stack.
        wf = jnp.transpose(wt, (0, 2, 3, 4, 1)).reshape(lp["c_out"], lp["K"])
        if lp["k_pad"] > lp["K"]:
            wf = jnp.pad(wf, ((0, 0), (0, lp["k_pad"] - lp["K"])))
        operands.append(wf.astype(jnp.bfloat16))
        in_specs.append(pl.BlockSpec((lp["c_out"], lp["k_pad"]),
                                     lambda i: (0, 0)))
        operands.append(bs[li].reshape(lp["c_out"], 1).astype(jnp.float32))
        in_specs.append(pl.BlockSpec((lp["c_out"], 1), lambda i: (0, 0)))

    # Junk-lane masks for intermediate layers (precomputed so the kernel does
    # no vector integer division).
    lane = jnp.arange(L_MAT)
    dz = lane // HpWp
    rem = lane - dz * HpWp
    hh = rem // Wp
    ww = rem - hh * Wp
    for li in range(n_layers - 1):
        lp = layers[li]
        m = (dz < lp["Do"]) & (hh < lp["Ho"]) & (ww < lp["Wo"])
        operands.append(m.astype(jnp.float32).reshape(1, L_MAT))
        in_specs.append(pl.BlockSpec((1, L_MAT), lambda i: (0, 0)))

    scratch_shapes = [pltpu.VMEM((max_k_pad, L_MAT), jnp.bfloat16)]
    if n_layers > 1:
        scratch_shapes.append(pltpu.VMEM((max_cmid, X_LANES), jnp.bfloat16))

    # VMEM budget guard (v7x: 64 MiB physical, ~32 MiB scoped default; input
    # and output blocks are double-buffered by the pipeline).
    vmem_bytes = (2 * C0 * X_LANES * 2                 # input block (bf16) x2
                  + 2 * c_last * L_MAT * 4             # output block (f32) x2
                  + max_k_pad * L_MAT * 2              # im2col scratch (bf16)
                  + (max_cmid * X_LANES * 2 if n_layers > 1 else 0)
                  + sum(l["c_out"] * (l["k_pad"] * 2 + 4) for l in layers)
                  + (n_layers - 1) * L_MAT * 4)
    assert vmem_bytes < 24 * 1024 * 1024, (
        f"per-sample VMEM footprint {vmem_bytes}B too large -- tile D/H")

    kern = functools.partial(_conv_run_kernel, layers=layers, L_MAT=L_MAT,
                             activation=activation)

    out = pl.pallas_call(
        kern,
        out_shape=jax.ShapeDtypeStruct((N, c_last, L_MAT), y.dtype),
        grid=(N,),
        in_specs=in_specs,
        out_specs=pl.BlockSpec((None, c_last, L_MAT), lambda i: (i, 0, 0)),
        scratch_shapes=scratch_shapes,
        compiler_params=pltpu.CompilerParams(
            dimension_semantics=("parallel",),
            vmem_limit_bytes=32 * 1024 * 1024),
    )(*operands)

    # Compact padded-stride lanes back to (Do, Ho, Wo): layout plumbing only.
    out = out[:, :, :Do_l * HpWp].reshape(N, c_last, Do_l, Hp, Wp)
    return out[:, :, :, :Ho_l, :Wo_l]


def conv_pass(x, weights, biases, kernel_sizes, padding, activation):
    """Equivalent of ConvPass(in_ch, out_ch, kernel_sizes, padding, act)(x).

    x: NCDHW float array; weights[i]: (C_out, C_in_i, kd, kh, kw); biases[i]: (C_out,).
    Consecutive layers with compatible padded geometry (the usual ConvPass
    config: odd kernels + 'same' padding) are fused into one pallas_call.
    """
    n_layers = len(weights)
    assert len(biases) == n_layers and len(kernel_sizes) == n_layers
    for ks in kernel_sizes:
        assert len(ks) == 3, "only 3-D kernels (Conv3d) are supported"
    if padding in ("SAME", "same"):
        # Matches the PyTorch module: numeric symmetric padding of k//2.
        pads = [tuple(int(k) // 2 for k in ks) for ks in kernel_sizes]
    elif padding in ("VALID", "valid"):
        pads = [(0, 0, 0)] * n_layers
    else:
        raise RuntimeError("invalid string value for padding")

    y = x
    i = 0
    while i < n_layers:
        N, C, D, H, W = y.shape
        pd, ph, pw = pads[i]
        Dp, Hp, Wp = D + 2 * pd, H + 2 * ph, W + 2 * pw
        kd, kh, kw = kernel_sizes[i]
        Do, Ho, Wo = Dp - kd + 1, Hp - kh + 1, Wp - kw + 1
        j = i + 1
        while j < n_layers:
            pdn, phn, pwn = pads[j]
            if (Do + 2 * pdn, Ho + 2 * phn, Wo + 2 * pwn) != (Dp, Hp, Wp):
                break
            kdn, khn, kwn = kernel_sizes[j]
            Do, Ho, Wo = Dp - kdn + 1, Hp - khn + 1, Wp - kwn + 1
            j += 1
        y = _conv_run(y, weights[i:j], biases[i:j], kernel_sizes[i:j],
                      pads[i:j], activation)
        i = j
    return y


def _reference(x, weights, biases, kernel_sizes, padding, activation):
    y = x
    for wt, b, ks in zip(weights, biases, kernel_sizes):
        if padding in ("SAME", "same"):
            pads = [(k // 2, k // 2) for k in ks]
        else:
            pads = [(0, 0)] * len(ks)
        y = lax.conv_general_dilated(
            y, wt, window_strides=(1, 1, 1), padding=pads,
            dimension_numbers=("NCDHW", "OIDHW", "NCDHW"),
            precision=lax.Precision.HIGHEST)
        y = y + b.reshape(1, -1, 1, 1, 1)
        if activation == "ReLU":
            y = jax.nn.relu(y)
        elif activation == "Sigmoid":
            y = jax.nn.sigmoid(y)
        elif activation == "Tanh":
            y = jnp.tanh(y)
    return y


if __name__ == "__main__":
    key = jax.random.PRNGKey(0)
    k_x, k_w1, k_b1, k_w2, k_b2 = jax.random.split(key, 5)

    # ConvPass(in_channels=4, out_channels=8, kernel_sizes=[(3,3,3),(3,3,3)],
    #          padding='same', activation='ReLU') at small shapes.
    N, C_in, C_out = 2, 4, 8
    D, H, W = 8, 16, 16
    kernel_sizes = [(3, 3, 3), (3, 3, 3)]

    x = jax.random.normal(k_x, (N, C_in, D, H, W), dtype=jnp.float32)
    w1 = 0.1 * jax.random.normal(k_w1, (C_out, C_in) + kernel_sizes[0], jnp.float32)
    b1 = 0.1 * jax.random.normal(k_b1, (C_out,), jnp.float32)
    w2 = 0.1 * jax.random.normal(k_w2, (C_out, C_out) + kernel_sizes[1], jnp.float32)
    b2 = 0.1 * jax.random.normal(k_b2, (C_out,), jnp.float32)
    weights, biases = [w1, w2], [b1, b2]

    # Fused path: both 'same'-padded layers in a single pallas_call.
    y = conv_pass(x, weights, biases, kernel_sizes, "same", "ReLU")
    y = jax.block_until_ready(y)
    y_ref = _reference(x, weights, biases, kernel_sizes, "same", "ReLU")
    assert y.shape == y_ref.shape == (N, C_out, D, H, W), y.shape
    err = float(jnp.max(jnp.abs(y - y_ref)))
    scale = float(jnp.max(jnp.abs(y_ref))) + 1e-6
    assert err / scale < 2e-2, (err, scale)

    # Single-layer 'valid' path (per-layer geometry, no fusion possible).
    yv = conv_pass(x, [w1], [b1], [kernel_sizes[0]], "valid", "ReLU")
    yv = jax.block_until_ready(yv)
    yv_ref = _reference(x, [w1], [b1], [kernel_sizes[0]], "valid", "ReLU")
    assert yv.shape == yv_ref.shape == (N, C_out, D - 2, H - 2, W - 2), yv.shape
    errv = float(jnp.max(jnp.abs(yv - yv_ref)))
    scalev = float(jnp.max(jnp.abs(yv_ref))) + 1e-6
    assert errv / scalev < 2e-2, (errv, scalev)

    print("KERNEL_OK")
</pallas_src>

<mosaic_0001>
module attributes {stable_mosaic.version = 11 : i64} {
  func.func @_conv_run_kernel(%arg0: i32, %arg1: memref<1x4x3456xbf16, #tpu.memory_space<vmem>>, %arg2: memref<8x112xbf16, #tpu.memory_space<vmem>>, %arg3: memref<8x1xf32, #tpu.memory_space<vmem>>, %arg4: memref<8x224xbf16, #tpu.memory_space<vmem>>, %arg5: memref<8x1xf32, #tpu.memory_space<vmem>>, %arg6: memref<1x2688xf32, #tpu.memory_space<vmem>>, %arg7: memref<1x8x2688xf32, #tpu.memory_space<vmem>>, %arg8: memref<224x2688xbf16, #tpu.memory_space<vmem>>, %arg9: memref<8x3456xbf16, #tpu.memory_space<vmem>>) attributes {dimension_semantics = [#tpu.dimension_semantics<parallel>], iteration_bounds = array<i64: 2>, scalar_prefetch = 0 : i64, scratch_operands = 2 : i64, tpu.core_type = #tpu.core_type<tc>, window_params = [{transform_indices = @transform_0, window_bounds = array<i64: 1, 4, 3456>}, {pipeline_mode = #tpu.pipeline_mode<synchronous>, transform_indices = @transform_1, window_bounds = array<i64: 8, 112>}, {pipeline_mode = #tpu.pipeline_mode<synchronous>, transform_indices = @transform_2, window_bounds = array<i64: 8, 1>}, {pipeline_mode = #tpu.pipeline_mode<synchronous>, transform_indices = @transform_3, window_bounds = array<i64: 8, 224>}, {pipeline_mode = #tpu.pipeline_mode<synchronous>, transform_indices = @transform_4, window_bounds = array<i64: 8, 1>}, {pipeline_mode = #tpu.pipeline_mode<synchronous>, transform_indices = @transform_5, window_bounds = array<i64: 1, 2688>}, {transform_indices = @transform_6, window_bounds = array<i64: 1, 8, 2688>}]} {
    %cst = arith.constant 0.000000e+00 : bf16
    %0 = vector.broadcast %cst : bf16 to vector<224x2688xbf16>
    %c0 = arith.constant 0 : index
    %c0_0 = arith.constant 0 : index
    %1 = vector.load %arg8[%c0, %c0_0] : memref<224x2688xbf16, #tpu.memory_space<vmem>>, vector<224x2688xbf16>
    tpu.vector_store %arg8[%c0, %c0_0], %0 {strides = array<i32>} : memref<224x2688xbf16, #tpu.memory_space<vmem>>, vector<224x2688xbf16>,
    %cst_1 = arith.constant 0.000000e+00 : bf16
    %2 = vector.broadcast %cst_1 : bf16 to vector<8x3456xbf16>
    %c0_2 = arith.constant 0 : index
    %c0_3 = arith.constant 0 : index
    %3 = vector.load %arg9[%c0_2, %c0_3] : memref<8x3456xbf16, #tpu.memory_space<vmem>>, vector<8x3456xbf16>
    tpu.vector_store %arg9[%c0_2, %c0_3], %2 {strides = array<i32>} : memref<8x3456xbf16, #tpu.memory_space<vmem>>, vector<8x3456xbf16>,
    %c0_4 = arith.constant 0 : index
    %c0_5 = arith.constant 0 : index
    %c0_6 = arith.constant 0 : index
    %4 = vector.load %arg1[%c0_4, %c0_5, %c0_6] : memref<1x4x3456xbf16, #tpu.memory_space<vmem>>, vector<1x4x2688xbf16>
    %5 = vector.shape_cast %4 : vector<1x4x2688xbf16> to vector<4x2688xbf16>
    %c0_7 = arith.constant 0 : index
    %c0_8 = arith.constant 0 : index
    %6 = vector.load %arg8[%c0_7, %c0_8] : memref<224x2688xbf16, #tpu.memory_space<vmem>>, vector<4x2688xbf16>
    tpu.vector_store %arg8[%c0_7, %c0_8], %5 {strides = array<i32>} : memref<224x2688xbf16, #tpu.memory_space<vmem>>, vector<4x2688xbf16>,
    %c0_9 = arith.constant 0 : index
    %c0_10 = arith.constant 0 : index
    %c1 = arith.constant 1 : index
    %7 = vector.load %arg1[%c0_9, %c0_10, %c1] : memref<1x4x3456xbf16, #tpu.memory_space<vmem>>, vector<1x4x2688xbf16>
    %8 = vector.shape_cast %7 : vector<1x4x2688xbf16> to vector<4x2688xbf16>
    %c4 = arith.constant 4 : index
    %c0_11 = arith.constant 0 : index
    %9 = vector.load %arg8[%c4, %c0_11] : memref<224x2688xbf16, #tpu.memory_space<vmem>>, vector<4x2688xbf16>
    tpu.vector_store %arg8[%c4, %c0_11], %8 {strides = array<i32>} : memref<224x2688xbf16, #tpu.memory_space<vmem>>, vector<4x2688xbf16>,
    %c0_12 = arith.constant 0 : index
    %c0_13 = arith.constant 0 : index
    %c2 = arith.constant 2 : index
    %10 = vector.load %arg1[%c0_12, %c0_13, %c2] : memref<1x4x3456xbf16, #tpu.memory_space<vmem>>, vector<1x4x2688xbf16>
    %11 = vector.shape_cast %10 : vector<1x4x2688xbf16> to vector<4x2688xbf16>
    %c8 = arith.constant 8 : index
    %c0_14 = arith.constant 0 : index
    %12 = vector.load %arg8[%c8, %c0_14] : memref<224x2688xbf16, #tpu.memory_space<vmem>>, vector<4x2688xbf16>
    tpu.vector_store %arg8[%c8, %c0_14], %11 {strides = array<i32>} : memref<224x2688xbf16, #tpu.memory_space<vmem>>, vector<4x2688xbf16>,
    %c0_15 = arith.constant 0 : index
    %c0_16 = arith.constant 0 : index
    %c18 = arith.constant 18 : index
    %13 = vector.load %arg1[%c0_15, %c0_16, %c18] : memref<1x4x3456xbf16, #tpu.memory_space<vmem>>, vector<1x4x2688xbf16>
    %14 = vector.shape_cast %13 : vector<1x4x2688xbf16> to vector<4x2688xbf16>
    %c12 = arith.constant 12 : index
    %c0_17 = arith.constant 0 : index
    %15 = vector.load %arg8[%c12, %c0_17] : memref<224x2688xbf16, #tpu.memory_space<vmem>>, vector<4x2688xbf16>
    tpu.vector_store %arg8[%c12, %c0_17], %14 {strides = array<i32>} : memref<224x2688xbf16, #tpu.memory_space<vmem>>, vector<4x2688xbf16>,
    %c0_18 = arith.constant 0 : index
    %c0_19 = arith.constant 0 : index
    %c19 = arith.constant 19 : index
    %16 = vector.load %arg1[%c0_18, %c0_19, %c19] : memref<1x4x3456xbf16, #tpu.memory_space<vmem>>, vector<1x4x2688xbf16>
    %17 = vector.shape_cast %16 : vector<1x4x2688xbf16> to vector<4x2688xbf16>
    %c16 = arith.constant 16 : index
    %c0_20 = arith.constant 0 : index
    %18 = vector.load %arg8[%c16, %c0_20] : memref<224x2688xbf16, #tpu.memory_space<vmem>>, vector<4x2688xbf16>
    tpu.vector_store %arg8[%c16, %c0_20], %17 {strides = array<i32>} : memref<224x2688xbf16, #tpu.memory_space<vmem>>, vector<4x2688xbf16>,
    %c0_21 = arith.constant 0 : index
    %c0_22 = arith.constant 0 : index
    %c20 = arith.constant 20 : index
    %19 = vector.load %arg1[%c0_21, %c0_22, %c20] : memref<1x4x3456xbf16, #tpu.memory_space<vmem>>, vector<1x4x2688xbf16>
    %20 = vector.shape_cast %19 : vector<1x4x2688xbf16> to vector<4x2688xbf16>
    %c20_23 = arith.constant 20 : index
    %c0_24 = arith.constant 0 : index
    %21 = vector.load %arg8[%c20_23, %c0_24] : memref<224x2688xbf16, #tpu.memory_space<vmem>>, vector<4x2688xbf16>
    tpu.vector_store %arg8[%c20_23, %c0_24], %20 {strides = array<i32>} : memref<224x2688xbf16, #tpu.memory_space<vmem>>, vector<4x2688xbf16>,
    %c0_25 = arith.constant 0 : index
    %c0_26 = arith.constant 0 : index
    %c36 = arith.constant 36 : index
    %22 = vector.load %arg1[%c0_25, %c0_26, %c36] : memref<1x4x3456xbf16, #tpu.memory_space<vmem>>, vector<1x4x2688xbf16>
    %23 = vector.shape_cast %22 : vector<1x4x2688xbf16> to vector<4x2688xbf16>
    %c24 = arith.constant 24 : index
    %c0_27 = arith.constant 0 : index
    %24 = vector.load %arg8[%c24, %c0_27] : memref<224x2688xbf16, #tpu.memory_space<vmem>>, vector<4x2688xbf16>
    tpu.vector_store %arg8[%c24, %c0_27], %23 {strides = array<i32>} : memref<224x2688xbf16, #tpu.memory_space<vmem>>, vector<4x2688xbf16>,
    %c0_28 = arith.constant 0 : index
    %c0_29 = arith.constant 0 : index
    %c37 = arith.constant 37 : index
    %25 = vector.load %arg1[%c0_28, %c0_29, %c37] : memref<1x4x3456xbf16, #tpu.memory_space<vmem>>, vector<1x4x2688xbf16>
    %26 = vector.shape_cast %25 : vector<1x4x2688xbf16> to vector<4x2688xbf16>
    %c28 = arith.constant 28 : index
    %c0_30 = arith.constant 0 : index
    %27 = vector.load %arg8[%c28, %c0_30] : memref<224x2688xbf16, #tpu.memory_space<vmem>>, vector<4x2688xbf16>
    tpu.vector_store %arg8[%c28, %c0_30], %26 {strides = array<i32>} : memref<224x2688xbf16, #tpu.memory_space<vmem>>, vector<4x2688xbf16>,
    %c0_31 = arith.constant 0 : index
    %c0_32 = arith.constant 0 : index
    %c38 = arith.constant 38 : index
    %28 = vector.load %arg1[%c0_31, %c0_32, %c38] : memref<1x4x3456xbf16, #tpu.memory_space<vmem>>, vector<1x4x2688xbf16>
    %29 = vector.shape_cast %28 : vector<1x4x2688xbf16> to vector<4x2688xbf16>
    %c32 = arith.constant 32 : index
    %c0_33 = arith.constant 0 : index
    %30 = vector.load %arg8[%c32, %c0_33] : memref<224x2688xbf16, #tpu.memory_space<vmem>>, vector<4x2688xbf16>
    tpu.vector_store %arg8[%c32, %c0_33], %29 {strides = array<i32>} : memref<224x2688xbf16, #tpu.memory_space<vmem>>, vector<4x2688xbf16>,
    %c0_34 = arith.constant 0 : index
    %c0_35 = arith.constant 0 : index
    %c324 = arith.constant 324 : index
    %31 = vector.load %arg1[%c0_34, %c0_35, %c324] : memref<1x4x3456xbf16, #tpu.memory_space<vmem>>, vector<1x4x2688xbf16>
    %32 = vector.shape_cast %31 : vector<1x4x2688xbf16> to vector<4x2688xbf16>
    %c36_36 = arith.constant 36 : index
    %c0_37 = arith.constant 0 : index
    %33 = vector.load %arg8[%c36_36, %c0_37] : memref<224x2688xbf16, #tpu.memory_space<vmem>>, vector<4x2688xbf16>
    tpu.vector_store %arg8[%c36_36, %c0_37], %32 {strides = array<i32>} : memref<224x2688xbf16, #tpu.memory_space<vmem>>, vector<4x2688xbf16>,
    %c0_38 = arith.constant 0 : index
    %c0_39 = arith.constant 0 : index
    %c325 = arith.constant 325 : index
    %34 = vector.load %arg1[%c0_38, %c0_39, %c325] : memref<1x4x3456xbf16, #tpu.memory_space<vmem>>, vector<1x4x2688xbf16>
    %35 = vector.shape_cast %34 : vector<1x4x2688xbf16> to vector<4x2688xbf16>
    %c40 = arith.constant 40 : index
    %c0_40 = arith.constant 0 : index
    %36 = vector.load %arg8[%c40, %c0_40] : memref<224x2688xbf16, #tpu.memory_space<vmem>>, vector<4x2688xbf16>
    tpu.vector_store %arg8[%c40, %c0_40], %35 {strides = array<i32>} : memref<224x2688xbf16, #tpu.memory_space<vmem>>, vector<4x2688xbf16>,
    %c0_41 = arith.constant 0 : index
    %c0_42 = arith.constant 0 : index
    %c326 = arith.constant 326 : index
    %37 = vector.load %arg1[%c0_41, %c0_42, %c326] : memref<1x4x3456xbf16, #tpu.memory_space<vmem>>, vector<1x4x2688xbf16>
    %38 = vector.shape_cast %37 : vector<1x4x2688xbf16> to vector<4x2688xbf16>
    %c44 = arith.constant 44 : index
    %c0_43 = arith.constant 0 : index
    %39 = vector.load %arg8[%c44, %c0_43] : memref<224x2688xbf16, #tpu.memory_space<vmem>>, vector<4x2688xbf16>
    tpu.vector_store %arg8[%c44, %c0_43], %38 {strides = array<i32>} : memref<224x2688xbf16, #tpu.memory_space<vmem>>, vector<4x2688xbf16>,
    %c0_44 = arith.constant 0 : index
    %c0_45 = arith.constant 0 : index
    %c342 = arith.constant 342 : index
    %40 = vector.load %arg1[%c0_44, %c0_45, %c342] : memref<1x4x3456xbf16, #tpu.memory_space<vmem>>, vector<1x4x2688xbf16>
    %41 = vector.shape_cast %40 : vector<1x4x2688xbf16> to vector<4x2688xbf16>
    %c48 = arith.constant 48 : index
    %c0_46 = arith.constant 0 : index
    %42 = vector.load %arg8[%c48, %c0_46] : memref<224x2688xbf16, #tpu.memory_space<vmem>>, vector<4x2688xbf16>
    tpu.vector_store %arg8[%c48, %c0_46], %41 {strides = array<i32>} : memref<224x2688xbf16, #tpu.memory_space<vmem>>, vector<4x2688xbf16>,
    %c0_47 = arith.constant 0 : index
    %c0_48 = arith.constant 0 : index
    %c343 = arith.constant 343 : index
    %43 = vector.load %arg1[%c0_47, %c0_48, %c343] : memref<1x4x3456xbf16, #tpu.memory_space<vmem>>, vector<1x4x2688xbf16>
    %44 = vector.shape_cast %43 : vector<1x4x2688xbf16> to vector<4x2688xbf16>
    %c52 = arith.constant 52 : index
    %c0_49 = arith.constant 0 : index
    %45 = vector.load %arg8[%c52, %c0_49] : memref<224x2688xbf16, #tpu.memory_space<vmem>>, vector<4x2688xbf16>
    tpu.vector_store %arg8[%c52, %c0_49], %44 {strides = array<i32>} : memref<224x2688xbf16, #tpu.memory_space<vmem>>, vector<4x2688xbf16>,
    %c0_50 = arith.constant 0 : index
    %c0_51 = arith.constant 0 : index
    %c344 = arith.constant 344 : index
    %46 = vector.load %arg1[%c0_50, %c0_51, %c344] : memref<1x4x3456xbf16, #tpu.memory_space<vmem>>, vector<1x4x2688xbf16>
    %47 = vector.shape_cast %46 : vector<1x4x2688xbf16> to vector<4x2688xbf16>
    %c56 = arith.constant 56 : index
    %c0_52 = arith.constant 0 : index
    %48 = vector.load %arg8[%c56, %c0_52] : memref<224x2688xbf16, #tpu.memory_space<vmem>>, vector<4x2688xbf16>
    tpu.vector_store %arg8[%c56, %c0_52], %47 {strides = array<i32>} : memref<224x2688xbf16, #tpu.memory_space<vmem>>, vector<4x2688xbf16>,
    %c0_53 = arith.constant 0 : index
    %c0_54 = arith.constant 0 : index
    %c360 = arith.constant 360 : index
    %49 = vector.load %arg1[%c0_53, %c0_54, %c360] : memref<1x4x3456xbf16, #tpu.memory_space<vmem>>, vector<1x4x2688xbf16>
    %50 = vector.shape_cast %49 : vector<1x4x2688xbf16> to vector<4x2688xbf16>
    %c60 = arith.constant 60 : index
    %c0_55 = arith.constant 0 : index
    %51 = vector.load %arg8[%c60, %c0_55] : memref<224x2688xbf16, #tpu.memory_space<vmem>>, vector<4x2688xbf16>
    tpu.vector_store %arg8[%c60, %c0_55], %50 {strides = array<i32>} : memref<224x2688xbf16, #tpu.memory_space<vmem>>, vector<4x2688xbf16>,
    %c0_56 = arith.constant 0 : index
    %c0_57 = arith.constant 0 : index
    %c361 = arith.constant 361 : index
    %52 = vector.load %arg1[%c0_56, %c0_57, %c361] : memref<1x4x3456xbf16, #tpu.memory_space<vmem>>, vector<1x4x2688xbf16>
    %53 = vector.shape_cast %52 : vector<1x4x2688xbf16> to vector<4x2688xbf16>
    %c64 = arith.constant 64 : index
    %c0_58 = arith.constant 0 : index
    %54 = vector.load %arg8[%c64, %c0_58] : memref<224x2688xbf16, #tpu.memory_space<vmem>>, vector<4x2688xbf16>
    tpu.vector_store %arg8[%c64, %c0_58], %53 {strides = array<i32>} : memref<224x2688xbf16, #tpu.memory_space<vmem>>, vector<4x2688xbf16>,
    %c0_59 = arith.constant 0 : index
    %c0_60 = arith.constant 0 : index
    %c362 = arith.constant 362 : index
    %55 = vector.load %arg1[%c0_59, %c0_60, %c362] : memref<1x4x3456xbf16, #tpu.memory_space<vmem>>, vector<1x4x2688xbf16>
    %56 = vector.shape_cast %55 : vector<1x4x2688xbf16> to vector<4x2688xbf16>
    %c68 = arith.constant 68 : index
    %c0_61 = arith.constant 0 : index
    %57 = vector.load %arg8[%c68, %c0_61] : memref<224x2688xbf16, #tpu.memory_space<vmem>>, vector<4x2688xbf16>
    tpu.vector_store %arg8[%c68, %c0_61], %56 {strides = array<i32>} : memref<224x2688xbf16, #tpu.memory_space<vmem>>, vector<4x2688xbf16>,
    %c0_62 = arith.constant 0 : index
    %c0_63 = arith.constant 0 : index
    %c648 = arith.constant 648 : index
    %58 = vector.load %arg1[%c0_62, %c0_63, %c648] : memref<1x4x3456xbf16, #tpu.memory_space<vmem>>, vector<1x4x2688xbf16>
    %59 = vector.shape_cast %58 : vector<1x4x2688xbf16> to vector<4x2688xbf16>
    %c72 = arith.constant 72 : index
    %c0_64 = arith.constant 0 : index
    %60 = vector.load %arg8[%c72, %c0_64] : memref<224x2688xbf16, #tpu.memory_space<vmem>>, vector<4x2688xbf16>
    tpu.vector_store %arg8[%c72, %c0_64], %59 {strides = array<i32>} : memref<224x2688xbf16, #tpu.memory_space<vmem>>, vector<4x2688xbf16>,
    %c0_65 = arith.constant 0 : index
    %c0_66 = arith.constant 0 : index
    %c649 = arith.constant 649 : index
    %61 = vector.load %arg1[%c0_65, %c0_66, %c649] : memref<1x4x3456xbf16, #tpu.memory_space<vmem>>, vector<1x4x2688xbf16>
    %62 = vector.shape_cast %61 : vector<1x4x2688xbf16> to vector<4x2688xbf16>
    %c76 = arith.constant 76 : index
    %c0_67 = arith.constant 0 : index
    %63 = vector.load %arg8[%c76, %c0_67] : memref<224x2688xbf16, #tpu.memory_space<vmem>>, vector<4x2688xbf16>
    tpu.vector_store %arg8[%c76, %c0_67], %62 {strides = array<i32>} : memref<224x2688xbf16, #tpu.memory_space<vmem>>, vector<4x2688xbf16>,
    %c0_68 = arith.constant 0 : index
    %c0_69 = arith.constant 0 : index
    %c650 = arith.constant 650 : index
    %64 = vector.load %arg1[%c0_68, %c0_69, %c650] : memref<1x4x3456xbf16, #tpu.memory_space<vmem>>, vector<1x4x2688xbf16>
    %65 = vector.shape_cast %64 : vector<1x4x2688xbf16> to vector<4x2688xbf16>
    %c80 = arith.constant 80 : index
    %c0_70 = arith.constant 0 : index
    %66 = vector.load %arg8[%c80, %c0_70] : memref<224x2688xbf16, #tpu.memory_space<vmem>>, vector<4x2688xbf16>
    tpu.vector_store %arg8[%c80, %c0_70], %65 {strides = array<i32>} : memref<224x2688xbf16, #tpu.memory_space<vmem>>, vector<4x2688xbf16>,
    %c0_71 = arith.constant 0 : index
    %c0_72 = arith.constant 0 : index
    %c666 = arith.constant 666 : index
    %67 = vector.load %arg1[%c0_71, %c0_72, %c666] : memref<1x4x3456xbf16, #tpu.memory_space<vmem>>, vector<1x4x2688xbf16>
    %68 = vector.shape_cast %67 : vector<1x4x2688xbf16> to vector<4x2688xbf16>
    %c84 = arith.constant 84 : index
    %c0_73 = arith.constant 0 : index
    %69 = vector.load %arg8[%c84, %c0_73] : memref<224x2688xbf16, #tpu.memory_space<vmem>>, vector<4x2688xbf16>
    tpu.vector_store %arg8[%c84, %c0_73], %68 {strides = array<i32>} : memref<224x2688xbf16, #tpu.memory_space<vmem>>, vector<4x2688xbf16>,
    %c0_74 = arith.constant 0 : index
    %c0_75 = arith.constant 0 : index
    %c667 = arith.constant 667 : index
    %70 = vector.load %arg1[%c0_74, %c0_75, %c667] : memref<1x4x3456xbf16, #tpu.memory_space<vmem>>, vector<1x4x2688xbf16>
    %71 = vector.shape_cast %70 : vector<1x4x2688xbf16> to vector<4x2688xbf16>
    %c88 = arith.constant 88 : index
    %c0_76 = arith.constant 0 : index
    %72 = vector.load %arg8[%c88, %c0_76] : memref<224x2688xbf16, #tpu.memory_space<vmem>>, vector<4x2688xbf16>
    tpu.vector_store %arg8[%c88, %c0_76], %71 {strides = array<i32>} : memref<224x2688xbf16, #tpu.memory_space<vmem>>, vector<4x2688xbf16>,
    %c0_77 = arith.constant 0 : index
    %c0_78 = arith.constant 0 : index
    %c668 = arith.constant 668 : index
    %73 = vector.load %arg1[%c0_77, %c0_78, %c668] : memref<1x4x3456xbf16, #tpu.memory_space<vmem>>, vector<1x4x2688xbf16>
    %74 = vector.shape_cast %73 : vector<1x4x2688xbf16> to vector<4x2688xbf16>
    %c92 = arith.constant 92 : index
    %c0_79 = arith.constant 0 : index
    %75 = vector.load %arg8[%c92, %c0_79] : memref<224x2688xbf16, #tpu.memory_space<vmem>>, vector<4x2688xbf16>
    tpu.vector_store %arg8[%c92, %c0_79], %74 {strides = array<i32>} : memref<224x2688xbf16, #tpu.memory_space<vmem>>, vector<4x2688xbf16>,
    %c0_80 = arith.constant 0 : index
    %c0_81 = arith.constant 0 : index
    %c684 = arith.constant 684 : index
    %76 = vector.load %arg1[%c0_80, %c0_81, %c684] : memref<1x4x3456xbf16, #tpu.memory_space<vmem>>, vector<1x4x2688xbf16>
    %77 = vector.shape_cast %76 : vector<1x4x2688xbf16> to vector<4x2688xbf16>
    %c96 = arith.constant 96 : index
    %c0_82 = arith.constant 0 : index
    %78 = vector.load %arg8[%c96, %c0_82] : memref<224x2688xbf16, #tpu.memory_space<vmem>>, vector<4x2688xbf16>
    tpu.vector_store %arg8[%c96, %c0_82], %77 {strides = array<i32>} : memref<224x2688xbf16, #tpu.memory_space<vmem>>, vector<4x2688xbf16>,
    %c0_83 = arith.constant 0 : index
    %c0_84 = arith.constant 0 : index
    %c685 = arith.constant 685 : index
    %79 = vector.load %arg1[%c0_83, %c0_84, %c685] : memref<1x4x3456xbf16, #tpu.memory_space<vmem>>, vector<1x4x2688xbf16>
    %80 = vector.shape_cast %79 : vector<1x4x2688xbf16> to vector<4x2688xbf16>
    %c100 = arith.constant 100 : index
    %c0_85 = arith.constant 0 : index
    %81 = vector.load %arg8[%c100, %c0_85] : memref<224x2688xbf16, #tpu.memory_space<vmem>>, vector<4x2688xbf16>
    tpu.vector_store %arg8[%c100, %c0_85], %80 {strides = array<i32>} : memref<224x2688xbf16, #tpu.memory_space<vmem>>, vector<4x2688xbf16>,
    %c0_86 = arith.constant 0 : index
    %c0_87 = arith.constant 0 : index
    %c686 = arith.constant 686 : index
    %82 = vector.load %arg1[%c0_86, %c0_87, %c686] : memref<1x4x3456xbf16, #tpu.memory_space<vmem>>, vector<1x4x2688xbf16>
    %83 = vector.shape_cast %82 : vector<1x4x2688xbf16> to vector<4x2688xbf16>
    %c104 = arith.constant 104 : index
    %c0_88 = arith.constant 0 : index
    %84 = vector.load %arg8[%c104, %c0_88] : memref<224x2688xbf16, #tpu.memory_space<vmem>>, vector<4x2688xbf16>
    tpu.vector_store %arg8[%c104, %c0_88], %83 {strides = array<i32>} : memref<224x2688xbf16, #tpu.memory_space<vmem>>, vector<4x2688xbf16>,
    %c0_89 = arith.constant 0 : index
    %c0_90 = arith.constant 0 : index
    %85 = vector.load %arg2[%c0_89, %c0_90] : memref<8x112xbf16, #tpu.memory_space<vmem>>, vector<8x112xbf16>
    %c0_91 = arith.constant 0 : index
    %c0_92 = arith.constant 0 : index
    %86 = vector.load %arg8[%c0_91, %c0_92] : memref<224x2688xbf16, #tpu.memory_space<vmem>>, vector<112x2688xbf16>
    %cst_93 = arith.constant dense<0.000000e+00> : vector<8x2688xf32>
    %87 = tpu.matmul %85, %86, %cst_93 {dimension_numbers = #tpu.dot_dimension_numbers<[1], [0], [0], [1], [0, 0, 1, 1], [], []>} : vector<8x112xbf16>, vector<112x2688xbf16>, vector<8x2688xf32> -> vector<8x2688xf32>
    %c0_94 = arith.constant 0 : index
    %c0_95 = arith.constant 0 : index
    %88 = vector.load %arg3[%c0_94, %c0_95] : memref<8x1xf32, #tpu.memory_space<vmem>>, vector<8x1xf32>
    %89 = vector.broadcast %88 : vector<8x1xf32> to vector<8x2688xf32>
    %90 = arith.addf %87, %89 : vector<8x2688xf32>
    %cst_96 = arith.constant 0.000000e+00 : f32
    %91 = vector.broadcast %cst_96 : f32 to vector<8x2688xf32>
    %92 = arith.maximumf %90, %91 : vector<8x2688xf32>
    %c0_97 = arith.constant 0 : index
    %c0_98 = arith.constant 0 : index
    %93 = vector.load %arg6[%c0_97, %c0_98] : memref<1x2688xf32, #tpu.memory_space<vmem>>, vector<1x2688xf32>
    %cst_99 = arith.constant 0.000000e+00 : f32
    %94 = vector.broadcast %cst_99 : f32 to vector<1x2688xf32>
    %95 = arith.cmpf one, %93, %94 : vector<1x2688xf32>
    %cst_100 = arith.constant 0.000000e+00 : f32
    %96 = vector.shape_cast %95 : vector<1x2688xi1> to vector<1x2688xi1>
    %97 = vector.broadcast %96 : vector<1x2688xi1> to vector<8x2688xi1>
    %98 = vector.broadcast %cst_100 : f32 to vector<8x2688xf32>
    %99 = arith.select %97, %92, %98 : vector<8x2688xi1>, vector<8x2688xf32>
    %100 = arith.truncf %99 : vector<8x2688xf32> to vector<8x2688xbf16>
    %c0_101 = arith.constant 0 : index
    %c343_102 = arith.constant 343 : index
    %101 = vector.load %arg9[%c0_101, %c343_102] : memref<8x3456xbf16, #tpu.memory_space<vmem>>, vector<8x2688xbf16>
    tpu.vector_store %arg9[%c0_101, %c343_102], %100 {strides = array<i32>} : memref<8x3456xbf16, #tpu.memory_space<vmem>>, vector<8x2688xbf16>,
    %c0_103 = arith.constant 0 : index
    %c0_104 = arith.constant 0 : index
    %102 = vector.load %arg9[%c0_103, %c0_104] : memref<8x3456xbf16, #tpu.memory_space<vmem>>, vector<8x2688xbf16>
    %c0_105 = arith.constant 0 : index
    %c0_106 = arith.constant 0 : index
    %103 = vector.load %arg8[%c0_105, %c0_106] : memref<224x2688xbf16, #tpu.memory_space<vmem>>, vector<8x2688xbf16>
    tpu.vector_store %arg8[%c0_105, %c0_106], %102 {strides = array<i32>} : memref<224x2688xbf16, #tpu.memory_space<vmem>>, vector<8x2688xbf16>,
    %c0_107 = arith.constant 0 : index
    %c1_108 = arith.constant 1 : index
    %104 = vector.load %arg9[%c0_107, %c1_108] : memref<8x3456xbf16, #tpu.memory_space<vmem>>, vector<8x2688xbf16>
    %c8_109 = arith.constant 8 : index
    %c0_110 = arith.constant 0 : index
    %105 = vector.load %arg8[%c8_109, %c0_110] : memref<224x2688xbf16, #tpu.memory_space<vmem>>, vector<8x2688xbf16>
    tpu.vector_store %arg8[%c8_109, %c0_110], %104 {strides = array<i32>} : memref<224x2688xbf16, #tpu.memory_space<vmem>>, vector<8x2688xbf16>,
    %c0_111 = arith.constant 0 : index
    %c2_112 = arith.constant 2 : index
    %106 = vector.load %arg9[%c0_111, %c2_112] : memref<8x3456xbf16, #tpu.memory_space<vmem>>, vector<8x2688xbf16>
    %c16_113 = arith.constant 16 : index
    %c0_114 = arith.constant 0 : index
    %107 = vector.load %arg8[%c16_113, %c0_114] : memref<224x2688xbf16, #tpu.memory_space<vmem>>, vector<8x2688xbf16>
    tpu.vector_store %arg8[%c16_113, %c0_114], %106 {strides = array<i32>} : memref<224x2688xbf16, #tpu.memory_space<vmem>>, vector<8x2688xbf16>,
    %c0_115 = arith.constant 0 : index
    %c18_116 = arith.constant 18 : index
    %108 = vector.load %arg9[%c0_115, %c18_116] : memref<8x3456xbf16, #tpu.memory_space<vmem>>, vector<8x2688xbf16>
    %c24_117 = arith.constant 24 : index
    %c0_118 = arith.constant 0 : index
    %109 = vector.load %arg8[%c24_117, %c0_118] : memref<224x2688xbf16, #tpu.memory_space<vmem>>, vector<8x2688xbf16>
    tpu.vector_store %arg8[%c24_117, %c0_118], %108 {strides = array<i32>} : memref<224x2688xbf16, #tpu.memory_space<vmem>>, vector<8x2688xbf16>,
    %c0_119 = arith.constant 0 : index
    %c19_120 = arith.constant 19 : index
    %110 = vector.load %arg9[%c0_119, %c19_120] : memref<8x3456xbf16, #tpu.memory_space<vmem>>, vector<8x2688xbf16>
    %c32_121 = arith.constant 32 : index
    %c0_122 = arith.constant 0 : index
    %111 = vector.load %arg8[%c32_121, %c0_122] : memref<224x2688xbf16, #tpu.memory_space<vmem>>, vector<8x2688xbf16>
    tpu.vector_store %arg8[%c32_121, %c0_122], %110 {strides = array<i32>} : memref<224x2688xbf16, #tpu.memory_space<vmem>>, vector<8x2688xbf16>,
    %c0_123 = arith.constant 0 : index
    %c20_124 = arith.constant 20 : index
    %112 = vector.load %arg9[%c0_123, %c20_124] : memref<8x3456xbf16, #tpu.memory_space<vmem>>, vector<8x2688xbf16>
    %c40_125 = arith.constant 40 : index
    %c0_126 = arith.constant 0 : index
    %113 = vector.load %arg8[%c40_125, %c0_126] : memref<224x2688xbf16, #tpu.memory_space<vmem>>, vector<8x2688xbf16>
    tpu.vector_store %arg8[%c40_125, %c0_126], %112 {strides = array<i32>} : memref<224x2688xbf16, #tpu.memory_space<vmem>>, vector<8x2688xbf16>,
    %c0_127 = arith.constant 0 : index
    %c36_128 = arith.constant 36 : index
    %114 = vector.load %arg9[%c0_127, %c36_128] : memref<8x3456xbf16, #tpu.memory_space<vmem>>, vector<8x2688xbf16>
    %c48_129 = arith.constant 48 : index
    %c0_130 = arith.constant 0 : index
    %115 = vector.load %arg8[%c48_129, %c0_130] : memref<224x2688xbf16, #tpu.memory_space<vmem>>, vector<8x2688xbf16>
    tpu.vector_store %arg8[%c48_129, %c0_130], %114 {strides = array<i32>} : memref<224x2688xbf16, #tpu.memory_space<vmem>>, vector<8x2688xbf16>,
    %c0_131 = arith.constant 0 : index
    %c37_132 = arith.constant 37 : index
    %116 = vector.load %arg9[%c0_131, %c37_132] : memref<8x3456xbf16, #tpu.memory_space<vmem>>, vector<8x2688xbf16>
    %c56_133 = arith.constant 56 : index
    %c0_134 = arith.constant 0 : index
    %117 = vector.load %arg8[%c56_133, %c0_134] : memref<224x2688xbf16, #tpu.memory_space<vmem>>, vector<8x2688xbf16>
    tpu.vector_store %arg8[%c56_133, %c0_134], %116 {strides = array<i32>} : memref<224x2688xbf16, #tpu.memory_space<vmem>>, vector<8x2688xbf16>,
    %c0_135 = arith.constant 0 : index
    %c38_136 = arith.constant 38 : index
    %118 = vector.load %arg9[%c0_135, %c38_136] : memref<8x3456xbf16, #tpu.memory_space<vmem>>, vector<8x2688xbf16>
    %c64_137 = arith.constant 64 : index
    %c0_138 = arith.constant 0 : index
    %119 = vector.load %arg8[%c64_137, %c0_138] : memref<224x2688xbf16, #tpu.memory_space<vmem>>, vector<8x2688xbf16>
    tpu.vector_store %arg8[%c64_137, %c0_138], %118 {strides = array<i32>} : memref<224x2688xbf16, #tpu.memory_space<vmem>>, vector<8x2688xbf16>,
    %c0_139 = arith.constant 0 : index
    %c324_140 = arith.constant 324 : index
    %120 = vector.load %arg9[%c0_139, %c324_140] : memref<8x3456xbf16, #tpu.memory_space<vmem>>, vector<8x2688xbf16>
    %c72_141 = arith.constant 72 : index
    %c0_142 = arith.constant 0 : index
    %121 = vector.load %arg8[%c72_141, %c0_142] : memref<224x2688xbf16, #tpu.memory_space<vmem>>, vector<8x2688xbf16>
    tpu.vector_store %arg8[%c72_141, %c0_142], %120 {strides = array<i32>} : memref<224x2688xbf16, #tpu.memory_space<vmem>>, vector<8x2688xbf16>,
    %c0_143 = arith.constant 0 : index
    %c325_144 = arith.constant 325 : index
    %122 = vector.load %arg9[%c0_143, %c325_144] : memref<8x3456xbf16, #tpu.memory_space<vmem>>, vector<8x2688xbf16>
    %c80_145 = arith.constant 80 : index
    %c0_146 = arith.constant 0 : index
    %123 = vector.load %arg8[%c80_145, %c0_146] : memref<224x2688xbf16, #tpu.memory_space<vmem>>, vector<8x2688xbf16>
    tpu.vector_store %arg8[%c80_145, %c0_146], %122 {strides = array<i32>} : memref<224x2688xbf16, #tpu.memory_space<vmem>>, vector<8x2688xbf16>,
    %c0_147 = arith.constant 0 : index
    %c326_148 = arith.constant 326 : index
    %124 = vector.load %arg9[%c0_147, %c326_148] : memref<8x3456xbf16, #tpu.memory_space<vmem>>, vector<8x2688xbf16>
    %c88_149 = arith.constant 88 : index
    %c0_150 = arith.constant 0 : index
    %125 = vector.load %arg8[%c88_149, %c0_150] : memref<224x2688xbf16, #tpu.memory_space<vmem>>, vector<8x2688xbf16>
    tpu.vector_store %arg8[%c88_149, %c0_150], %124 {strides = array<i32>} : memref<224x2688xbf16, #tpu.memory_space<vmem>>, vector<8x2688xbf16>,
    %c0_151 = arith.constant 0 : index
    %c342_152 = arith.constant 342 : index
    %126 = vector.load %arg9[%c0_151, %c342_152] : memref<8x3456xbf16, #tpu.memory_space<vmem>>, vector<8x2688xbf16>
    %c96_153 = arith.constant 96 : index
    %c0_154 = arith.constant 0 : index
    %127 = vector.load %arg8[%c96_153, %c0_154] : memref<224x2688xbf16, #tpu.memory_space<vmem>>, vector<8x2688xbf16>
    tpu.vector_store %arg8[%c96_153, %c0_154], %126 {strides = array<i32>} : memref<224x2688xbf16, #tpu.memory_space<vmem>>, vector<8x2688xbf16>,
    %c0_155 = arith.constant 0 : index
    %c343_156 = arith.constant 343 : index
    %128 = vector.load %arg9[%c0_155, %c343_156] : memref<8x3456xbf16, #tpu.memory_space<vmem>>, vector<8x2688xbf16>
    %c104_157 = arith.constant 104 : index
    %c0_158 = arith.constant 0 : index
    %129 = vector.load %arg8[%c104_157, %c0_158] : memref<224x2688xbf16, #tpu.memory_space<vmem>>, vector<8x2688xbf16>
    tpu.vector_store %arg8[%c104_157, %c0_158], %128 {strides = array<i32>} : memref<224x2688xbf16, #tpu.memory_space<vmem>>, vector<8x2688xbf16>,
    %c0_159 = arith.constant 0 : index
    %c344_160 = arith.constant 344 : index
    %130 = vector.load %arg9[%c0_159, %c344_160] : memref<8x3456xbf16, #tpu.memory_space<vmem>>, vector<8x2688xbf16>
    %c112 = arith.constant 112 : index
    %c0_161 = arith.constant 0 : index
    %131 = vector.load %arg8[%c112, %c0_161] : memref<224x2688xbf16, #tpu.memory_space<vmem>>, vector<8x2688xbf16>
    tpu.vector_store %arg8[%c112, %c0_161], %130 {strides = array<i32>} : memref<224x2688xbf16, #tpu.memory_space<vmem>>, vector<8x2688xbf16>,
    %c0_162 = arith.constant 0 : index
    %c360_163 = arith.constant 360 : index
    %132 = vector.load %arg9[%c0_162, %c360_163] : memref<8x3456xbf16, #tpu.memory_space<vmem>>, vector<8x2688xbf16>
    %c120 = arith.constant 120 : index
    %c0_164 = arith.constant 0 : index
    %133 = vector.load %arg8[%c120, %c0_164] : memref<224x2688xbf16, #tpu.memory_space<vmem>>, vector<8x2688xbf16>
    tpu.vector_store %arg8[%c120, %c0_164], %132 {strides = array<i32>} : memref<224x2688xbf16, #tpu.memory_space<vmem>>, vector<8x2688xbf16>,
    %c0_165 = arith.constant 0 : index
    %c361_166 = arith.constant 361 : index
    %134 = vector.load %arg9[%c0_165, %c361_166] : memref<8x3456xbf16, #tpu.memory_space<vmem>>, vector<8x2688xbf16>
    %c128 = arith.constant 128 : index
    %c0_167 = arith.constant 0 : index
    %135 = vector.load %arg8[%c128, %c0_167] : memref<224x2688xbf16, #tpu.memory_space<vmem>>, vector<8x2688xbf16>
    tpu.vector_store %arg8[%c128, %c0_167], %134 {strides = array<i32>} : memref<224x2688xbf16, #tpu.memory_space<vmem>>, vector<8x2688xbf16>,
    %c0_168 = arith.constant 0 : index
    %c362_169 = arith.constant 362 : index
    %136 = vector.load %arg9[%c0_168, %c362_169] : memref<8x3456xbf16, #tpu.memory_space<vmem>>, vector<8x2688xbf16>
    %c136 = arith.constant 136 : index
    %c0_170 = arith.constant 0 : index
    %137 = vector.load %arg8[%c136, %c0_170] : memref<224x2688xbf16, #tpu.memory_space<vmem>>, vector<8x2688xbf16>
    tpu.vector_store %arg8[%c136, %c0_170], %136 {strides = array<i32>} : memref<224x2688xbf16, #tpu.memory_space<vmem>>, vector<8x2688xbf16>,
    %c0_171 = arith.constant 0 : index
    %c648_172 = arith.constant 648 : index
    %138 = vector.load %arg9[%c0_171, %c648_172] : memref<8x3456xbf16, #tpu.memory_space<vmem>>, vector<8x2688xbf16>
    %c144 = arith.constant 144 : index
    %c0_173 = arith.constant 0 : index
    %139 = vector.load %arg8[%c144, %c0_173] : memref<224x2688xbf16, #tpu.memory_space<vmem>>, vector<8x2688xbf16>
    tpu.vector_store %arg8[%c144, %c0_173], %138 {strides = array<i32>} : memref<224x2688xbf16, #tpu.memory_space<vmem>>, vector<8x2688xbf16>,
    %c0_174 = arith.constant 0 : index
    %c649_175 = arith.constant 649 : index
    %140 = vector.load %arg9[%c0_174, %c649_175] : memref<8x3456xbf16, #tpu.memory_space<vmem>>, vector<8x2688xbf16>
    %c152 = arith.constant 152 : index
    %c0_176 = arith.constant 0 : index
    %141 = vector.load %arg8[%c152, %c0_176] : memref<224x2688xbf16, #tpu.memory_space<vmem>>, vector<8x2688xbf16>
    tpu.vector_store %arg8[%c152, %c0_176], %140 {strides = array<i32>} : memref<224x2688xbf16, #tpu.memory_space<vmem>>, vector<8x2688xbf16>,
    %c0_177 = arith.constant 0 : index
    %c650_178 = arith.constant 650 : index
    %142 = vector.load %arg9[%c0_177, %c650_178] : memref<8x3456xbf16, #tpu.memory_space<vmem>>, vector<8x2688xbf16>
    %c160 = arith.constant 160 : index
    %c0_179 = arith.constant 0 : index
    %143 = vector.load %arg8[%c160, %c0_179] : memref<224x2688xbf16, #tpu.memory_space<vmem>>, vector<8x2688xbf16>
    tpu.vector_store %arg8[%c160, %c0_179], %142 {strides = array<i32>} : memref<224x2688xbf16, #tpu.memory_space<vmem>>, vector<8x2688xbf16>,
    %c0_180 = arith.constant 0 : index
    %c666_181 = arith.constant 666 : index
    %144 = vector.load %arg9[%c0_180, %c666_181] : memref<8x3456xbf16, #tpu.memory_space<vmem>>, vector<8x2688xbf16>
    %c168 = arith.constant 168 : index
    %c0_182 = arith.constant 0 : index
    %145 = vector.load %arg8[%c168, %c0_182] : memref<224x2688xbf16, #tpu.memory_space<vmem>>, vector<8x2688xbf16>
    tpu.vector_store %arg8[%c168, %c0_182], %144 {strides = array<i32>} : memref<224x2688xbf16, #tpu.memory_space<vmem>>, vector<8x2688xbf16>,
    %c0_183 = arith.constant 0 : index
    %c667_184 = arith.constant 667 : index
    %146 = vector.load %arg9[%c0_183, %c667_184] : memref<8x3456xbf16, #tpu.memory_space<vmem>>, vector<8x2688xbf16>
    %c176 = arith.constant 176 : index
    %c0_185 = arith.constant 0 : index
    %147 = vector.load %arg8[%c176, %c0_185] : memref<224x2688xbf16, #tpu.memory_space<vmem>>, vector<8x2688xbf16>
    tpu.vector_store %arg8[%c176, %c0_185], %146 {strides = array<i32>} : memref<224x2688xbf16, #tpu.memory_space<vmem>>, vector<8x2688xbf16>,
    %c0_186 = arith.constant 0 : index
    %c668_187 = arith.constant 668 : index
    %148 = vector.load %arg9[%c0_186, %c668_187] : memref<8x3456xbf16, #tpu.memory_space<vmem>>, vector<8x2688xbf16>
    %c184 = arith.constant 184 : index
    %c0_188 = arith.constant 0 : index
    %149 = vector.load %arg8[%c184, %c0_188] : memref<224x2688xbf16, #tpu.memory_space<vmem>>, vector<8x2688xbf16>
    tpu.vector_store %arg8[%c184, %c0_188], %148 {strides = array<i32>} : memref<224x2688xbf16, #tpu.memory_space<vmem>>, vector<8x2688xbf16>,
    %c0_189 = arith.constant 0 : index
    %c684_190 = arith.constant 684 : index
    %150 = vector.load %arg9[%c0_189, %c684_190] : memref<8x3456xbf16, #tpu.memory_space<vmem>>, vector<8x2688xbf16>
    %c192 = arith.constant 192 : index
    %c0_191 = arith.constant 0 : index
    %151 = vector.load %arg8[%c192, %c0_191] : memref<224x2688xbf16, #tpu.memory_space<vmem>>, vector<8x2688xbf16>
    tpu.vector_store %arg8[%c192, %c0_191], %150 {strides = array<i32>} : memref<224x2688xbf16, #tpu.memory_space<vmem>>, vector<8x2688xbf16>,
    %c0_192 = arith.constant 0 : index
    %c685_193 = arith.constant 685 : index
    %152 = vector.load %arg9[%c0_192, %c685_193] : memref<8x3456xbf16, #tpu.memory_space<vmem>>, vector<8x2688xbf16>
    %c200 = arith.constant 200 : index
    %c0_194 = arith.constant 0 : index
    %153 = vector.load %arg8[%c200, %c0_194] : memref<224x2688xbf16, #tpu.memory_space<vmem>>, vector<8x2688xbf16>
    tpu.vector_store %arg8[%c200, %c0_194], %152 {strides = array<i32>} : memref<224x2688xbf16, #tpu.memory_space<vmem>>, vector<8x2688xbf16>,
    %c0_195 = arith.constant 0 : index
    %c686_196 = arith.constant 686 : index
    %154 = vector.load %arg9[%c0_195, %c686_196] : memref<8x3456xbf16, #tpu.memory_space<vmem>>, vector<8x2688xbf16>
    %c208 = arith.constant 208 : index
    %c0_197 = arith.constant 0 : index
    %155 = vector.load %arg8[%c208, %c0_197] : memref<224x2688xbf16, #tpu.memory_space<vmem>>, vector<8x2688xbf16>
    tpu.vector_store %arg8[%c208, %c0_197], %154 {strides = array<i32>} : memref<224x2688xbf16, #tpu.memory_space<vmem>>, vector<8x2688xbf16>,
    %c0_198 = arith.constant 0 : index
    %c0_199 = arith.constant 0 : index
    %156 = vector.load %arg4[%c0_198, %c0_199] : memref<8x224xbf16, #tpu.memory_space<vmem>>, vector<8x224xbf16>
    %c0_200 = arith.constant 0 : index
    %c0_201 = arith.constant 0 : index
    %157 = vector.load %arg8[%c0_200, %c0_201] : memref<224x2688xbf16, #tpu.memory_space<vmem>>, vector<224x2688xbf16>
    %cst_202 = arith.constant dense<0.000000e+00> : vector<8x2688xf32>
    %158 = tpu.matmul %156, %157, %cst_202 {dimension_numbers = #tpu.dot_dimension_numbers<[1], [0], [0], [1], [0, 0, 1, 1], [], []>} : vector<8x224xbf16>, vector<224x2688xbf16>, vector<8x2688xf32> -> vector<8x2688xf32>
    %c0_203 = arith.constant 0 : index
    %c0_204 = arith.constant 0 : index
    %159 = vector.load %arg5[%c0_203, %c0_204] : memref<8x1xf32, #tpu.memory_space<vmem>>, vector<8x1xf32>
    %160 = vector.broadcast %159 : vector<8x1xf32> to vector<8x2688xf32>
    %161 = arith.addf %158, %160 : vector<8x2688xf32>
    %cst_205 = arith.constant 0.000000e+00 : f32
    %162 = vector.broadcast %cst_205 : f32 to vector<8x2688xf32>
    %163 = arith.maximumf %161, %162 : vector<8x2688xf32>
    %c0_206 = arith.constant 0 : index
    %c0_207 = arith.constant 0 : index
    %c0_208 = arith.constant 0 : index
    %164 = vector.load %arg7[%c0_206, %c0_207, %c0_208] : memref<1x8x2688xf32, #tpu.memory_space<vmem>>, vector<1x8x2688xf32>
    %165 = vector.shape_cast %164 : vector<1x8x2688xf32> to vector<8x2688xf32>
    %166 = vector.shape_cast %163 : vector<8x2688xf32> to vector<1x8x2688xf32>
    tpu.vector_store %arg7[%c0_206, %c0_207, %c0_208], %166 {strides = array<i32>} : memref<1x8x2688xf32, #tpu.memory_space<vmem>>, vector<1x8x2688xf32>,
    return
  }
  func.func @transform_0(%arg0: i32) -> (i32, i32, i32) {
    %c0_i32 = arith.constant 0 : i32
    %c0_i32_0 = arith.constant 0 : i32
    %c0_i32_1 = arith.constant 0 : i32
    return %arg0, %c0_i32, %c0_i32_0 : i32, i32, i32
  }
  func.func @transform_1(%arg0: i32) -> (i32, i32) {
    %c0_i32 = arith.constant 0 : i32
    %c0_i32_0 = arith.constant 0 : i32
    %c0_i32_1 = arith.constant 0 : i32
    return %c0_i32, %c0_i32_0 : i32, i32
  }
  func.func @transform_2(%arg0: i32) -> (i32, i32) {
    %c0_i32 = arith.constant 0 : i32
    %c0_i32_0 = arith.constant 0 : i32
    %c0_i32_1 = arith.constant 0 : i32
    return %c0_i32, %c0_i32_0 : i32, i32
  }
  func.func @transform_3(%arg0: i32) -> (i32, i32) {
    %c0_i32 = arith.constant 0 : i32
    %c0_i32_0 = arith.constant 0 : i32
    %c0_i32_1 = arith.constant 0 : i32
    return %c0_i32, %c0_i32_0 : i32, i32
  }
  func.func @transform_4(%arg0: i32) -> (i32, i32) {
    %c0_i32 = arith.constant 0 : i32
    %c0_i32_0 = arith.constant 0 : i32
    %c0_i32_1 = arith.constant 0 : i32
    return %c0_i32, %c0_i32_0 : i32, i32
  }
  func.func @transform_5(%arg0: i32) -> (i32, i32) {
    %c0_i32 = arith.constant 0 : i32
    %c0_i32_0 = arith.constant 0 : i32
    %c0_i32_1 = arith.constant 0 : i32
    return %c0_i32, %c0_i32_0 : i32, i32
  }
  func.func @transform_6(%arg0: i32) -> (i32, i32, i32) {
    %c0_i32 = arith.constant 0 : i32
    %c0_i32_0 = arith.constant 0 : i32
    %c0_i32_1 = arith.constant 0 : i32
    return %arg0, %c0_i32, %c0_i32_0 : i32, i32, i32
  }
}

</mosaic_0001>

<llo_original>
// kernel: tpu_custom_call.1
$region0: #{tpu_custom_call.1}
  #allocation0 [shape = 'u32[]', space=smem, size = 0x4, offset = 0x4, fixed_abs, tag = 'smem constant byte address 0x4 - core index']
  #allocation1 [shape = 'u32[144,128]{1,0:T(1,128)}', space=vmem, size = 0x12000, scoped, tag = 'internal scratch']
  #allocation2 [shape = 'bf16[224,2688]{1,0:T(8,128)(2,1)}', space=vmem, size = 0x126000, scoped, tag = 'scratch operand']
  #allocation3 [shape = 'bf16[8,3456]{1,0:T(8,128)(2,1)}', space=vmem, size = 0xd800, scoped, tag = 'scratch operand']
  %s0 = inlined_call_operand.hbm [shape: bf16[2,4,3456], index: 0, kind: input, shape index: {}]
  %s1 = inlined_call_operand.vmem [shape: bf16[8,112], index: 1, kind: input, shape index: {}]
  %s2 = inlined_call_operand.vmem [shape: f32[8,1], index: 2, kind: input, shape index: {}]
  %s3 = inlined_call_operand.hbm [shape: bf16[8,224], index: 3, kind: input, shape index: {}]
  %s4 = inlined_call_operand.vmem [shape: f32[8,1], index: 4, kind: input, shape index: {}]
  %s5 = inlined_call_operand.vmem [shape: f32[1,2688], index: 5, kind: input, shape index: {}]
  %s6 = inlined_call_operand.hbm [shape: f32[2,8,2688], index: 6, kind: output, shape index: {}]
  %s7 = sld [smem:[#allocation0]]
  $region65: #{tpu_custom_call.1} parent=0
    _
  %s9 = ssub.s32 1, %s7
  %s10 = scalar_select 0, %s9, %s7
  $region1: #{tpu_custom_call.1} parent=0
    #allocation4 [shape = 'u8[55296]{0}', space=vmem, size = 0xd800, scoped, tag = 'input window, operand 0']
    #allocation5 [shape = 's32[2]{0}', space=sflag, size = 0x8, scoped, tag = 'scoped memory for tpu_custom_call.1']
    #allocation6 [shape = 's32[2]{0}', space=sflag, size = 0x8, scoped, tag = 'scoped memory for tpu_custom_call.1']
    #allocation7 [shape = 'u8[4096]{0}', space=vmem, size = 0x1000, scoped, tag = 'input window, operand 3, single buffered']
    #allocation8 [shape = 's32[1]{0}', space=sflag, size = 0x4, scoped, tag = 'scoped memory for tpu_custom_call.1']
    #allocation9 [shape = 'u8[172032]{0}', space=vmem, size = 0x2a000, scoped, tag = 'output window, operand 0']
    %11 = vsyncpa [#allocation5], 0
    %s12 = scalar_lea.sflag [#allocation5], 1
    %13 = vsyncpa %s12, 0
    %14 = vsyncpa [#allocation8], 0
    %15 = vsyncpa [#allocation6], 0
    %s16 = scalar_lea.sflag [#allocation6], 1
    %17 = vsyncpa %s16, 0
    loop: start=0, step=1, limit=4
    $region2: #{tpu_custom_call.1} parent=1 // loop_pre_header
      _
    $region3: #{tpu_custom_call.1} parent=1 // loop_header
      %s19 = sphi 0, %s23
      %p20 = scmp.ge.s32.totalorder %s19, 4
      %s29 = sphi 0, %s31
      %s32 = sphi 0, %s29
      %s33 = sphi 0, %s32
      %s49 = sphi 0, %s33
      %s53 = sphi 0, %s53
      %s55 = sphi 0, %s53
      %s56 = sphi 0, %s55
      %s70 = sphi 0, %s56
      %s74 = sphi 0, %s74
      %s76 = sphi 0, %s74
      %s77 = sphi 0, %s76
      %s91 = sphi 0, %s77
      %s95 = sphi 0, %s95
      %s97 = sphi 0, %s95
      %s98 = sphi 0, %s97
      %s112 = sphi 0, %s98
      %s116 = sphi 0, %s116
      %s118 = sphi 0, %s116
      %s119 = sphi 0, %s118
      %s133 = sphi 0, %s119
      %s137 = sphi 0, %s137
      %s139 = sphi 0, %s137
      %s140 = sphi 0, %s139
      %s154 = sphi 0, %s140
      %s160 = sphi 0, %s162
      %s163 = sphi 0, %s160
      %s164 = sphi 0, %s163
      %s180 = sphi 0, %s164
    $region4: #{tpu_custom_call.1} parent=1 // loop_header_branch
      %22 = sbr.rel (%p20) target = $region8
    $region5: #{tpu_custom_call.1} parent=1 // loop_body
      %s24 = ssub.s32 %s19, 1
      %s25 = ssub.s32 %s19, 2
      %s26 = sadd.s32 %s19, 1
      %s27 = ssub.s32 %s19, %s26
      %p28 = scmp.eq.s32.totalorder %s27, 0
      %s30 = sadd.s32 %s29, 1
      %s31 = scalar_select %p28, %s29, %s30
      %p34 = pneg %p28
      %p35 = scmp.eq.s32.totalorder %s19, 1
      %p36 = por %p34, %p35
      %p37 = scmp.ne.s32.totalorder %s29, %s32
      %p38 = scmp.eq.s32.totalorder %s19, 0
      %p39 = por %p37, %p38
      %p40 = scmp.ne.s32.totalorder %s29, %s32
      %p41 = scmp.eq.s32.totalorder %s24, 1
      %p42 = por %p40, %p41
      %p43 = scmp.ne.s32.totalorder %s32, %s33
      %p44 = scmp.eq.s32.totalorder %s24, 0
      %p45 = por %p43, %p44
      %p46 = scmp.ne.s32.totalorder %s32, %s33
      %p47 = scmp.eq.s32.totalorder %s25, 1
      %p48 = por %p46, %p47
      %p50 = scmp.ne.s32.totalorder %s33, %s49
      %p51 = scmp.eq.s32.totalorder %s25, 0
      %p52 = por %p50, %p51
      %s54 = sadd.s32 %s53, 1
      %p57 = scmp.eq.s32.totalorder %s19, 1
      %p58 = scmp.ne.s32.totalorder %s53, %s55
      %p59 = scmp.eq.s32.totalorder %s19, 0
      %p60 = por %p58, %p59
      %p61 = scmp.ne.s32.totalorder %s53, %s55
      %p62 = scmp.eq.s32.totalorder %s24, 1
      %p63 = por %p61, %p62
      %p64 = scmp.ne.s32.totalorder %s55, %s56
      %p65 = scmp.eq.s32.totalorder %s24, 0
      %p66 = por %p64, %p65
      %p67 = scmp.ne.s32.totalorder %s55, %s56
      %p68 = scmp.eq.s32.totalorder %s25, 1
      %p69 = por %p67, %p68
      %p71 = scmp.ne.s32.totalorder %s56, %s70
      %p72 = scmp.eq.s32.totalorder %s25, 0
      %p73 = por %p71, %p72
      %s75 = sadd.s32 %s74, 1
      %p78 = scmp.eq.s32.totalorder %s19, 1
      %p79 = scmp.ne.s32.totalorder %s74, %s76
      %p80 = scmp.eq.s32.totalorder %s19, 0
      %p81 = por %p79, %p80
      %p82 = scmp.ne.s32.totalorder %s74, %s76
      %p83 = scmp.eq.s32.totalorder %s24, 1
      %p84 = por %p82, %p83
      %p85 = scmp.ne.s32.totalorder %s76, %s77
      %p86 = scmp.eq.s32.totalorder %s24, 0
      %p87 = por %p85, %p86
      %p88 = scmp.ne.s32.totalorder %s76, %s77
      %p89 = scmp.eq.s32.totalorder %s25, 1
      %p90 = por %p88, %p89
      %p92 = scmp.ne.s32.totalorder %s77, %s91
      %p93 = scmp.eq.s32.totalorder %s25, 0
      %p94 = por %p92, %p93
      %s96 = sadd.s32 %s95, 1
      %p99 = scmp.eq.s32.totalorder %s19, 1
      %p100 = scmp.ne.s32.totalorder %s95, %s97
      %p101 = scmp.eq.s32.totalorder %s19, 0
      %p102 = por %p100, %p101
      %p103 = scmp.ne.s32.totalorder %s95, %s97
      %p104 = scmp.eq.s32.totalorder %s24, 1
      %p105 = por %p103, %p104
      %p106 = scmp.ne.s32.totalorder %s97, %s98
      %p107 = scmp.eq.s32.totalorder %s24, 0
      %p108 = por %p106, %p107
      %p109 = scmp.ne.s32.totalorder %s97, %s98
      %p110 = scmp.eq.s32.totalorder %s25, 1
      %p111 = por %p109, %p110
      %p113 = scmp.ne.s32.totalorder %s98, %s112
      %p114 = scmp.eq.s32.totalorder %s25, 0
      %p115 = por %p113, %p114
      %s117 = sadd.s32 %s116, 1
      %p120 = scmp.eq.s32.totalorder %s19, 1
      %p121 = scmp.ne.s32.totalorder %s116, %s118
      %p122 = scmp.eq.s32.totalorder %s19, 0
      %p123 = por %p121, %p122
      %p124 = scmp.ne.s32.totalorder %s116, %s118
      %p125 = scmp.eq.s32.totalorder %s24, 1
      %p126 = por %p124, %p125
      %p127 = scmp.ne.s32.totalorder %s118, %s119
      %p128 = scmp.eq.s32.totalorder %s24, 0
      %p129 = por %p127, %p128
      %p130 = scmp.ne.s32.totalorder %s118, %s119
      %p131 = scmp.eq.s32.totalorder %s25, 1
      %p132 = por %p130, %p131
      %p134 = scmp.ne.s32.totalorder %s119, %s133
      %p135 = scmp.eq.s32.totalorder %s25, 0
      %p136 = por %p134, %p135
      %s138 = sadd.s32 %s137, 1
      %p141 = scmp.eq.s32.totalorder %s19, 1
      %p142 = scmp.ne.s32.totalorder %s137, %s139
      %p143 = scmp.eq.s32.totalorder %s19, 0
      %p144 = por %p142, %p143
      %p145 = scmp.ne.s32.totalorder %s137, %s139
      %p146 = scmp.eq.s32.totalorder %s24, 1
      %p147 = por %p145, %p146
      %p148 = scmp.ne.s32.totalorder %s139, %s140
      %p149 = scmp.eq.s32.totalorder %s24, 0
      %p150 = por %p148, %p149
      %p151 = scmp.ne.s32.totalorder %s139, %s140
      %p152 = scmp.eq.s32.totalorder %s25, 1
      %p153 = por %p151, %p152
      %p155 = scmp.ne.s32.totalorder %s140, %s154
      %p156 = scmp.eq.s32.totalorder %s25, 0
      %p157 = por %p155, %p156
      %s158 = ssub.s32 %s19, %s26
      %p159 = scmp.eq.s32.totalorder %s158, 0
      %s161 = sadd.s32 %s160, 1
      %s162 = scalar_select %p159, %s160, %s161
      %p165 = pneg %p159
      %p166 = scmp.eq.s32.totalorder %s19, 1
      %p167 = por %p165, %p166
      %p168 = scmp.ne.s32.totalorder %s160, %s163
      %p169 = scmp.eq.s32.totalorder %s19, 0
      %p170 = por %p168, %p169
      %p171 = scmp.ne.s32.totalorder %s160, %s163
      %p172 = scmp.eq.s32.totalorder %s24, 1
      %p173 = por %p171, %p172
      %p174 = scmp.ne.s32.totalorder %s163, %s164
      %p175 = scmp.eq.s32.totalorder %s24, 0
      %p176 = por %p174, %p175
      %p177 = scmp.ne.s32.totalorder %s163, %s164
      %p178 = scmp.eq.s32.totalorder %s25, 1
      %p179 = por %p177, %p178
      %p181 = scmp.ne.s32.totalorder %s164, %s180
      %p182 = scmp.eq.s32.totalorder %s25, 0
      %p183 = por %p181, %p182
      %p184 = scmp.le.s32.totalorder 1, %s19
      %p185 = scmp.lt.s32.totalorder %s19, 3
      %p186 = pnand %p184, %p185
      %p187 = pneg %p186
      // Predicated region
      $region9: #{tpu_custom_call.1} parent=5 // pred_check
        _
      $region10: #{tpu_custom_call.1} parent=5 // pred_check_branch
        %189 = sbr.rel (%p186) target = $region12
      $region11: #{tpu_custom_call.1} parent=5 // pred_region
        %s190 = ssub.s32 %s19, 1
        // Predicated region
        $region13: #{tpu_custom_call.1} parent=11 // pred_check
          %p191 = pneg %p66
        $region14: #{tpu_custom_call.1} parent=11 // pred_check_branch
          %193 = sbr.rel (%p191) target = $region16
        $region15: #{tpu_custom_call.1} parent=11 // pred_region
          _
        $region16: #{tpu_custom_call.1} parent=11 // pred_fallthru
          _
        // Predicated region
        $region17: #{tpu_custom_call.1} parent=11 // pred_check
          %p194 = pneg %p87
        $region18: #{tpu_custom_call.1} parent=11 // pred_check_branch
          %196 = sbr.rel (%p194) target = $region20
        $region19: #{tpu_custom_call.1} parent=11 // pred_region
          _
        $region20: #{tpu_custom_call.1} parent=11 // pred_fallthru
          _
        // Predicated region
        $region21: #{tpu_custom_call.1} parent=11 // pred_check
          %p197 = pneg %p108
        $region22: #{tpu_custom_call.1} parent=11 // pred_check_branch
          %199 = sbr.rel (%p197) target = $region24
        $region23: #{tpu_custom_call.1} parent=11 // pred_region
          %s201 = ssub.s32 128, 128
          %202 = vsyncadd [#allocation8], %s201
          %s204 = sshll.u32 [#allocation7], 4
          %s205 = int_to_ptr.vmem [resolvable:$true] %s204
          %207 = dma.hbm_to_vmem [thread:$0]  %s3, 128, %s205, [#allocation8]
        $region24: #{tpu_custom_call.1} parent=11 // pred_fallthru
          _
        // Predicated region
        $region25: #{tpu_custom_call.1} parent=11 // pred_check
          %p208 = pneg %p129
        $region26: #{tpu_custom_call.1} parent=11 // pred_check_branch
          %210 = sbr.rel (%p208) target = $region28
        $region27: #{tpu_custom_call.1} parent=11 // pred_region
          _
        $region28: #{tpu_custom_call.1} parent=11 // pred_fallthru
          _
        // Predicated region
        $region29: #{tpu_custom_call.1} parent=11 // pred_check
          %p211 = pneg %p150
        $region30: #{tpu_custom_call.1} parent=11 // pred_check_branch
          %213 = sbr.rel (%p211) target = $region32
        $region31: #{tpu_custom_call.1} parent=11 // pred_region
          _
        $region32: #{tpu_custom_call.1} parent=11 // pred_fallthru
          _
      $region12: #{tpu_custom_call.1} parent=5 // pred_fallthru
        _
      %p214 = scmp.lt.s32.totalorder %s19, 2
      // Predicated region
      $region33: #{tpu_custom_call.1} parent=5 // pred_check
        %p215 = pneg %p214
      $region34: #{tpu_custom_call.1} parent=5 // pred_check_branch
        %217 = sbr.rel (%p215) target = $region36
      $region35: #{tpu_custom_call.1} parent=5 // pred_region
        // Predicated region
        $region37: #{tpu_custom_call.1} parent=35 // pred_check
          %p218 = pneg %p39
        $region38: #{tpu_custom_call.1} parent=35 // pred_check_branch
          %220 = sbr.rel (%p218) target = $region40
        $region39: #{tpu_custom_call.1} parent=35 // pred_region
          %s221 = sand.u32 %s29, 1
          %s222 = scalar_lea.sflag [#allocation5], %s221
          %s223 = sand.u32 %s29, 1
          %s224 = smul.addr %s223, 54
          %s225 = scalar_lea.vmem [#allocation4], %s224
          %s227 = ssub.s32 864, 864
          %228 = vsyncadd %s222, %s227
          %s229 = smul.addr %s19, 27
          %s230 = smul.addr %s229, 32
          %s231 = scalar_lea.hbm %s0, %s230
          %s233 = sshll.u32 %s225, 4
          %s234 = int_to_ptr.vmem [resolvable:$true] %s233
          %236 = dma.hbm_to_vmem [thread:$0]  %s231, 864, %s234, %s222
        $region40: #{tpu_custom_call.1} parent=35 // pred_fallthru
          _
      $region36: #{tpu_custom_call.1} parent=5 // pred_fallthru
        _
      %p237 = scmp.le.s32.totalorder 1, %s19
      %p238 = scmp.lt.s32.totalorder %s19, 3
      %p239 = pnand %p237, %p238
      %p240 = pneg %p239
      // Predicated region
      $region41: #{tpu_custom_call.1} parent=5 // pred_check
        _
      $region42: #{tpu_custom_call.1} parent=5 // pred_check_branch
        %242 = sbr.rel (%p239) target = $region44
      $region43: #{tpu_custom_call.1} parent=5 // pred_region
        %s243 = ssub.s32 %s19, 1
        %s244 = sand.u32 %s32, 1
        %s245 = scalar_lea.sflag [#allocation5], %s244
        %s246 = sand.u32 %s32, 1
        %s247 = smul.addr %s246, 54
        %s248 = scalar_lea.vmem [#allocation4], %s247
        // Predicated region
        $region45: #{tpu_custom_call.1} parent=43 // pred_check
          %p249 = pneg %p45
        $region46: #{tpu_custom_call.1} parent=43 // pred_check_branch
          %251 = sbr.rel (%p249) target = $region48
        $region47: #{tpu_custom_call.1} parent=43 // pred_region
          %252 = dma.done %s245, 864
        $region48: #{tpu_custom_call.1} parent=43 // pred_fallthru
          _
        // Predicated region
        $region49: #{tpu_custom_call.1} parent=43 // pred_check
          %p253 = pneg %p108
        $region50: #{tpu_custom_call.1} parent=43 // pred_check_branch
          %255 = sbr.rel (%p253) target = $region52
        $region51: #{tpu_custom_call.1} parent=43 // pred_region
          %256 = dma.done [#allocation8], 128
        $region52: #{tpu_custom_call.1} parent=43 // pred_fallthru
          _
        %s257 = sand.u32 %s32, 1
        %s258 = scalar_lea.sflag [#allocation5], %s257
        %s259 = sand.u32 %s32, 1
        %s260 = smul.addr %s259, 54
        %s261 = scalar_lea.vmem [#allocation4], %s260
        %p262 = pneg %p45
        %p263 = pneg %p42
        %p264 = pneg %p66
        %p265 = pneg %p63
        %p266 = pneg %p87
        %p267 = pneg %p84
        %p268 = pneg %p108
        %p269 = pneg %p105
        %p270 = pneg %p129
        %p271 = pneg %p126
        %p272 = pneg %p150
        %p273 = pneg %p147
        %p274 = pneg %p176
        %p275 = pneg %p173
        %s276 = sand.u32 %s163, 1
        %s277 = scalar_lea.sflag [#allocation6], %s276
        %s278 = sand.u32 %s163, 1
        %s279 = smul.addr %s278, 168
        %s280 = scalar_lea.vmem [#allocation9], %s279
        %282 = vst [vmem:[#allocation2] sm:$0xff] 0
        %283 = vst [vmem:[#allocation2 + $0x8] sm:$0xff] 0
        %284 = vst [vmem:[#allocation2 + $0x10] sm:$0xff] 0
        %285 = vst [vmem:[#allocation2 + $0x18] sm:$0xff] 0
        %286 = vst [vmem:[#allocation2 + $0x20] sm:$0xff] 0
        %287 = vst [vmem:[#allocation2 + $0x28] sm:$0xff] 0
        %288 = vst [vmem:[#allocation2 + $0x30] sm:$0xff] 0
        %289 = vst [vmem:[#allocation2 + $0x38] sm:$0xff] 0
        %290 = vst [vmem:[#allocation2 + $0x40] sm:$0xff] 0
        %291 = vst [vmem:[#allocation2 + $0x48] sm:$0xff] 0
        %292 = vst [vmem:[#allocation2 + $0x50] sm:$0xf] 0
        %293 = vst [vmem:[#allocation2 + $0x54] sm:$0xff] 0
        %294 = vst [vmem:[#allocation2 + $0x5c] sm:$0xff] 0
        %295 = vst [vmem:[#allocation2 + $0x64] sm:$0xff] 0
        %296 = vst [vmem:[#allocation2 + $0x6c] sm:$0xff] 0
        %297 = vst [vmem:[#allocation2 + $0x74] sm:$0xff] 0
        %298 = vst [vmem:[#allocation2 + $0x7c] sm:$0xff] 0
        %299 = vst [vmem:[#allocation2 + $0x84] sm:$0xff] 0
        %300 = vst [vmem:[#allocation2 + $0x8c] sm:$0xff] 0
        %301 = vst [vmem:[#allocation2 + $0x94] sm:$0xff] 0
        %302 = vst [vmem:[#allocation2 + $0x9c] sm:$0xff] 0
        %303 = vst [vmem:[#allocation2 + $0xa4] sm:$0xf] 0
        %304 = vst [vmem:[#allocation2 + $0xa8] sm:$0xff] 0
        %305 = vst [vmem:[#allocation2 + $0xb0] sm:$0xff] 0
        %306 = vst [vmem:[#allocation2 + $0xb8] sm:$0xff] 0
        %307 = vst [vmem:[#allocation2 + $0xc0] sm:$0xff] 0
        %308 = vst [vmem:[#allocation2 + $0xc8] sm:$0xff] 0
        %309 = vst [vmem:[#allocation2 + $0xd0] sm:$0xff] 0
        %310 = vst [vmem:[#allocation2 + $0xd8] sm:$0xff] 0
        %311 = vst [vmem:[#allocation2 + $0xe0] sm:$0xff] 0
        %312 = vst [vmem:[#allocation2 + $0xe8] sm:$0xff] 0
        %313 = vst [vmem:[#allocation2 + $0xf0] sm:$0xff] 0
        %314 = vst [vmem:[#allocation2 + $0xf8] sm:$0xf] 0
        %315 = vst [vmem:[#allocation2 + $0xfc] sm:$0xff] 0
        %316 = vst [vmem:[#allocation2 + $0x104] sm:$0xff] 0
        %317 = vst [vmem:[#allocation2 + $0x10c] sm:$0xff] 0
        %318 = vst [vmem:[#allocation2 + $0x114] sm:$0xff] 0
        %319 = vst [vmem:[#allocation2 + $0x11c] sm:$0xff] 0
        %320 = vst [vmem:[#allocation2 + $0x124] sm:$0xff] 0
        %321 = vst [vmem:[#allocation2 + $0x12c] sm:$0xff] 0
        %322 = vst [vmem:[#allocation2 + $0x134] sm:$0xff] 0
        %323 = vst [vmem:[#allocation2 + $0x13c] sm:$0xff] 0
        %324 = vst [vmem:[#allocation2 + $0x144] sm:$0xff] 0
        %325 = vst [vmem:[#allocation2 + $0x14c] sm:$0xf] 0
        %326 = vst [vmem:[#allocation2 + $0x150] sm:$0xff] 0
        %327 = vst [vmem:[#allocation2 + $0x158] sm:$0xff] 0
        %328 = vst [vmem:[#allocation2 + $0x160] sm:$0xff] 0
        %329 = vst [vmem:[#allocation2 + $0x168] sm:$0xff] 0
        %330 = vst [vmem:[#allocation2 + $0x170] sm:$0xff] 0
        %331 = vst [vmem:[#allocation2 + $0x178] sm:$0xff] 0
        %332 = vst [vmem:[#allocation2 + $0x180] sm:$0xff] 0
        %333 = vst [vmem:[#allocation2 + $0x188] sm:$0xff] 0
        %334 = vst [vmem:[#allocation2 + $0x190] sm:$0xff] 0
        %335 = vst [vmem:[#allocation2 + $0x198] sm:$0xff] 0
        %336 = vst [vmem:[#allocation2 + $0x1a0] sm:$0xf] 0
        %337 = vst [vmem:[#allocation2 + $0x1a4] sm:$0xff] 0
        %338 = vst [vmem:[#allocation2 + $0x1ac] sm:$0xff] 0
        %339 = vst [vmem:[#allocation2 + $0x1b4] sm:$0xff] 0
        %340 = vst [vmem:[#allocation2 + $0x1bc] sm:$0xff] 0
        %341 = vst [vmem:[#allocation2 + $0x1c4] sm:$0xff] 0
        %342 = vst [vmem:[#allocation2 + $0x1cc] sm:$0xff] 0
        %343 = vst [vmem:[#allocation2 + $0x1d4] sm:$0xff] 0
        %344 = vst [vmem:[#allocation2 + $0x1dc] sm:$0xff] 0
        %345 = vst [vmem:[#allocation2 + $0x1e4] sm:$0xff] 0
        %346 = vst [vmem:[#allocation2 + $0x1ec] sm:$0xff] 0
        %347 = vst [vmem:[#allocation2 + $0x1f4] sm:$0xf] 0
        %348 = vst [vmem:[#allocation2 + $0x1f8] sm:$0xff] 0
        %349 = vst [vmem:[#allocation2 + $0x200] sm:$0xff] 0
        %350 = vst [vmem:[#allocation2 + $0x208] sm:$0xff] 0
        %351 = vst [vmem:[#allocation2 + $0x210] sm:$0xff] 0
        %352 = vst [vmem:[#allocation2 + $0x218] sm:$0xff] 0
        %353 = vst [vmem:[#allocation2 + $0x220] sm:$0xff] 0
        %354 = vst [vmem:[#allocation2 + $0x228] sm:$0xff] 0
        %355 = vst [vmem:[#allocation2 + $0x230] sm:$0xff] 0
        %356 = vst [vmem:[#allocation2 + $0x238] sm:$0xff] 0
        %357 = vst [vmem:[#allocation2 + $0x240] sm:$0xff] 0
        %358 = vst [vmem:[#allocation2 + $0x248] sm:$0xf] 0
        %359 = vst [vmem:[#allocation2 + $0x24c] sm:$0xff] 0
        %360 = vst [vmem:[#allocation2 + $0x254] sm:$0xff] 0
        %361 = vst [vmem:[#allocation2 + $0x25c] sm:$0xff] 0
        %362 = vst [vmem:[#allocation2 + $0x264] sm:$0xff] 0
        %363 = vst [vmem:[#allocation2 + $0x26c] sm:$0xff] 0
        %364 = vst [vmem:[#allocation2 + $0x274] sm:$0xff] 0
        %365 = vst [vmem:[#allocation2 + $0x27c] sm:$0xff] 0
        %366 = vst [vmem:[#allocation2 + $0x284] sm:$0xff] 0
        %367 = vst [vmem:[#allocation2 + $0x28c] sm:$0xff] 0
        %368 = vst [vmem:[#allocation2 + $0x294] sm:$0xff] 0
        %369 = vst [vmem:[#allocation2 + $0x29c] sm:$0xf] 0
        %370 = vst [vmem:[#allocation2 + $0x2a0] sm:$0xff] 0
        %371 = vst [vmem:[#allocation2 + $0x2a8] sm:$0xff] 0
        %372 = vst [vmem:[#allocation2 + $0x2b0] sm:$0xff] 0
        %373 = vst [vmem:[#allocation2 + $0x2b8] sm:$0xff] 0
        %374 = vst [vmem:[#allocation2 + $0x2c0] sm:$0xff] 0
        %375 = vst [vmem:[#allocation2 + $0x2c8] sm:$0xff] 0
        %376 = vst [vmem:[#allocation2 + $0x2d0] sm:$0xff] 0
        %377 = vst [vmem:[#allocation2 + $0x2d8] sm:$0xff] 0
        %378 = vst [vmem:[#allocation2 + $0x2e0] sm:$0xff] 0
        %379 = vst [vmem:[#allocation2 + $0x2e8] sm:$0xff] 0
        %380 = vst [vmem:[#allocation2 + $0x2f0] sm:$0xf] 0
        %381 = vst [vmem:[#allocation2 + $0x2f4] sm:$0xff] 0
        %382 = vst [vmem:[#allocation2 + $0x2fc] sm:$0xff] 0
        %383 = vst [vmem:[#allocation2 + $0x304] sm:$0xff] 0
        %384 = vst [vmem:[#allocation2 + $0x30c] sm:$0xff] 0
        %385 = vst [vmem:[#allocation2 + $0x314] sm:$0xff] 0
        %386 = vst [vmem:[#allocation2 + $0x31c] sm:$0xff] 0
        %387 = vst [vmem:[#allocation2 + $0x324] sm:$0xff] 0
        %388 = vst [vmem:[#allocation2 + $0x32c] sm:$0xff] 0
        %389 = vst [vmem:[#allocation2 + $0x334] sm:$0xff] 0
        %390 = vst [vmem:[#allocation2 + $0x33c] sm:$0xff] 0
        %391 = vst [vmem:[#allocation2 + $0x344] sm:$0xf] 0
        %392 = vst [vmem:[#allocation2 + $0x348] sm:$0xff] 0
        %393 = vst [vmem:[#allocation2 + $0x350] sm:$0xff] 0
        %394 = vst [vmem:[#allocation2 + $0x358] sm:$0xff] 0
        %395 = vst [vmem:[#allocation2 + $0x360] sm:$0xff] 0
        %396 = vst [vmem:[#allocation2 + $0x368] sm:$0xff] 0
        %397 = vst [vmem:[#allocation2 + $0x370] sm:$0xff] 0
        %398 = vst [vmem:[#allocation2 + $0x378] sm:$0xff] 0
        %399 = vst [vmem:[#allocation2 + $0x380] sm:$0xff] 0
        %400 = vst [vmem:[#allocation2 + $0x388] sm:$0xff] 0
        %401 = vst [vmem:[#allocation2 + $0x390] sm:$0xff] 0
        %402 = vst [vmem:[#allocation2 + $0x398] sm:$0xf] 0
        %403 = vst [vmem:[#allocation2 + $0x39c] sm:$0xff] 0
        %404 = vst [vmem:[#allocation2 + $0x3a4] sm:$0xff] 0
        %405 = vst [vmem:[#allocation2 + $0x3ac] sm:$0xff] 0
        %406 = vst [vmem:[#allocation2 + $0x3b4] sm:$0xff] 0
        %407 = vst [vmem:[#allocation2 + $0x3bc] sm:$0xff] 0
        %408 = vst [vmem:[#allocation2 + $0x3c4] sm:$0xff] 0
        %409 = vst [vmem:[#allocation2 + $0x3cc] sm:$0xff] 0
        %410 = vst [vmem:[#allocation2 + $0x3d4] sm:$0xff] 0
        %411 = vst [vmem:[#allocation2 + $0x3dc] sm:$0xff] 0
        %412 = vst [vmem:[#allocation2 + $0x3e4] sm:$0xff] 0
        %413 = vst [vmem:[#allocation2 + $0x3ec] sm:$0xf] 0
        %414 = vst [vmem:[#allocation2 + $0x3f0] sm:$0xff] 0
        %415 = vst [vmem:[#allocation2 + $0x3f8] sm:$0xff] 0
        %416 = vst [vmem:[#allocation2 + $0x400] sm:$0xff] 0
        %417 = vst [vmem:[#allocation2 + $0x408] sm:$0xff] 0
        %418 = vst [vmem:[#allocation2 + $0x410] sm:$0xff] 0
        %419 = vst [vmem:[#allocation2 + $0x418] sm:$0xff] 0
        %420 = vst [vmem:[#allocation2 + $0x420] sm:$0xff] 0
        %421 = vst [vmem:[#allocation2 + $0x428] sm:$0xff] 0
        %422 = vst [vmem:[#allocation2 + $0x430] sm:$0xff] 0
        %423 = vst [vmem:[#allocation2 + $0x438] sm:$0xff] 0
        %424 = vst [vmem:[#allocation2 + $0x440] sm:$0xf] 0
        %425 = vst [vmem:[#allocation2 + $0x444] sm:$0xff] 0
        %426 = vst [vmem:[#allocation2 + $0x44c] sm:$0xff] 0
        %427 = vst [vmem:[#allocation2 + $0x454] sm:$0xff] 0
        %428 = vst [vmem:[#allocation2 + $0x45c] sm:$0xff] 0
        %429 = vst [vmem:[#allocation2 + $0x464] sm:$0xff] 0
        %430 = vst [vmem:[#allocation2 + $0x46c] sm:$0xff] 0
        %431 = vst [vmem:[#allocation2 + $0x474] sm:$0xff] 0
        %432 = vst [vmem:[#allocation2 + $0x47c] sm:$0xff] 0
        %433 = vst [vmem:[#allocation2 + $0x484] sm:$0xff] 0
        %434 = vst [vmem:[#allocation2 + $0x48c] sm:$0xff] 0
        %435 = vst [vmem:[#allocation2 + $0x494] sm:$0xf] 0
        %436 = vst [vmem:[#allocation2 + $0x498] sm:$0xff] 0
        %437 = vst [vmem:[#allocation2 + $0x4a0] sm:$0xff] 0
        %438 = vst [vmem:[#allocation2 + $0x4a8] sm:$0xff] 0
        %439 = vst [vmem:[#allocation2 + $0x4b0] sm:$0xff] 0
        %440 = vst [vmem:[#allocation2 + $0x4b8] sm:$0xff] 0
        %441 = vst [vmem:[#allocation2 + $0x4c0] sm:$0xff] 0
        %442 = vst [vmem:[#allocation2 + $0x4c8] sm:$0xff] 0
        %443 = vst [vmem:[#allocation2 + $0x4d0] sm:$0xff] 0
        %444 = vst [vmem:[#allocation2 + $0x4d8] sm:$0xff] 0
        %445 = vst [vmem:[#allocation2 + $0x4e0] sm:$0xff] 0
        %446 = vst [vmem:[#allocation2 + $0x4e8] sm:$0xf] 0
        %447 = vst [vmem:[#allocation2 + $0x4ec] sm:$0xff] 0
        %448 = vst [vmem:[#allocation2 + $0x4f4] sm:$0xff] 0
        %449 = vst [vmem:[#allocation2 + $0x4fc] sm:$0xff] 0
        %450 = vst [vmem:[#allocation2 + $0x504] sm:$0xff] 0
        %451 = vst [vmem:[#allocation2 + $0x50c] sm:$0xff] 0
        %452 = vst [vmem:[#allocation2 + $0x514] sm:$0xff] 0
        %453 = vst [vmem:[#allocation2 + $0x51c] sm:$0xff] 0
        %454 = vst [vmem:[#allocation2 + $0x524] sm:$0xff] 0
        %455 = vst [vmem:[#allocation2 + $0x52c] sm:$0xff] 0
        %456 = vst [vmem:[#allocation2 + $0x534] sm:$0xff] 0
        %457 = vst [vmem:[#allocation2 + $0x53c] sm:$0xf] 0
        %458 = vst [vmem:[#allocation2 + $0x540] sm:$0xff] 0
        %459 = vst [vmem:[#allocation2 + $0x548] sm:$0xff] 0
        %460 = vst [vmem:[#allocation2 + $0x550] sm:$0xff] 0
        %461 = vst [vmem:[#allocation2 + $0x558] sm:$0xff] 0
        %462 = vst [vmem:[#allocation2 + $0x560] sm:$0xff] 0
        %463 = vst [vmem:[#allocation2 + $0x568] sm:$0xff] 0
        %464 = vst [vmem:[#allocation2 + $0x570] sm:$0xff] 0
        %465 = vst [vmem:[#allocation2 + $0x578] sm:$0xff] 0
        %466 = vst [vmem:[#allocation2 + $0x580] sm:$0xff] 0
        %467 = vst [vmem:[#allocation2 + $0x588] sm:$0xff] 0
        %468 = vst [vmem:[#allocation2 + $0x590] sm:$0xf] 0
        %469 = vst [vmem:[#allocation2 + $0x594] sm:$0xff] 0
        %470 = vst [vmem:[#allocation2 + $0x59c] sm:$0xff] 0
        %471 = vst [vmem:[#allocation2 + $0x5a4] sm:$0xff] 0
        %472 = vst [vmem:[#allocation2 + $0x5ac] sm:$0xff] 0
        %473 = vst [vmem:[#allocation2 + $0x5b4] sm:$0xff] 0
        %474 = vst [vmem:[#allocation2 + $0x5bc] sm:$0xff] 0
        %475 = vst [vmem:[#allocation2 + $0x5c4] sm:$0xff] 0
        %476 = vst [vmem:[#allocation2 + $0x5cc] sm:$0xff] 0
        %477 = vst [vmem:[#allocation2 + $0x5d4] sm:$0xff] 0
        %478 = vst [vmem:[#allocation2 + $0x5dc] sm:$0xff] 0
        %479 = vst [vmem:[#allocation2 + $0x5e4] sm:$0xf] 0
        %480 = vst [vmem:[#allocation2 + $0x5e8] sm:$0xff] 0
        %481 = vst [vmem:[#allocation2 + $0x5f0] sm:$0xff] 0
        %482 = vst [vmem:[#allocation2 + $0x5f8] sm:$0xff] 0
        %483 = vst [vmem:[#allocation2 + $0x600] sm:$0xff] 0
        %484 = vst [vmem:[#allocation2 + $0x608] sm:$0xff] 0
        %485 = vst [vmem:[#allocation2 + $0x610] sm:$0xff] 0
        %486 = vst [vmem:[#allocation2 + $0x618] sm:$0xff] 0
        %487 = vst [vmem:[#allocation2 + $0x620] sm:$0xff] 0
        %488 = vst [vmem:[#allocation2 + $0x628] sm:$0xff] 0
        %489 = vst [vmem:[#allocation2 + $0x630] sm:$0xff] 0
        %490 = vst [vmem:[#allocation2 + $0x638] sm:$0xf] 0
        %491 = vst [vmem:[#allocation2 + $0x63c] sm:$0xff] 0
        %492 = vst [vmem:[#allocation2 + $0x644] sm:$0xff] 0
        %493 = vst [vmem:[#allocation2 + $0x64c] sm:$0xff] 0
        %494 = vst [vmem:[#allocation2 + $0x654] sm:$0xff] 0
        %495 = vst [vmem:[#allocation2 + $0x65c] sm:$0xff] 0
        %496 = vst [vmem:[#allocation2 + $0x664] sm:$0xff] 0
        %497 = vst [vmem:[#allocation2 + $0x66c] sm:$0xff] 0
        %498 = vst [vmem:[#allocation2 + $0x674] sm:$0xff] 0
        %499 = vst [vmem:[#allocation2 + $0x67c] sm:$0xff] 0
        %500 = vst [vmem:[#allocation2 + $0x684] sm:$0xff] 0
        %501 = vst [vmem:[#allocation2 + $0x68c] sm:$0xf] 0
        %502 = vst [vmem:[#allocation2 + $0x690] sm:$0xff] 0
        %503 = vst [vmem:[#allocation2 + $0x698] sm:$0xff] 0
        %504 = vst [vmem:[#allocation2 + $0x6a0] sm:$0xff] 0
        %505 = vst [vmem:[#allocation2 + $0x6a8] sm:$0xff] 0
        %506 = vst [vmem:[#allocation2 + $0x6b0] sm:$0xff] 0
        %507 = vst [vmem:[#allocation2 + $0x6b8] sm:$0xff] 0
        %508 = vst [vmem:[#allocation2 + $0x6c0] sm:$0xff] 0
        %509 = vst [vmem:[#allocation2 + $0x6c8] sm:$0xff] 0
        %510 = vst [vmem:[#allocation2 + $0x6d0] sm:$0xff] 0
        %511 = vst [vmem:[#allocation2 + $0x6d8] sm:$0xff] 0
        %512 = vst [vmem:[#allocation2 + $0x6e0] sm:$0xf] 0
        %513 = vst [vmem:[#allocation2 + $0x6e4] sm:$0xff] 0
        %514 = vst [vmem:[#allocation2 + $0x6ec] sm:$0xff] 0
        %515 = vst [vmem:[#allocation2 + $0x6f4] sm:$0xff] 0
        %516 = vst [vmem:[#allocation2 + $0x6fc] sm:$0xff] 0
        %517 = vst [vmem:[#allocation2 + $0x704] sm:$0xff] 0
        %518 = vst [vmem:[#allocation2 + $0x70c] sm:$0xff] 0
        %519 = vst [vmem:[#allocation2 + $0x714] sm:$0xff] 0
        %520 = vst [vmem:[#allocation2 + $0x71c] sm:$0xff] 0
        %521 = vst [vmem:[#allocation2 + $0x724] sm:$0xff] 0
        %522 = vst [vmem:[#allocation2 + $0x72c] sm:$0xff] 0
        %523 = vst [vmem:[#allocation2 + $0x734] sm:$0xf] 0
        %524 = vst [vmem:[#allocation2 + $0x738] sm:$0xff] 0
        %525 = vst [vmem:[#allocation2 + $0x740] sm:$0xff] 0
        %526 = vst [vmem:[#allocation2 + $0x748] sm:$0xff] 0
        %527 = vst [vmem:[#allocation2 + $0x750] sm:$0xff] 0
        %528 = vst [vmem:[#allocation2 + $0x758] sm:$0xff] 0
        %529 = vst [vmem:[#allocation2 + $0x760] sm:$0xff] 0
        %530 = vst [vmem:[#allocation2 + $0x768] sm:$0xff] 0
        %531 = vst [vmem:[#allocation2 + $0x770] sm:$0xff] 0
        %532 = vst [vmem:[#allocation2 + $0x778] sm:$0xff] 0
        %533 = vst [vmem:[#allocation2 + $0x780] sm:$0xff] 0
        %534 = vst [vmem:[#allocation2 + $0x788] sm:$0xf] 0
        %535 = vst [vmem:[#allocation2 + $0x78c] sm:$0xff] 0
        %536 = vst [vmem:[#allocation2 + $0x794] sm:$0xff] 0
        %537 = vst [vmem:[#allocation2 + $0x79c] sm:$0xff] 0
        %538 = vst [vmem:[#allocation2 + $0x7a4] sm:$0xff] 0
        %539 = vst [vmem:[#allocation2 + $0x7ac] sm:$0xff] 0
        %540 = vst [vmem:[#allocation2 + $0x7b4] sm:$0xff] 0
        %541 = vst [vmem:[#allocation2 + $0x7bc] sm:$0xff] 0
        %542 = vst [vmem:[#allocation2 + $0x7c4] sm:$0xff] 0
        %543 = vst [vmem:[#allocation2 + $0x7cc] sm:$0xff] 0
        %544 = vst [vmem:[#allocation2 + $0x7d4] sm:$0xff] 0
        %545 = vst [vmem:[#allocation2 + $0x7dc] sm:$0xf] 0
        %546 = vst [vmem:[#allocation2 + $0x7e0] sm:$0xff] 0
        %547 = vst [vmem:[#allocation2 + $0x7e8] sm:$0xff] 0
        %548 = vst [vmem:[#allocation2 + $0x7f0] sm:$0xff] 0
        %549 = vst [vmem:[#allocation2 + $0x7f8] sm:$0xff] 0
        %550 = vst [vmem:[#allocation2 + $0x800] sm:$0xff] 0
        %551 = vst [vmem:[#allocation2 + $0x808] sm:$0xff] 0
        %552 = vst [vmem:[#allocation2 + $0x810] sm:$0xff] 0
        %553 = vst [vmem:[#allocation2 + $0x818] sm:$0xff] 0
        %554 = vst [vmem:[#allocation2 + $0x820] sm:$0xff] 0
        %555 = vst [vmem:[#allocation2 + $0x828] sm:$0xff] 0
        %556 = vst [vmem:[#allocation2 + $0x830] sm:$0xf] 0
        %557 = vst [vmem:[#allocation2 + $0x834] sm:$0xff] 0
        %558 = vst [vmem:[#allocation2 + $0x83c] sm:$0xff] 0
        %559 = vst [vmem:[#allocation2 + $0x844] sm:$0xff] 0
        %560 = vst [vmem:[#allocation2 + $0x84c] sm:$0xff] 0
        %561 = vst [vmem:[#allocation2 + $0x854] sm:$0xff] 0
        %562 = vst [vmem:[#allocation2 + $0x85c] sm:$0xff] 0
        %563 = vst [vmem:[#allocation2 + $0x864] sm:$0xff] 0
        %564 = vst [vmem:[#allocation2 + $0x86c] sm:$0xff] 0
        %565 = vst [vmem:[#allocation2 + $0x874] sm:$0xff] 0
        %566 = vst [vmem:[#allocation2 + $0x87c] sm:$0xff] 0
        %567 = vst [vmem:[#allocation2 + $0x884] sm:$0xf] 0
        %568 = vst [vmem:[#allocation2 + $0x888] sm:$0xff] 0
        %569 = vst [vmem:[#allocation2 + $0x890] sm:$0xff] 0
        %570 = vst [vmem:[#allocation2 + $0x898] sm:$0xff] 0
        %571 = vst [vmem:[#allocation2 + $0x8a0] sm:$0xff] 0
        %572 = vst [vmem:[#allocation2 + $0x8a8] sm:$0xff] 0
        %573 = vst [vmem:[#allocation2 + $0x8b0] sm:$0xff] 0
        %574 = vst [vmem:[#allocation2 + $0x8b8] sm:$0xff] 0
        %575 = vst [vmem:[#allocation2 + $0x8c0] sm:$0xff] 0
        %576 = vst [vmem:[#allocation2 + $0x8c8] sm:$0xff] 0
        %577 = vst [vmem:[#allocation2 + $0x8d0] sm:$0xff] 0
        %578 = vst [vmem:[#allocation2 + $0x8d8] sm:$0xf] 0
        %579 = vst [vmem:[#allocation2 + $0x8dc] sm:$0xff] 0
        %580 = vst [vmem:[#allocation2 + $0x8e4] sm:$0xff] 0
        %581 = vst [vmem:[#allocation2 + $0x8ec] sm:$0xff] 0
        %582 = vst [vmem:[#allocation2 + $0x8f4] sm:$0xff] 0
        %583 = vst [vmem:[#allocation2 + $0x8fc] sm:$0xff] 0
        %584 = vst [vmem:[#allocation2 + $0x904] sm:$0xff] 0
        %585 = vst [vmem:[#allocation2 + $0x90c] sm:$0xff] 0
        %586 = vst [vmem:[#allocation2 + $0x914] sm:$0xff] 0
        %587 = vst [vmem:[#allocation2 + $0x91c] sm:$0xff] 0
        %588 = vst [vmem:[#allocation2 + $0x924] sm:$0xff] 0
        %589 = vst [vmem:[#allocation2 + $0x92c] sm:$0xf] 0
        %590 = vst [vmem:[#allocation3] sm:$0xff] 0
        %591 = vst [vmem:[#allocation3 + $0x8] sm:$0xff] 0
        %592 = vst [vmem:[#allocation3 + $0x10] sm:$0xff] 0
        %593 = vst [vmem:[#allocation3 + $0x18] sm:$0xff] 0
        %594 = vst [vmem:[#allocation3 + $0x20] sm:$0xff] 0
        %595 = vst [vmem:[#allocation3 + $0x28] sm:$0xff] 0
        %596 = vst [vmem:[#allocation3 + $0x30] sm:$0xff] 0
        %597 = vst [vmem:[#allocation3 + $0x38] sm:$0xff] 0
        %598 = vst [vmem:[#allocation3 + $0x40] sm:$0xff] 0
        %599 = vst [vmem:[#allocation3 + $0x48] sm:$0xff] 0
        %600 = vst [vmem:[#allocation3 + $0x50] sm:$0xff] 0
        %601 = vst [vmem:[#allocation3 + $0x58] sm:$0xff] 0
        %602 = vst [vmem:[#allocation3 + $0x60] sm:$0xff] 0
        %603 = vst [vmem:[#allocation3 + $0x68] sm:$0xf] 0
        %v604 = vld [vmem:[%s248] sm:$0xff]
        %v605 = vld [vmem:[%s248 + $0x8] sm:$0xff]
        %v606 = vld [vmem:[%s248 + $0x10] sm:$0xff]
        %v607 = vld [vmem:[%s248 + $0x18] sm:$0xff]
        %v608 = vld [vmem:[%s248 + $0x20] sm:$0xff]
        %v609 = vld [vmem:[%s248 + $0x28] sm:$0x3]
        %v616 = vcombine.high %v604, %v604
        %v618 = vunpack.c.l.s4 1983009808
        %v619 = vunpack.c.0.s8 %v618
        %v620 = vlaneseq
        %v621 = vshrl.u32 %v620, 7
        %v622 = vsub.s32 %v619, %v621
        %v623 = vrot.slane %v604, %v622
        %v625 = vunpack.c.l.s4 1983009808
        %v626 = vunpack.c.0.s8 %v625
        %v627 = vlaneseq
        %v628 = vshrl.u32 %v627, 7
        %v629 = vsub.s32 %v626, %v628
        %v630 = vrot.slane %v616, %v629
        %v631 = vcombine.high %v605, %v605
        %v633 = vunpack.c.l.s4 1983009808
        %v634 = vunpack.c.0.s8 %v633
        %v635 = vlaneseq
        %v636 = vshrl.u32 %v635, 7
        %v637 = vsub.s32 %v634, %v636
        %v638 = vrot.slane %v605, %v637
        %v640 = vunpack.c.l.s4 1983009808
        %v641 = vunpack.c.0.s8 %v640
        %v642 = vlaneseq
        %v643 = vshrl.u32 %v642, 7
        %v644 = vsub.s32 %v641, %v643
        %v645 = vrot.slane %v631, %v644
        %v646 = vcombine.high %v606, %v606
        %v648 = vunpack.c.l.s4 1983009808
        %v649 = vunpack.c.0.s8 %v648
        %v650 = vlaneseq
        %v651 = vshrl.u32 %v650, 7
        %v652 = vsub.s32 %v649, %v651
        %v653 = vrot.slane %v606, %v652
        %v655 = vunpack.c.l.s4 1983009808
        %v656 = vunpack.c.0.s8 %v655
        %v657 = vlaneseq
        %v658 = vshrl.u32 %v657, 7
        %v659 = vsub.s32 %v656, %v658
        %v660 = vrot.slane %v646, %v659
        %v661 = vcombine.high %v607, %v607
        %v663 = vunpack.c.l.s4 1983009808
        %v664 = vunpack.c.0.s8 %v663
        %v665 = vlaneseq
        %v666 = vshrl.u32 %v665, 7
        %v667 = vsub.s32 %v664, %v666
        %v668 = vrot.slane %v607, %v667
        %v670 = vunpack.c.l.s4 1983009808
        %v671 = vunpack.c.0.s8 %v670
        %v672 = vlaneseq
        %v673 = vshrl.u32 %v672, 7
        %v674 = vsub.s32 %v671, %v673
        %v675 = vrot.slane %v661, %v674
        %v676 = vcombine.high %v608, %v608
        %v678 = vunpack.c.l.s4 1983009808
        %v679 = vunpack.c.0.s8 %v678
        %v680 = vlaneseq
        %v681 = vshrl.u32 %v680, 7
        %v682 = vsub.s32 %v679, %v681
        %v683 = vrot.slane %v608, %v682
        %v685 = vunpack.c.l.s4 1983009808
        %v686 = vunpack.c.0.s8 %v685
        %v687 = vlaneseq
        %v688 = vshrl.u32 %v687, 7
        %v689 = vsub.s32 %v686, %v688
        %v690 = vrot.slane %v676, %v689
        %v692 = vunpack.c.l.s4 1983009808
        %v693 = vunpack.c.0.s8 %v692
        %v694 = vlaneseq
        %v695 = vshrl.u32 %v694, 7
        %v696 = vsub.s32 %v693, %v695
        %v697 = vrot.slane %v609, %v696
        %709 = vst [vmem:[#allocation2] sm:$0x33] %v623
        %710 = vst [vmem:[#allocation2 + $0x8] sm:$0x33] %v630
        %711 = vst [vmem:[#allocation2 + $0x10] sm:$0x33] %v638
        %712 = vst [vmem:[#allocation2 + $0x18] sm:$0x33] %v645
        %713 = vst [vmem:[#allocation2 + $0x20] sm:$0x33] %v653
        %714 = vst [vmem:[#allocation2 + $0x28] sm:$0x33] %v660
        %715 = vst [vmem:[#allocation2 + $0x30] sm:$0x33] %v668
        %716 = vst [vmem:[#allocation2 + $0x38] sm:$0x33] %v675
        %717 = vst [vmem:[#allocation2 + $0x40] sm:$0x33] %v683
        %718 = vst [vmem:[#allocation2 + $0x48] sm:$0x33] %v690
        %719 = vst [vmem:[#allocation2 + $0x50] sm:$0x3] %v697
        %v720 = vld [vmem:[%s248] sm:$0xff]
        %v721 = vld [vmem:[%s248 + $0x8] sm:$0xff]
        %v722 = vld [vmem:[%s248 + $0x10] sm:$0xff]
        %v723 = vld [vmem:[%s248 + $0x18] sm:$0xff]
        %v724 = vld [vmem:[%s248 + $0x20] sm:$0xff]
        %v725 = vld [vmem:[%s248 + $0x28] sm:$0xf]
        %v732 = vcombine.low %v720, %v720
        %v734 = vunpack.c.l.s4 1983009808
        %v735 = vunpack.c.0.s8 %v734
        %v736 = vlaneseq
        %v737 = vshrl.u32 %v736, 7
        %v738 = vsub.s32 %v735, %v737
        %v739 = vrot.slane %v732, %v738
        %v741 = vunpack.c.l.s4 1983009808
        %v742 = vunpack.c.0.s8 %v741
        %v743 = vlaneseq
        %v744 = vshrl.u32 %v743, 7
        %v745 = vsub.s32 %v742, %v744
        %v746 = vrot.slane %v720, %v745
        %v747 = vcombine.low %v721, %v721
        %v749 = vunpack.c.l.s4 1983009808
        %v750 = vunpack.c.0.s8 %v749
        %v751 = vlaneseq
        %v752 = vshrl.u32 %v751, 7
        %v753 = vsub.s32 %v750, %v752
        %v754 = vrot.slane %v747, %v753
        %v756 = vunpack.c.l.s4 1983009808
        %v757 = vunpack.c.0.s8 %v756
        %v758 = vlaneseq
        %v759 = vshrl.u32 %v758, 7
        %v760 = vsub.s32 %v757, %v759
        %v761 = vrot.slane %v721, %v760
        %v762 = vcombine.low %v722, %v722
        %v764 = vunpack.c.l.s4 1983009808
        %v765 = vunpack.c.0.s8 %v764
        %v766 = vlaneseq
        %v767 = vshrl.u32 %v766, 7
        %v768 = vsub.s32 %v765, %v767
        %v769 = vrot.slane %v762, %v768
        %v771 = vunpack.c.l.s4 1983009808
        %v772 = vunpack.c.0.s8 %v771
        %v773 = vlaneseq
        %v774 = vshrl.u32 %v773, 7
        %v775 = vsub.s32 %v772, %v774
        %v776 = vrot.slane %v722, %v775
        %v777 = vcombine.low %v723, %v723
        %v779 = vunpack.c.l.s4 1983009808
        %v780 = vunpack.c.0.s8 %v779
        %v781 = vlaneseq
        %v782 = vshrl.u32 %v781, 7
        %v783 = vsub.s32 %v780, %v782
        %v784 = vrot.slane %v777, %v783
        %v786 = vunpack.c.l.s4 1983009808
        %v787 = vunpack.c.0.s8 %v786
        %v788 = vlaneseq
        %v789 = vshrl.u32 %v788, 7
        %v790 = vsub.s32 %v787, %v789
        %v791 = vrot.slane %v723, %v790
        %v792 = vcombine.low %v724, %v724
        %v794 = vunpack.c.l.s4 1983009808
        %v795 = vunpack.c.0.s8 %v794
        %v796 = vlaneseq
        %v797 = vshrl.u32 %v796, 7
        %v798 = vsub.s32 %v795, %v797
        %v799 = vrot.slane %v792, %v798
        %v801 = vunpack.c.l.s4 1983009808
        %v802 = vunpack.c.0.s8 %v801
        %v803 = vlaneseq
        %v804 = vshrl.u32 %v803, 7
        %v805 = vsub.s32 %v802, %v804
        %v806 = vrot.slane %v724, %v805
        %v807 = vcombine.low %v725, %v725
        %v809 = vunpack.c.l.s4 1983009808
        %v810 = vunpack.c.0.s8 %v809
        %v811 = vlaneseq
        %v812 = vshrl.u32 %v811, 7
        %v813 = vsub.s32 %v810, %v812
        %v814 = vrot.slane %v807, %v813
        %815 = vrot.lane.b32.xlu0 %v739, 127
        %v816 = vpop.permute.xlu0 %815
        %817 = vrot.lane.b32.xlu0 %v746, 127
        %v818 = vpop.permute.xlu0 %817
        %819 = vrot.lane.b32.xlu0 %v754, 127
        %v820 = vpop.permute.xlu0 %819
        %821 = vrot.lane.b32.xlu0 %v761, 127
        %v822 = vpop.permute.xlu0 %821
        %823 = vrot.lane.b32.xlu0 %v769, 127
        %v824 = vpop.permute.xlu0 %823
        %825 = vrot.lane.b32.xlu0 %v776, 127
        %v826 = vpop.permute.xlu0 %825
        %827 = vrot.lane.b32.xlu0 %v784, 127
        %v828 = vpop.permute.xlu0 %827
        %829 = vrot.lane.b32.xlu0 %v791, 127
        %v830 = vpop.permute.xlu0 %829
        %831 = vrot.lane.b32.xlu0 %v799, 127
        %v832 = vpop.permute.xlu0 %831
        %833 = vrot.lane.b32.xlu0 %v806, 127
        %v834 = vpop.permute.xlu0 %833
        %835 = vrot.lane.b32.xlu0 %v814, 127
        %v836 = vpop.permute.xlu0 %835
        %v837 = vrot.slane %v816, 4
        %v838 = vrot.slane %v818, 4
        %v839 = vrot.slane %v820, 4
        %v840 = vrot.slane %v822, 4
        %v841 = vrot.slane %v824, 4
        %v842 = vrot.slane %v826, 4
        %v843 = vrot.slane %v828, 4
        %v844 = vrot.slane %v830, 4
        %v845 = vrot.slane %v832, 4
        %v846 = vrot.slane %v834, 4
        %v847 = vrot.slane %v836, 4
        %vm848 = vcmask 1043456
        %v849 = vsel %vm848, %v837, %v838
        %vm850 = vcmask 1039360
        %v851 = vsel %vm850, %v816, %v849
        %v852 = vsel %vm848, %v838, %v839
        %v853 = vsel %vm850, %v818, %v852
        %v854 = vsel %vm848, %v839, %v840
        %v855 = vsel %vm850, %v820, %v854
        %v856 = vsel %vm848, %v840, %v841
        %v857 = vsel %vm850, %v822, %v856
        %v858 = vsel %vm848, %v841, %v842
        %v859 = vsel %vm850, %v824, %v858
        %v860 = vsel %vm848, %v842, %v843
        %v861 = vsel %vm850, %v826, %v860
        %v862 = vsel %vm848, %v843, %v844
        %v863 = vsel %vm850, %v828, %v862
        %v864 = vsel %vm848, %v844, %v845
        %v865 = vsel %vm850, %v830, %v864
        %v866 = vsel %vm848, %v845, %v846
        %v867 = vsel %vm850, %v832, %v866
        %v868 = vsel %vm848, %v846, %v847
        %v869 = vsel %vm850, %v834, %v868
        %v870 = vsel %vm850, %v836, %v847
        %882 = vst [vmem:[#allocation2] sm:$0xcc] %v851
        %883 = vst [vmem:[#allocation2 + $0x8] sm:$0xcc] %v853
        %884 = vst [vmem:[#allocation2 + $0x10] sm:$0xcc] %v855
        %885 = vst [vmem:[#allocation2 + $0x18] sm:$0xcc] %v857
        %886 = vst [vmem:[#allocation2 + $0x20] sm:$0xcc] %v859
        %887 = vst [vmem:[#allocation2 + $0x28] sm:$0xcc] %v861
        %888 = vst [vmem:[#allocation2 + $0x30] sm:$0xcc] %v863
        %889 = vst [vmem:[#allocation2 + $0x38] sm:$0xcc] %v865
        %890 = vst [vmem:[#allocation2 + $0x40] sm:$0xcc] %v867
        %891 = vst [vmem:[#allocation2 + $0x48] sm:$0xcc] %v869
        %892 = vst [vmem:[#allocation2 + $0x50] sm:$0xc] %v870
        %v893 = vld [vmem:[%s248] sm:$0xff]
        %v894 = vld [vmem:[%s248 + $0x8] sm:$0xff]
        %v895 = vld [vmem:[%s248 + $0x10] sm:$0xff]
        %v896 = vld [vmem:[%s248 + $0x18] sm:$0xff]
        %v897 = vld [vmem:[%s248 + $0x20] sm:$0xff]
        %v898 = vld [vmem:[%s248 + $0x28] sm:$0xf]
        %v905 = vcombine.high %v893, %v893
        %v907 = vunpack.c.l.s4 1983009808
        %v908 = vunpack.c.0.s8 %v907
        %v909 = vlaneseq
        %v910 = vshrl.u32 %v909, 7
        %v911 = vsub.s32 %v908, %v910
        %v912 = vrot.slane %v893, %v911
        %v914 = vunpack.c.l.s4 1983009808
        %v915 = vunpack.c.0.s8 %v914
        %v916 = vlaneseq
        %v917 = vshrl.u32 %v916, 7
        %v918 = vsub.s32 %v915, %v917
        %v919 = vrot.slane %v905, %v918
        %v920 = vcombine.high %v894, %v894
        %v922 = vunpack.c.l.s4 1983009808
        %v923 = vunpack.c.0.s8 %v922
        %v924 = vlaneseq
        %v925 = vshrl.u32 %v924, 7
        %v926 = vsub.s32 %v923, %v925
        %v927 = vrot.slane %v894, %v926
        %v929 = vunpack.c.l.s4 1983009808
        %v930 = vunpack.c.0.s8 %v929
        %v931 = vlaneseq
        %v932 = vshrl.u32 %v931, 7
        %v933 = vsub.s32 %v930, %v932
        %v934 = vrot.slane %v920, %v933
        %v935 = vcombine.high %v895, %v895
        %v937 = vunpack.c.l.s4 1983009808
        %v938 = vunpack.c.0.s8 %v937
        %v939 = vlaneseq
        %v940 = vshrl.u32 %v939, 7
        %v941 = vsub.s32 %v938, %v940
        %v942 = vrot.slane %v895, %v941
        %v944 = vunpack.c.l.s4 1983009808
        %v945 = vunpack.c.0.s8 %v944
        %v946 = vlaneseq
        %v947 = vshrl.u32 %v946, 7
        %v948 = vsub.s32 %v945, %v947
        %v949 = vrot.slane %v935, %v948
        %v950 = vcombine.high %v896, %v896
        %v952 = vunpack.c.l.s4 1983009808
        %v953 = vunpack.c.0.s8 %v952
        %v954 = vlaneseq
        %v955 = vshrl.u32 %v954, 7
        %v956 = vsub.s32 %v953, %v955
        %v957 = vrot.slane %v896, %v956
        %v959 = vunpack.c.l.s4 1983009808
        %v960 = vunpack.c.0.s8 %v959
        %v961 = vlaneseq
        %v962 = vshrl.u32 %v961, 7
        %v963 = vsub.s32 %v960, %v962
        %v964 = vrot.slane %v950, %v963
        %v965 = vcombine.high %v897, %v897
        %v967 = vunpack.c.l.s4 1983009808
        %v968 = vunpack.c.0.s8 %v967
        %v969 = vlaneseq
        %v970 = vshrl.u32 %v969, 7
        %v971 = vsub.s32 %v968, %v970
        %v972 = vrot.slane %v897, %v971
        %v974 = vunpack.c.l.s4 1983009808
        %v975 = vunpack.c.0.s8 %v974
        %v976 = vlaneseq
        %v977 = vshrl.u32 %v976, 7
        %v978 = vsub.s32 %v975, %v977
        %v979 = vrot.slane %v965, %v978
        %v981 = vunpack.c.l.s4 1983009808
        %v982 = vunpack.c.0.s8 %v981
        %v983 = vlaneseq
        %v984 = vshrl.u32 %v983, 7
        %v985 = vsub.s32 %v982, %v984
        %v986 = vrot.slane %v898, %v985
        %987 = vrot.lane.b32.xlu0 %v912, 126
        %v988 = vpop.permute.xlu0 %987
        %989 = vrot.lane.b32.xlu0 %v919, 126
        %v990 = vpop.permute.xlu0 %989
        %991 = vrot.lane.b32.xlu0 %v927, 126
        %v992 = vpop.permute.xlu0 %991
        %993 = vrot.lane.b32.xlu0 %v934, 126
        %v994 = vpop.permute.xlu0 %993
        %995 = vrot.lane.b32.xlu0 %v942, 126
        %v996 = vpop.permute.xlu0 %995
        %997 = vrot.lane.b32.xlu0 %v949, 126
        %v998 = vpop.permute.xlu0 %997
        %999 = vrot.lane.b32.xlu0 %v957, 126
        %v1000 = vpop.permute.xlu0 %999
        %1001 = vrot.lane.b32.xlu0 %v964, 126
        %v1002 = vpop.permute.xlu0 %1001
        %1003 = vrot.lane.b32.xlu0 %v972, 126
        %v1004 = vpop.permute.xlu0 %1003
        %1005 = vrot.lane.b32.xlu0 %v979, 126
        %v1006 = vpop.permute.xlu0 %1005
        %1007 = vrot.lane.b32.xlu0 %v986, 126
        %v1008 = vpop.permute.xlu0 %1007
        %v1009 = vrot.slane %v988, 4
        %v1010 = vrot.slane %v990, 4
        %v1011 = vrot.slane %v992, 4
        %v1012 = vrot.slane %v994, 4
        %v1013 = vrot.slane %v996, 4
        %v1014 = vrot.slane %v998, 4
        %v1015 = vrot.slane %v1000, 4
        %v1016 = vrot.slane %v1002, 4
        %v1017 = vrot.slane %v1004, 4
        %v1018 = vrot.slane %v1006, 4
        %v1019 = vrot.slane %v1008, 4
        %v1020 = vsel %vm848, %v1009, %v1010
        %vm1021 = vcmask 1031168
        %v1022 = vsel %vm1021, %v988, %v1020
        %v1023 = vsel %vm848, %v1010, %v1011
        %v1024 = vsel %vm1021, %v990, %v1023
        %v1025 = vsel %vm848, %v1011, %v1012
        %v1026 = vsel %vm1021, %v992, %v1025
        %v1027 = vsel %vm848, %v1012, %v1013
        %v1028 = vsel %vm1021, %v994, %v1027
        %v1029 = vsel %vm848, %v1013, %v1014
        %v1030 = vsel %vm1021, %v996, %v1029
        %v1031 = vsel %vm848, %v1014, %v1015
        %v1032 = vsel %vm1021, %v998, %v1031
        %v1033 = vsel %vm848, %v1015, %v1016
        %v1034 = vsel %vm1021, %v1000, %v1033
        %v1035 = vsel %vm848, %v1016, %v1017
        %v1036 = vsel %vm1021, %v1002, %v1035
        %v1037 = vsel %vm848, %v1017, %v1018
        %v1038 = vsel %vm1021, %v1004, %v1037
        %v1039 = vsel %vm848, %v1018, %v1019
        %v1040 = vsel %vm1021, %v1006, %v1039
        %v1041 = vsel %vm1021, %v1008, %v1019
        %1053 = vst [vmem:[#allocation2 + $0x54] sm:$0x33] %v1022
        %1054 = vst [vmem:[#allocation2 + $0x5c] sm:$0x33] %v1024
        %1055 = vst [vmem:[#allocation2 + $0x64] sm:$0x33] %v1026
        %1056 = vst [vmem:[#allocation2 + $0x6c] sm:$0x33] %v1028
        %1057 = vst [vmem:[#allocation2 + $0x74] sm:$0x33] %v1030
        %1058 = vst [vmem:[#allocation2 + $0x7c] sm:$0x33] %v1032
        %1059 = vst [vmem:[#allocation2 + $0x84] sm:$0x33] %v1034
        %1060 = vst [vmem:[#allocation2 + $0x8c] sm:$0x33] %v1036
        %1061 = vst [vmem:[#allocation2 + $0x94] sm:$0x33] %v1038
        %1062 = vst [vmem:[#allocation2 + $0x9c] sm:$0x33] %v1040
        %1063 = vst [vmem:[#allocation2 + $0xa4] sm:$0x3] %v1041
        %v1064 = vld [vmem:[%s248] sm:$0xff]
        %v1065 = vld [vmem:[%s248 + $0x8] sm:$0xff]
        %v1066 = vld [vmem:[%s248 + $0x10] sm:$0xff]
        %v1067 = vld [vmem:[%s248 + $0x18] sm:$0xff]
        %v1068 = vld [vmem:[%s248 + $0x20] sm:$0xff]
        %v1069 = vld [vmem:[%s248 + $0x28] sm:$0xf]
        %v1076 = vcombine.low %v1064, %v1064
        %v1078 = vunpack.c.l.s4 1983009808
        %v1079 = vunpack.c.0.s8 %v1078
        %v1080 = vlaneseq
        %v1081 = vshrl.u32 %v1080, 7
        %v1082 = vsub.s32 %v1079, %v1081
        %v1083 = vrot.slane %v1076, %v1082
        %v1085 = vunpack.c.l.s4 1983009808
        %v1086 = vunpack.c.0.s8 %v1085
        %v1087 = vlaneseq
        %v1088 = vshrl.u32 %v1087, 7
        %v1089 = vsub.s32 %v1086, %v1088
        %v1090 = vrot.slane %v1064, %v1089
        %v1091 = vcombine.low %v1065, %v1065
        %v1093 = vunpack.c.l.s4 1983009808
        %v1094 = vunpack.c.0.s8 %v1093
        %v1095 = vlaneseq
        %v1096 = vshrl.u32 %v1095, 7
        %v1097 = vsub.s32 %v1094, %v1096
        %v1098 = vrot.slane %v1091, %v1097
        %v1100 = vunpack.c.l.s4 1983009808
        %v1101 = vunpack.c.0.s8 %v1100
        %v1102 = vlaneseq
        %v1103 = vshrl.u32 %v1102, 7
        %v1104 = vsub.s32 %v1101, %v1103
        %v1105 = vrot.slane %v1065, %v1104
        %v1106 = vcombine.low %v1066, %v1066
        %v1108 = vunpack.c.l.s4 1983009808
        %v1109 = vunpack.c.0.s8 %v1108
        %v1110 = vlaneseq
        %v1111 = vshrl.u32 %v1110, 7
        %v1112 = vsub.s32 %v1109, %v1111
        %v1113 = vrot.slane %v1106, %v1112
        %v1115 = vunpack.c.l.s4 1983009808
        %v1116 = vunpack.c.0.s8 %v1115
        %v1117 = vlaneseq
        %v1118 = vshrl.u32 %v1117, 7
        %v1119 = vsub.s32 %v1116, %v1118
        %v1120 = vrot.slane %v1066, %v1119
        %v1121 = vcombine.low %v1067, %v1067
        %v1123 = vunpack.c.l.s4 1983009808
        %v1124 = vunpack.c.0.s8 %v1123
        %v1125 = vlaneseq
        %v1126 = vshrl.u32 %v1125, 7
        %v1127 = vsub.s32 %v1124, %v1126
        %v1128 = vrot.slane %v1121, %v1127
        %v1130 = vunpack.c.l.s4 1983009808
        %v1131 = vunpack.c.0.s8 %v1130
        %v1132 = vlaneseq
        %v1133 = vshrl.u32 %v1132, 7
        %v1134 = vsub.s32 %v1131, %v1133
        %v1135 = vrot.slane %v1067, %v1134
        %v1136 = vcombine.low %v1068, %v1068
        %v1138 = vunpack.c.l.s4 1983009808
        %v1139 = vunpack.c.0.s8 %v1138
        %v1140 = vlaneseq
        %v1141 = vshrl.u32 %v1140, 7
        %v1142 = vsub.s32 %v1139, %v1141
        %v1143 = vrot.slane %v1136, %v1142
        %v1145 = vunpack.c.l.s4 1983009808
        %v1146 = vunpack.c.0.s8 %v1145
        %v1147 = vlaneseq
        %v1148 = vshrl.u32 %v1147, 7
        %v1149 = vsub.s32 %v1146, %v1148
        %v1150 = vrot.slane %v1068, %v1149
        %v1151 = vcombine.low %v1069, %v1069
        %v1153 = vunpack.c.l.s4 1983009808
        %v1154 = vunpack.c.0.s8 %v1153
        %v1155 = vlaneseq
        %v1156 = vshrl.u32 %v1155, 7
        %v1157 = vsub.s32 %v1154, %v1156
        %v1158 = vrot.slane %v1151, %v1157
        %1159 = vrot.lane.b32.xlu0 %v1083, 110
        %v1160 = vpop.permute.xlu0 %1159
        %1161 = vrot.lane.b32.xlu0 %v1090, 110
        %v1162 = vpop.permute.xlu0 %1161
        %1163 = vrot.lane.b32.xlu0 %v1098, 110
        %v1164 = vpop.permute.xlu0 %1163
        %1165 = vrot.lane.b32.xlu0 %v1105, 110
        %v1166 = vpop.permute.xlu0 %1165
        %1167 = vrot.lane.b32.xlu0 %v1113, 110
        %v1168 = vpop.permute.xlu0 %1167
        %1169 = vrot.lane.b32.xlu0 %v1120, 110
        %v1170 = vpop.permute.xlu0 %1169
        %1171 = vrot.lane.b32.xlu0 %v1128, 110
        %v1172 = vpop.permute.xlu0 %1171
        %1173 = vrot.lane.b32.xlu0 %v1135, 110
        %v1174 = vpop.permute.xlu0 %1173
        %1175 = vrot.lane.b32.xlu0 %v1143, 110
        %v1176 = vpop.permute.xlu0 %1175
        %1177 = vrot.lane.b32.xlu0 %v1150, 110
        %v1178 = vpop.permute.xlu0 %1177
        %1179 = vrot.lane.b32.xlu0 %v1158, 110
        %v1180 = vpop.permute.xlu0 %1179
        %v1181 = vrot.slane %v1160, 4
        %v1182 = vrot.slane %v1162, 4
        %v1183 = vrot.slane %v1164, 4
        %v1184 = vrot.slane %v1166, 4
        %v1185 = vrot.slane %v1168, 4
        %v1186 = vrot.slane %v1170, 4
        %v1187 = vrot.slane %v1172, 4
        %v1188 = vrot.slane %v1174, 4
        %v1189 = vrot.slane %v1176, 4
        %v1190 = vrot.slane %v1178, 4
        %v1191 = vrot.slane %v1180, 4
        %v1192 = vsel %vm848, %v1181, %v1182
        %vm1193 = vcmask 900096
        %v1194 = vsel %vm1193, %v1160, %v1192
        %v1195 = vsel %vm848, %v1182, %v1183
        %v1196 = vsel %vm1193, %v1162, %v1195
        %v1197 = vsel %vm848, %v1183, %v1184
        %v1198 = vsel %vm1193, %v1164, %v1197
        %v1199 = vsel %vm848, %v1184, %v1185
        %v1200 = vsel %vm1193, %v1166, %v1199
        %v1201 = vsel %vm848, %v1185, %v1186
        %v1202 = vsel %vm1193, %v1168, %v1201
        %v1203 = vsel %vm848, %v1186, %v1187
        %v1204 = vsel %vm1193, %v1170, %v1203
        %v1205 = vsel %vm848, %v1187, %v1188
        %v1206 = vsel %vm1193, %v1172, %v1205
        %v1207 = vsel %vm848, %v1188, %v1189
        %v1208 = vsel %vm1193, %v1174, %v1207
        %v1209 = vsel %vm848, %v1189, %v1190
        %v1210 = vsel %vm1193, %v1176, %v1209
        %v1211 = vsel %vm848, %v1190, %v1191
        %v1212 = vsel %vm1193, %v1178, %v1211
        %v1213 = vsel %vm1193, %v1180, %v1191
        %1225 = vst [vmem:[#allocation2 + $0x54] sm:$0xcc] %v1194
        %1226 = vst [vmem:[#allocation2 + $0x5c] sm:$0xcc] %v1196
        %1227 = vst [vmem:[#allocation2 + $0x64] sm:$0xcc] %v1198
        %1228 = vst [vmem:[#allocation2 + $0x6c] sm:$0xcc] %v1200
        %1229 = vst [vmem:[#allocation2 + $0x74] sm:$0xcc] %v1202
        %1230 = vst [vmem:[#allocation2 + $0x7c] sm:$0xcc] %v1204
        %1231 = vst [vmem:[#allocation2 + $0x84] sm:$0xcc] %v1206
        %1232 = vst [vmem:[#allocation2 + $0x8c] sm:$0xcc] %v1208
        %1233 = vst [vmem:[#allocation2 + $0x94] sm:$0xcc] %v1210
        %1234 = vst [vmem:[#allocation2 + $0x9c] sm:$0xcc] %v1212
        %1235 = vst [vmem:[#allocation2 + $0xa4] sm:$0xc] %v1213
        %v1236 = vld [vmem:[%s248] sm:$0xff]
        %v1237 = vld [vmem:[%s248 + $0x8] sm:$0xff]
        %v1238 = vld [vmem:[%s248 + $0x10] sm:$0xff]
        %v1239 = vld [vmem:[%s248 + $0x18] sm:$0xff]
        %v1240 = vld [vmem:[%s248 + $0x20] sm:$0xff]
        %v1241 = vld [vmem:[%s248 + $0x28] sm:$0xf]
        %v1248 = vcombine.high %v1236, %v1236
        %v1250 = vunpack.c.l.s4 1983009808
        %v1251 = vunpack.c.0.s8 %v1250
        %v1252 = vlaneseq
        %v1253 = vshrl.u32 %v1252, 7
        %v1254 = vsub.s32 %v1251, %v1253
        %v1255 = vrot.slane %v1236, %v1254
        %v1257 = vunpack.c.l.s4 1983009808
        %v1258 = vunpack.c.0.s8 %v1257
        %v1259 = vlaneseq
        %v1260 = vshrl.u32 %v1259, 7
        %v1261 = vsub.s32 %v1258, %v1260
        %v1262 = vrot.slane %v1248, %v1261
        %v1263 = vcombine.high %v1237, %v1237
        %v1265 = vunpack.c.l.s4 1983009808
        %v1266 = vunpack.c.0.s8 %v1265
        %v1267 = vlaneseq
        %v1268 = vshrl.u32 %v1267, 7
        %v1269 = vsub.s32 %v1266, %v1268
        %v1270 = vrot.slane %v1237, %v1269
        %v1272 = vunpack.c.l.s4 1983009808
        %v1273 = vunpack.c.0.s8 %v1272
        %v1274 = vlaneseq
        %v1275 = vshrl.u32 %v1274, 7
        %v1276 = vsub.s32 %v1273, %v1275
        %v1277 = vrot.slane %v1263, %v1276
        %v1278 = vcombine.high %v1238, %v1238
        %v1280 = vunpack.c.l.s4 1983009808
        %v1281 = vunpack.c.0.s8 %v1280
        %v1282 = vlaneseq
        %v1283 = vshrl.u32 %v1282, 7
        %v1284 = vsub.s32 %v1281, %v1283
        %v1285 = vrot.slane %v1238, %v1284
        %v1287 = vunpack.c.l.s4 1983009808
        %v1288 = vunpack.c.0.s8 %v1287
        %v1289 = vlaneseq
        %v1290 = vshrl.u32 %v1289, 7
        %v1291 = vsub.s32 %v1288, %v1290
        %v1292 = vrot.slane %v1278, %v1291
        %v1293 = vcombine.high %v1239, %v1239
        %v1295 = vunpack.c.l.s4 1983009808
        %v1296 = vunpack.c.0.s8 %v1295
        %v1297 = vlaneseq
        %v1298 = vshrl.u32 %v1297, 7
        %v1299 = vsub.s32 %v1296, %v1298
        %v1300 = vrot.slane %v1239, %v1299
        %v1302 = vunpack.c.l.s4 1983009808
        %v1303 = vunpack.c.0.s8 %v1302
        %v1304 = vlaneseq
        %v1305 = vshrl.u32 %v1304, 7
        %v1306 = vsub.s32 %v1303, %v1305
        %v1307 = vrot.slane %v1293, %v1306
        %v1308 = vcombine.high %v1240, %v1240
        %v1310 = vunpack.c.l.s4 1983009808
        %v1311 = vunpack.c.0.s8 %v1310
        %v1312 = vlaneseq
        %v1313 = vshrl.u32 %v1312, 7
        %v1314 = vsub.s32 %v1311, %v1313
        %v1315 = vrot.slane %v1240, %v1314
        %v1317 = vunpack.c.l.s4 1983009808
        %v1318 = vunpack.c.0.s8 %v1317
        %v1319 = vlaneseq
        %v1320 = vshrl.u32 %v1319, 7
        %v1321 = vsub.s32 %v1318, %v1320
        %v1322 = vrot.slane %v1308, %v1321
        %v1324 = vunpack.c.l.s4 1983009808
        %v1325 = vunpack.c.0.s8 %v1324
        %v1326 = vlaneseq
        %v1327 = vshrl.u32 %v1326, 7
        %v1328 = vsub.s32 %v1325, %v1327
        %v1329 = vrot.slane %v1241, %v1328
        %1330 = vrot.lane.b32.xlu0 %v1255, 109
        %v1331 = vpop.permute.xlu0 %1330
        %1332 = vrot.lane.b32.xlu0 %v1262, 109
        %v1333 = vpop.permute.xlu0 %1332
        %1334 = vrot.lane.b32.xlu0 %v1270, 109
        %v1335 = vpop.permute.xlu0 %1334
        %1336 = vrot.lane.b32.xlu0 %v1277, 109
        %v1337 = vpop.permute.xlu0 %1336
        %1338 = vrot.lane.b32.xlu0 %v1285, 109
        %v1339 = vpop.permute.xlu0 %1338
        %1340 = vrot.lane.b32.xlu0 %v1292, 109
        %v1341 = vpop.permute.xlu0 %1340
        %1342 = vrot.lane.b32.xlu0 %v1300, 109
        %v1343 = vpop.permute.xlu0 %1342
        %1344 = vrot.lane.b32.xlu0 %v1307, 109
        %v1345 = vpop.permute.xlu0 %1344
        %1346 = vrot.lane.b32.xlu0 %v1315, 109
        %v1347 = vpop.permute.xlu0 %1346
        %1348 = vrot.lane.b32.xlu0 %v1322, 109
        %v1349 = vpop.permute.xlu0 %1348
        %1350 = vrot.lane.b32.xlu0 %v1329, 109
        %v1351 = vpop.permute.xlu0 %1350
        %v1352 = vrot.slane %v1331, 4
        %v1353 = vrot.slane %v1333, 4
        %v1354 = vrot.slane %v1335, 4
        %v1355 = vrot.slane %v1337, 4
        %v1356 = vrot.slane %v1339, 4
        %v1357 = vrot.slane %v1341, 4
        %v1358 = vrot.slane %v1343, 4
        %v1359 = vrot.slane %v1345, 4
        %v1360 = vrot.slane %v1347, 4
        %v1361 = vrot.slane %v1349, 4
        %v1362 = vrot.slane %v1351, 4
        %v1363 = vsel %vm848, %v1352, %v1353
        %vm1364 = vcmask 891904
        %v1365 = vsel %vm1364, %v1331, %v1363
        %v1366 = vsel %vm848, %v1353, %v1354
        %v1367 = vsel %vm1364, %v1333, %v1366
        %v1368 = vsel %vm848, %v1354, %v1355
        %v1369 = vsel %vm1364, %v1335, %v1368
        %v1370 = vsel %vm848, %v1355, %v1356
        %v1371 = vsel %vm1364, %v1337, %v1370
        %v1372 = vsel %vm848, %v1356, %v1357
        %v1373 = vsel %vm1364, %v1339, %v1372
        %v1374 = vsel %vm848, %v1357, %v1358
        %v1375 = vsel %vm1364, %v1341, %v1374
        %v1376 = vsel %vm848, %v1358, %v1359
        %v1377 = vsel %vm1364, %v1343, %v1376
        %v1378 = vsel %vm848, %v1359, %v1360
        %v1379 = vsel %vm1364, %v1345, %v1378
        %v1380 = vsel %vm848, %v1360, %v1361
        %v1381 = vsel %vm1364, %v1347, %v1380
        %v1382 = vsel %vm848, %v1361, %v1362
        %v1383 = vsel %vm1364, %v1349, %v1382
        %v1384 = vsel %vm1364, %v1351, %v1362
        %1396 = vst [vmem:[#allocation2 + $0xa8] sm:$0x33] %v1365
        %1397 = vst [vmem:[#allocation2 + $0xb0] sm:$0x33] %v1367
        %1398 = vst [vmem:[#allocation2 + $0xb8] sm:$0x33] %v1369
        %1399 = vst [vmem:[#allocation2 + $0xc0] sm:$0x33] %v1371
        %1400 = vst [vmem:[#allocation2 + $0xc8] sm:$0x33] %v1373
        %1401 = vst [vmem:[#allocation2 + $0xd0] sm:$0x33] %v1375
        %1402 = vst [vmem:[#allocation2 + $0xd8] sm:$0x33] %v1377
        %1403 = vst [vmem:[#allocation2 + $0xe0] sm:$0x33] %v1379
        %1404 = vst [vmem:[#allocation2 + $0xe8] sm:$0x33] %v1381
        %1405 = vst [vmem:[#allocation2 + $0xf0] sm:$0x33] %v1383
        %1406 = vst [vmem:[#allocation2 + $0xf8] sm:$0x3] %v1384
        %v1407 = vld [vmem:[%s248] sm:$0xff]
        %v1408 = vld [vmem:[%s248 + $0x8] sm:$0xff]
        %v1409 = vld [vmem:[%s248 + $0x10] sm:$0xff]
        %v1410 = vld [vmem:[%s248 + $0x18] sm:$0xff]
        %v1411 = vld [vmem:[%s248 + $0x20] sm:$0xff]
        %v1412 = vld [vmem:[%s248 + $0x28] sm:$0xf]
        %v1419 = vcombine.low %v1407, %v1407
        %v1421 = vunpack.c.l.s4 1983009808
        %v1422 = vunpack.c.0.s8 %v1421
        %v1423 = vlaneseq
        %v1424 = vshrl.u32 %v1423, 7
        %v1425 = vsub.s32 %v1422, %v1424
        %v1426 = vrot.slane %v1419, %v1425
        %v1428 = vunpack.c.l.s4 1983009808
        %v1429 = vunpack.c.0.s8 %v1428
        %v1430 = vlaneseq
        %v1431 = vshrl.u32 %v1430, 7
        %v1432 = vsub.s32 %v1429, %v1431
        %v1433 = vrot.slane %v1407, %v1432
        %v1434 = vcombine.low %v1408, %v1408
        %v1436 = vunpack.c.l.s4 1983009808
        %v1437 = vunpack.c.0.s8 %v1436
        %v1438 = vlaneseq
        %v1439 = vshrl.u32 %v1438, 7
        %v1440 = vsub.s32 %v1437, %v1439
        %v1441 = vrot.slane %v1434, %v1440
        %v1443 = vunpack.c.l.s4 1983009808
        %v1444 = vunpack.c.0.s8 %v1443
        %v1445 = vlaneseq
        %v1446 = vshrl.u32 %v1445, 7
        %v1447 = vsub.s32 %v1444, %v1446
        %v1448 = vrot.slane %v1408, %v1447
        %v1449 = vcombine.low %v1409, %v1409
        %v1451 = vunpack.c.l.s4 1983009808
        %v1452 = vunpack.c.0.s8 %v1451
        %v1453 = vlaneseq
        %v1454 = vshrl.u32 %v1453, 7
        %v1455 = vsub.s32 %v1452, %v1454
        %v1456 = vrot.slane %v1449, %v1455
        %v1458 = vunpack.c.l.s4 1983009808
        %v1459 = vunpack.c.0.s8 %v1458
        %v1460 = vlaneseq
        %v1461 = vshrl.u32 %v1460, 7
        %v1462 = vsub.s32 %v1459, %v1461
        %v1463 = vrot.slane %v1409, %v1462
        %v1464 = vcombine.low %v1410, %v1410
        %v1466 = vunpack.c.l.s4 1983009808
        %v1467 = vunpack.c.0.s8 %v1466
        %v1468 = vlaneseq
        %v1469 = vshrl.u32 %v1468, 7
        %v1470 = vsub.s32 %v1467, %v1469
        %v1471 = vrot.slane %v1464, %v1470
        %v1473 = vunpack.c.l.s4 1983009808
        %v1474 = vunpack.c.0.s8 %v1473
        %v1475 = vlaneseq
        %v1476 = vshrl.u32 %v1475, 7
        %v1477 = vsub.s32 %v1474, %v1476
        %v1478 = vrot.slane %v1410, %v1477
        %v1479 = vcombine.low %v1411, %v1411
        %v1481 = vunpack.c.l.s4 1983009808
        %v1482 = vunpack.c.0.s8 %v1481
        %v1483 = vlaneseq
        %v1484 = vshrl.u32 %v1483, 7
        %v1485 = vsub.s32 %v1482, %v1484
        %v1486 = vrot.slane %v1479, %v1485
        %v1488 = vunpack.c.l.s4 1983009808
        %v1489 = vunpack.c.0.s8 %v1488
        %v1490 = vlaneseq
        %v1491 = vshrl.u32 %v1490, 7
        %v1492 = vsub.s32 %v1489, %v1491
        %v1493 = vrot.slane %v1411, %v1492
        %v1494 = vcombine.low %v1412, %v1412
        %v1496 = vunpack.c.l.s4 1983009808
        %v1497 = vunpack.c.0.s8 %v1496
        %v1498 = vlaneseq
        %v1499 = vshrl.u32 %v1498, 7
        %v1500 = vsub.s32 %v1497, %v1499
        %v1501 = vrot.slane %v1494, %v1500
        %1502 = vrot.lane.b32.xlu0 %v1426, 108
        %v1503 = vpop.permute.xlu0 %1502
        %1504 = vrot.lane.b32.xlu0 %v1433, 108
        %v1505 = vpop.permute.xlu0 %1504
        %1506 = vrot.lane.b32.xlu0 %v1441, 108
        %v1507 = vpop.permute.xlu0 %1506
        %1508 = vrot.lane.b32.xlu0 %v1448, 108
        %v1509 = vpop.permute.xlu0 %1508
        %1510 = vrot.lane.b32.xlu0 %v1456, 108
        %v1511 = vpop.permute.xlu0 %1510
        %1512 = vrot.lane.b32.xlu0 %v1463, 108
        %v1513 = vpop.permute.xlu0 %1512
        %1514 = vrot.lane.b32.xlu0 %v1471, 108
        %v1515 = vpop.permute.xlu0 %1514
        %1516 = vrot.lane.b32.xlu0 %v1478, 108
        %v1517 = vpop.permute.xlu0 %1516
        %1518 = vrot.lane.b32.xlu0 %v1486, 108
        %v1519 = vpop.permute.xlu0 %1518
        %1520 = vrot.lane.b32.xlu0 %v1493, 108
        %v1521 = vpop.permute.xlu0 %1520
        %1522 = vrot.lane.b32.xlu0 %v1501, 108
        %v1523 = vpop.permute.xlu0 %1522
        %v1524 = vrot.slane %v1503, 4
        %v1525 = vrot.slane %v1505, 4
        %v1526 = vrot.slane %v1507, 4
        %v1527 = vrot.slane %v1509, 4
        %v1528 = vrot.slane %v1511, 4
        %v1529 = vrot.slane %v1513, 4
        %v1530 = vrot.slane %v1515, 4
        %v1531 = vrot.slane %v1517, 4
        %v1532 = vrot.slane %v1519, 4
        %v1533 = vrot.slane %v1521, 4
        %v1534 = vrot.slane %v1523, 4
        %v1535 = vsel %vm848, %v1524, %v1525
        %vm1536 = vcmask 883712
        %v1537 = vsel %vm1536, %v1503, %v1535
        %v1538 = vsel %vm848, %v1525, %v1526
        %v1539 = vsel %vm1536, %v1505, %v1538
        %v1540 = vsel %vm848, %v1526, %v1527
        %v1541 = vsel %vm1536, %v1507, %v1540
        %v1542 = vsel %vm848, %v1527, %v1528
        %v1543 = vsel %vm1536, %v1509, %v1542
        %v1544 = vsel %vm848, %v1528, %v1529
        %v1545 = vsel %vm1536, %v1511, %v1544
        %v1546 = vsel %vm848, %v1529, %v1530
        %v1547 = vsel %vm1536, %v1513, %v1546
        %v1548 = vsel %vm848, %v1530, %v1531
        %v1549 = vsel %vm1536, %v1515, %v1548
        %v1550 = vsel %vm848, %v1531, %v1532
        %v1551 = vsel %vm1536, %v1517, %v1550
        %v1552 = vsel %vm848, %v1532, %v1533
        %v1553 = vsel %vm1536, %v1519, %v1552
        %v1554 = vsel %vm848, %v1533, %v1534
        %v1555 = vsel %vm1536, %v1521, %v1554
        %v1556 = vsel %vm1536, %v1523, %v1534
        %1568 = vst [vmem:[#allocation2 + $0xa8] sm:$0xcc] %v1537
        %1569 = vst [vmem:[#allocation2 + $0xb0] sm:$0xcc] %v1539
        %1570 = vst [vmem:[#allocation2 + $0xb8] sm:$0xcc] %v1541
        %1571 = vst [vmem:[#allocation2 + $0xc0] sm:$0xcc] %v1543
        %1572 = vst [vmem:[#allocation2 + $0xc8] sm:$0xcc] %v1545
        %1573 = vst [vmem:[#allocation2 + $0xd0] sm:$0xcc] %v1547
        %1574 = vst [vmem:[#allocation2 + $0xd8] sm:$0xcc] %v1549
        %1575 = vst [vmem:[#allocation2 + $0xe0] sm:$0xcc] %v1551
        %1576 = vst [vmem:[#allocation2 + $0xe8] sm:$0xcc] %v1553
        %1577 = vst [vmem:[#allocation2 + $0xf0] sm:$0xcc] %v1555
        %1578 = vst [vmem:[#allocation2 + $0xf8] sm:$0xc] %v1556
        %v1579 = vld [vmem:[%s248] sm:$0xff]
        %v1580 = vld [vmem:[%s248 + $0x8] sm:$0xff]
        %v1581 = vld [vmem:[%s248 + $0x10] sm:$0xff]
        %v1582 = vld [vmem:[%s248 + $0x18] sm:$0xff]
        %v1583 = vld [vmem:[%s248 + $0x20] sm:$0xff]
        %v1584 = vld [vmem:[%s248 + $0x28] sm:$0xf]
        %v1591 = vcombine.high %v1579, %v1579
        %v1593 = vunpack.c.l.s4 1983009808
        %v1594 = vunpack.c.0.s8 %v1593
        %v1595 = vlaneseq
        %v1596 = vshrl.u32 %v1595, 7
        %v1597 = vsub.s32 %v1594, %v1596
        %v1598 = vrot.slane %v1579, %v1597
        %v1600 = vunpack.c.l.s4 1983009808
        %v1601 = vunpack.c.0.s8 %v1600
        %v1602 = vlaneseq
        %v1603 = vshrl.u32 %v1602, 7
        %v1604 = vsub.s32 %v1601, %v1603
        %v1605 = vrot.slane %v1591, %v1604
        %v1606 = vcombine.high %v1580, %v1580
        %v1608 = vunpack.c.l.s4 1983009808
        %v1609 = vunpack.c.0.s8 %v1608
        %v1610 = vlaneseq
        %v1611 = vshrl.u32 %v1610, 7
        %v1612 = vsub.s32 %v1609, %v1611
        %v1613 = vrot.slane %v1580, %v1612
        %v1615 = vunpack.c.l.s4 1983009808
        %v1616 = vunpack.c.0.s8 %v1615
        %v1617 = vlaneseq
        %v1618 = vshrl.u32 %v1617, 7
        %v1619 = vsub.s32 %v1616, %v1618
        %v1620 = vrot.slane %v1606, %v1619
        %v1621 = vcombine.high %v1581, %v1581
        %v1623 = vunpack.c.l.s4 1983009808
        %v1624 = vunpack.c.0.s8 %v1623
        %v1625 = vlaneseq
        %v1626 = vshrl.u32 %v1625, 7
        %v1627 = vsub.s32 %v1624, %v1626
        %v1628 = vrot.slane %v1581, %v1627
        %v1630 = vunpack.c.l.s4 1983009808
        %v1631 = vunpack.c.0.s8 %v1630
        %v1632 = vlaneseq
        %v1633 = vshrl.u32 %v1632, 7
        %v1634 = vsub.s32 %v1631, %v1633
        %v1635 = vrot.slane %v1621, %v1634
        %v1636 = vcombine.high %v1582, %v1582
        %v1638 = vunpack.c.l.s4 1983009808
        %v1639 = vunpack.c.0.s8 %v1638
        %v1640 = vlaneseq
        %v1641 = vshrl.u32 %v1640, 7
        %v1642 = vsub.s32 %v1639, %v1641
        %v1643 = vrot.slane %v1582, %v1642
        %v1645 = vunpack.c.l.s4 1983009808
        %v1646 = vunpack.c.0.s8 %v1645
        %v1647 = vlaneseq
        %v1648 = vshrl.u32 %v1647, 7
        %v1649 = vsub.s32 %v1646, %v1648
        %v1650 = vrot.slane %v1636, %v1649
        %v1651 = vcombine.high %v1583, %v1583
        %v1653 = vunpack.c.l.s4 1983009808
        %v1654 = vunpack.c.0.s8 %v1653
        %v1655 = vlaneseq
        %v1656 = vshrl.u32 %v1655, 7
        %v1657 = vsub.s32 %v1654, %v1656
        %v1658 = vrot.slane %v1583, %v1657
        %v1660 = vunpack.c.l.s4 1983009808
        %v1661 = vunpack.c.0.s8 %v1660
        %v1662 = vlaneseq
        %v1663 = vshrl.u32 %v1662, 7
        %v1664 = vsub.s32 %v1661, %v1663
        %v1665 = vrot.slane %v1651, %v1664
        %v1667 = vunpack.c.l.s4 1983009808
        %v1668 = vunpack.c.0.s8 %v1667
        %v1669 = vlaneseq
        %v1670 = vshrl.u32 %v1669, 7
        %v1671 = vsub.s32 %v1668, %v1670
        %v1672 = vrot.slane %v1584, %v1671
        %1673 = vrot.lane.b32.xlu0 %v1598, 92
        %v1674 = vpop.permute.xlu0 %1673
        %1675 = vrot.lane.b32.xlu0 %v1605, 92
        %v1676 = vpop.permute.xlu0 %1675
        %1677 = vrot.lane.b32.xlu0 %v1613, 92
        %v1678 = vpop.permute.xlu0 %1677
        %1679 = vrot.lane.b32.xlu0 %v1620, 92
        %v1680 = vpop.permute.xlu0 %1679
        %1681 = vrot.lane.b32.xlu0 %v1628, 92
        %v1682 = vpop.permute.xlu0 %1681
        %1683 = vrot.lane.b32.xlu0 %v1635, 92
        %v1684 = vpop.permute.xlu0 %1683
        %1685 = vrot.lane.b32.xlu0 %v1643, 92
        %v1686 = vpop.permute.xlu0 %1685
        %1687 = vrot.lane.b32.xlu0 %v1650, 92
        %v1688 = vpop.permute.xlu0 %1687
        %1689 = vrot.lane.b32.xlu0 %v1658, 92
        %v1690 = vpop.permute.xlu0 %1689
        %1691 = vrot.lane.b32.xlu0 %v1665, 92
        %v1692 = vpop.permute.xlu0 %1691
        %1693 = vrot.lane.b32.xlu0 %v1672, 92
        %v1694 = vpop.permute.xlu0 %1693
        %v1695 = vrot.slane %v1674, 4
        %v1696 = vrot.slane %v1676, 4
        %v1697 = vrot.slane %v1678, 4
        %v1698 = vrot.slane %v1680, 4
        %v1699 = vrot.slane %v1682, 4
        %v1700 = vrot.slane %v1684, 4
        %v1701 = vrot.slane %v1686, 4
        %v1702 = vrot.slane %v1688, 4
        %v1703 = vrot.slane %v1690, 4
        %v1704 = vrot.slane %v1692, 4
        %v1705 = vrot.slane %v1694, 4
        %v1706 = vsel %vm848, %v1695, %v1696
        %vm1707 = vcmask 752640
        %v1708 = vsel %vm1707, %v1674, %v1706
        %v1709 = vsel %vm848, %v1696, %v1697
        %v1710 = vsel %vm1707, %v1676, %v1709
        %v1711 = vsel %vm848, %v1697, %v1698
        %v1712 = vsel %vm1707, %v1678, %v1711
        %v1713 = vsel %vm848, %v1698, %v1699
        %v1714 = vsel %vm1707, %v1680, %v1713
        %v1715 = vsel %vm848, %v1699, %v1700
        %v1716 = vsel %vm1707, %v1682, %v1715
        %v1717 = vsel %vm848, %v1700, %v1701
        %v1718 = vsel %vm1707, %v1684, %v1717
        %v1719 = vsel %vm848, %v1701, %v1702
        %v1720 = vsel %vm1707, %v1686, %v1719
        %v1721 = vsel %vm848, %v1702, %v1703
        %v1722 = vsel %vm1707, %v1688, %v1721
        %v1723 = vsel %vm848, %v1703, %v1704
        %v1724 = vsel %vm1707, %v1690, %v1723
        %v1725 = vsel %vm848, %v1704, %v1705
        %v1726 = vsel %vm1707, %v1692, %v1725
        %v1727 = vsel %vm1707, %v1694, %v1705
        %1739 = vst [vmem:[#allocation2 + $0xfc] sm:$0x33] %v1708
        %1740 = vst [vmem:[#allocation2 + $0x104] sm:$0x33] %v1710
        %1741 = vst [vmem:[#allocation2 + $0x10c] sm:$0x33] %v1712
        %1742 = vst [vmem:[#allocation2 + $0x114] sm:$0x33] %v1714
        %1743 = vst [vmem:[#allocation2 + $0x11c] sm:$0x33] %v1716
        %1744 = vst [vmem:[#allocation2 + $0x124] sm:$0x33] %v1718
        %1745 = vst [vmem:[#allocation2 + $0x12c] sm:$0x33] %v1720
        %1746 = vst [vmem:[#allocation2 + $0x134] sm:$0x33] %v1722
        %1747 = vst [vmem:[#allocation2 + $0x13c] sm:$0x33] %v1724
        %1748 = vst [vmem:[#allocation2 + $0x144] sm:$0x33] %v1726
        %1749 = vst [vmem:[#allocation2 + $0x14c] sm:$0x3] %v1727
        %v1750 = vld [vmem:[%s248] sm:$0xff]
        %v1751 = vld [vmem:[%s248 + $0x8] sm:$0xff]
        %v1752 = vld [vmem:[%s248 + $0x10] sm:$0xff]
        %v1753 = vld [vmem:[%s248 + $0x18] sm:$0xff]
        %v1754 = vld [vmem:[%s248 + $0x20] sm:$0xff]
        %v1755 = vld [vmem:[%s248 + $0x28] sm:$0xf]
        %v1762 = vcombine.low %v1750, %v1750
        %v1764 = vunpack.c.l.s4 1983009808
        %v1765 = vunpack.c.0.s8 %v1764
        %v1766 = vlaneseq
        %v1767 = vshrl.u32 %v1766, 7
        %v1768 = vsub.s32 %v1765, %v1767
        %v1769 = vrot.slane %v1762, %v1768
        %v1771 = vunpack.c.l.s4 1983009808
        %v1772 = vunpack.c.0.s8 %v1771
        %v1773 = vlaneseq
        %v1774 = vshrl.u32 %v1773, 7
        %v1775 = vsub.s32 %v1772, %v1774
        %v1776 = vrot.slane %v1750, %v1775
        %v1777 = vcombine.low %v1751, %v1751
        %v1779 = vunpack.c.l.s4 1983009808
        %v1780 = vunpack.c.0.s8 %v1779
        %v1781 = vlaneseq
        %v1782 = vshrl.u32 %v1781, 7
        %v1783 = vsub.s32 %v1780, %v1782
        %v1784 = vrot.slane %v1777, %v1783
        %v1786 = vunpack.c.l.s4 1983009808
        %v1787 = vunpack.c.0.s8 %v1786
        %v1788 = vlaneseq
        %v1789 = vshrl.u32 %v1788, 7
        %v1790 = vsub.s32 %v1787, %v1789
        %v1791 = vrot.slane %v1751, %v1790
        %v1792 = vcombine.low %v1752, %v1752
        %v1794 = vunpack.c.l.s4 1983009808
        %v1795 = vunpack.c.0.s8 %v1794
        %v1796 = vlaneseq
        %v1797 = vshrl.u32 %v1796, 7
        %v1798 = vsub.s32 %v1795, %v1797
        %v1799 = vrot.slane %v1792, %v1798
        %v1801 = vunpack.c.l.s4 1983009808
        %v1802 = vunpack.c.0.s8 %v1801
        %v1803 = vlaneseq
        %v1804 = vshrl.u32 %v1803, 7
        %v1805 = vsub.s32 %v1802, %v1804
        %v1806 = vrot.slane %v1752, %v1805
        %v1807 = vcombine.low %v1753, %v1753
        %v1809 = vunpack.c.l.s4 1983009808
        %v1810 = vunpack.c.0.s8 %v1809
        %v1811 = vlaneseq
        %v1812 = vshrl.u32 %v1811, 7
        %v1813 = vsub.s32 %v1810, %v1812
        %v1814 = vrot.slane %v1807, %v1813
        %v1816 = vunpack.c.l.s4 1983009808
        %v1817 = vunpack.c.0.s8 %v1816
        %v1818 = vlaneseq
        %v1819 = vshrl.u32 %v1818, 7
        %v1820 = vsub.s32 %v1817, %v1819
        %v1821 = vrot.slane %v1753, %v1820
        %v1822 = vcombine.low %v1754, %v1754
        %v1824 = vunpack.c.l.s4 1983009808
        %v1825 = vunpack.c.0.s8 %v1824
        %v1826 = vlaneseq
        %v1827 = vshrl.u32 %v1826, 7
        %v1828 = vsub.s32 %v1825, %v1827
        %v1829 = vrot.slane %v1822, %v1828
        %v1831 = vunpack.c.l.s4 1983009808
        %v1832 = vunpack.c.0.s8 %v1831
        %v1833 = vlaneseq
        %v1834 = vshrl.u32 %v1833, 7
        %v1835 = vsub.s32 %v1832, %v1834
        %v1836 = vrot.slane %v1754, %v1835
        %v1837 = vcombine.low %v1755, %v1755
        %v1839 = vunpack.c.l.s4 1983009808
        %v1840 = vunpack.c.0.s8 %v1839
        %v1841 = vlaneseq
        %v1842 = vshrl.u32 %v1841, 7
        %v1843 = vsub.s32 %v1840, %v1842
        %v1844 = vrot.slane %v1837, %v1843
        %1845 = vrot.lane.b32.xlu0 %v1769, 91
        %v1846 = vpop.permute.xlu0 %1845
        %1847 = vrot.lane.b32.xlu0 %v1776, 91
        %v1848 = vpop.permute.xlu0 %1847
        %1849 = vrot.lane.b32.xlu0 %v1784, 91
        %v1850 = vpop.permute.xlu0 %1849
        %1851 = vrot.lane.b32.xlu0 %v1791, 91
        %v1852 = vpop.permute.xlu0 %1851
        %1853 = vrot.lane.b32.xlu0 %v1799, 91
        %v1854 = vpop.permute.xlu0 %1853
        %1855 = vrot.lane.b32.xlu0 %v1806, 91
        %v1856 = vpop.permute.xlu0 %1855
        %1857 = vrot.lane.b32.xlu0 %v1814, 91
        %v1858 = vpop.permute.xlu0 %1857
        %1859 = vrot.lane.b32.xlu0 %v1821, 91
        %v1860 = vpop.permute.xlu0 %1859
        %1861 = vrot.lane.b32.xlu0 %v1829, 91
        %v1862 = vpop.permute.xlu0 %1861
        %1863 = vrot.lane.b32.xlu0 %v1836, 91
        %v1864 = vpop.permute.xlu0 %1863
        %1865 = vrot.lane.b32.xlu0 %v1844, 91
        %v1866 = vpop.permute.xlu0 %1865
        %v1867 = vrot.slane %v1846, 4
        %v1868 = vrot.slane %v1848, 4
        %v1869 = vrot.slane %v1850, 4
        %v1870 = vrot.slane %v1852, 4
        %v1871 = vrot.slane %v1854, 4
        %v1872 = vrot.slane %v1856, 4
        %v1873 = vrot.slane %v1858, 4
        %v1874 = vrot.slane %v1860, 4
        %v1875 = vrot.slane %v1862, 4
        %v1876 = vrot.slane %v1864, 4
        %v1877 = vrot.slane %v1866, 4
        %v1878 = vsel %vm848, %v1867, %v1868
        %vm1879 = vcmask 744448
        %v1880 = vsel %vm1879, %v1846, %v1878
        %v1881 = vsel %vm848, %v1868, %v1869
        %v1882 = vsel %vm1879, %v1848, %v1881
        %v1883 = vsel %vm848, %v1869, %v1870
        %v1884 = vsel %vm1879, %v1850, %v1883
        %v1885 = vsel %vm848, %v1870, %v1871
        %v1886 = vsel %vm1879, %v1852, %v1885
        %v1887 = vsel %vm848, %v1871, %v1872
        %v1888 = vsel %vm1879, %v1854, %v1887
        %v1889 = vsel %vm848, %v1872, %v1873
        %v1890 = vsel %vm1879, %v1856, %v1889
        %v1891 = vsel %vm848, %v1873, %v1874
        %v1892 = vsel %vm1879, %v1858, %v1891
        %v1893 = vsel %vm848, %v1874, %v1875
        %v1894 = vsel %vm1879, %v1860, %v1893
        %v1895 = vsel %vm848, %v1875, %v1876
        %v1896 = vsel %vm1879, %v1862, %v1895
        %v1897 = vsel %vm848, %v1876, %v1877
        %v1898 = vsel %vm1879, %v1864, %v1897
        %v1899 = vsel %vm1879, %v1866, %v1877
        %1911 = vst [vmem:[#allocation2 + $0xfc] sm:$0xcc] %v1880
        %1912 = vst [vmem:[#allocation2 + $0x104] sm:$0xcc] %v1882
        %1913 = vst [vmem:[#allocation2 + $0x10c] sm:$0xcc] %v1884
        %1914 = vst [vmem:[#allocation2 + $0x114] sm:$0xcc] %v1886
        %1915 = vst [vmem:[#allocation2 + $0x11c] sm:$0xcc] %v1888
        %1916 = vst [vmem:[#allocation2 + $0x124] sm:$0xcc] %v1890
        %1917 = vst [vmem:[#allocation2 + $0x12c] sm:$0xcc] %v1892
        %1918 = vst [vmem:[#allocation2 + $0x134] sm:$0xcc] %v1894
        %1919 = vst [vmem:[#allocation2 + $0x13c] sm:$0xcc] %v1896
        %1920 = vst [vmem:[#allocation2 + $0x144] sm:$0xcc] %v1898
        %1921 = vst [vmem:[#allocation2 + $0x14c] sm:$0xc] %v1899
        %v1922 = vld [vmem:[%s248] sm:$0xff]
        %v1923 = vld [vmem:[%s248 + $0x8] sm:$0xff]
        %v1924 = vld [vmem:[%s248 + $0x10] sm:$0xff]
        %v1925 = vld [vmem:[%s248 + $0x18] sm:$0xff]
        %v1926 = vld [vmem:[%s248 + $0x20] sm:$0xff]
        %v1927 = vld [vmem:[%s248 + $0x28] sm:$0xf]
        %v1934 = vcombine.high %v1922, %v1922
        %v1936 = vunpack.c.l.s4 1983009808
        %v1937 = vunpack.c.0.s8 %v1936
        %v1938 = vlaneseq
        %v1939 = vshrl.u32 %v1938, 7
        %v1940 = vsub.s32 %v1937, %v1939
        %v1941 = vrot.slane %v1922, %v1940
        %v1943 = vunpack.c.l.s4 1983009808
        %v1944 = vunpack.c.0.s8 %v1943
        %v1945 = vlaneseq
        %v1946 = vshrl.u32 %v1945, 7
        %v1947 = vsub.s32 %v1944, %v1946
        %v1948 = vrot.slane %v1934, %v1947
        %v1949 = vcombine.high %v1923, %v1923
        %v1951 = vunpack.c.l.s4 1983009808
        %v1952 = vunpack.c.0.s8 %v1951
        %v1953 = vlaneseq
        %v1954 = vshrl.u32 %v1953, 7
        %v1955 = vsub.s32 %v1952, %v1954
        %v1956 = vrot.slane %v1923, %v1955
        %v1958 = vunpack.c.l.s4 1983009808
        %v1959 = vunpack.c.0.s8 %v1958
        %v1960 = vlaneseq
        %v1961 = vshrl.u32 %v1960, 7
        %v1962 = vsub.s32 %v1959, %v1961
        %v1963 = vrot.slane %v1949, %v1962
        %v1964 = vcombine.high %v1924, %v1924
        %v1966 = vunpack.c.l.s4 1983009808
        %v1967 = vunpack.c.0.s8 %v1966
        %v1968 = vlaneseq
        %v1969 = vshrl.u32 %v1968, 7
        %v1970 = vsub.s32 %v1967, %v1969
        %v1971 = vrot.slane %v1924, %v1970
        %v1973 = vunpack.c.l.s4 1983009808
        %v1974 = vunpack.c.0.s8 %v1973
        %v1975 = vlaneseq
        %v1976 = vshrl.u32 %v1975, 7
        %v1977 = vsub.s32 %v1974, %v1976
        %v1978 = vrot.slane %v1964, %v1977
        %v1979 = vcombine.high %v1925, %v1925
        %v1981 = vunpack.c.l.s4 1983009808
        %v1982 = vunpack.c.0.s8 %v1981
        %v1983 = vlaneseq
        %v1984 = vshrl.u32 %v1983, 7
        %v1985 = vsub.s32 %v1982, %v1984
        %v1986 = vrot.slane %v1925, %v1985
        %v1988 = vunpack.c.l.s4 1983009808
        %v1989 = vunpack.c.0.s8 %v1988
        %v1990 = vlaneseq
        %v1991 = vshrl.u32 %v1990, 7
        %v1992 = vsub.s32 %v1989, %v1991
        %v1993 = vrot.slane %v1979, %v1992
        %v1994 = vcombine.high %v1926, %v1926
        %v1996 = vunpack.c.l.s4 1983009808
        %v1997 = vunpack.c.0.s8 %v1996
        %v1998 = vlaneseq
        %v1999 = vshrl.u32 %v1998, 7
        %v2000 = vsub.s32 %v1997, %v1999
        %v2001 = vrot.slane %v1926, %v2000
        %v2003 = vunpack.c.l.s4 1983009808
        %v2004 = vunpack.c.0.s8 %v2003
        %v2005 = vlaneseq
        %v2006 = vshrl.u32 %v2005, 7
        %v2007 = vsub.s32 %v2004, %v2006
        %v2008 = vrot.slane %v1994, %v2007
        %v2010 = vunpack.c.l.s4 1983009808
        %v2011 = vunpack.c.0.s8 %v2010
        %v2012 = vlaneseq
        %v2013 = vshrl.u32 %v2012, 7
        %v2014 = vsub.s32 %v2011, %v2013
        %v2015 = vrot.slane %v1927, %v2014
        %2016 = vrot.lane.b32.xlu0 %v1941, 90
        %v2017 = vpop.permute.xlu0 %2016
        %2018 = vrot.lane.b32.xlu0 %v1948, 90
        %v2019 = vpop.permute.xlu0 %2018
        %2020 = vrot.lane.b32.xlu0 %v1956, 90
        %v2021 = vpop.permute.xlu0 %2020
        %2022 = vrot.lane.b32.xlu0 %v1963, 90
        %v2023 = vpop.permute.xlu0 %2022
        %2024 = vrot.lane.b32.xlu0 %v1971, 90
        %v2025 = vpop.permute.xlu0 %2024
        %2026 = vrot.lane.b32.xlu0 %v1978, 90
        %v2027 = vpop.permute.xlu0 %2026
        %2028 = vrot.lane.b32.xlu0 %v1986, 90
        %v2029 = vpop.permute.xlu0 %2028
        %2030 = vrot.lane.b32.xlu0 %v1993, 90
        %v2031 = vpop.permute.xlu0 %2030
        %2032 = vrot.lane.b32.xlu0 %v2001, 90
        %v2033 = vpop.permute.xlu0 %2032
        %2034 = vrot.lane.b32.xlu0 %v2008, 90
        %v2035 = vpop.permute.xlu0 %2034
        %2036 = vrot.lane.b32.xlu0 %v2015, 90
        %v2037 = vpop.permute.xlu0 %2036
        %v2038 = vrot.slane %v2017, 4
        %v2039 = vrot.slane %v2019, 4
        %v2040 = vrot.slane %v2021, 4
        %v2041 = vrot.slane %v2023, 4
        %v2042 = vrot.slane %v2025, 4
        %v2043 = vrot.slane %v2027, 4
        %v2044 = vrot.slane %v2029, 4
        %v2045 = vrot.slane %v2031, 4
        %v2046 = vrot.slane %v2033, 4
        %v2047 = vrot.slane %v2035, 4
        %v2048 = vrot.slane %v2037, 4
        %v2049 = vsel %vm848, %v2038, %v2039
        %vm2050 = vcmask 736256
        %v2051 = vsel %vm2050, %v2017, %v2049
        %v2052 = vsel %vm848, %v2039, %v2040
        %v2053 = vsel %vm2050, %v2019, %v2052
        %v2054 = vsel %vm848, %v2040, %v2041
        %v2055 = vsel %vm2050, %v2021, %v2054
        %v2056 = vsel %vm848, %v2041, %v2042
        %v2057 = vsel %vm2050, %v2023, %v2056
        %v2058 = vsel %vm848, %v2042, %v2043
        %v2059 = vsel %vm2050, %v2025, %v2058
        %v2060 = vsel %vm848, %v2043, %v2044
        %v2061 = vsel %vm2050, %v2027, %v2060
        %v2062 = vsel %vm848, %v2044, %v2045
        %v2063 = vsel %vm2050, %v2029, %v2062
        %v2064 = vsel %vm848, %v2045, %v2046
        %v2065 = vsel %vm2050, %v2031, %v2064
        %v2066 = vsel %vm848, %v2046, %v2047
        %v2067 = vsel %vm2050, %v2033, %v2066
        %v2068 = vsel %vm848, %v2047, %v2048
        %v2069 = vsel %vm2050, %v2035, %v2068
        %v2070 = vsel %vm2050, %v2037, %v2048
        %2082 = vst [vmem:[#allocation2 + $0x150] sm:$0x33] %v2051
        %2083 = vst [vmem:[#allocation2 + $0x158] sm:$0x33] %v2053
        %2084 = vst [vmem:[#allocation2 + $0x160] sm:$0x33] %v2055
        %2085 = vst [vmem:[#allocation2 + $0x168] sm:$0x33] %v2057
        %2086 = vst [vmem:[#allocation2 + $0x170] sm:$0x33] %v2059
        %2087 = vst [vmem:[#allocation2 + $0x178] sm:$0x33] %v2061
        %2088 = vst [vmem:[#allocation2 + $0x180] sm:$0x33] %v2063
        %2089 = vst [vmem:[#allocation2 + $0x188] sm:$0x33] %v2065
        %2090 = vst [vmem:[#allocation2 + $0x190] sm:$0x33] %v2067
        %2091 = vst [vmem:[#allocation2 + $0x198] sm:$0x33] %v2069
        %2092 = vst [vmem:[#allocation2 + $0x1a0] sm:$0x3] %v2070
        %v2093 = vld [vmem:[%s248 + $0x4] sm:$0xff]
        %v2094 = vld [vmem:[%s248 + $0xc] sm:$0xff]
        %v2095 = vld [vmem:[%s248 + $0x14] sm:$0xff]
        %v2096 = vld [vmem:[%s248 + $0x1c] sm:$0xff]
        %v2097 = vld [vmem:[%s248 + $0x24] sm:$0xff]
        %v2098 = vld [vmem:[%s248 + $0x2c] sm:$0xf]
        %v2105 = vcombine.low %v2093, %v2093
        %v2107 = vunpack.c.l.s4 1983009808
        %v2108 = vunpack.c.0.s8 %v2107
        %v2109 = vlaneseq
        %v2110 = vshrl.u32 %v2109, 7
        %v2111 = vsub.s32 %v2108, %v2110
        %v2112 = vrot.slane %v2105, %v2111
        %v2114 = vunpack.c.l.s4 1983009808
        %v2115 = vunpack.c.0.s8 %v2114
        %v2116 = vlaneseq
        %v2117 = vshrl.u32 %v2116, 7
        %v2118 = vsub.s32 %v2115, %v2117
        %v2119 = vrot.slane %v2093, %v2118
        %v2120 = vcombine.low %v2094, %v2094
        %v2122 = vunpack.c.l.s4 1983009808
        %v2123 = vunpack.c.0.s8 %v2122
        %v2124 = vlaneseq
        %v2125 = vshrl.u32 %v2124, 7
        %v2126 = vsub.s32 %v2123, %v2125
        %v2127 = vrot.slane %v2120, %v2126
        %v2129 = vunpack.c.l.s4 1983009808
        %v2130 = vunpack.c.0.s8 %v2129
        %v2131 = vlaneseq
        %v2132 = vshrl.u32 %v2131, 7
        %v2133 = vsub.s32 %v2130, %v2132
        %v2134 = vrot.slane %v2094, %v2133
        %v2135 = vcombine.low %v2095, %v2095
        %v2137 = vunpack.c.l.s4 1983009808
        %v2138 = vunpack.c.0.s8 %v2137
        %v2139 = vlaneseq
        %v2140 = vshrl.u32 %v2139, 7
        %v2141 = vsub.s32 %v2138, %v2140
        %v2142 = vrot.slane %v2135, %v2141
        %v2144 = vunpack.c.l.s4 1983009808
        %v2145 = vunpack.c.0.s8 %v2144
        %v2146 = vlaneseq
        %v2147 = vshrl.u32 %v2146, 7
        %v2148 = vsub.s32 %v2145, %v2147
        %v2149 = vrot.slane %v2095, %v2148
        %v2150 = vcombine.low %v2096, %v2096
        %v2152 = vunpack.c.l.s4 1983009808
        %v2153 = vunpack.c.0.s8 %v2152
        %v2154 = vlaneseq
        %v2155 = vshrl.u32 %v2154, 7
        %v2156 = vsub.s32 %v2153, %v2155
        %v2157 = vrot.slane %v2150, %v2156
        %v2159 = vunpack.c.l.s4 1983009808
        %v2160 = vunpack.c.0.s8 %v2159
        %v2161 = vlaneseq
        %v2162 = vshrl.u32 %v2161, 7
        %v2163 = vsub.s32 %v2160, %v2162
        %v2164 = vrot.slane %v2096, %v2163
        %v2165 = vcombine.low %v2097, %v2097
        %v2167 = vunpack.c.l.s4 1983009808
        %v2168 = vunpack.c.0.s8 %v2167
        %v2169 = vlaneseq
        %v2170 = vshrl.u32 %v2169, 7
        %v2171 = vsub.s32 %v2168, %v2170
        %v2172 = vrot.slane %v2165, %v2171
        %v2174 = vunpack.c.l.s4 1983009808
        %v2175 = vunpack.c.0.s8 %v2174
        %v2176 = vlaneseq
        %v2177 = vshrl.u32 %v2176, 7
        %v2178 = vsub.s32 %v2175, %v2177
        %v2179 = vrot.slane %v2097, %v2178
        %v2180 = vcombine.low %v2098, %v2098
        %v2182 = vunpack.c.l.s4 1983009808
        %v2183 = vunpack.c.0.s8 %v2182
        %v2184 = vlaneseq
        %v2185 = vshrl.u32 %v2184, 7
        %v2186 = vsub.s32 %v2183, %v2185
        %v2187 = vrot.slane %v2180, %v2186
        %2188 = vrot.lane.b32.xlu0 %v2112, 60
        %v2189 = vpop.permute.xlu0 %2188
        %2190 = vrot.lane.b32.xlu0 %v2119, 60
        %v2191 = vpop.permute.xlu0 %2190
        %2192 = vrot.lane.b32.xlu0 %v2127, 60
        %v2193 = vpop.permute.xlu0 %2192
        %2194 = vrot.lane.b32.xlu0 %v2134, 60
        %v2195 = vpop.permute.xlu0 %2194
        %2196 = vrot.lane.b32.xlu0 %v2142, 60
        %v2197 = vpop.permute.xlu0 %2196
        %2198 = vrot.lane.b32.xlu0 %v2149, 60
        %v2199 = vpop.permute.xlu0 %2198
        %2200 = vrot.lane.b32.xlu0 %v2157, 60
        %v2201 = vpop.permute.xlu0 %2200
        %2202 = vrot.lane.b32.xlu0 %v2164, 60
        %v2203 = vpop.permute.xlu0 %2202
        %2204 = vrot.lane.b32.xlu0 %v2172, 60
        %v2205 = vpop.permute.xlu0 %2204
        %2206 = vrot.lane.b32.xlu0 %v2179, 60
        %v2207 = vpop.permute.xlu0 %2206
        %2208 = vrot.lane.b32.xlu0 %v2187, 60
        %v2209 = vpop.permute.xlu0 %2208
        %v2210 = vrot.slane %v2189, 4
        %v2211 = vrot.slane %v2191, 4
        %v2212 = vrot.slane %v2193, 4
        %v2213 = vrot.slane %v2195, 4
        %v2214 = vrot.slane %v2197, 4
        %v2215 = vrot.slane %v2199, 4
        %v2216 = vrot.slane %v2201, 4
        %v2217 = vrot.slane %v2203, 4
        %v2218 = vrot.slane %v2205, 4
        %v2219 = vrot.slane %v2207, 4
        %v2220 = vrot.slane %v2209, 4
        %v2221 = vsel %vm848, %v2210, %v2211
        %vm2222 = vcmask 490496
        %v2223 = vsel %vm2222, %v2189, %v2221
        %v2224 = vsel %vm848, %v2211, %v2212
        %v2225 = vsel %vm2222, %v2191, %v2224
        %v2226 = vsel %vm848, %v2212, %v2213
        %v2227 = vsel %vm2222, %v2193, %v2226
        %v2228 = vsel %vm848, %v2213, %v2214
        %v2229 = vsel %vm2222, %v2195, %v2228
        %v2230 = vsel %vm848, %v2214, %v2215
        %v2231 = vsel %vm2222, %v2197, %v2230
        %v2232 = vsel %vm848, %v2215, %v2216
        %v2233 = vsel %vm2222, %v2199, %v2232
        %v2234 = vsel %vm848, %v2216, %v2217
        %v2235 = vsel %vm2222, %v2201, %v2234
        %v2236 = vsel %vm848, %v2217, %v2218
        %v2237 = vsel %vm2222, %v2203, %v2236
        %v2238 = vsel %vm848, %v2218, %v2219
        %v2239 = vsel %vm2222, %v2205, %v2238
        %v2240 = vsel %vm848, %v2219, %v2220
        %v2241 = vsel %vm2222, %v2207, %v2240
        %v2242 = vsel %vm2222, %v2209, %v2220
        %2254 = vst [vmem:[#allocation2 + $0x150] sm:$0xcc] %v2223
        %2255 = vst [vmem:[#allocation2 + $0x158] sm:$0xcc] %v2225
        %2256 = vst [vmem:[#allocation2 + $0x160] sm:$0xcc] %v2227
        %2257 = vst [vmem:[#allocation2 + $0x168] sm:$0xcc] %v2229
        %2258 = vst [vmem:[#allocation2 + $0x170] sm:$0xcc] %v2231
        %2259 = vst [vmem:[#allocation2 + $0x178] sm:$0xcc] %v2233
        %2260 = vst [vmem:[#allocation2 + $0x180] sm:$0xcc] %v2235
        %2261 = vst [vmem:[#allocation2 + $0x188] sm:$0xcc] %v2237
        %2262 = vst [vmem:[#allocation2 + $0x190] sm:$0xcc] %v2239
        %2263 = vst [vmem:[#allocation2 + $0x198] sm:$0xcc] %v2241
        %2264 = vst [vmem:[#allocation2 + $0x1a0] sm:$0xc] %v2242
        %v2265 = vld [vmem:[%s248 + $0x4] sm:$0xff]
        %v2266 = vld [vmem:[%s248 + $0xc] sm:$0xff]
        %v2267 = vld [vmem:[%s248 + $0x14] sm:$0xff]
        %v2268 = vld [vmem:[%s248 + $0x1c] sm:$0xff]
        %v2269 = vld [vmem:[%s248 + $0x24] sm:$0xff]
        %v2270 = vld [vmem:[%s248 + $0x2c] sm:$0xf]
        %v2277 = vcombine.high %v2265, %v2265
        %v2279 = vunpack.c.l.s4 1983009808
        %v2280 = vunpack.c.0.s8 %v2279
        %v2281 = vlaneseq
        %v2282 = vshrl.u32 %v2281, 7
        %v2283 = vsub.s32 %v2280, %v2282
        %v2284 = vrot.slane %v2265, %v2283
        %v2286 = vunpack.c.l.s4 1983009808
        %v2287 = vunpack.c.0.s8 %v2286
        %v2288 = vlaneseq
        %v2289 = vshrl.u32 %v2288, 7
        %v2290 = vsub.s32 %v2287, %v2289
        %v2291 = vrot.slane %v2277, %v2290
        %v2292 = vcombine.high %v2266, %v2266
        %v2294 = vunpack.c.l.s4 1983009808
        %v2295 = vunpack.c.0.s8 %v2294
        %v2296 = vlaneseq
        %v2297 = vshrl.u32 %v2296, 7
        %v2298 = vsub.s32 %v2295, %v2297
        %v2299 = vrot.slane %v2266, %v2298
        %v2301 = vunpack.c.l.s4 1983009808
        %v2302 = vunpack.c.0.s8 %v2301
        %v2303 = vlaneseq
        %v2304 = vshrl.u32 %v2303, 7
        %v2305 = vsub.s32 %v2302, %v2304
        %v2306 = vrot.slane %v2292, %v2305
        %v2307 = vcombine.high %v2267, %v2267
        %v2309 = vunpack.c.l.s4 1983009808
        %v2310 = vunpack.c.0.s8 %v2309
        %v2311 = vlaneseq
        %v2312 = vshrl.u32 %v2311, 7
        %v2313 = vsub.s32 %v2310, %v2312
        %v2314 = vrot.slane %v2267, %v2313
        %v2316 = vunpack.c.l.s4 1983009808
        %v2317 = vunpack.c.0.s8 %v2316
        %v2318 = vlaneseq
        %v2319 = vshrl.u32 %v2318, 7
        %v2320 = vsub.s32 %v2317, %v2319
        %v2321 = vrot.slane %v2307, %v2320
        %v2322 = vcombine.high %v2268, %v2268
        %v2324 = vunpack.c.l.s4 1983009808
        %v2325 = vunpack.c.0.s8 %v2324
        %v2326 = vlaneseq
        %v2327 = vshrl.u32 %v2326, 7
        %v2328 = vsub.s32 %v2325, %v2327
        %v2329 = vrot.slane %v2268, %v2328
        %v2331 = vunpack.c.l.s4 1983009808
        %v2332 = vunpack.c.0.s8 %v2331
        %v2333 = vlaneseq
        %v2334 = vshrl.u32 %v2333, 7
        %v2335 = vsub.s32 %v2332, %v2334
        %v2336 = vrot.slane %v2322, %v2335
        %v2337 = vcombine.high %v2269, %v2269
        %v2339 = vunpack.c.l.s4 1983009808
        %v2340 = vunpack.c.0.s8 %v2339
        %v2341 = vlaneseq
        %v2342 = vshrl.u32 %v2341, 7
        %v2343 = vsub.s32 %v2340, %v2342
        %v2344 = vrot.slane %v2269, %v2343
        %v2346 = vunpack.c.l.s4 1983009808
        %v2347 = vunpack.c.0.s8 %v2346
        %v2348 = vlaneseq
        %v2349 = vshrl.u32 %v2348, 7
        %v2350 = vsub.s32 %v2347, %v2349
        %v2351 = vrot.slane %v2337, %v2350
        %v2353 = vunpack.c.l.s4 1983009808
        %v2354 = vunpack.c.0.s8 %v2353
        %v2355 = vlaneseq
        %v2356 = vshrl.u32 %v2355, 7
        %v2357 = vsub.s32 %v2354, %v2356
        %v2358 = vrot.slane %v2270, %v2357
        %2359 = vrot.lane.b32.xlu0 %v2284, 59
        %v2360 = vpop.permute.xlu0 %2359
        %2361 = vrot.lane.b32.xlu0 %v2291, 59
        %v2362 = vpop.permute.xlu0 %2361
        %2363 = vrot.lane.b32.xlu0 %v2299, 59
        %v2364 = vpop.permute.xlu0 %2363
        %2365 = vrot.lane.b32.xlu0 %v2306, 59
        %v2366 = vpop.permute.xlu0 %2365
        %2367 = vrot.lane.b32.xlu0 %v2314, 59
        %v2368 = vpop.permute.xlu0 %2367
        %2369 = vrot.lane.b32.xlu0 %v2321, 59
        %v2370 = vpop.permute.xlu0 %2369
        %2371 = vrot.lane.b32.xlu0 %v2329, 59
        %v2372 = vpop.permute.xlu0 %2371
        %2373 = vrot.lane.b32.xlu0 %v2336, 59
        %v2374 = vpop.permute.xlu0 %2373
        %2375 = vrot.lane.b32.xlu0 %v2344, 59
        %v2376 = vpop.permute.xlu0 %2375
        %2377 = vrot.lane.b32.xlu0 %v2351, 59
        %v2378 = vpop.permute.xlu0 %2377
        %2379 = vrot.lane.b32.xlu0 %v2358, 59
        %v2380 = vpop.permute.xlu0 %2379
        %v2381 = vrot.slane %v2360, 4
        %v2382 = vrot.slane %v2362, 4
        %v2383 = vrot.slane %v2364, 4
        %v2384 = vrot.slane %v2366, 4
        %v2385 = vrot.slane %v2368, 4
        %v2386 = vrot.slane %v2370, 4
        %v2387 = vrot.slane %v2372, 4
        %v2388 = vrot.slane %v2374, 4
        %v2389 = vrot.slane %v2376, 4
        %v2390 = vrot.slane %v2378, 4
        %v2391 = vrot.slane %v2380, 4
        %v2392 = vsel %vm848, %v2381, %v2382
        %vm2393 = vcmask 482304
        %v2394 = vsel %vm2393, %v2360, %v2392
        %v2395 = vsel %vm848, %v2382, %v2383
        %v2396 = vsel %vm2393, %v2362, %v2395
        %v2397 = vsel %vm848, %v2383, %v2384
        %v2398 = vsel %vm2393, %v2364, %v2397
        %v2399 = vsel %vm848, %v2384, %v2385
        %v2400 = vsel %vm2393, %v2366, %v2399
        %v2401 = vsel %vm848, %v2385, %v2386
        %v2402 = vsel %vm2393, %v2368, %v2401
        %v2403 = vsel %vm848, %v2386, %v2387
        %v2404 = vsel %vm2393, %v2370, %v2403
        %v2405 = vsel %vm848, %v2387, %v2388
        %v2406 = vsel %vm2393, %v2372, %v2405
        %v2407 = vsel %vm848, %v2388, %v2389
        %v2408 = vsel %vm2393, %v2374, %v2407
        %v2409 = vsel %vm848, %v2389, %v2390
        %v2410 = vsel %vm2393, %v2376, %v2409
        %v2411 = vsel %vm848, %v2390, %v2391
        %v2412 = vsel %vm2393, %v2378, %v2411
        %v2413 = vsel %vm2393, %v2380, %v2391
        %2425 = vst [vmem:[#allocation2 + $0x1a4] sm:$0x33] %v2394
        %2426 = vst [vmem:[#allocation2 + $0x1ac] sm:$0x33] %v2396
        %2427 = vst [vmem:[#allocation2 + $0x1b4] sm:$0x33] %v2398
        %2428 = vst [vmem:[#allocation2 + $0x1bc] sm:$0x33] %v2400
        %2429 = vst [vmem:[#allocation2 + $0x1c4] sm:$0x33] %v2402
        %2430 = vst [vmem:[#allocation2 + $0x1cc] sm:$0x33] %v2404
        %2431 = vst [vmem:[#allocation2 + $0x1d4] sm:$0x33] %v2406
        %2432 = vst [vmem:[#allocation2 + $0x1dc] sm:$0x33] %v2408
        %2433 = vst [vmem:[#allocation2 + $0x1e4] sm:$0x33] %v2410
        %2434 = vst [vmem:[#allocation2 + $0x1ec] sm:$0x33] %v2412
        %2435 = vst [vmem:[#allocation2 + $0x1f4] sm:$0x3] %v2413
        %v2436 = vld [vmem:[%s248 + $0x4] sm:$0xff]
        %v2437 = vld [vmem:[%s248 + $0xc] sm:$0xff]
        %v2438 = vld [vmem:[%s248 + $0x14] sm:$0xff]
        %v2439 = vld [vmem:[%s248 + $0x1c] sm:$0xff]
        %v2440 = vld [vmem:[%s248 + $0x24] sm:$0xff]
        %v2441 = vld [vmem:[%s248 + $0x2c] sm:$0xf]
        %v2448 = vcombine.low %v2436, %v2436
        %v2450 = vunpack.c.l.s4 1983009808
        %v2451 = vunpack.c.0.s8 %v2450
        %v2452 = vlaneseq
        %v2453 = vshrl.u32 %v2452, 7
        %v2454 = vsub.s32 %v2451, %v2453
        %v2455 = vrot.slane %v2448, %v2454
        %v2457 = vunpack.c.l.s4 1983009808
        %v2458 = vunpack.c.0.s8 %v2457
        %v2459 = vlaneseq
        %v2460 = vshrl.u32 %v2459, 7
        %v2461 = vsub.s32 %v2458, %v2460
        %v2462 = vrot.slane %v2436, %v2461
        %v2463 = vcombine.low %v2437, %v2437
        %v2465 = vunpack.c.l.s4 1983009808
        %v2466 = vunpack.c.0.s8 %v2465
        %v2467 = vlaneseq
        %v2468 = vshrl.u32 %v2467, 7
        %v2469 = vsub.s32 %v2466, %v2468
        %v2470 = vrot.slane %v2463, %v2469
        %v2472 = vunpack.c.l.s4 1983009808
        %v2473 = vunpack.c.0.s8 %v2472
        %v2474 = vlaneseq
        %v2475 = vshrl.u32 %v2474, 7
        %v2476 = vsub.s32 %v2473, %v2475
        %v2477 = vrot.slane %v2437, %v2476
        %v2478 = vcombine.low %v2438, %v2438
        %v2480 = vunpack.c.l.s4 1983009808
        %v2481 = vunpack.c.0.s8 %v2480
        %v2482 = vlaneseq
        %v2483 = vshrl.u32 %v2482, 7
        %v2484 = vsub.s32 %v2481, %v2483
        %v2485 = vrot.slane %v2478, %v2484
        %v2487 = vunpack.c.l.s4 1983009808
        %v2488 = vunpack.c.0.s8 %v2487
        %v2489 = vlaneseq
        %v2490 = vshrl.u32 %v2489, 7
        %v2491 = vsub.s32 %v2488, %v2490
        %v2492 = vrot.slane %v2438, %v2491
        %v2493 = vcombine.low %v2439, %v2439
        %v2495 = vunpack.c.l.s4 1983009808
        %v2496 = vunpack.c.0.s8 %v2495
        %v2497 = vlaneseq
        %v2498 = vshrl.u32 %v2497, 7
        %v2499 = vsub.s32 %v2496, %v2498
        %v2500 = vrot.slane %v2493, %v2499
        %v2502 = vunpack.c.l.s4 1983009808
        %v2503 = vunpack.c.0.s8 %v2502
        %v2504 = vlaneseq
        %v2505 = vshrl.u32 %v2504, 7
        %v2506 = vsub.s32 %v2503, %v2505
        %v2507 = vrot.slane %v2439, %v2506
        %v2508 = vcombine.low %v2440, %v2440
        %v2510 = vunpack.c.l.s4 1983009808
        %v2511 = vunpack.c.0.s8 %v2510
        %v2512 = vlaneseq
        %v2513 = vshrl.u32 %v2512, 7
        %v2514 = vsub.s32 %v2511, %v2513
        %v2515 = vrot.slane %v2508, %v2514
        %v2517 = vunpack.c.l.s4 1983009808
        %v2518 = vunpack.c.0.s8 %v2517
        %v2519 = vlaneseq
        %v2520 = vshrl.u32 %v2519, 7
        %v2521 = vsub.s32 %v2518, %v2520
        %v2522 = vrot.slane %v2440, %v2521
        %v2523 = vcombine.low %v2441, %v2441
        %v2525 = vunpack.c.l.s4 1983009808
        %v2526 = vunpack.c.0.s8 %v2525
        %v2527 = vlaneseq
        %v2528 = vshrl.u32 %v2527, 7
        %v2529 = vsub.s32 %v2526, %v2528
        %v2530 = vrot.slane %v2523, %v2529
        %2531 = vrot.lane.b32.xlu0 %v2455, 58
        %v2532 = vpop.permute.xlu0 %2531
        %2533 = vrot.lane.b32.xlu0 %v2462, 58
        %v2534 = vpop.permute.xlu0 %2533
        %2535 = vrot.lane.b32.xlu0 %v2470, 58
        %v2536 = vpop.permute.xlu0 %2535
        %2537 = vrot.lane.b32.xlu0 %v2477, 58
        %v2538 = vpop.permute.xlu0 %2537
        %2539 = vrot.lane.b32.xlu0 %v2485, 58
        %v2540 = vpop.permute.xlu0 %2539
        %2541 = vrot.lane.b32.xlu0 %v2492, 58
        %v2542 = vpop.permute.xlu0 %2541
        %2543 = vrot.lane.b32.xlu0 %v2500, 58
        %v2544 = vpop.permute.xlu0 %2543
        %2545 = vrot.lane.b32.xlu0 %v2507, 58
        %v2546 = vpop.permute.xlu0 %2545
        %2547 = vrot.lane.b32.xlu0 %v2515, 58
        %v2548 = vpop.permute.xlu0 %2547
        %2549 = vrot.lane.b32.xlu0 %v2522, 58
        %v2550 = vpop.permute.xlu0 %2549
        %2551 = vrot.lane.b32.xlu0 %v2530, 58
        %v2552 = vpop.permute.xlu0 %2551
        %v2553 = vrot.slane %v2532, 4
        %v2554 = vrot.slane %v2534, 4
        %v2555 = vrot.slane %v2536, 4
        %v2556 = vrot.slane %v2538, 4
        %v2557 = vrot.slane %v2540, 4
        %v2558 = vrot.slane %v2542, 4
        %v2559 = vrot.slane %v2544, 4
        %v2560 = vrot.slane %v2546, 4
        %v2561 = vrot.slane %v2548, 4
        %v2562 = vrot.slane %v2550, 4
        %v2563 = vrot.slane %v2552, 4
        %v2564 = vsel %vm848, %v2553, %v2554
        %vm2565 = vcmask 474112
        %v2566 = vsel %vm2565, %v2532, %v2564
        %v2567 = vsel %vm848, %v2554, %v2555
        %v2568 = vsel %vm2565, %v2534, %v2567
        %v2569 = vsel %vm848, %v2555, %v2556
        %v2570 = vsel %vm2565, %v2536, %v2569
        %v2571 = vsel %vm848, %v2556, %v2557
        %v2572 = vsel %vm2565, %v2538, %v2571
        %v2573 = vsel %vm848, %v2557, %v2558
        %v2574 = vsel %vm2565, %v2540, %v2573
        %v2575 = vsel %vm848, %v2558, %v2559
        %v2576 = vsel %vm2565, %v2542, %v2575
        %v2577 = vsel %vm848, %v2559, %v2560
        %v2578 = vsel %vm2565, %v2544, %v2577
        %v2579 = vsel %vm848, %v2560, %v2561
        %v2580 = vsel %vm2565, %v2546, %v2579
        %v2581 = vsel %vm848, %v2561, %v2562
        %v2582 = vsel %vm2565, %v2548, %v2581
        %v2583 = vsel %vm848, %v2562, %v2563
        %v2584 = vsel %vm2565, %v2550, %v2583
        %v2585 = vsel %vm2565, %v2552, %v2563
        %2597 = vst [vmem:[#allocation2 + $0x1a4] sm:$0xcc] %v2566
        %2598 = vst [vmem:[#allocation2 + $0x1ac] sm:$0xcc] %v2568
        %2599 = vst [vmem:[#allocation2 + $0x1b4] sm:$0xcc] %v2570
        %2600 = vst [vmem:[#allocation2 + $0x1bc] sm:$0xcc] %v2572
        %2601 = vst [vmem:[#allocation2 + $0x1c4] sm:$0xcc] %v2574
        %2602 = vst [vmem:[#allocation2 + $0x1cc] sm:$0xcc] %v2576
        %2603 = vst [vmem:[#allocation2 + $0x1d4] sm:$0xcc] %v2578
        %2604 = vst [vmem:[#allocation2 + $0x1dc] sm:$0xcc] %v2580
        %2605 = vst [vmem:[#allocation2 + $0x1e4] sm:$0xcc] %v2582
        %2606 = vst [vmem:[#allocation2 + $0x1ec] sm:$0xcc] %v2584
        %2607 = vst [vmem:[#allocation2 + $0x1f4] sm:$0xc] %v2585
        %v2608 = vld [vmem:[%s248 + $0x4] sm:$0xff]
        %v2609 = vld [vmem:[%s248 + $0xc] sm:$0xff]
        %v2610 = vld [vmem:[%s248 + $0x14] sm:$0xff]
        %v2611 = vld [vmem:[%s248 + $0x1c] sm:$0xff]
        %v2612 = vld [vmem:[%s248 + $0x24] sm:$0xff]
        %v2613 = vld [vmem:[%s248 + $0x2c] sm:$0xf]
        %v2620 = vcombine.high %v2608, %v2608
        %v2622 = vunpack.c.l.s4 1983009808
        %v2623 = vunpack.c.0.s8 %v2622
        %v2624 = vlaneseq
        %v2625 = vshrl.u32 %v2624, 7
        %v2626 = vsub.s32 %v2623, %v2625
        %v2627 = vrot.slane %v2608, %v2626
        %v2629 = vunpack.c.l.s4 1983009808
        %v2630 = vunpack.c.0.s8 %v2629
        %v2631 = vlaneseq
        %v2632 = vshrl.u32 %v2631, 7
        %v2633 = vsub.s32 %v2630, %v2632
        %v2634 = vrot.slane %v2620, %v2633
        %v2635 = vcombine.high %v2609, %v2609
        %v2637 = vunpack.c.l.s4 1983009808
        %v2638 = vunpack.c.0.s8 %v2637
        %v2639 = vlaneseq
        %v2640 = vshrl.u32 %v2639, 7
        %v2641 = vsub.s32 %v2638, %v2640
        %v2642 = vrot.slane %v2609, %v2641
        %v2644 = vunpack.c.l.s4 1983009808
        %v2645 = vunpack.c.0.s8 %v2644
        %v2646 = vlaneseq
        %v2647 = vshrl.u32 %v2646, 7
        %v2648 = vsub.s32 %v2645, %v2647
        %v2649 = vrot.slane %v2635, %v2648
        %v2650 = vcombine.high %v2610, %v2610
        %v2652 = vunpack.c.l.s4 1983009808
        %v2653 = vunpack.c.0.s8 %v2652
        %v2654 = vlaneseq
        %v2655 = vshrl.u32 %v2654, 7
        %v2656 = vsub.s32 %v2653, %v2655
        %v2657 = vrot.slane %v2610, %v2656
        %v2659 = vunpack.c.l.s4 1983009808
        %v2660 = vunpack.c.0.s8 %v2659
        %v2661 = vlaneseq
        %v2662 = vshrl.u32 %v2661, 7
        %v2663 = vsub.s32 %v2660, %v2662
        %v2664 = vrot.slane %v2650, %v2663
        %v2665 = vcombine.high %v2611, %v2611
        %v2667 = vunpack.c.l.s4 1983009808
        %v2668 = vunpack.c.0.s8 %v2667
        %v2669 = vlaneseq
        %v2670 = vshrl.u32 %v2669, 7
        %v2671 = vsub.s32 %v2668, %v2670
        %v2672 = vrot.slane %v2611, %v2671
        %v2674 = vunpack.c.l.s4 1983009808
        %v2675 = vunpack.c.0.s8 %v2674
        %v2676 = vlaneseq
        %v2677 = vshrl.u32 %v2676, 7
        %v2678 = vsub.s32 %v2675, %v2677
        %v2679 = vrot.slane %v2665, %v2678
        %v2680 = vcombine.high %v2612, %v2612
        %v2682 = vunpack.c.l.s4 1983009808
        %v2683 = vunpack.c.0.s8 %v2682
        %v2684 = vlaneseq
        %v2685 = vshrl.u32 %v2684, 7
        %v2686 = vsub.s32 %v2683, %v2685
        %v2687 = vrot.slane %v2612, %v2686
        %v2689 = vunpack.c.l.s4 1983009808
        %v2690 = vunpack.c.0.s8 %v2689
        %v2691 = vlaneseq
        %v2692 = vshrl.u32 %v2691, 7
        %v2693 = vsub.s32 %v2690, %v2692
        %v2694 = vrot.slane %v2680, %v2693
        %v2696 = vunpack.c.l.s4 1983009808
        %v2697 = vunpack.c.0.s8 %v2696
        %v2698 = vlaneseq
        %v2699 = vshrl.u32 %v2698, 7
        %v2700 = vsub.s32 %v2697, %v2699
        %v2701 = vrot.slane %v2613, %v2700
        %2702 = vrot.lane.b32.xlu0 %v2627, 42
        %v2703 = vpop.permute.xlu0 %2702
        %2704 = vrot.lane.b32.xlu0 %v2634, 42
        %v2705 = vpop.permute.xlu0 %2704
        %2706 = vrot.lane.b32.xlu0 %v2642, 42
        %v2707 = vpop.permute.xlu0 %2706
        %2708 = vrot.lane.b32.xlu0 %v2649, 42
        %v2709 = vpop.permute.xlu0 %2708
        %2710 = vrot.lane.b32.xlu0 %v2657, 42
        %v2711 = vpop.permute.xlu0 %2710
        %2712 = vrot.lane.b32.xlu0 %v2664, 42
        %v2713 = vpop.permute.xlu0 %2712
        %2714 = vrot.lane.b32.xlu0 %v2672, 42
        %v2715 = vpop.permute.xlu0 %2714
        %2716 = vrot.lane.b32.xlu0 %v2679, 42
        %v2717 = vpop.permute.xlu0 %2716
        %2718 = vrot.lane.b32.xlu0 %v2687, 42
        %v2719 = vpop.permute.xlu0 %2718
        %2720 = vrot.lane.b32.xlu0 %v2694, 42
        %v2721 = vpop.permute.xlu0 %2720
        %2722 = vrot.lane.b32.xlu0 %v2701, 42
        %v2723 = vpop.permute.xlu0 %2722
        %v2724 = vrot.slane %v2703, 4
        %v2725 = vrot.slane %v2705, 4
        %v2726 = vrot.slane %v2707, 4
        %v2727 = vrot.slane %v2709, 4
        %v2728 = vrot.slane %v2711, 4
        %v2729 = vrot.slane %v2713, 4
        %v2730 = vrot.slane %v2715, 4
        %v2731 = vrot.slane %v2717, 4
        %v2732 = vrot.slane %v2719, 4
        %v2733 = vrot.slane %v2721, 4
        %v2734 = vrot.slane %v2723, 4
        %v2735 = vsel %vm848, %v2724, %v2725
        %vm2736 = vcmask 343040
        %v2737 = vsel %vm2736, %v2703, %v2735
        %v2738 = vsel %vm848, %v2725, %v2726
        %v2739 = vsel %vm2736, %v2705, %v2738
        %v2740 = vsel %vm848, %v2726, %v2727
        %v2741 = vsel %vm2736, %v2707, %v2740
        %v2742 = vsel %vm848, %v2727, %v2728
        %v2743 = vsel %vm2736, %v2709, %v2742
        %v2744 = vsel %vm848, %v2728, %v2729
        %v2745 = vsel %vm2736, %v2711, %v2744
        %v2746 = vsel %vm848, %v2729, %v2730
        %v2747 = vsel %vm2736, %v2713, %v2746
        %v2748 = vsel %vm848, %v2730, %v2731
        %v2749 = vsel %vm2736, %v2715, %v2748
        %v2750 = vsel %vm848, %v2731, %v2732
        %v2751 = vsel %vm2736, %v2717, %v2750
        %v2752 = vsel %vm848, %v2732, %v2733
        %v2753 = vsel %vm2736, %v2719, %v2752
        %v2754 = vsel %vm848, %v2733, %v2734
        %v2755 = vsel %vm2736, %v2721, %v2754
        %v2756 = vsel %vm2736, %v2723, %v2734
        %2768 = vst [vmem:[#allocation2 + $0x1f8] sm:$0x33] %v2737
        %2769 = vst [vmem:[#allocation2 + $0x200] sm:$0x33] %v2739
        %2770 = vst [vmem:[#allocation2 + $0x208] sm:$0x33] %v2741
        %2771 = vst [vmem:[#allocation2 + $0x210] sm:$0x33] %v2743
        %2772 = vst [vmem:[#allocation2 + $0x218] sm:$0x33] %v2745
        %2773 = vst [vmem:[#allocation2 + $0x220] sm:$0x33] %v2747
        %2774 = vst [vmem:[#allocation2 + $0x228] sm:$0x33] %v2749
        %2775 = vst [vmem:[#allocation2 + $0x230] sm:$0x33] %v2751
        %2776 = vst [vmem:[#allocation2 + $0x238] sm:$0x33] %v2753
        %2777 = vst [vmem:[#allocation2 + $0x240] sm:$0x33] %v2755
        %2778 = vst [vmem:[#allocation2 + $0x248] sm:$0x3] %v2756
        %v2779 = vld [vmem:[%s248 + $0x4] sm:$0xff]
        %v2780 = vld [vmem:[%s248 + $0xc] sm:$0xff]
        %v2781 = vld [vmem:[%s248 + $0x14] sm:$0xff]
        %v2782 = vld [vmem:[%s248 + $0x1c] sm:$0xff]
        %v2783 = vld [vmem:[%s248 + $0x24] sm:$0xff]
        %v2784 = vld [vmem:[%s248 + $0x2c] sm:$0xf]
        %v2791 = vcombine.low %v2779, %v2779
        %v2793 = vunpack.c.l.s4 1983009808
        %v2794 = vunpack.c.0.s8 %v2793
        %v2795 = vlaneseq
        %v2796 = vshrl.u32 %v2795, 7
        %v2797 = vsub.s32 %v2794, %v2796
        %v2798 = vrot.slane %v2791, %v2797
        %v2800 = vunpack.c.l.s4 1983009808
        %v2801 = vunpack.c.0.s8 %v2800
        %v2802 = vlaneseq
        %v2803 = vshrl.u32 %v2802, 7
        %v2804 = vsub.s32 %v2801, %v2803
        %v2805 = vrot.slane %v2779, %v2804
        %v2806 = vcombine.low %v2780, %v2780
        %v2808 = vunpack.c.l.s4 1983009808
        %v2809 = vunpack.c.0.s8 %v2808
        %v2810 = vlaneseq
        %v2811 = vshrl.u32 %v2810, 7
        %v2812 = vsub.s32 %v2809, %v2811
        %v2813 = vrot.slane %v2806, %v2812
        %v2815 = vunpack.c.l.s4 1983009808
        %v2816 = vunpack.c.0.s8 %v2815
        %v2817 = vlaneseq
        %v2818 = vshrl.u32 %v2817, 7
        %v2819 = vsub.s32 %v2816, %v2818
        %v2820 = vrot.slane %v2780, %v2819
        %v2821 = vcombine.low %v2781, %v2781
        %v2823 = vunpack.c.l.s4 1983009808
        %v2824 = vunpack.c.0.s8 %v2823
        %v2825 = vlaneseq
        %v2826 = vshrl.u32 %v2825, 7
        %v2827 = vsub.s32 %v2824, %v2826
        %v2828 = vrot.slane %v2821, %v2827
        %v2830 = vunpack.c.l.s4 1983009808
        %v2831 = vunpack.c.0.s8 %v2830
        %v2832 = vlaneseq
        %v2833 = vshrl.u32 %v2832, 7
        %v2834 = vsub.s32 %v2831, %v2833
        %v2835 = vrot.slane %v2781, %v2834
        %v2836 = vcombine.low %v2782, %v2782
        %v2838 = vunpack.c.l.s4 1983009808
        %v2839 = vunpack.c.0.s8 %v2838
        %v2840 = vlaneseq
        %v2841 = vshrl.u32 %v2840, 7
        %v2842 = vsub.s32 %v2839, %v2841
        %v2843 = vrot.slane %v2836, %v2842
        %v2845 = vunpack.c.l.s4 1983009808
        %v2846 = vunpack.c.0.s8 %v2845
        %v2847 = vlaneseq
        %v2848 = vshrl.u32 %v2847, 7
        %v2849 = vsub.s32 %v2846, %v2848
        %v2850 = vrot.slane %v2782, %v2849
        %v2851 = vcombine.low %v2783, %v2783
        %v2853 = vunpack.c.l.s4 1983009808
        %v2854 = vunpack.c.0.s8 %v2853
        %v2855 = vlaneseq
        %v2856 = vshrl.u32 %v2855, 7
        %v2857 = vsub.s32 %v2854, %v2856
        %v2858 = vrot.slane %v2851, %v2857
        %v2860 = vunpack.c.l.s4 1983009808
        %v2861 = vunpack.c.0.s8 %v2860
        %v2862 = vlaneseq
        %v2863 = vshrl.u32 %v2862, 7
        %v2864 = vsub.s32 %v2861, %v2863
        %v2865 = vrot.slane %v2783, %v2864
        %v2866 = vcombine.low %v2784, %v2784
        %v2868 = vunpack.c.l.s4 1983009808
        %v2869 = vunpack.c.0.s8 %v2868
        %v2870 = vlaneseq
        %v2871 = vshrl.u32 %v2870, 7
        %v2872 = vsub.s32 %v2869, %v2871
        %v2873 = vrot.slane %v2866, %v2872
        %2874 = vrot.lane.b32.xlu0 %v2798, 41
        %v2875 = vpop.permute.xlu0 %2874
        %2876 = vrot.lane.b32.xlu0 %v2805, 41
        %v2877 = vpop.permute.xlu0 %2876
        %2878 = vrot.lane.b32.xlu0 %v2813, 41
        %v2879 = vpop.permute.xlu0 %2878
        %2880 = vrot.lane.b32.xlu0 %v2820, 41
        %v2881 = vpop.permute.xlu0 %2880
        %2882 = vrot.lane.b32.xlu0 %v2828, 41
        %v2883 = vpop.permute.xlu0 %2882
        %2884 = vrot.lane.b32.xlu0 %v2835, 41
        %v2885 = vpop.permute.xlu0 %2884
        %2886 = vrot.lane.b32.xlu0 %v2843, 41
        %v2887 = vpop.permute.xlu0 %2886
        %2888 = vrot.lane.b32.xlu0 %v2850, 41
        %v2889 = vpop.permute.xlu0 %2888
        %2890 = vrot.lane.b32.xlu0 %v2858, 41
        %v2891 = vpop.permute.xlu0 %2890
        %2892 = vrot.lane.b32.xlu0 %v2865, 41
        %v2893 = vpop.permute.xlu0 %2892
        %2894 = vrot.lane.b32.xlu0 %v2873, 41
        %v2895 = vpop.permute.xlu0 %2894
        %v2896 = vrot.slane %v2875, 4
        %v2897 = vrot.slane %v2877, 4
        %v2898 = vrot.slane %v2879, 4
        %v2899 = vrot.slane %v2881, 4
        %v2900 = vrot.slane %v2883, 4
        %v2901 = vrot.slane %v2885, 4
        %v2902 = vrot.slane %v2887, 4
        %v2903 = vrot.slane %v2889, 4
        %v2904 = vrot.slane %v2891, 4
        %v2905 = vrot.slane %v2893, 4
        %v2906 = vrot.slane %v2895, 4
        %v2907 = vsel %vm848, %v2896, %v2897
        %vm2908 = vcmask 334848
        %v2909 = vsel %vm2908, %v2875, %v2907
        %v2910 = vsel %vm848, %v2897, %v2898
        %v2911 = vsel %vm2908, %v2877, %v2910
        %v2912 = vsel %vm848, %v2898, %v2899
        %v2913 = vsel %vm2908, %v2879, %v2912
        %v2914 = vsel %vm848, %v2899, %v2900
        %v2915 = vsel %vm2908, %v2881, %v2914
        %v2916 = vsel %vm848, %v2900, %v2901
        %v2917 = vsel %vm2908, %v2883, %v2916
        %v2918 = vsel %vm848, %v2901, %v2902
        %v2919 = vsel %vm2908, %v2885, %v2918
        %v2920 = vsel %vm848, %v2902, %v2903
        %v2921 = vsel %vm2908, %v2887, %v2920
        %v2922 = vsel %vm848, %v2903, %v2904
        %v2923 = vsel %vm2908, %v2889, %v2922
        %v2924 = vsel %vm848, %v2904, %v2905
        %v2925 = vsel %vm2908, %v2891, %v2924
        %v2926 = vsel %vm848, %v2905, %v2906
        %v2927 = vsel %vm2908, %v2893, %v2926
        %v2928 = vsel %vm2908, %v2895, %v2906
        %2940 = vst [vmem:[#allocation2 + $0x1f8] sm:$0xcc] %v2909
        %2941 = vst [vmem:[#allocation2 + $0x200] sm:$0xcc] %v2911
        %2942 = vst [vmem:[#allocation2 + $0x208] sm:$0xcc] %v2913
        %2943 = vst [vmem:[#allocation2 + $0x210] sm:$0xcc] %v2915
        %2944 = vst [vmem:[#allocation2 + $0x218] sm:$0xcc] %v2917
        %2945 = vst [vmem:[#allocation2 + $0x220] sm:$0xcc] %v2919
        %2946 = vst [vmem:[#allocation2 + $0x228] sm:$0xcc] %v2921
        %2947 = vst [vmem:[#allocation2 + $0x230] sm:$0xcc] %v2923
        %2948 = vst [vmem:[#allocation2 + $0x238] sm:$0xcc] %v2925
        %2949 = vst [vmem:[#allocation2 + $0x240] sm:$0xcc] %v2927
        %2950 = vst [vmem:[#allocation2 + $0x248] sm:$0xc] %v2928
        %v2951 = vld [vmem:[%s248 + $0x4] sm:$0xff]
        %v2952 = vld [vmem:[%s248 + $0xc] sm:$0xff]
        %v2953 = vld [vmem:[%s248 + $0x14] sm:$0xff]
        %v2954 = vld [vmem:[%s248 + $0x1c] sm:$0xff]
        %v2955 = vld [vmem:[%s248 + $0x24] sm:$0xff]
        %v2956 = vld [vmem:[%s248 + $0x2c] sm:$0xf]
        %v2963 = vcombine.high %v2951, %v2951
        %v2965 = vunpack.c.l.s4 1983009808
        %v2966 = vunpack.c.0.s8 %v2965
        %v2967 = vlaneseq
        %v2968 = vshrl.u32 %v2967, 7
        %v2969 = vsub.s32 %v2966, %v2968
        %v2970 = vrot.slane %v2951, %v2969
        %v2972 = vunpack.c.l.s4 1983009808
        %v2973 = vunpack.c.0.s8 %v2972
        %v2974 = vlaneseq
        %v2975 = vshrl.u32 %v2974, 7
        %v2976 = vsub.s32 %v2973, %v2975
        %v2977 = vrot.slane %v2963, %v2976
        %v2978 = vcombine.high %v2952, %v2952
        %v2980 = vunpack.c.l.s4 1983009808
        %v2981 = vunpack.c.0.s8 %v2980
        %v2982 = vlaneseq
        %v2983 = vshrl.u32 %v2982, 7
        %v2984 = vsub.s32 %v2981, %v2983
        %v2985 = vrot.slane %v2952, %v2984
        %v2987 = vunpack.c.l.s4 1983009808
        %v2988 = vunpack.c.0.s8 %v2987
        %v2989 = vlaneseq
        %v2990 = vshrl.u32 %v2989, 7
        %v2991 = vsub.s32 %v2988, %v2990
        %v2992 = vrot.slane %v2978, %v2991
        %v2993 = vcombine.high %v2953, %v2953
        %v2995 = vunpack.c.l.s4 1983009808
        %v2996 = vunpack.c.0.s8 %v2995
        %v2997 = vlaneseq
        %v2998 = vshrl.u32 %v2997, 7
        %v2999 = vsub.s32 %v2996, %v2998
        %v3000 = vrot.slane %v2953, %v2999
        %v3002 = vunpack.c.l.s4 1983009808
        %v3003 = vunpack.c.0.s8 %v3002
        %v3004 = vlaneseq
        %v3005 = vshrl.u32 %v3004, 7
        %v3006 = vsub.s32 %v3003, %v3005
        %v3007 = vrot.slane %v2993, %v3006
        %v3008 = vcombine.high %v2954, %v2954
        %v3010 = vunpack.c.l.s4 1983009808
        %v3011 = vunpack.c.0.s8 %v3010
        %v3012 = vlaneseq
        %v3013 = vshrl.u32 %v3012, 7
        %v3014 = vsub.s32 %v3011, %v3013
        %v3015 = vrot.slane %v2954, %v3014
        %v3017 = vunpack.c.l.s4 1983009808
        %v3018 = vunpack.c.0.s8 %v3017
        %v3019 = vlaneseq
        %v3020 = vshrl.u32 %v3019, 7
        %v3021 = vsub.s32 %v3018, %v3020
        %v3022 = vrot.slane %v3008, %v3021
        %v3023 = vcombine.high %v2955, %v2955
        %v3025 = vunpack.c.l.s4 1983009808
        %v3026 = vunpack.c.0.s8 %v3025
        %v3027 = vlaneseq
        %v3028 = vshrl.u32 %v3027, 7
        %v3029 = vsub.s32 %v3026, %v3028
        %v3030 = vrot.slane %v2955, %v3029
        %v3032 = vunpack.c.l.s4 1983009808
        %v3033 = vunpack.c.0.s8 %v3032
        %v3034 = vlaneseq
        %v3035 = vshrl.u32 %v3034, 7
        %v3036 = vsub.s32 %v3033, %v3035
        %v3037 = vrot.slane %v3023, %v3036
        %v3039 = vunpack.c.l.s4 1983009808
        %v3040 = vunpack.c.0.s8 %v3039
        %v3041 = vlaneseq
        %v3042 = vshrl.u32 %v3041, 7
        %v3043 = vsub.s32 %v3040, %v3042
        %v3044 = vrot.slane %v2956, %v3043
        %3045 = vrot.lane.b32.xlu0 %v2970, 40
        %v3046 = vpop.permute.xlu0 %3045
        %3047 = vrot.lane.b32.xlu0 %v2977, 40
        %v3048 = vpop.permute.xlu0 %3047
        %3049 = vrot.lane.b32.xlu0 %v2985, 40
        %v3050 = vpop.permute.xlu0 %3049
        %3051 = vrot.lane.b32.xlu0 %v2992, 40
        %v3052 = vpop.permute.xlu0 %3051
        %3053 = vrot.lane.b32.xlu0 %v3000, 40
        %v3054 = vpop.permute.xlu0 %3053
        %3055 = vrot.lane.b32.xlu0 %v3007, 40
        %v3056 = vpop.permute.xlu0 %3055
        %3057 = vrot.lane.b32.xlu0 %v3015, 40
        %v3058 = vpop.permute.xlu0 %3057
        %3059 = vrot.lane.b32.xlu0 %v3022, 40
        %v3060 = vpop.permute.xlu0 %3059
        %3061 = vrot.lane.b32.xlu0 %v3030, 40
        %v3062 = vpop.permute.xlu0 %3061
        %3063 = vrot.lane.b32.xlu0 %v3037, 40
        %v3064 = vpop.permute.xlu0 %3063
        %3065 = vrot.lane.b32.xlu0 %v3044, 40
        %v3066 = vpop.permute.xlu0 %3065
        %v3067 = vrot.slane %v3046, 4
        %v3068 = vrot.slane %v3048, 4
        %v3069 = vrot.slane %v3050, 4
        %v3070 = vrot.slane %v3052, 4
        %v3071 = vrot.slane %v3054, 4
        %v3072 = vrot.slane %v3056, 4
        %v3073 = vrot.slane %v3058, 4
        %v3074 = vrot.slane %v3060, 4
        %v3075 = vrot.slane %v3062, 4
        %v3076 = vrot.slane %v3064, 4
        %v3077 = vrot.slane %v3066, 4
        %v3078 = vsel %vm848, %v3067, %v3068
        %vm3079 = vcmask 326656
        %v3080 = vsel %vm3079, %v3046, %v3078
        %v3081 = vsel %vm848, %v3068, %v3069
        %v3082 = vsel %vm3079, %v3048, %v3081
        %v3083 = vsel %vm848, %v3069, %v3070
        %v3084 = vsel %vm3079, %v3050, %v3083
        %v3085 = vsel %vm848, %v3070, %v3071
        %v3086 = vsel %vm3079, %v3052, %v3085
        %v3087 = vsel %vm848, %v3071, %v3072
        %v3088 = vsel %vm3079, %v3054, %v3087
        %v3089 = vsel %vm848, %v3072, %v3073
        %v3090 = vsel %vm3079, %v3056, %v3089
        %v3091 = vsel %vm848, %v3073, %v3074
        %v3092 = vsel %vm3079, %v3058, %v3091
        %v3093 = vsel %vm848, %v3074, %v3075
        %v3094 = vsel %vm3079, %v3060, %v3093
        %v3095 = vsel %vm848, %v3075, %v3076
        %v3096 = vsel %vm3079, %v3062, %v3095
        %v3097 = vsel %vm848, %v3076, %v3077
        %v3098 = vsel %vm3079, %v3064, %v3097
        %v3099 = vsel %vm3079, %v3066, %v3077
        %3111 = vst [vmem:[#allocation2 + $0x24c] sm:$0x33] %v3080
        %3112 = vst [vmem:[#allocation2 + $0x254] sm:$0x33] %v3082
        %3113 = vst [vmem:[#allocation2 + $0x25c] sm:$0x33] %v3084
        %3114 = vst [vmem:[#allocation2 + $0x264] sm:$0x33] %v3086
        %3115 = vst [vmem:[#allocation2 + $0x26c] sm:$0x33] %v3088
        %3116 = vst [vmem:[#allocation2 + $0x274] sm:$0x33] %v3090
        %3117 = vst [vmem:[#allocation2 + $0x27c] sm:$0x33] %v3092
        %3118 = vst [vmem:[#allocation2 + $0x284] sm:$0x33] %v3094
        %3119 = vst [vmem:[#allocation2 + $0x28c] sm:$0x33] %v3096
        %3120 = vst [vmem:[#allocation2 + $0x294] sm:$0x33] %v3098
        %3121 = vst [vmem:[#allocation2 + $0x29c] sm:$0x3] %v3099
        %v3122 = vld [vmem:[%s248 + $0x4] sm:$0xff]
        %v3123 = vld [vmem:[%s248 + $0xc] sm:$0xff]
        %v3124 = vld [vmem:[%s248 + $0x14] sm:$0xff]
        %v3125 = vld [vmem:[%s248 + $0x1c] sm:$0xff]
        %v3126 = vld [vmem:[%s248 + $0x24] sm:$0xff]
        %v3127 = vld [vmem:[%s248 + $0x2c] sm:$0xf]
        %v3134 = vcombine.low %v3122, %v3122
        %v3136 = vunpack.c.l.s4 1983009808
        %v3137 = vunpack.c.0.s8 %v3136
        %v3138 = vlaneseq
        %v3139 = vshrl.u32 %v3138, 7
        %v3140 = vsub.s32 %v3137, %v3139
        %v3141 = vrot.slane %v3134, %v3140
        %v3143 = vunpack.c.l.s4 1983009808
        %v3144 = vunpack.c.0.s8 %v3143
        %v3145 = vlaneseq
        %v3146 = vshrl.u32 %v3145, 7
        %v3147 = vsub.s32 %v3144, %v3146
        %v3148 = vrot.slane %v3122, %v3147
        %v3149 = vcombine.low %v3123, %v3123
        %v3151 = vunpack.c.l.s4 1983009808
        %v3152 = vunpack.c.0.s8 %v3151
        %v3153 = vlaneseq
        %v3154 = vshrl.u32 %v3153, 7
        %v3155 = vsub.s32 %v3152, %v3154
        %v3156 = vrot.slane %v3149, %v3155
        %v3158 = vunpack.c.l.s4 1983009808
        %v3159 = vunpack.c.0.s8 %v3158
        %v3160 = vlaneseq
        %v3161 = vshrl.u32 %v3160, 7
        %v3162 = vsub.s32 %v3159, %v3161
        %v3163 = vrot.slane %v3123, %v3162
        %v3164 = vcombine.low %v3124, %v3124
        %v3166 = vunpack.c.l.s4 1983009808
        %v3167 = vunpack.c.0.s8 %v3166
        %v3168 = vlaneseq
        %v3169 = vshrl.u32 %v3168, 7
        %v3170 = vsub.s32 %v3167, %v3169
        %v3171 = vrot.slane %v3164, %v3170
        %v3173 = vunpack.c.l.s4 1983009808
        %v3174 = vunpack.c.0.s8 %v3173
        %v3175 = vlaneseq
        %v3176 = vshrl.u32 %v3175, 7
        %v3177 = vsub.s32 %v3174, %v3176
        %v3178 = vrot.slane %v3124, %v3177
        %v3179 = vcombine.low %v3125, %v3125
        %v3181 = vunpack.c.l.s4 1983009808
        %v3182 = vunpack.c.0.s8 %v3181
        %v3183 = vlaneseq
        %v3184 = vshrl.u32 %v3183, 7
        %v3185 = vsub.s32 %v3182, %v3184
        %v3186 = vrot.slane %v3179, %v3185
        %v3188 = vunpack.c.l.s4 1983009808
        %v3189 = vunpack.c.0.s8 %v3188
        %v3190 = vlaneseq
        %v3191 = vshrl.u32 %v3190, 7
        %v3192 = vsub.s32 %v3189, %v3191
        %v3193 = vrot.slane %v3125, %v3192
        %v3194 = vcombine.low %v3126, %v3126
        %v3196 = vunpack.c.l.s4 1983009808
        %v3197 = vunpack.c.0.s8 %v3196
        %v3198 = vlaneseq
        %v3199 = vshrl.u32 %v3198, 7
        %v3200 = vsub.s32 %v3197, %v3199
        %v3201 = vrot.slane %v3194, %v3200
        %v3203 = vunpack.c.l.s4 1983009808
        %v3204 = vunpack.c.0.s8 %v3203
        %v3205 = vlaneseq
        %v3206 = vshrl.u32 %v3205, 7
        %v3207 = vsub.s32 %v3204, %v3206
        %v3208 = vrot.slane %v3126, %v3207
        %v3209 = vcombine.low %v3127, %v3127
        %v3211 = vunpack.c.l.s4 1983009808
        %v3212 = vunpack.c.0.s8 %v3211
        %v3213 = vlaneseq
        %v3214 = vshrl.u32 %v3213, 7
        %v3215 = vsub.s32 %v3212, %v3214
        %v3216 = vrot.slane %v3209, %v3215
        %3217 = vrot.lane.b32.xlu0 %v3141, 24
        %v3218 = vpop.permute.xlu0 %3217
        %3219 = vrot.lane.b32.xlu0 %v3148, 24
        %v3220 = vpop.permute.xlu0 %3219
        %3221 = vrot.lane.b32.xlu0 %v3156, 24
        %v3222 = vpop.permute.xlu0 %3221
        %3223 = vrot.lane.b32.xlu0 %v3163, 24
        %v3224 = vpop.permute.xlu0 %3223
        %3225 = vrot.lane.b32.xlu0 %v3171, 24
        %v3226 = vpop.permute.xlu0 %3225
        %3227 = vrot.lane.b32.xlu0 %v3178, 24
        %v3228 = vpop.permute.xlu0 %3227
        %3229 = vrot.lane.b32.xlu0 %v3186, 24
        %v3230 = vpop.permute.xlu0 %3229
        %3231 = vrot.lane.b32.xlu0 %v3193, 24
        %v3232 = vpop.permute.xlu0 %3231
        %3233 = vrot.lane.b32.xlu0 %v3201, 24
        %v3234 = vpop.permute.xlu0 %3233
        %3235 = vrot.lane.b32.xlu0 %v3208, 24
        %v3236 = vpop.permute.xlu0 %3235
        %3237 = vrot.lane.b32.xlu0 %v3216, 24
        %v3238 = vpop.permute.xlu0 %3237
        %v3239 = vrot.slane %v3218, 4
        %v3240 = vrot.slane %v3220, 4
        %v3241 = vrot.slane %v3222, 4
        %v3242 = vrot.slane %v3224, 4
        %v3243 = vrot.slane %v3226, 4
        %v3244 = vrot.slane %v3228, 4
        %v3245 = vrot.slane %v3230, 4
        %v3246 = vrot.slane %v3232, 4
        %v3247 = vrot.slane %v3234, 4
        %v3248 = vrot.slane %v3236, 4
        %v3249 = vrot.slane %v3238, 4
        %v3250 = vsel %vm848, %v3239, %v3240
        %vm3251 = vcmask 195584
        %v3252 = vsel %vm3251, %v3218, %v3250
        %v3253 = vsel %vm848, %v3240, %v3241
        %v3254 = vsel %vm3251, %v3220, %v3253
        %v3255 = vsel %vm848, %v3241, %v3242
        %v3256 = vsel %vm3251, %v3222, %v3255
        %v3257 = vsel %vm848, %v3242, %v3243
        %v3258 = vsel %vm3251, %v3224, %v3257
        %v3259 = vsel %vm848, %v3243, %v3244
        %v3260 = vsel %vm3251, %v3226, %v3259
        %v3261 = vsel %vm848, %v3244, %v3245
        %v3262 = vsel %vm3251, %v3228, %v3261
        %v3263 = vsel %vm848, %v3245, %v3246
        %v3264 = vsel %vm3251, %v3230, %v3263
        %v3265 = vsel %vm848, %v3246, %v3247
        %v3266 = vsel %vm3251, %v3232, %v3265
        %v3267 = vsel %vm848, %v3247, %v3248
        %v3268 = vsel %vm3251, %v3234, %v3267
        %v3269 = vsel %vm848, %v3248, %v3249
        %v3270 = vsel %vm3251, %v3236, %v3269
        %v3271 = vsel %vm3251, %v3238, %v3249
        %3283 = vst [vmem:[#allocation2 + $0x24c] sm:$0xcc] %v3252
        %3284 = vst [vmem:[#allocation2 + $0x254] sm:$0xcc] %v3254
        %3285 = vst [vmem:[#allocation2 + $0x25c] sm:$0xcc] %v3256
        %3286 = vst [vmem:[#allocation2 + $0x264] sm:$0xcc] %v3258
        %3287 = vst [vmem:[#allocation2 + $0x26c] sm:$0xcc] %v3260
        %3288 = vst [vmem:[#allocation2 + $0x274] sm:$0xcc] %v3262
        %3289 = vst [vmem:[#allocation2 + $0x27c] sm:$0xcc] %v3264
        %3290 = vst [vmem:[#allocation2 + $0x284] sm:$0xcc] %v3266
        %3291 = vst [vmem:[#allocation2 + $0x28c] sm:$0xcc] %v3268
        %3292 = vst [vmem:[#allocation2 + $0x294] sm:$0xcc] %v3270
        %3293 = vst [vmem:[#allocation2 + $0x29c] sm:$0xc] %v3271
        %v3294 = vld [vmem:[%s248 + $0x4] sm:$0xff]
        %v3295 = vld [vmem:[%s248 + $0xc] sm:$0xff]
        %v3296 = vld [vmem:[%s248 + $0x14] sm:$0xff]
        %v3297 = vld [vmem:[%s248 + $0x1c] sm:$0xff]
        %v3298 = vld [vmem:[%s248 + $0x24] sm:$0xff]
        %v3299 = vld [vmem:[%s248 + $0x2c] sm:$0xf]
        %v3306 = vcombine.high %v3294, %v3294
        %v3308 = vunpack.c.l.s4 1983009808
        %v3309 = vunpack.c.0.s8 %v3308
        %v3310 = vlaneseq
        %v3311 = vshrl.u32 %v3310, 7
        %v3312 = vsub.s32 %v3309, %v3311
        %v3313 = vrot.slane %v3294, %v3312
        %v3315 = vunpack.c.l.s4 1983009808
        %v3316 = vunpack.c.0.s8 %v3315
        %v3317 = vlaneseq
        %v3318 = vshrl.u32 %v3317, 7
        %v3319 = vsub.s32 %v3316, %v3318
        %v3320 = vrot.slane %v3306, %v3319
        %v3321 = vcombine.high %v3295, %v3295
        %v3323 = vunpack.c.l.s4 1983009808
        %v3324 = vunpack.c.0.s8 %v3323
        %v3325 = vlaneseq
        %v3326 = vshrl.u32 %v3325, 7
        %v3327 = vsub.s32 %v3324, %v3326
        %v3328 = vrot.slane %v3295, %v3327
        %v3330 = vunpack.c.l.s4 1983009808
        %v3331 = vunpack.c.0.s8 %v3330
        %v3332 = vlaneseq
        %v3333 = vshrl.u32 %v3332, 7
        %v3334 = vsub.s32 %v3331, %v3333
        %v3335 = vrot.slane %v3321, %v3334
        %v3336 = vcombine.high %v3296, %v3296
        %v3338 = vunpack.c.l.s4 1983009808
        %v3339 = vunpack.c.0.s8 %v3338
        %v3340 = vlaneseq
        %v3341 = vshrl.u32 %v3340, 7
        %v3342 = vsub.s32 %v3339, %v3341
        %v3343 = vrot.slane %v3296, %v3342
        %v3345 = vunpack.c.l.s4 1983009808
        %v3346 = vunpack.c.0.s8 %v3345
        %v3347 = vlaneseq
        %v3348 = vshrl.u32 %v3347, 7
        %v3349 = vsub.s32 %v3346, %v3348
        %v3350 = vrot.slane %v3336, %v3349
        %v3351 = vcombine.high %v3297, %v3297
        %v3353 = vunpack.c.l.s4 1983009808
        %v3354 = vunpack.c.0.s8 %v3353
        %v3355 = vlaneseq
        %v3356 = vshrl.u32 %v3355, 7
        %v3357 = vsub.s32 %v3354, %v3356
        %v3358 = vrot.slane %v3297, %v3357
        %v3360 = vunpack.c.l.s4 1983009808
        %v3361 = vunpack.c.0.s8 %v3360
        %v3362 = vlaneseq
        %v3363 = vshrl.u32 %v3362, 7
        %v3364 = vsub.s32 %v3361, %v3363
        %v3365 = vrot.slane %v3351, %v3364
        %v3366 = vcombine.high %v3298, %v3298
        %v3368 = vunpack.c.l.s4 1983009808
        %v3369 = vunpack.c.0.s8 %v3368
        %v3370 = vlaneseq
        %v3371 = vshrl.u32 %v3370, 7
        %v3372 = vsub.s32 %v3369, %v3371
        %v3373 = vrot.slane %v3298, %v3372
        %v3375 = vunpack.c.l.s4 1983009808
        %v3376 = vunpack.c.0.s8 %v3375
        %v3377 = vlaneseq
        %v3378 = vshrl.u32 %v3377, 7
        %v3379 = vsub.s32 %v3376, %v3378
        %v3380 = vrot.slane %v3366, %v3379
        %v3382 = vunpack.c.l.s4 1983009808
        %v3383 = vunpack.c.0.s8 %v3382
        %v3384 = vlaneseq
        %v3385 = vshrl.u32 %v3384, 7
        %v3386 = vsub.s32 %v3383, %v3385
        %v3387 = vrot.slane %v3299, %v3386
        %3388 = vrot.lane.b32.xlu0 %v3313, 23
        %v3389 = vpop.permute.xlu0 %3388
        %3390 = vrot.lane.b32.xlu0 %v3320, 23
        %v3391 = vpop.permute.xlu0 %3390
        %3392 = vrot.lane.b32.xlu0 %v3328, 23
        %v3393 = vpop.permute.xlu0 %3392
        %3394 = vrot.lane.b32.xlu0 %v3335, 23
        %v3395 = vpop.permute.xlu0 %3394
        %3396 = vrot.lane.b32.xlu0 %v3343, 23
        %v3397 = vpop.permute.xlu0 %3396
        %3398 = vrot.lane.b32.xlu0 %v3350, 23
        %v3399 = vpop.permute.xlu0 %3398
        %3400 = vrot.lane.b32.xlu0 %v3358, 23
        %v3401 = vpop.permute.xlu0 %3400
        %3402 = vrot.lane.b32.xlu0 %v3365, 23
        %v3403 = vpop.permute.xlu0 %3402
        %3404 = vrot.lane.b32.xlu0 %v3373, 23
        %v3405 = vpop.permute.xlu0 %3404
        %3406 = vrot.lane.b32.xlu0 %v3380, 23
        %v3407 = vpop.permute.xlu0 %3406
        %3408 = vrot.lane.b32.xlu0 %v3387, 23
        %v3409 = vpop.permute.xlu0 %3408
        %v3410 = vrot.slane %v3389, 4
        %v3411 = vrot.slane %v3391, 4
        %v3412 = vrot.slane %v3393, 4
        %v3413 = vrot.slane %v3395, 4
        %v3414 = vrot.slane %v3397, 4
        %v3415 = vrot.slane %v3399, 4
        %v3416 = vrot.slane %v3401, 4
        %v3417 = vrot.slane %v3403, 4
        %v3418 = vrot.slane %v3405, 4
        %v3419 = vrot.slane %v3407, 4
        %v3420 = vrot.slane %v3409, 4
        %v3421 = vsel %vm848, %v3410, %v3411
        %vm3422 = vcmask 187392
        %v3423 = vsel %vm3422, %v3389, %v3421
        %v3424 = vsel %vm848, %v3411, %v3412
        %v3425 = vsel %vm3422, %v3391, %v3424
        %v3426 = vsel %vm848, %v3412, %v3413
        %v3427 = vsel %vm3422, %v3393, %v3426
        %v3428 = vsel %vm848, %v3413, %v3414
        %v3429 = vsel %vm3422, %v3395, %v3428
        %v3430 = vsel %vm848, %v3414, %v3415
        %v3431 = vsel %vm3422, %v3397, %v3430
        %v3432 = vsel %vm848, %v3415, %v3416
        %v3433 = vsel %vm3422, %v3399, %v3432
        %v3434 = vsel %vm848, %v3416, %v3417
        %v3435 = vsel %vm3422, %v3401, %v3434
        %v3436 = vsel %vm848, %v3417, %v3418
        %v3437 = vsel %vm3422, %v3403, %v3436
        %v3438 = vsel %vm848, %v3418, %v3419
        %v3439 = vsel %vm3422, %v3405, %v3438
        %v3440 = vsel %vm848, %v3419, %v3420
        %v3441 = vsel %vm3422, %v3407, %v3440
        %v3442 = vsel %vm3422, %v3409, %v3420
        %3454 = vst [vmem:[#allocation2 + $0x2a0] sm:$0x33] %v3423
        %3455 = vst [vmem:[#allocation2 + $0x2a8] sm:$0x33] %v3425
        %3456 = vst [vmem:[#allocation2 + $0x2b0] sm:$0x33] %v3427
        %3457 = vst [vmem:[#allocation2 + $0x2b8] sm:$0x33] %v3429
        %3458 = vst [vmem:[#allocation2 + $0x2c0] sm:$0x33] %v3431
        %3459 = vst [vmem:[#allocation2 + $0x2c8] sm:$0x33] %v3433
        %3460 = vst [vmem:[#allocation2 + $0x2d0] sm:$0x33] %v3435
        %3461 = vst [vmem:[#allocation2 + $0x2d8] sm:$0x33] %v3437
        %3462 = vst [vmem:[#allocation2 + $0x2e0] sm:$0x33] %v3439
        %3463 = vst [vmem:[#allocation2 + $0x2e8] sm:$0x33] %v3441
        %3464 = vst [vmem:[#allocation2 + $0x2f0] sm:$0x3] %v3442
        %v3465 = vld [vmem:[%s248 + $0x4] sm:$0xff]
        %v3466 = vld [vmem:[%s248 + $0xc] sm:$0xff]
        %v3467 = vld [vmem:[%s248 + $0x14] sm:$0xff]
        %v3468 = vld [vmem:[%s248 + $0x1c] sm:$0xff]
        %v3469 = vld [vmem:[%s248 + $0x24] sm:$0xff]
        %v3470 = vld [vmem:[%s248 + $0x2c] sm:$0xf]
        %v3477 = vcombine.low %v3465, %v3465
        %v3479 = vunpack.c.l.s4 1983009808
        %v3480 = vunpack.c.0.s8 %v3479
        %v3481 = vlaneseq
        %v3482 = vshrl.u32 %v3481, 7
        %v3483 = vsub.s32 %v3480, %v3482
        %v3484 = vrot.slane %v3477, %v3483
        %v3486 = vunpack.c.l.s4 1983009808
        %v3487 = vunpack.c.0.s8 %v3486
        %v3488 = vlaneseq
        %v3489 = vshrl.u32 %v3488, 7
        %v3490 = vsub.s32 %v3487, %v3489
        %v3491 = vrot.slane %v3465, %v3490
        %v3492 = vcombine.low %v3466, %v3466
        %v3494 = vunpack.c.l.s4 1983009808
        %v3495 = vunpack.c.0.s8 %v3494
        %v3496 = vlaneseq
        %v3497 = vshrl.u32 %v3496, 7
        %v3498 = vsub.s32 %v3495, %v3497
        %v3499 = vrot.slane %v3492, %v3498
        %v3501 = vunpack.c.l.s4 1983009808
        %v3502 = vunpack.c.0.s8 %v3501
        %v3503 = vlaneseq
        %v3504 = vshrl.u32 %v3503, 7
        %v3505 = vsub.s32 %v3502, %v3504
        %v3506 = vrot.slane %v3466, %v3505
        %v3507 = vcombine.low %v3467, %v3467
        %v3509 = vunpack.c.l.s4 1983009808
        %v3510 = vunpack.c.0.s8 %v3509
        %v3511 = vlaneseq
        %v3512 = vshrl.u32 %v3511, 7
        %v3513 = vsub.s32 %v3510, %v3512
        %v3514 = vrot.slane %v3507, %v3513
        %v3516 = vunpack.c.l.s4 1983009808
        %v3517 = vunpack.c.0.s8 %v3516
        %v3518 = vlaneseq
        %v3519 = vshrl.u32 %v3518, 7
        %v3520 = vsub.s32 %v3517, %v3519
        %v3521 = vrot.slane %v3467, %v3520
        %v3522 = vcombine.low %v3468, %v3468
        %v3524 = vunpack.c.l.s4 1983009808
        %v3525 = vunpack.c.0.s8 %v3524
        %v3526 = vlaneseq
        %v3527 = vshrl.u32 %v3526, 7
        %v3528 = vsub.s32 %v3525, %v3527
        %v3529 = vrot.slane %v3522, %v3528
        %v3531 = vunpack.c.l.s4 1983009808
        %v3532 = vunpack.c.0.s8 %v3531
        %v3533 = vlaneseq
        %v3534 = vshrl.u32 %v3533, 7
        %v3535 = vsub.s32 %v3532, %v3534
        %v3536 = vrot.slane %v3468, %v3535
        %v3537 = vcombine.low %v3469, %v3469
        %v3539 = vunpack.c.l.s4 1983009808
        %v3540 = vunpack.c.0.s8 %v3539
        %v3541 = vlaneseq
        %v3542 = vshrl.u32 %v3541, 7
        %v3543 = vsub.s32 %v3540, %v3542
        %v3544 = vrot.slane %v3537, %v3543
        %v3546 = vunpack.c.l.s4 1983009808
        %v3547 = vunpack.c.0.s8 %v3546
        %v3548 = vlaneseq
        %v3549 = vshrl.u32 %v3548, 7
        %v3550 = vsub.s32 %v3547, %v3549
        %v3551 = vrot.slane %v3469, %v3550
        %v3552 = vcombine.low %v3470, %v3470
        %v3554 = vunpack.c.l.s4 1983009808
        %v3555 = vunpack.c.0.s8 %v3554
        %v3556 = vlaneseq
        %v3557 = vshrl.u32 %v3556, 7
        %v3558 = vsub.s32 %v3555, %v3557
        %v3559 = vrot.slane %v3552, %v3558
        %3560 = vrot.lane.b32.xlu0 %v3484, 22
        %v3561 = vpop.permute.xlu0 %3560
        %3562 = vrot.lane.b32.xlu0 %v3491, 22
        %v3563 = vpop.permute.xlu0 %3562
        %3564 = vrot.lane.b32.xlu0 %v3499, 22
        %v3565 = vpop.permute.xlu0 %3564
        %3566 = vrot.lane.b32.xlu0 %v3506, 22
        %v3567 = vpop.permute.xlu0 %3566
        %3568 = vrot.lane.b32.xlu0 %v3514, 22
        %v3569 = vpop.permute.xlu0 %3568
        %3570 = vrot.lane.b32.xlu0 %v3521, 22
        %v3571 = vpop.permute.xlu0 %3570
        %3572 = vrot.lane.b32.xlu0 %v3529, 22
        %v3573 = vpop.permute.xlu0 %3572
        %3574 = vrot.lane.b32.xlu0 %v3536, 22
        %v3575 = vpop.permute.xlu0 %3574
        %3576 = vrot.lane.b32.xlu0 %v3544, 22
        %v3577 = vpop.permute.xlu0 %3576
        %3578 = vrot.lane.b32.xlu0 %v3551, 22
        %v3579 = vpop.permute.xlu0 %3578
        %3580 = vrot.lane.b32.xlu0 %v3559, 22
        %v3581 = vpop.permute.xlu0 %3580
        %v3582 = vrot.slane %v3561, 4
        %v3583 = vrot.slane %v3563, 4
        %v3584 = vrot.slane %v3565, 4
        %v3585 = vrot.slane %v3567, 4
        %v3586 = vrot.slane %v3569, 4
        %v3587 = vrot.slane %v3571, 4
        %v3588 = vrot.slane %v3573, 4
        %v3589 = vrot.slane %v3575, 4
        %v3590 = vrot.slane %v3577, 4
        %v3591 = vrot.slane %v3579, 4
        %v3592 = vrot.slane %v3581, 4
        %v3593 = vsel %vm848, %v3582, %v3583
        %vm3594 = vcmask 179200
        %v3595 = vsel %vm3594, %v3561, %v3593
        %v3596 = vsel %vm848, %v3583, %v3584
        %v3597 = vsel %vm3594, %v3563, %v3596
        %v3598 = vsel %vm848, %v3584, %v3585
        %v3599 = vsel %vm3594, %v3565, %v3598
        %v3600 = vsel %vm848, %v3585, %v3586
        %v3601 = vsel %vm3594, %v3567, %v3600
        %v3602 = vsel %vm848, %v3586, %v3587
        %v3603 = vsel %vm3594, %v3569, %v3602
        %v3604 = vsel %vm848, %v3587, %v3588
        %v3605 = vsel %vm3594, %v3571, %v3604
        %v3606 = vsel %vm848, %v3588, %v3589
        %v3607 = vsel %vm3594, %v3573, %v3606
        %v3608 = vsel %vm848, %v3589, %v3590
        %v3609 = vsel %vm3594, %v3575, %v3608
        %v3610 = vsel %vm848, %v3590, %v3591
        %v3611 = vsel %vm3594, %v3577, %v3610
        %v3612 = vsel %vm848, %v3591, %v3592
        %v3613 = vsel %vm3594, %v3579, %v3612
        %v3614 = vsel %vm3594, %v3581, %v3592
        %3626 = vst [vmem:[#allocation2 + $0x2a0] sm:$0xcc] %v3595
        %3627 = vst [vmem:[#allocation2 + $0x2a8] sm:$0xcc] %v3597
        %3628 = vst [vmem:[#allocation2 + $0x2b0] sm:$0xcc] %v3599
        %3629 = vst [vmem:[#allocation2 + $0x2b8] sm:$0xcc] %v3601
        %3630 = vst [vmem:[#allocation2 + $0x2c0] sm:$0xcc] %v3603
        %3631 = vst [vmem:[#allocation2 + $0x2c8] sm:$0xcc] %v3605
        %3632 = vst [vmem:[#allocation2 + $0x2d0] sm:$0xcc] %v3607
        %3633 = vst [vmem:[#allocation2 + $0x2d8] sm:$0xcc] %v3609
        %3634 = vst [vmem:[#allocation2 + $0x2e0] sm:$0xcc] %v3611
        %3635 = vst [vmem:[#allocation2 + $0x2e8] sm:$0xcc] %v3613
        %3636 = vst [vmem:[#allocation2 + $0x2f0] sm:$0xc] %v3614
        %v3637 = vld [vmem:[%s248 + $0xa] sm:$0xff]
        %v3638 = vld [vmem:[%s248 + $0x12] sm:$0xff]
        %v3639 = vld [vmem:[%s248 + $0x1a] sm:$0xff]
        %v3640 = vld [vmem:[%s248 + $0x22] sm:$0xff]
        %v3641 = vld [vmem:[%s248 + $0x2a] sm:$0xff]
        %v3642 = vld [vmem:[%s248 + $0x32] sm:$0xf]
        %v3649 = vcombine.high %v3637, %v3637
        %v3651 = vunpack.c.l.s4 1983009808
        %v3652 = vunpack.c.0.s8 %v3651
        %v3653 = vlaneseq
        %v3654 = vshrl.u32 %v3653, 7
        %v3655 = vsub.s32 %v3652, %v3654
        %v3656 = vrot.slane %v3637, %v3655
        %v3658 = vunpack.c.l.s4 1983009808
        %v3659 = vunpack.c.0.s8 %v3658
        %v3660 = vlaneseq
        %v3661 = vshrl.u32 %v3660, 7
        %v3662 = vsub.s32 %v3659, %v3661
        %v3663 = vrot.slane %v3649, %v3662
        %v3664 = vcombine.high %v3638, %v3638
        %v3666 = vunpack.c.l.s4 1983009808
        %v3667 = vunpack.c.0.s8 %v3666
        %v3668 = vlaneseq
        %v3669 = vshrl.u32 %v3668, 7
        %v3670 = vsub.s32 %v3667, %v3669
        %v3671 = vrot.slane %v3638, %v3670
        %v3673 = vunpack.c.l.s4 1983009808
        %v3674 = vunpack.c.0.s8 %v3673
        %v3675 = vlaneseq
        %v3676 = vshrl.u32 %v3675, 7
        %v3677 = vsub.s32 %v3674, %v3676
        %v3678 = vrot.slane %v3664, %v3677
        %v3679 = vcombine.high %v3639, %v3639
        %v3681 = vunpack.c.l.s4 1983009808
        %v3682 = vunpack.c.0.s8 %v3681
        %v3683 = vlaneseq
        %v3684 = vshrl.u32 %v3683, 7
        %v3685 = vsub.s32 %v3682, %v3684
        %v3686 = vrot.slane %v3639, %v3685
        %v3688 = vunpack.c.l.s4 1983009808
        %v3689 = vunpack.c.0.s8 %v3688
        %v3690 = vlaneseq
        %v3691 = vshrl.u32 %v3690, 7
        %v3692 = vsub.s32 %v3689, %v3691
        %v3693 = vrot.slane %v3679, %v3692
        %v3694 = vcombine.high %v3640, %v3640
        %v3696 = vunpack.c.l.s4 1983009808
        %v3697 = vunpack.c.0.s8 %v3696
        %v3698 = vlaneseq
        %v3699 = vshrl.u32 %v3698, 7
        %v3700 = vsub.s32 %v3697, %v3699
        %v3701 = vrot.slane %v3640, %v3700
        %v3703 = vunpack.c.l.s4 1983009808
        %v3704 = vunpack.c.0.s8 %v3703
        %v3705 = vlaneseq
        %v3706 = vshrl.u32 %v3705, 7
        %v3707 = vsub.s32 %v3704, %v3706
        %v3708 = vrot.slane %v3694, %v3707
        %v3709 = vcombine.high %v3641, %v3641
        %v3711 = vunpack.c.l.s4 1983009808
        %v3712 = vunpack.c.0.s8 %v3711
        %v3713 = vlaneseq
        %v3714 = vshrl.u32 %v3713, 7
        %v3715 = vsub.s32 %v3712, %v3714
        %v3716 = vrot.slane %v3641, %v3715
        %v3718 = vunpack.c.l.s4 1983009808
        %v3719 = vunpack.c.0.s8 %v3718
        %v3720 = vlaneseq
        %v3721 = vshrl.u32 %v3720, 7
        %v3722 = vsub.s32 %v3719, %v3721
        %v3723 = vrot.slane %v3709, %v3722
        %v3725 = vunpack.c.l.s4 1983009808
        %v3726 = vunpack.c.0.s8 %v3725
        %v3727 = vlaneseq
        %v3728 = vshrl.u32 %v3727, 7
        %v3729 = vsub.s32 %v3726, %v3728
        %v3730 = vrot.slane %v3642, %v3729
        %3731 = vrot.lane.b32.xlu0 %v3656, 120
        %v3732 = vpop.permute.xlu0 %3731
        %3733 = vrot.lane.b32.xlu0 %v3663, 120
        %v3734 = vpop.permute.xlu0 %3733
        %3735 = vrot.lane.b32.xlu0 %v3671, 120
        %v3736 = vpop.permute.xlu0 %3735
        %3737 = vrot.lane.b32.xlu0 %v3678, 120
        %v3738 = vpop.permute.xlu0 %3737
        %3739 = vrot.lane.b32.xlu0 %v3686, 120
        %v3740 = vpop.permute.xlu0 %3739
        %3741 = vrot.lane.b32.xlu0 %v3693, 120
        %v3742 = vpop.permute.xlu0 %3741
        %3743 = vrot.lane.b32.xlu0 %v3701, 120
        %v3744 = vpop.permute.xlu0 %3743
        %3745 = vrot.lane.b32.xlu0 %v3708, 120
        %v3746 = vpop.permute.xlu0 %3745
        %3747 = vrot.lane.b32.xlu0 %v3716, 120
        %v3748 = vpop.permute.xlu0 %3747
        %3749 = vrot.lane.b32.xlu0 %v3723, 120
        %v3750 = vpop.permute.xlu0 %3749
        %3751 = vrot.lane.b32.xlu0 %v3730, 120
        %v3752 = vpop.permute.xlu0 %3751
        %v3753 = vrot.slane %v3732, 4
        %v3754 = vrot.slane %v3734, 4
        %v3755 = vrot.slane %v3736, 4
        %v3756 = vrot.slane %v3738, 4
        %v3757 = vrot.slane %v3740, 4
        %v3758 = vrot.slane %v3742, 4
        %v3759 = vrot.slane %v3744, 4
        %v3760 = vrot.slane %v3746, 4
        %v3761 = vrot.slane %v3748, 4
        %v3762 = vrot.slane %v3750, 4
        %v3763 = vrot.slane %v3752, 4
        %v3764 = vsel %vm848, %v3753, %v3754
        %vm3765 = vcmask 982016
        %v3766 = vsel %vm3765, %v3732, %v3764
        %v3767 = vsel %vm848, %v3754, %v3755
        %v3768 = vsel %vm3765, %v3734, %v3767
        %v3769 = vsel %vm848, %v3755, %v3756
        %v3770 = vsel %vm3765, %v3736, %v3769
        %v3771 = vsel %vm848, %v3756, %v3757
        %v3772 = vsel %vm3765, %v3738, %v3771
        %v3773 = vsel %vm848, %v3757, %v3758
        %v3774 = vsel %vm3765, %v3740, %v3773
        %v3775 = vsel %vm848, %v3758, %v3759
        %v3776 = vsel %vm3765, %v3742, %v3775
        %v3777 = vsel %vm848, %v3759, %v3760
        %v3778 = vsel %vm3765, %v3744, %v3777
        %v3779 = vsel %vm848, %v3760, %v3761
        %v3780 = vsel %vm3765, %v3746, %v3779
        %v3781 = vsel %vm848, %v3761, %v3762
        %v3782 = vsel %vm3765, %v3748, %v3781
        %v3783 = vsel %vm848, %v3762, %v3763
        %v3784 = vsel %vm3765, %v3750, %v3783
        %v3785 = vsel %vm3765, %v3752, %v3763
        %3797 = vst [vmem:[#allocation2 + $0x2f4] sm:$0x33] %v3766
        %3798 = vst [vmem:[#allocation2 + $0x2fc] sm:$0x33] %v3768
        %3799 = vst [vmem:[#allocation2 + $0x304] sm:$0x33] %v3770
        %3800 = vst [vmem:[#allocation2 + $0x30c] sm:$0x33] %v3772
        %3801 = vst [vmem:[#allocation2 + $0x314] sm:$0x33] %v3774
        %3802 = vst [vmem:[#allocation2 + $0x31c] sm:$0x33] %v3776
        %3803 = vst [vmem:[#allocation2 + $0x324] sm:$0x33] %v3778
        %3804 = vst [vmem:[#allocation2 + $0x32c] sm:$0x33] %v3780
        %3805 = vst [vmem:[#allocation2 + $0x334] sm:$0x33] %v3782
        %3806 = vst [vmem:[#allocation2 + $0x33c] sm:$0x33] %v3784
        %3807 = vst [vmem:[#allocation2 + $0x344] sm:$0x3] %v3785
        %v3808 = vld [vmem:[%s248 + $0xa] sm:$0xff]
        %v3809 = vld [vmem:[%s248 + $0x12] sm:$0xff]
        %v3810 = vld [vmem:[%s248 + $0x1a] sm:$0xff]
        %v3811 = vld [vmem:[%s248 + $0x22] sm:$0xff]
        %v3812 = vld [vmem:[%s248 + $0x2a] sm:$0xff]
        %v3813 = vld [vmem:[%s248 + $0x32] sm:$0xf]
        %v3820 = vcombine.low %v3808, %v3808
        %v3822 = vunpack.c.l.s4 1983009808
        %v3823 = vunpack.c.0.s8 %v3822
        %v3824 = vlaneseq
        %v3825 = vshrl.u32 %v3824, 7
        %v3826 = vsub.s32 %v3823, %v3825
        %v3827 = vrot.slane %v3820, %v3826
        %v3829 = vunpack.c.l.s4 1983009808
        %v3830 = vunpack.c.0.s8 %v3829
        %v3831 = vlaneseq
        %v3832 = vshrl.u32 %v3831, 7
        %v3833 = vsub.s32 %v3830, %v3832
        %v3834 = vrot.slane %v3808, %v3833
        %v3835 = vcombine.low %v3809, %v3809
        %v3837 = vunpack.c.l.s4 1983009808
        %v3838 = vunpack.c.0.s8 %v3837
        %v3839 = vlaneseq
        %v3840 = vshrl.u32 %v3839, 7
        %v3841 = vsub.s32 %v3838, %v3840
        %v3842 = vrot.slane %v3835, %v3841
        %v3844 = vunpack.c.l.s4 1983009808
        %v3845 = vunpack.c.0.s8 %v3844
        %v3846 = vlaneseq
        %v3847 = vshrl.u32 %v3846, 7
        %v3848 = vsub.s32 %v3845, %v3847
        %v3849 = vrot.slane %v3809, %v3848
        %v3850 = vcombine.low %v3810, %v3810
        %v3852 = vunpack.c.l.s4 1983009808
        %v3853 = vunpack.c.0.s8 %v3852
        %v3854 = vlaneseq
        %v3855 = vshrl.u32 %v3854, 7
        %v3856 = vsub.s32 %v3853, %v3855
        %v3857 = vrot.slane %v3850, %v3856
        %v3859 = vunpack.c.l.s4 1983009808
        %v3860 = vunpack.c.0.s8 %v3859
        %v3861 = vlaneseq
        %v3862 = vshrl.u32 %v3861, 7
        %v3863 = vsub.s32 %v3860, %v3862
        %v3864 = vrot.slane %v3810, %v3863
        %v3865 = vcombine.low %v3811, %v3811
        %v3867 = vunpack.c.l.s4 1983009808
        %v3868 = vunpack.c.0.s8 %v3867
        %v3869 = vlaneseq
        %v3870 = vshrl.u32 %v3869, 7
        %v3871 = vsub.s32 %v3868, %v3870
        %v3872 = vrot.slane %v3865, %v3871
        %v3874 = vunpack.c.l.s4 1983009808
        %v3875 = vunpack.c.0.s8 %v3874
        %v3876 = vlaneseq
        %v3877 = vshrl.u32 %v3876, 7
        %v3878 = vsub.s32 %v3875, %v3877
        %v3879 = vrot.slane %v3811, %v3878
        %v3880 = vcombine.low %v3812, %v3812
        %v3882 = vunpack.c.l.s4 1983009808
        %v3883 = vunpack.c.0.s8 %v3882
        %v3884 = vlaneseq
        %v3885 = vshrl.u32 %v3884, 7
        %v3886 = vsub.s32 %v3883, %v3885
        %v3887 = vrot.slane %v3880, %v3886
        %v3889 = vunpack.c.l.s4 1983009808
        %v3890 = vunpack.c.0.s8 %v3889
        %v3891 = vlaneseq
        %v3892 = vshrl.u32 %v3891, 7
        %v3893 = vsub.s32 %v3890, %v3892
        %v3894 = vrot.slane %v3812, %v3893
        %v3895 = vcombine.low %v3813, %v3813
        %v3897 = vunpack.c.l.s4 1983009808
        %v3898 = vunpack.c.0.s8 %v3897
        %v3899 = vlaneseq
        %v3900 = vshrl.u32 %v3899, 7
        %v3901 = vsub.s32 %v3898, %v3900
        %v3902 = vrot.slane %v3895, %v3901
        %3903 = vrot.lane.b32.xlu0 %v3827, 119
        %v3904 = vpop.permute.xlu0 %3903
        %3905 = vrot.lane.b32.xlu0 %v3834, 119
        %v3906 = vpop.permute.xlu0 %3905
        %3907 = vrot.lane.b32.xlu0 %v3842, 119
        %v3908 = vpop.permute.xlu0 %3907
        %3909 = vrot.lane.b32.xlu0 %v3849, 119
        %v3910 = vpop.permute.xlu0 %3909
        %3911 = vrot.lane.b32.xlu0 %v3857, 119
        %v3912 = vpop.permute.xlu0 %3911
        %3913 = vrot.lane.b32.xlu0 %v3864, 119
        %v3914 = vpop.permute.xlu0 %3913
        %3915 = vrot.lane.b32.xlu0 %v3872, 119
        %v3916 = vpop.permute.xlu0 %3915
        %3917 = vrot.lane.b32.xlu0 %v3879, 119
        %v3918 = vpop.permute.xlu0 %3917
        %3919 = vrot.lane.b32.xlu0 %v3887, 119
        %v3920 = vpop.permute.xlu0 %3919
        %3921 = vrot.lane.b32.xlu0 %v3894, 119
        %v3922 = vpop.permute.xlu0 %3921
        %3923 = vrot.lane.b32.xlu0 %v3902, 119
        %v3924 = vpop.permute.xlu0 %3923
        %v3925 = vrot.slane %v3904, 4
        %v3926 = vrot.slane %v3906, 4
        %v3927 = vrot.slane %v3908, 4
        %v3928 = vrot.slane %v3910, 4
        %v3929 = vrot.slane %v3912, 4
        %v3930 = vrot.slane %v3914, 4
        %v3931 = vrot.slane %v3916, 4
        %v3932 = vrot.slane %v3918, 4
        %v3933 = vrot.slane %v3920, 4
        %v3934 = vrot.slane %v3922, 4
        %v3935 = vrot.slane %v3924, 4
        %v3936 = vsel %vm848, %v3925, %v3926
        %vm3937 = vcmask 973824
        %v3938 = vsel %vm3937, %v3904, %v3936
        %v3939 = vsel %vm848, %v3926, %v3927
        %v3940 = vsel %vm3937, %v3906, %v3939
        %v3941 = vsel %vm848, %v3927, %v3928
        %v3942 = vsel %vm3937, %v3908, %v3941
        %v3943 = vsel %vm848, %v3928, %v3929
        %v3944 = vsel %vm3937, %v3910, %v3943
        %v3945 = vsel %vm848, %v3929, %v3930
        %v3946 = vsel %vm3937, %v3912, %v3945
        %v3947 = vsel %vm848, %v3930, %v3931
        %v3948 = vsel %vm3937, %v3914, %v3947
        %v3949 = vsel %vm848, %v3931, %v3932
        %v3950 = vsel %vm3937, %v3916, %v3949
        %v3951 = vsel %vm848, %v3932, %v3933
        %v3952 = vsel %vm3937, %v3918, %v3951
        %v3953 = vsel %vm848, %v3933, %v3934
        %v3954 = vsel %vm3937, %v3920, %v3953
        %v3955 = vsel %vm848, %v3934, %v3935
        %v3956 = vsel %vm3937, %v3922, %v3955
        %v3957 = vsel %vm3937, %v3924, %v3935
        %3969 = vst [vmem:[#allocation2 + $0x2f4] sm:$0xcc] %v3938
        %3970 = vst [vmem:[#allocation2 + $0x2fc] sm:$0xcc] %v3940
        %3971 = vst [vmem:[#allocation2 + $0x304] sm:$0xcc] %v3942
        %3972 = vst [vmem:[#allocation2 + $0x30c] sm:$0xcc] %v3944
        %3973 = vst [vmem:[#allocation2 + $0x314] sm:$0xcc] %v3946
        %3974 = vst [vmem:[#allocation2 + $0x31c] sm:$0xcc] %v3948
        %3975 = vst [vmem:[#allocation2 + $0x324] sm:$0xcc] %v3950
        %3976 = vst [vmem:[#allocation2 + $0x32c] sm:$0xcc] %v3952
        %3977 = vst [vmem:[#allocation2 + $0x334] sm:$0xcc] %v3954
        %3978 = vst [vmem:[#allocation2 + $0x33c] sm:$0xcc] %v3956
        %3979 = vst [vmem:[#allocation2 + $0x344] sm:$0xc] %v3957
        %v3980 = vld [vmem:[%s248 + $0xa] sm:$0xff]
        %v3981 = vld [vmem:[%s248 + $0x12] sm:$0xff]
        %v3982 = vld [vmem:[%s248 + $0x1a] sm:$0xff]
        %v3983 = vld [vmem:[%s248 + $0x22] sm:$0xff]
        %v3984 = vld [vmem:[%s248 + $0x2a] sm:$0xff]
        %v3985 = vld [vmem:[%s248 + $0x32] sm:$0xf]
        %v3992 = vcombine.high %v3980, %v3980
        %v3994 = vunpack.c.l.s4 1983009808
        %v3995 = vunpack.c.0.s8 %v3994
        %v3996 = vlaneseq
        %v3997 = vshrl.u32 %v3996, 7
        %v3998 = vsub.s32 %v3995, %v3997
        %v3999 = vrot.slane %v3980, %v3998
        %v4001 = vunpack.c.l.s4 1983009808
        %v4002 = vunpack.c.0.s8 %v4001
        %v4003 = vlaneseq
        %v4004 = vshrl.u32 %v4003, 7
        %v4005 = vsub.s32 %v4002, %v4004
        %v4006 = vrot.slane %v3992, %v4005
        %v4007 = vcombine.high %v3981, %v3981
        %v4009 = vunpack.c.l.s4 1983009808
        %v4010 = vunpack.c.0.s8 %v4009
        %v4011 = vlaneseq
        %v4012 = vshrl.u32 %v4011, 7
        %v4013 = vsub.s32 %v4010, %v4012
        %v4014 = vrot.slane %v3981, %v4013
        %v4016 = vunpack.c.l.s4 1983009808
        %v4017 = vunpack.c.0.s8 %v4016
        %v4018 = vlaneseq
        %v4019 = vshrl.u32 %v4018, 7
        %v4020 = vsub.s32 %v4017, %v4019
        %v4021 = vrot.slane %v4007, %v4020
        %v4022 = vcombine.high %v3982, %v3982
        %v4024 = vunpack.c.l.s4 1983009808
        %v4025 = vunpack.c.0.s8 %v4024
        %v4026 = vlaneseq
        %v4027 = vshrl.u32 %v4026, 7
        %v4028 = vsub.s32 %v4025, %v4027
        %v4029 = vrot.slane %v3982, %v4028
        %v4031 = vunpack.c.l.s4 1983009808
        %v4032 = vunpack.c.0.s8 %v4031
        %v4033 = vlaneseq
        %v4034 = vshrl.u32 %v4033, 7
        %v4035 = vsub.s32 %v4032, %v4034
        %v4036 = vrot.slane %v4022, %v4035
        %v4037 = vcombine.high %v3983, %v3983
        %v4039 = vunpack.c.l.s4 1983009808
        %v4040 = vunpack.c.0.s8 %v4039
        %v4041 = vlaneseq
        %v4042 = vshrl.u32 %v4041, 7
        %v4043 = vsub.s32 %v4040, %v4042
        %v4044 = vrot.slane %v3983, %v4043
        %v4046 = vunpack.c.l.s4 1983009808
        %v4047 = vunpack.c.0.s8 %v4046
        %v4048 = vlaneseq
        %v4049 = vshrl.u32 %v4048, 7
        %v4050 = vsub.s32 %v4047, %v4049
        %v4051 = vrot.slane %v4037, %v4050
        %v4052 = vcombine.high %v3984, %v3984
        %v4054 = vunpack.c.l.s4 1983009808
        %v4055 = vunpack.c.0.s8 %v4054
        %v4056 = vlaneseq
        %v4057 = vshrl.u32 %v4056, 7
        %v4058 = vsub.s32 %v4055, %v4057
        %v4059 = vrot.slane %v3984, %v4058
        %v4061 = vunpack.c.l.s4 1983009808
        %v4062 = vunpack.c.0.s8 %v4061
        %v4063 = vlaneseq
        %v4064 = vshrl.u32 %v4063, 7
        %v4065 = vsub.s32 %v4062, %v4064
        %v4066 = vrot.slane %v4052, %v4065
        %v4068 = vunpack.c.l.s4 1983009808
        %v4069 = vunpack.c.0.s8 %v4068
        %v4070 = vlaneseq
        %v4071 = vshrl.u32 %v4070, 7
        %v4072 = vsub.s32 %v4069, %v4071
        %v4073 = vrot.slane %v3985, %v4072
        %4074 = vrot.lane.b32.xlu0 %v3999, 118
        %v4075 = vpop.permute.xlu0 %4074
        %4076 = vrot.lane.b32.xlu0 %v4006, 118
        %v4077 = vpop.permute.xlu0 %4076
        %4078 = vrot.lane.b32.xlu0 %v4014, 118
        %v4079 = vpop.permute.xlu0 %4078
        %4080 = vrot.lane.b32.xlu0 %v4021, 118
        %v4081 = vpop.permute.xlu0 %4080
        %4082 = vrot.lane.b32.xlu0 %v4029, 118
        %v4083 = vpop.permute.xlu0 %4082
        %4084 = vrot.lane.b32.xlu0 %v4036, 118
        %v4085 = vpop.permute.xlu0 %4084
        %4086 = vrot.lane.b32.xlu0 %v4044, 118
        %v4087 = vpop.permute.xlu0 %4086
        %4088 = vrot.lane.b32.xlu0 %v4051, 118
        %v4089 = vpop.permute.xlu0 %4088
        %4090 = vrot.lane.b32.xlu0 %v4059, 118
        %v4091 = vpop.permute.xlu0 %4090
        %4092 = vrot.lane.b32.xlu0 %v4066, 118
        %v4093 = vpop.permute.xlu0 %4092
        %4094 = vrot.lane.b32.xlu0 %v4073, 118
        %v4095 = vpop.permute.xlu0 %4094
        %v4096 = vrot.slane %v4075, 4
        %v4097 = vrot.slane %v4077, 4
        %v4098 = vrot.slane %v4079, 4
        %v4099 = vrot.slane %v4081, 4
        %v4100 = vrot.slane %v4083, 4
        %v4101 = vrot.slane %v4085, 4
        %v4102 = vrot.slane %v4087, 4
        %v4103 = vrot.slane %v4089, 4
        %v4104 = vrot.slane %v4091, 4
        %v4105 = vrot.slane %v4093, 4
        %v4106 = vrot.slane %v4095, 4
        %v4107 = vsel %vm848, %v4096, %v4097
        %vm4108 = vcmask 965632
        %v4109 = vsel %vm4108, %v4075, %v4107
        %v4110 = vsel %vm848, %v4097, %v4098
        %v4111 = vsel %vm4108, %v4077, %v4110
        %v4112 = vsel %vm848, %v4098, %v4099
        %v4113 = vsel %vm4108, %v4079, %v4112
        %v4114 = vsel %vm848, %v4099, %v4100
        %v4115 = vsel %vm4108, %v4081, %v4114
        %v4116 = vsel %vm848, %v4100, %v4101
        %v4117 = vsel %vm4108, %v4083, %v4116
        %v4118 = vsel %vm848, %v4101, %v4102
        %v4119 = vsel %vm4108, %v4085, %v4118
        %v4120 = vsel %vm848, %v4102, %v4103
        %v4121 = vsel %vm4108, %v4087, %v4120
        %v4122 = vsel %vm848, %v4103, %v4104
        %v4123 = vsel %vm4108, %v4089, %v4122
        %v4124 = vsel %vm848, %v4104, %v4105
        %v4125 = vsel %vm4108, %v4091, %v4124
        %v4126 = vsel %vm848, %v4105, %v4106
        %v4127 = vsel %vm4108, %v4093, %v4126
        %v4128 = vsel %vm4108, %v4095, %v4106
        %4140 = vst [vmem:[#allocation2 + $0x348] sm:$0x33] %v4109
        %4141 = vst [vmem:[#allocation2 + $0x350] sm:$0x33] %v4111
        %4142 = vst [vmem:[#allocation2 + $0x358] sm:$0x33] %v4113
        %4143 = vst [vmem:[#allocation2 + $0x360] sm:$0x33] %v4115
        %4144 = vst [vmem:[#allocation2 + $0x368] sm:$0x33] %v4117
        %4145 = vst [vmem:[#allocation2 + $0x370] sm:$0x33] %v4119
        %4146 = vst [vmem:[#allocation2 + $0x378] sm:$0x33] %v4121
        %4147 = vst [vmem:[#allocation2 + $0x380] sm:$0x33] %v4123
        %4148 = vst [vmem:[#allocation2 + $0x388] sm:$0x33] %v4125
        %4149 = vst [vmem:[#allocation2 + $0x390] sm:$0x33] %v4127
        %4150 = vst [vmem:[#allocation2 + $0x398] sm:$0x3] %v4128
        %v4151 = vld [vmem:[%s248 + $0xa] sm:$0xff]
        %v4152 = vld [vmem:[%s248 + $0x12] sm:$0xff]
        %v4153 = vld [vmem:[%s248 + $0x1a] sm:$0xff]
        %v4154 = vld [vmem:[%s248 + $0x22] sm:$0xff]
        %v4155 = vld [vmem:[%s248 + $0x2a] sm:$0xff]
        %v4156 = vld [vmem:[%s248 + $0x32] sm:$0xf]
        %v4163 = vcombine.low %v4151, %v4151
        %v4165 = vunpack.c.l.s4 1983009808
        %v4166 = vunpack.c.0.s8 %v4165
        %v4167 = vlaneseq
        %v4168 = vshrl.u32 %v4167, 7
        %v4169 = vsub.s32 %v4166, %v4168
        %v4170 = vrot.slane %v4163, %v4169
        %v4172 = vunpack.c.l.s4 1983009808
        %v4173 = vunpack.c.0.s8 %v4172
        %v4174 = vlaneseq
        %v4175 = vshrl.u32 %v4174, 7
        %v4176 = vsub.s32 %v4173, %v4175
        %v4177 = vrot.slane %v4151, %v4176
        %v4178 = vcombine.low %v4152, %v4152
        %v4180 = vunpack.c.l.s4 1983009808
        %v4181 = vunpack.c.0.s8 %v4180
        %v4182 = vlaneseq
        %v4183 = vshrl.u32 %v4182, 7
        %v4184 = vsub.s32 %v4181, %v4183
        %v4185 = vrot.slane %v4178, %v4184
        %v4187 = vunpack.c.l.s4 1983009808
        %v4188 = vunpack.c.0.s8 %v4187
        %v4189 = vlaneseq
        %v4190 = vshrl.u32 %v4189, 7
        %v4191 = vsub.s32 %v4188, %v4190
        %v4192 = vrot.slane %v4152, %v4191
        %v4193 = vcombine.low %v4153, %v4153
        %v4195 = vunpack.c.l.s4 1983009808
        %v4196 = vunpack.c.0.s8 %v4195
        %v4197 = vlaneseq
        %v4198 = vshrl.u32 %v4197, 7
        %v4199 = vsub.s32 %v4196, %v4198
        %v4200 = vrot.slane %v4193, %v4199
        %v4202 = vunpack.c.l.s4 1983009808
        %v4203 = vunpack.c.0.s8 %v4202
        %v4204 = vlaneseq
        %v4205 = vshrl.u32 %v4204, 7
        %v4206 = vsub.s32 %v4203, %v4205
        %v4207 = vrot.slane %v4153, %v4206
        %v4208 = vcombine.low %v4154, %v4154
        %v4210 = vunpack.c.l.s4 1983009808
        %v4211 = vunpack.c.0.s8 %v4210
        %v4212 = vlaneseq
        %v4213 = vshrl.u32 %v4212, 7
        %v4214 = vsub.s32 %v4211, %v4213
        %v4215 = vrot.slane %v4208, %v4214
        %v4217 = vunpack.c.l.s4 1983009808
        %v4218 = vunpack.c.0.s8 %v4217
        %v4219 = vlaneseq
        %v4220 = vshrl.u32 %v4219, 7
        %v4221 = vsub.s32 %v4218, %v4220
        %v4222 = vrot.slane %v4154, %v4221
        %v4223 = vcombine.low %v4155, %v4155
        %v4225 = vunpack.c.l.s4 1983009808
        %v4226 = vunpack.c.0.s8 %v4225
        %v4227 = vlaneseq
        %v4228 = vshrl.u32 %v4227, 7
        %v4229 = vsub.s32 %v4226, %v4228
        %v4230 = vrot.slane %v4223, %v4229
        %v4232 = vunpack.c.l.s4 1983009808
        %v4233 = vunpack.c.0.s8 %v4232
        %v4234 = vlaneseq
        %v4235 = vshrl.u32 %v4234, 7
        %v4236 = vsub.s32 %v4233, %v4235
        %v4237 = vrot.slane %v4155, %v4236
        %v4238 = vcombine.low %v4156, %v4156
        %v4240 = vunpack.c.l.s4 1983009808
        %v4241 = vunpack.c.0.s8 %v4240
        %v4242 = vlaneseq
        %v4243 = vshrl.u32 %v4242, 7
        %v4244 = vsub.s32 %v4241, %v4243
        %v4245 = vrot.slane %v4238, %v4244
        %4246 = vrot.lane.b32.xlu0 %v4170, 102
        %v4247 = vpop.permute.xlu0 %4246
        %4248 = vrot.lane.b32.xlu0 %v4177, 102
        %v4249 = vpop.permute.xlu0 %4248
        %4250 = vrot.lane.b32.xlu0 %v4185, 102
        %v4251 = vpop.permute.xlu0 %4250
        %4252 = vrot.lane.b32.xlu0 %v4192, 102
        %v4253 = vpop.permute.xlu0 %4252
        %4254 = vrot.lane.b32.xlu0 %v4200, 102
        %v4255 = vpop.permute.xlu0 %4254
        %4256 = vrot.lane.b32.xlu0 %v4207, 102
        %v4257 = vpop.permute.xlu0 %4256
        %4258 = vrot.lane.b32.xlu0 %v4215, 102
        %v4259 = vpop.permute.xlu0 %4258
        %4260 = vrot.lane.b32.xlu0 %v4222, 102
        %v4261 = vpop.permute.xlu0 %4260
        %4262 = vrot.lane.b32.xlu0 %v4230, 102
        %v4263 = vpop.permute.xlu0 %4262
        %4264 = vrot.lane.b32.xlu0 %v4237, 102
        %v4265 = vpop.permute.xlu0 %4264
        %4266 = vrot.lane.b32.xlu0 %v4245, 102
        %v4267 = vpop.permute.xlu0 %4266
        %v4268 = vrot.slane %v4247, 4
        %v4269 = vrot.slane %v4249, 4
        %v4270 = vrot.slane %v4251, 4
        %v4271 = vrot.slane %v4253, 4
        %v4272 = vrot.slane %v4255, 4
        %v4273 = vrot.slane %v4257, 4
        %v4274 = vrot.slane %v4259, 4
        %v4275 = vrot.slane %v4261, 4
        %v4276 = vrot.slane %v4263, 4
        %v4277 = vrot.slane %v4265, 4
        %v4278 = vrot.slane %v4267, 4
        %v4279 = vsel %vm848, %v4268, %v4269
        %vm4280 = vcmask 834560
        %v4281 = vsel %vm4280, %v4247, %v4279
        %v4282 = vsel %vm848, %v4269, %v4270
        %v4283 = vsel %vm4280, %v4249, %v4282
        %v4284 = vsel %vm848, %v4270, %v4271
        %v4285 = vsel %vm4280, %v4251, %v4284
        %v4286 = vsel %vm848, %v4271, %v4272
        %v4287 = vsel %vm4280, %v4253, %v4286
        %v4288 = vsel %vm848, %v4272, %v4273
        %v4289 = vsel %vm4280, %v4255, %v4288
        %v4290 = vsel %vm848, %v4273, %v4274
        %v4291 = vsel %vm4280, %v4257, %v4290
        %v4292 = vsel %vm848, %v4274, %v4275
        %v4293 = vsel %vm4280, %v4259, %v4292
        %v4294 = vsel %vm848, %v4275, %v4276
        %v4295 = vsel %vm4280, %v4261, %v4294
        %v4296 = vsel %vm848, %v4276, %v4277
        %v4297 = vsel %vm4280, %v4263, %v4296
        %v4298 = vsel %vm848, %v4277, %v4278
        %v4299 = vsel %vm4280, %v4265, %v4298
        %v4300 = vsel %vm4280, %v4267, %v4278
        %4312 = vst [vmem:[#allocation2 + $0x348] sm:$0xcc] %v4281
        %4313 = vst [vmem:[#allocation2 + $0x350] sm:$0xcc] %v4283
        %4314 = vst [vmem:[#allocation2 + $0x358] sm:$0xcc] %v4285
        %4315 = vst [vmem:[#allocation2 + $0x360] sm:$0xcc] %v4287
        %4316 = vst [vmem:[#allocation2 + $0x368] sm:$0xcc] %v4289
        %4317 = vst [vmem:[#allocation2 + $0x370] sm:$0xcc] %v4291
        %4318 = vst [vmem:[#allocation2 + $0x378] sm:$0xcc] %v4293
        %4319 = vst [vmem:[#allocation2 + $0x380] sm:$0xcc] %v4295
        %4320 = vst [vmem:[#allocation2 + $0x388] sm:$0xcc] %v4297
        %4321 = vst [vmem:[#allocation2 + $0x390] sm:$0xcc] %v4299
        %4322 = vst [vmem:[#allocation2 + $0x398] sm:$0xc] %v4300
        %v4323 = vld [vmem:[%s248 + $0xa] sm:$0xff]
        %v4324 = vld [vmem:[%s248 + $0x12] sm:$0xff]
        %v4325 = vld [vmem:[%s248 + $0x1a] sm:$0xff]
        %v4326 = vld [vmem:[%s248 + $0x22] sm:$0xff]
        %v4327 = vld [vmem:[%s248 + $0x2a] sm:$0xff]
        %v4328 = vld [vmem:[%s248 + $0x32] sm:$0xf]
        %v4335 = vcombine.high %v4323, %v4323
        %v4337 = vunpack.c.l.s4 1983009808
        %v4338 = vunpack.c.0.s8 %v4337
        %v4339 = vlaneseq
        %v4340 = vshrl.u32 %v4339, 7
        %v4341 = vsub.s32 %v4338, %v4340
        %v4342 = vrot.slane %v4323, %v4341
        %v4344 = vunpack.c.l.s4 1983009808
        %v4345 = vunpack.c.0.s8 %v4344
        %v4346 = vlaneseq
        %v4347 = vshrl.u32 %v4346, 7
        %v4348 = vsub.s32 %v4345, %v4347
        %v4349 = vrot.slane %v4335, %v4348
        %v4350 = vcombine.high %v4324, %v4324
        %v4352 = vunpack.c.l.s4 1983009808
        %v4353 = vunpack.c.0.s8 %v4352
        %v4354 = vlaneseq
        %v4355 = vshrl.u32 %v4354, 7
        %v4356 = vsub.s32 %v4353, %v4355
        %v4357 = vrot.slane %v4324, %v4356
        %v4359 = vunpack.c.l.s4 1983009808
        %v4360 = vunpack.c.0.s8 %v4359
        %v4361 = vlaneseq
        %v4362 = vshrl.u32 %v4361, 7
        %v4363 = vsub.s32 %v4360, %v4362
        %v4364 = vrot.slane %v4350, %v4363
        %v4365 = vcombine.high %v4325, %v4325
        %v4367 = vunpack.c.l.s4 1983009808
        %v4368 = vunpack.c.0.s8 %v4367
        %v4369 = vlaneseq
        %v4370 = vshrl.u32 %v4369, 7
        %v4371 = vsub.s32 %v4368, %v4370
        %v4372 = vrot.slane %v4325, %v4371
        %v4374 = vunpack.c.l.s4 1983009808
        %v4375 = vunpack.c.0.s8 %v4374
        %v4376 = vlaneseq
        %v4377 = vshrl.u32 %v4376, 7
        %v4378 = vsub.s32 %v4375, %v4377
        %v4379 = vrot.slane %v4365, %v4378
        %v4380 = vcombine.high %v4326, %v4326
        %v4382 = vunpack.c.l.s4 1983009808
        %v4383 = vunpack.c.0.s8 %v4382
        %v4384 = vlaneseq
        %v4385 = vshrl.u32 %v4384, 7
        %v4386 = vsub.s32 %v4383, %v4385
        %v4387 = vrot.slane %v4326, %v4386
        %v4389 = vunpack.c.l.s4 1983009808
        %v4390 = vunpack.c.0.s8 %v4389
        %v4391 = vlaneseq
        %v4392 = vshrl.u32 %v4391, 7
        %v4393 = vsub.s32 %v4390, %v4392
        %v4394 = vrot.slane %v4380, %v4393
        %v4395 = vcombine.high %v4327, %v4327
        %v4397 = vunpack.c.l.s4 1983009808
        %v4398 = vunpack.c.0.s8 %v4397
        %v4399 = vlaneseq
        %v4400 = vshrl.u32 %v4399, 7
        %v4401 = vsub.s32 %v4398, %v4400
        %v4402 = vrot.slane %v4327, %v4401
        %v4404 = vunpack.c.l.s4 1983009808
        %v4405 = vunpack.c.0.s8 %v4404
        %v4406 = vlaneseq
        %v4407 = vshrl.u32 %v4406, 7
        %v4408 = vsub.s32 %v4405, %v4407
        %v4409 = vrot.slane %v4395, %v4408
        %v4411 = vunpack.c.l.s4 1983009808
        %v4412 = vunpack.c.0.s8 %v4411
        %v4413 = vlaneseq
        %v4414 = vshrl.u32 %v4413, 7
        %v4415 = vsub.s32 %v4412, %v4414
        %v4416 = vrot.slane %v4328, %v4415
        %4417 = vrot.lane.b32.xlu0 %v4342, 101
        %v4418 = vpop.permute.xlu0 %4417
        %4419 = vrot.lane.b32.xlu0 %v4349, 101
        %v4420 = vpop.permute.xlu0 %4419
        %4421 = vrot.lane.b32.xlu0 %v4357, 101
        %v4422 = vpop.permute.xlu0 %4421
        %4423 = vrot.lane.b32.xlu0 %v4364, 101
        %v4424 = vpop.permute.xlu0 %4423
        %4425 = vrot.lane.b32.xlu0 %v4372, 101
        %v4426 = vpop.permute.xlu0 %4425
        %4427 = vrot.lane.b32.xlu0 %v4379, 101
        %v4428 = vpop.permute.xlu0 %4427
        %4429 = vrot.lane.b32.xlu0 %v4387, 101
        %v4430 = vpop.permute.xlu0 %4429
        %4431 = vrot.lane.b32.xlu0 %v4394, 101
        %v4432 = vpop.permute.xlu0 %4431
        %4433 = vrot.lane.b32.xlu0 %v4402, 101
        %v4434 = vpop.permute.xlu0 %4433
        %4435 = vrot.lane.b32.xlu0 %v4409, 101
        %v4436 = vpop.permute.xlu0 %4435
        %4437 = vrot.lane.b32.xlu0 %v4416, 101
        %v4438 = vpop.permute.xlu0 %4437
        %v4439 = vrot.slane %v4418, 4
        %v4440 = vrot.slane %v4420, 4
        %v4441 = vrot.slane %v4422, 4
        %v4442 = vrot.slane %v4424, 4
        %v4443 = vrot.slane %v4426, 4
        %v4444 = vrot.slane %v4428, 4
        %v4445 = vrot.slane %v4430, 4
        %v4446 = vrot.slane %v4432, 4
        %v4447 = vrot.slane %v4434, 4
        %v4448 = vrot.slane %v4436, 4
        %v4449 = vrot.slane %v4438, 4
        %v4450 = vsel %vm848, %v4439, %v4440
        %vm4451 = vcmask 826368
        %v4452 = vsel %vm4451, %v4418, %v4450
        %v4453 = vsel %vm848, %v4440, %v4441
        %v4454 = vsel %vm4451, %v4420, %v4453
        %v4455 = vsel %vm848, %v4441, %v4442
        %v4456 = vsel %vm4451, %v4422, %v4455
        %v4457 = vsel %vm848, %v4442, %v4443
        %v4458 = vsel %vm4451, %v4424, %v4457
        %v4459 = vsel %vm848, %v4443, %v4444
        %v4460 = vsel %vm4451, %v4426, %v4459
        %v4461 = vsel %vm848, %v4444, %v4445
        %v4462 = vsel %vm4451, %v4428, %v4461
        %v4463 = vsel %vm848, %v4445, %v4446
        %v4464 = vsel %vm4451, %v4430, %v4463
        %v4465 = vsel %vm848, %v4446, %v4447
        %v4466 = vsel %vm4451, %v4432, %v4465
        %v4467 = vsel %vm848, %v4447, %v4448
        %v4468 = vsel %vm4451, %v4434, %v4467
        %v4469 = vsel %vm848, %v4448, %v4449
        %v4470 = vsel %vm4451, %v4436, %v4469
        %v4471 = vsel %vm4451, %v4438, %v4449
        %4483 = vst [vmem:[#allocation2 + $0x39c] sm:$0x33] %v4452
        %4484 = vst [vmem:[#allocation2 + $0x3a4] sm:$0x33] %v4454
        %4485 = vst [vmem:[#allocation2 + $0x3ac] sm:$0x33] %v4456
        %4486 = vst [vmem:[#allocation2 + $0x3b4] sm:$0x33] %v4458
        %4487 = vst [vmem:[#allocation2 + $0x3bc] sm:$0x33] %v4460
        %4488 = vst [vmem:[#allocation2 + $0x3c4] sm:$0x33] %v4462
        %4489 = vst [vmem:[#allocation2 + $0x3cc] sm:$0x33] %v4464
        %4490 = vst [vmem:[#allocation2 + $0x3d4] sm:$0x33] %v4466
        %4491 = vst [vmem:[#allocation2 + $0x3dc] sm:$0x33] %v4468
        %4492 = vst [vmem:[#allocation2 + $0x3e4] sm:$0x33] %v4470
        %4493 = vst [vmem:[#allocation2 + $0x3ec] sm:$0x3] %v4471
        %v4494 = vld [vmem:[%s248 + $0xa] sm:$0xff]
        %v4495 = vld [vmem:[%s248 + $0x12] sm:$0xff]
        %v4496 = vld [vmem:[%s248 + $0x1a] sm:$0xff]
        %v4497 = vld [vmem:[%s248 + $0x22] sm:$0xff]
        %v4498 = vld [vmem:[%s248 + $0x2a] sm:$0xff]
        %v4499 = vld [vmem:[%s248 + $0x32] sm:$0xf]
        %v4506 = vcombine.low %v4494, %v4494
        %v4508 = vunpack.c.l.s4 1983009808
        %v4509 = vunpack.c.0.s8 %v4508
        %v4510 = vlaneseq
        %v4511 = vshrl.u32 %v4510, 7
        %v4512 = vsub.s32 %v4509, %v4511
        %v4513 = vrot.slane %v4506, %v4512
        %v4515 = vunpack.c.l.s4 1983009808
        %v4516 = vunpack.c.0.s8 %v4515
        %v4517 = vlaneseq
        %v4518 = vshrl.u32 %v4517, 7
        %v4519 = vsub.s32 %v4516, %v4518
        %v4520 = vrot.slane %v4494, %v4519
        %v4521 = vcombine.low %v4495, %v4495
        %v4523 = vunpack.c.l.s4 1983009808
        %v4524 = vunpack.c.0.s8 %v4523
        %v4525 = vlaneseq
        %v4526 = vshrl.u32 %v4525, 7
        %v4527 = vsub.s32 %v4524, %v4526
        %v4528 = vrot.slane %v4521, %v4527
        %v4530 = vunpack.c.l.s4 1983009808
        %v4531 = vunpack.c.0.s8 %v4530
        %v4532 = vlaneseq
        %v4533 = vshrl.u32 %v4532, 7
        %v4534 = vsub.s32 %v4531, %v4533
        %v4535 = vrot.slane %v4495, %v4534
        %v4536 = vcombine.low %v4496, %v4496
        %v4538 = vunpack.c.l.s4 1983009808
        %v4539 = vunpack.c.0.s8 %v4538
        %v4540 = vlaneseq
        %v4541 = vshrl.u32 %v4540, 7
        %v4542 = vsub.s32 %v4539, %v4541
        %v4543 = vrot.slane %v4536, %v4542
        %v4545 = vunpack.c.l.s4 1983009808
        %v4546 = vunpack.c.0.s8 %v4545
        %v4547 = vlaneseq
        %v4548 = vshrl.u32 %v4547, 7
        %v4549 = vsub.s32 %v4546, %v4548
        %v4550 = vrot.slane %v4496, %v4549
        %v4551 = vcombine.low %v4497, %v4497
        %v4553 = vunpack.c.l.s4 1983009808
        %v4554 = vunpack.c.0.s8 %v4553
        %v4555 = vlaneseq
        %v4556 = vshrl.u32 %v4555, 7
        %v4557 = vsub.s32 %v4554, %v4556
        %v4558 = vrot.slane %v4551, %v4557
        %v4560 = vunpack.c.l.s4 1983009808
        %v4561 = vunpack.c.0.s8 %v4560
        %v4562 = vlaneseq
        %v4563 = vshrl.u32 %v4562, 7
        %v4564 = vsub.s32 %v4561, %v4563
        %v4565 = vrot.slane %v4497, %v4564
        %v4566 = vcombine.low %v4498, %v4498
        %v4568 = vunpack.c.l.s4 1983009808
        %v4569 = vunpack.c.0.s8 %v4568
        %v4570 = vlaneseq
        %v4571 = vshrl.u32 %v4570, 7
        %v4572 = vsub.s32 %v4569, %v4571
        %v4573 = vrot.slane %v4566, %v4572
        %v4575 = vunpack.c.l.s4 1983009808
        %v4576 = vunpack.c.0.s8 %v4575
        %v4577 = vlaneseq
        %v4578 = vshrl.u32 %v4577, 7
        %v4579 = vsub.s32 %v4576, %v4578
        %v4580 = vrot.slane %v4498, %v4579
        %v4581 = vcombine.low %v4499, %v4499
        %v4583 = vunpack.c.l.s4 1983009808
        %v4584 = vunpack.c.0.s8 %v4583
        %v4585 = vlaneseq
        %v4586 = vshrl.u32 %v4585, 7
        %v4587 = vsub.s32 %v4584, %v4586
        %v4588 = vrot.slane %v4581, %v4587
        %4589 = vrot.lane.b32.xlu0 %v4513, 100
        %v4590 = vpop.permute.xlu0 %4589
        %4591 = vrot.lane.b32.xlu0 %v4520, 100
        %v4592 = vpop.permute.xlu0 %4591
        %4593 = vrot.lane.b32.xlu0 %v4528, 100
        %v4594 = vpop.permute.xlu0 %4593
        %4595 = vrot.lane.b32.xlu0 %v4535, 100
        %v4596 = vpop.permute.xlu0 %4595
        %4597 = vrot.lane.b32.xlu0 %v4543, 100
        %v4598 = vpop.permute.xlu0 %4597
        %4599 = vrot.lane.b32.xlu0 %v4550, 100
        %v4600 = vpop.permute.xlu0 %4599
        %4601 = vrot.lane.b32.xlu0 %v4558, 100
        %v4602 = vpop.permute.xlu0 %4601
        %4603 = vrot.lane.b32.xlu0 %v4565, 100
        %v4604 = vpop.permute.xlu0 %4603
        %4605 = vrot.lane.b32.xlu0 %v4573, 100
        %v4606 = vpop.permute.xlu0 %4605
        %4607 = vrot.lane.b32.xlu0 %v4580, 100
        %v4608 = vpop.permute.xlu0 %4607
        %4609 = vrot.lane.b32.xlu0 %v4588, 100
        %v4610 = vpop.permute.xlu0 %4609
        %v4611 = vrot.slane %v4590, 4
        %v4612 = vrot.slane %v4592, 4
        %v4613 = vrot.slane %v4594, 4
        %v4614 = vrot.slane %v4596, 4
        %v4615 = vrot.slane %v4598, 4
        %v4616 = vrot.slane %v4600, 4
        %v4617 = vrot.slane %v4602, 4
        %v4618 = vrot.slane %v4604, 4
        %v4619 = vrot.slane %v4606, 4
        %v4620 = vrot.slane %v4608, 4
        %v4621 = vrot.slane %v4610, 4
        %v4622 = vsel %vm848, %v4611, %v4612
        %vm4623 = vcmask 818176
        %v4624 = vsel %vm4623, %v4590, %v4622
        %v4625 = vsel %vm848, %v4612, %v4613
        %v4626 = vsel %vm4623, %v4592, %v4625
        %v4627 = vsel %vm848, %v4613, %v4614
        %v4628 = vsel %vm4623, %v4594, %v4627
        %v4629 = vsel %vm848, %v4614, %v4615
        %v4630 = vsel %vm4623, %v4596, %v4629
        %v4631 = vsel %vm848, %v4615, %v4616
        %v4632 = vsel %vm4623, %v4598, %v4631
        %v4633 = vsel %vm848, %v4616, %v4617
        %v4634 = vsel %vm4623, %v4600, %v4633
        %v4635 = vsel %vm848, %v4617, %v4618
        %v4636 = vsel %vm4623, %v4602, %v4635
        %v4637 = vsel %vm848, %v4618, %v4619
        %v4638 = vsel %vm4623, %v4604, %v4637
        %v4639 = vsel %vm848, %v4619, %v4620
        %v4640 = vsel %vm4623, %v4606, %v4639
        %v4641 = vsel %vm848, %v4620, %v4621
        %v4642 = vsel %vm4623, %v4608, %v4641
        %v4643 = vsel %vm4623, %v4610, %v4621
        %4655 = vst [vmem:[#allocation2 + $0x39c] sm:$0xcc] %v4624
        %4656 = vst [vmem:[#allocation2 + $0x3a4] sm:$0xcc] %v4626
        %4657 = vst [vmem:[#allocation2 + $0x3ac] sm:$0xcc] %v4628
        %4658 = vst [vmem:[#allocation2 + $0x3b4] sm:$0xcc] %v4630
        %4659 = vst [vmem:[#allocation2 + $0x3bc] sm:$0xcc] %v4632
        %4660 = vst [vmem:[#allocation2 + $0x3c4] sm:$0xcc] %v4634
        %4661 = vst [vmem:[#allocation2 + $0x3cc] sm:$0xcc] %v4636
        %4662 = vst [vmem:[#allocation2 + $0x3d4] sm:$0xcc] %v4638
        %4663 = vst [vmem:[#allocation2 + $0x3dc] sm:$0xcc] %v4640
        %4664 = vst [vmem:[#allocation2 + $0x3e4] sm:$0xcc] %v4642
        %4665 = vst [vmem:[#allocation2 + $0x3ec] sm:$0xc] %v4643
        %v4666 = vld [vmem:[%s248 + $0xa] sm:$0xff]
        %v4667 = vld [vmem:[%s248 + $0x12] sm:$0xff]
        %v4668 = vld [vmem:[%s248 + $0x1a] sm:$0xff]
        %v4669 = vld [vmem:[%s248 + $0x22] sm:$0xff]
        %v4670 = vld [vmem:[%s248 + $0x2a] sm:$0xff]
        %v4671 = vld [vmem:[%s248 + $0x32] sm:$0xf]
        %v4678 = vcombine.high %v4666, %v4666
        %v4680 = vunpack.c.l.s4 1983009808
        %v4681 = vunpack.c.0.s8 %v4680
        %v4682 = vlaneseq
        %v4683 = vshrl.u32 %v4682, 7
        %v4684 = vsub.s32 %v4681, %v4683
        %v4685 = vrot.slane %v4666, %v4684
        %v4687 = vunpack.c.l.s4 1983009808
        %v4688 = vunpack.c.0.s8 %v4687
        %v4689 = vlaneseq
        %v4690 = vshrl.u32 %v4689, 7
        %v4691 = vsub.s32 %v4688, %v4690
        %v4692 = vrot.slane %v4678, %v4691
        %v4693 = vcombine.high %v4667, %v4667
        %v4695 = vunpack.c.l.s4 1983009808
        %v4696 = vunpack.c.0.s8 %v4695
        %v4697 = vlaneseq
        %v4698 = vshrl.u32 %v4697, 7
        %v4699 = vsub.s32 %v4696, %v4698
        %v4700 = vrot.slane %v4667, %v4699
        %v4702 = vunpack.c.l.s4 1983009808
        %v4703 = vunpack.c.0.s8 %v4702
        %v4704 = vlaneseq
        %v4705 = vshrl.u32 %v4704, 7
        %v4706 = vsub.s32 %v4703, %v4705
        %v4707 = vrot.slane %v4693, %v4706
        %v4708 = vcombine.high %v4668, %v4668
        %v4710 = vunpack.c.l.s4 1983009808
        %v4711 = vunpack.c.0.s8 %v4710
        %v4712 = vlaneseq
        %v4713 = vshrl.u32 %v4712, 7
        %v4714 = vsub.s32 %v4711, %v4713
        %v4715 = vrot.slane %v4668, %v4714
        %v4717 = vunpack.c.l.s4 1983009808
        %v4718 = vunpack.c.0.s8 %v4717
        %v4719 = vlaneseq
        %v4720 = vshrl.u32 %v4719, 7
        %v4721 = vsub.s32 %v4718, %v4720
        %v4722 = vrot.slane %v4708, %v4721
        %v4723 = vcombine.high %v4669, %v4669
        %v4725 = vunpack.c.l.s4 1983009808
        %v4726 = vunpack.c.0.s8 %v4725
        %v4727 = vlaneseq
        %v4728 = vshrl.u32 %v4727, 7
        %v4729 = vsub.s32 %v4726, %v4728
        %v4730 = vrot.slane %v4669, %v4729
        %v4732 = vunpack.c.l.s4 1983009808
        %v4733 = vunpack.c.0.s8 %v4732
        %v4734 = vlaneseq
        %v4735 = vshrl.u32 %v4734, 7
        %v4736 = vsub.s32 %v4733, %v4735
        %v4737 = vrot.slane %v4723, %v4736
        %v4738 = vcombine.high %v4670, %v4670
        %v4740 = vunpack.c.l.s4 1983009808
        %v4741 = vunpack.c.0.s8 %v4740
        %v4742 = vlaneseq
        %v4743 = vshrl.u32 %v4742, 7
        %v4744 = vsub.s32 %v4741, %v4743
        %v4745 = vrot.slane %v4670, %v4744
        %v4747 = vunpack.c.l.s4 1983009808
        %v4748 = vunpack.c.0.s8 %v4747
        %v4749 = vlaneseq
        %v4750 = vshrl.u32 %v4749, 7
        %v4751 = vsub.s32 %v4748, %v4750
        %v4752 = vrot.slane %v4738, %v4751
        %v4754 = vunpack.c.l.s4 1983009808
        %v4755 = vunpack.c.0.s8 %v4754
        %v4756 = vlaneseq
        %v4757 = vshrl.u32 %v4756, 7
        %v4758 = vsub.s32 %v4755, %v4757
        %v4759 = vrot.slane %v4671, %v4758
        %4760 = vrot.lane.b32.xlu0 %v4685, 84
        %v4761 = vpop.permute.xlu0 %4760
        %4762 = vrot.lane.b32.xlu0 %v4692, 84
        %v4763 = vpop.permute.xlu0 %4762
        %4764 = vrot.lane.b32.xlu0 %v4700, 84
        %v4765 = vpop.permute.xlu0 %4764
        %4766 = vrot.lane.b32.xlu0 %v4707, 84
        %v4767 = vpop.permute.xlu0 %4766
        %4768 = vrot.lane.b32.xlu0 %v4715, 84
        %v4769 = vpop.permute.xlu0 %4768
        %4770 = vrot.lane.b32.xlu0 %v4722, 84
        %v4771 = vpop.permute.xlu0 %4770
        %4772 = vrot.lane.b32.xlu0 %v4730, 84
        %v4773 = vpop.permute.xlu0 %4772
        %4774 = vrot.lane.b32.xlu0 %v4737, 84
        %v4775 = vpop.permute.xlu0 %4774
        %4776 = vrot.lane.b32.xlu0 %v4745, 84
        %v4777 = vpop.permute.xlu0 %4776
        %4778 = vrot.lane.b32.xlu0 %v4752, 84
        %v4779 = vpop.permute.xlu0 %4778
        %4780 = vrot.lane.b32.xlu0 %v4759, 84
        %v4781 = vpop.permute.xlu0 %4780
        %v4782 = vrot.slane %v4761, 4
        %v4783 = vrot.slane %v4763, 4
        %v4784 = vrot.slane %v4765, 4
        %v4785 = vrot.slane %v4767, 4
        %v4786 = vrot.slane %v4769, 4
        %v4787 = vrot.slane %v4771, 4
        %v4788 = vrot.slane %v4773, 4
        %v4789 = vrot.slane %v4775, 4
        %v4790 = vrot.slane %v4777, 4
        %v4791 = vrot.slane %v4779, 4
        %v4792 = vrot.slane %v4781, 4
        %v4793 = vsel %vm848, %v4782, %v4783
        %vm4794 = vcmask 687104
        %v4795 = vsel %vm4794, %v4761, %v4793
        %v4796 = vsel %vm848, %v4783, %v4784
        %v4797 = vsel %vm4794, %v4763, %v4796
        %v4798 = vsel %vm848, %v4784, %v4785
        %v4799 = vsel %vm4794, %v4765, %v4798
        %v4800 = vsel %vm848, %v4785, %v4786
        %v4801 = vsel %vm4794, %v4767, %v4800
        %v4802 = vsel %vm848, %v4786, %v4787
        %v4803 = vsel %vm4794, %v4769, %v4802
        %v4804 = vsel %vm848, %v4787, %v4788
        %v4805 = vsel %vm4794, %v4771, %v4804
        %v4806 = vsel %vm848, %v4788, %v4789
        %v4807 = vsel %vm4794, %v4773, %v4806
        %v4808 = vsel %vm848, %v4789, %v4790
        %v4809 = vsel %vm4794, %v4775, %v4808
        %v4810 = vsel %vm848, %v4790, %v4791
        %v4811 = vsel %vm4794, %v4777, %v4810
        %v4812 = vsel %vm848, %v4791, %v4792
        %v4813 = vsel %vm4794, %v4779, %v4812
        %v4814 = vsel %vm4794, %v4781, %v4792
        %4826 = vst [vmem:[#allocation2 + $0x3f0] sm:$0x33] %v4795
        %4827 = vst [vmem:[#allocation2 + $0x3f8] sm:$0x33] %v4797
        %4828 = vst [vmem:[#allocation2 + $0x400] sm:$0x33] %v4799
        %4829 = vst [vmem:[#allocation2 + $0x408] sm:$0x33] %v4801
        %4830 = vst [vmem:[#allocation2 + $0x410] sm:$0x33] %v4803
        %4831 = vst [vmem:[#allocation2 + $0x418] sm:$0x33] %v4805
        %4832 = vst [vmem:[#allocation2 + $0x420] sm:$0x33] %v4807
        %4833 = vst [vmem:[#allocation2 + $0x428] sm:$0x33] %v4809
        %4834 = vst [vmem:[#allocation2 + $0x430] sm:$0x33] %v4811
        %4835 = vst [vmem:[#allocation2 + $0x438] sm:$0x33] %v4813
        %4836 = vst [vmem:[#allocation2 + $0x440] sm:$0x3] %v4814
        %v4837 = vld [vmem:[%s248 + $0xa] sm:$0xff]
        %v4838 = vld [vmem:[%s248 + $0x12] sm:$0xff]
        %v4839 = vld [vmem:[%s248 + $0x1a] sm:$0xff]
        %v4840 = vld [vmem:[%s248 + $0x22] sm:$0xff]
        %v4841 = vld [vmem:[%s248 + $0x2a] sm:$0xff]
        %v4842 = vld [vmem:[%s248 + $0x32] sm:$0xf]
        %v4849 = vcombine.low %v4837, %v4837
        %v4851 = vunpack.c.l.s4 1983009808
        %v4852 = vunpack.c.0.s8 %v4851
        %v4853 = vlaneseq
        %v4854 = vshrl.u32 %v4853, 7
        %v4855 = vsub.s32 %v4852, %v4854
        %v4856 = vrot.slane %v4849, %v4855
        %v4858 = vunpack.c.l.s4 1983009808
        %v4859 = vunpack.c.0.s8 %v4858
        %v4860 = vlaneseq
        %v4861 = vshrl.u32 %v4860, 7
        %v4862 = vsub.s32 %v4859, %v4861
        %v4863 = vrot.slane %v4837, %v4862
        %v4864 = vcombine.low %v4838, %v4838
        %v4866 = vunpack.c.l.s4 1983009808
        %v4867 = vunpack.c.0.s8 %v4866
        %v4868 = vlaneseq
        %v4869 = vshrl.u32 %v4868, 7
        %v4870 = vsub.s32 %v4867, %v4869
        %v4871 = vrot.slane %v4864, %v4870
        %v4873 = vunpack.c.l.s4 1983009808
        %v4874 = vunpack.c.0.s8 %v4873
        %v4875 = vlaneseq
        %v4876 = vshrl.u32 %v4875, 7
        %v4877 = vsub.s32 %v4874, %v4876
        %v4878 = vrot.slane %v4838, %v4877
        %v4879 = vcombine.low %v4839, %v4839
        %v4881 = vunpack.c.l.s4 1983009808
        %v4882 = vunpack.c.0.s8 %v4881
        %v4883 = vlaneseq
        %v4884 = vshrl.u32 %v4883, 7
        %v4885 = vsub.s32 %v4882, %v4884
        %v4886 = vrot.slane %v4879, %v4885
        %v4888 = vunpack.c.l.s4 1983009808
        %v4889 = vunpack.c.0.s8 %v4888
        %v4890 = vlaneseq
        %v4891 = vshrl.u32 %v4890, 7
        %v4892 = vsub.s32 %v4889, %v4891
        %v4893 = vrot.slane %v4839, %v4892
        %v4894 = vcombine.low %v4840, %v4840
        %v4896 = vunpack.c.l.s4 1983009808
        %v4897 = vunpack.c.0.s8 %v4896
        %v4898 = vlaneseq
        %v4899 = vshrl.u32 %v4898, 7
        %v4900 = vsub.s32 %v4897, %v4899
        %v4901 = vrot.slane %v4894, %v4900
        %v4903 = vunpack.c.l.s4 1983009808
        %v4904 = vunpack.c.0.s8 %v4903
        %v4905 = vlaneseq
        %v4906 = vshrl.u32 %v4905, 7
        %v4907 = vsub.s32 %v4904, %v4906
        %v4908 = vrot.slane %v4840, %v4907
        %v4909 = vcombine.low %v4841, %v4841
        %v4911 = vunpack.c.l.s4 1983009808
        %v4912 = vunpack.c.0.s8 %v4911
        %v4913 = vlaneseq
        %v4914 = vshrl.u32 %v4913, 7
        %v4915 = vsub.s32 %v4912, %v4914
        %v4916 = vrot.slane %v4909, %v4915
        %v4918 = vunpack.c.l.s4 1983009808
        %v4919 = vunpack.c.0.s8 %v4918
        %v4920 = vlaneseq
        %v4921 = vshrl.u32 %v4920, 7
        %v4922 = vsub.s32 %v4919, %v4921
        %v4923 = vrot.slane %v4841, %v4922
        %v4924 = vcombine.low %v4842, %v4842
        %v4926 = vunpack.c.l.s4 1983009808
        %v4927 = vunpack.c.0.s8 %v4926
        %v4928 = vlaneseq
        %v4929 = vshrl.u32 %v4928, 7
        %v4930 = vsub.s32 %v4927, %v4929
        %v4931 = vrot.slane %v4924, %v4930
        %4932 = vrot.lane.b32.xlu0 %v4856, 83
        %v4933 = vpop.permute.xlu0 %4932
        %4934 = vrot.lane.b32.xlu0 %v4863, 83
        %v4935 = vpop.permute.xlu0 %4934
        %4936 = vrot.lane.b32.xlu0 %v4871, 83
        %v4937 = vpop.permute.xlu0 %4936
        %4938 = vrot.lane.b32.xlu0 %v4878, 83
        %v4939 = vpop.permute.xlu0 %4938
        %4940 = vrot.lane.b32.xlu0 %v4886, 83
        %v4941 = vpop.permute.xlu0 %4940
        %4942 = vrot.lane.b32.xlu0 %v4893, 83
        %v4943 = vpop.permute.xlu0 %4942
        %4944 = vrot.lane.b32.xlu0 %v4901, 83
        %v4945 = vpop.permute.xlu0 %4944
        %4946 = vrot.lane.b32.xlu0 %v4908, 83
        %v4947 = vpop.permute.xlu0 %4946
        %4948 = vrot.lane.b32.xlu0 %v4916, 83
        %v4949 = vpop.permute.xlu0 %4948
        %4950 = vrot.lane.b32.xlu0 %v4923, 83
        %v4951 = vpop.permute.xlu0 %4950
        %4952 = vrot.lane.b32.xlu0 %v4931, 83
        %v4953 = vpop.permute.xlu0 %4952
        %v4954 = vrot.slane %v4933, 4
        %v4955 = vrot.slane %v4935, 4
        %v4956 = vrot.slane %v4937, 4
        %v4957 = vrot.slane %v4939, 4
        %v4958 = vrot.slane %v4941, 4
        %v4959 = vrot.slane %v4943, 4
        %v4960 = vrot.slane %v4945, 4
        %v4961 = vrot.slane %v4947, 4
        %v4962 = vrot.slane %v4949, 4
        %v4963 = vrot.slane %v4951, 4
        %v4964 = vrot.slane %v4953, 4
        %v4965 = vsel %vm848, %v4954, %v4955
        %vm4966 = vcmask 678912
        %v4967 = vsel %vm4966, %v4933, %v4965
        %v4968 = vsel %vm848, %v4955, %v4956
        %v4969 = vsel %vm4966, %v4935, %v4968
        %v4970 = vsel %vm848, %v4956, %v4957
        %v4971 = vsel %vm4966, %v4937, %v4970
        %v4972 = vsel %vm848, %v4957, %v4958
        %v4973 = vsel %vm4966, %v4939, %v4972
        %v4974 = vsel %vm848, %v4958, %v4959
        %v4975 = vsel %vm4966, %v4941, %v4974
        %v4976 = vsel %vm848, %v4959, %v4960
        %v4977 = vsel %vm4966, %v4943, %v4976
        %v4978 = vsel %vm848, %v4960, %v4961
        %v4979 = vsel %vm4966, %v4945, %v4978
        %v4980 = vsel %vm848, %v4961, %v4962
        %v4981 = vsel %vm4966, %v4947, %v4980
        %v4982 = vsel %vm848, %v4962, %v4963
        %v4983 = vsel %vm4966, %v4949, %v4982
        %v4984 = vsel %vm848, %v4963, %v4964
        %v4985 = vsel %vm4966, %v4951, %v4984
        %v4986 = vsel %vm4966, %v4953, %v4964
        %4998 = vst [vmem:[#allocation2 + $0x3f0] sm:$0xcc] %v4967
        %4999 = vst [vmem:[#allocation2 + $0x3f8] sm:$0xcc] %v4969
        %5000 = vst [vmem:[#allocation2 + $0x400] sm:$0xcc] %v4971
        %5001 = vst [vmem:[#allocation2 + $0x408] sm:$0xcc] %v4973
        %5002 = vst [vmem:[#allocation2 + $0x410] sm:$0xcc] %v4975
        %5003 = vst [vmem:[#allocation2 + $0x418] sm:$0xcc] %v4977
        %5004 = vst [vmem:[#allocation2 + $0x420] sm:$0xcc] %v4979
        %5005 = vst [vmem:[#allocation2 + $0x428] sm:$0xcc] %v4981
        %5006 = vst [vmem:[#allocation2 + $0x430] sm:$0xcc] %v4983
        %5007 = vst [vmem:[#allocation2 + $0x438] sm:$0xcc] %v4985
        %5008 = vst [vmem:[#allocation2 + $0x440] sm:$0xc] %v4986
        %v5009 = vld [vmem:[%s248 + $0xa] sm:$0xff]
        %v5010 = vld [vmem:[%s248 + $0x12] sm:$0xff]
        %v5011 = vld [vmem:[%s248 + $0x1a] sm:$0xff]
        %v5012 = vld [vmem:[%s248 + $0x22] sm:$0xff]
        %v5013 = vld [vmem:[%s248 + $0x2a] sm:$0xff]
        %v5014 = vld [vmem:[%s248 + $0x32] sm:$0xf]
        %v5021 = vcombine.high %v5009, %v5009
        %v5023 = vunpack.c.l.s4 1983009808
        %v5024 = vunpack.c.0.s8 %v5023
        %v5025 = vlaneseq
        %v5026 = vshrl.u32 %v5025, 7
        %v5027 = vsub.s32 %v5024, %v5026
        %v5028 = vrot.slane %v5009, %v5027
        %v5030 = vunpack.c.l.s4 1983009808
        %v5031 = vunpack.c.0.s8 %v5030
        %v5032 = vlaneseq
        %v5033 = vshrl.u32 %v5032, 7
        %v5034 = vsub.s32 %v5031, %v5033
        %v5035 = vrot.slane %v5021, %v5034
        %v5036 = vcombine.high %v5010, %v5010
        %v5038 = vunpack.c.l.s4 1983009808
        %v5039 = vunpack.c.0.s8 %v5038
        %v5040 = vlaneseq
        %v5041 = vshrl.u32 %v5040, 7
        %v5042 = vsub.s32 %v5039, %v5041
        %v5043 = vrot.slane %v5010, %v5042
        %v5045 = vunpack.c.l.s4 1983009808
        %v5046 = vunpack.c.0.s8 %v5045
        %v5047 = vlaneseq
        %v5048 = vshrl.u32 %v5047, 7
        %v5049 = vsub.s32 %v5046, %v5048
        %v5050 = vrot.slane %v5036, %v5049
        %v5051 = vcombine.high %v5011, %v5011
        %v5053 = vunpack.c.l.s4 1983009808
        %v5054 = vunpack.c.0.s8 %v5053
        %v5055 = vlaneseq
        %v5056 = vshrl.u32 %v5055, 7
        %v5057 = vsub.s32 %v5054, %v5056
        %v5058 = vrot.slane %v5011, %v5057
        %v5060 = vunpack.c.l.s4 1983009808
        %v5061 = vunpack.c.0.s8 %v5060
        %v5062 = vlaneseq
        %v5063 = vshrl.u32 %v5062, 7
        %v5064 = vsub.s32 %v5061, %v5063
        %v5065 = vrot.slane %v5051, %v5064
        %v5066 = vcombine.high %v5012, %v5012
        %v5068 = vunpack.c.l.s4 1983009808
        %v5069 = vunpack.c.0.s8 %v5068
        %v5070 = vlaneseq
        %v5071 = vshrl.u32 %v5070, 7
        %v5072 = vsub.s32 %v5069, %v5071
        %v5073 = vrot.slane %v5012, %v5072
        %v5075 = vunpack.c.l.s4 1983009808
        %v5076 = vunpack.c.0.s8 %v5075
        %v5077 = vlaneseq
        %v5078 = vshrl.u32 %v5077, 7
        %v5079 = vsub.s32 %v5076, %v5078
        %v5080 = vrot.slane %v5066, %v5079
        %v5081 = vcombine.high %v5013, %v5013
        %v5083 = vunpack.c.l.s4 1983009808
        %v5084 = vunpack.c.0.s8 %v5083
        %v5085 = vlaneseq
        %v5086 = vshrl.u32 %v5085, 7
        %v5087 = vsub.s32 %v5084, %v5086
        %v5088 = vrot.slane %v5013, %v5087
        %v5090 = vunpack.c.l.s4 1983009808
        %v5091 = vunpack.c.0.s8 %v5090
        %v5092 = vlaneseq
        %v5093 = vshrl.u32 %v5092, 7
        %v5094 = vsub.s32 %v5091, %v5093
        %v5095 = vrot.slane %v5081, %v5094
        %v5097 = vunpack.c.l.s4 1983009808
        %v5098 = vunpack.c.0.s8 %v5097
        %v5099 = vlaneseq
        %v5100 = vshrl.u32 %v5099, 7
        %v5101 = vsub.s32 %v5098, %v5100
        %v5102 = vrot.slane %v5014, %v5101
        %5103 = vrot.lane.b32.xlu0 %v5028, 82
        %v5104 = vpop.permute.xlu0 %5103
        %5105 = vrot.lane.b32.xlu0 %v5035, 82
        %v5106 = vpop.permute.xlu0 %5105
        %5107 = vrot.lane.b32.xlu0 %v5043, 82
        %v5108 = vpop.permute.xlu0 %5107
        %5109 = vrot.lane.b32.xlu0 %v5050, 82
        %v5110 = vpop.permute.xlu0 %5109
        %5111 = vrot.lane.b32.xlu0 %v5058, 82
        %v5112 = vpop.permute.xlu0 %5111
        %5113 = vrot.lane.b32.xlu0 %v5065, 82
        %v5114 = vpop.permute.xlu0 %5113
        %5115 = vrot.lane.b32.xlu0 %v5073, 82
        %v5116 = vpop.permute.xlu0 %5115
        %5117 = vrot.lane.b32.xlu0 %v5080, 82
        %v5118 = vpop.permute.xlu0 %5117
        %5119 = vrot.lane.b32.xlu0 %v5088, 82
        %v5120 = vpop.permute.xlu0 %5119
        %5121 = vrot.lane.b32.xlu0 %v5095, 82
        %v5122 = vpop.permute.xlu0 %5121
        %5123 = vrot.lane.b32.xlu0 %v5102, 82
        %v5124 = vpop.permute.xlu0 %5123
        %v5125 = vrot.slane %v5104, 4
        %v5126 = vrot.slane %v5106, 4
        %v5127 = vrot.slane %v5108, 4
        %v5128 = vrot.slane %v5110, 4
        %v5129 = vrot.slane %v5112, 4
        %v5130 = vrot.slane %v5114, 4
        %v5131 = vrot.slane %v5116, 4
        %v5132 = vrot.slane %v5118, 4
        %v5133 = vrot.slane %v5120, 4
        %v5134 = vrot.slane %v5122, 4
        %v5135 = vrot.slane %v5124, 4
        %v5136 = vsel %vm848, %v5125, %v5126
        %vm5137 = vcmask 670720
        %v5138 = vsel %vm5137, %v5104, %v5136
        %v5139 = vsel %vm848, %v5126, %v5127
        %v5140 = vsel %vm5137, %v5106, %v5139
        %v5141 = vsel %vm848, %v5127, %v5128
        %v5142 = vsel %vm5137, %v5108, %v5141
        %v5143 = vsel %vm848, %v5128, %v5129
        %v5144 = vsel %vm5137, %v5110, %v5143
        %v5145 = vsel %vm848, %v5129, %v5130
        %v5146 = vsel %vm5137, %v5112, %v5145
        %v5147 = vsel %vm848, %v5130, %v5131
        %v5148 = vsel %vm5137, %v5114, %v5147
        %v5149 = vsel %vm848, %v5131, %v5132
        %v5150 = vsel %vm5137, %v5116, %v5149
        %v5151 = vsel %vm848, %v5132, %v5133
        %v5152 = vsel %vm5137, %v5118, %v5151
        %v5153 = vsel %vm848, %v5133, %v5134
        %v5154 = vsel %vm5137, %v5120, %v5153
        %v5155 = vsel %vm848, %v5134, %v5135
        %v5156 = vsel %vm5137, %v5122, %v5155
        %v5157 = vsel %vm5137, %v5124, %v5135
        %5169 = vst [vmem:[#allocation2 + $0x444] sm:$0x33] %v5138
        %5170 = vst [vmem:[#allocation2 + $0x44c] sm:$0x33] %v5140
        %5171 = vst [vmem:[#allocation2 + $0x454] sm:$0x33] %v5142
        %5172 = vst [vmem:[#allocation2 + $0x45c] sm:$0x33] %v5144
        %5173 = vst [vmem:[#allocation2 + $0x464] sm:$0x33] %v5146
        %5174 = vst [vmem:[#allocation2 + $0x46c] sm:$0x33] %v5148
        %5175 = vst [vmem:[#allocation2 + $0x474] sm:$0x33] %v5150
        %5176 = vst [vmem:[#allocation2 + $0x47c] sm:$0x33] %v5152
        %5177 = vst [vmem:[#allocation2 + $0x484] sm:$0x33] %v5154
        %5178 = vst [vmem:[#allocation2 + $0x48c] sm:$0x33] %v5156
        %5179 = vst [vmem:[#allocation2 + $0x494] sm:$0x3] %v5157
        %v5180 = vld [vmem:[%s1] sm:$0xf]
        %v5181 = vld [vmem:[#allocation2] sm:$0xff]
        %v5182 = vld [vmem:[#allocation2 + $0x8] sm:$0xff]
        %v5183 = vld [vmem:[#allocation2 + $0x10] sm:$0xff]
        %v5184 = vld [vmem:[#allocation2 + $0x18] sm:$0xff]
        %v5185 = vld [vmem:[#allocation2 + $0x20] sm:$0xff]
        %v5186 = vld [vmem:[#allocation2 + $0x28] sm:$0xff]
        %v5187 = vld [vmem:[#allocation2 + $0x30] sm:$0xff]
        %v5188 = vld [vmem:[#allocation2 + $0x38] sm:$0xff]
        %v5189 = vld [vmem:[#allocation2 + $0x40] sm:$0xff]
        %v5190 = vld [vmem:[#allocation2 + $0x48] sm:$0xff]
        %v5191 = vld [vmem:[#allocation2 + $0x50] sm:$0xf]
        %v5192 = vld [vmem:[#allocation2 + $0x54] sm:$0xff]
        %v5193 = vld [vmem:[#allocation2 + $0x5c] sm:$0xff]
        %v5194 = vld [vmem:[#allocation2 + $0x64] sm:$0xff]
        %v5195 = vld [vmem:[#allocation2 + $0x6c] sm:$0xff]
        %v5196 = vld [vmem:[#allocation2 + $0x74] sm:$0xff]
        %v5197 = vld [vmem:[#allocation2 + $0x7c] sm:$0xff]
        %v5198 = vld [vmem:[#allocation2 + $0x84] sm:$0xff]
        %v5199 = vld [vmem:[#allocation2 + $0x8c] sm:$0xff]
        %v5200 = vld [vmem:[#allocation2 + $0x94] sm:$0xff]
        %v5201 = vld [vmem:[#allocation2 + $0x9c] sm:$0xff]
        %v5202 = vld [vmem:[#allocation2 + $0xa4] sm:$0xf]
        %v5203 = vld [vmem:[#allocation2 + $0xa8] sm:$0xff]
        %v5204 = vld [vmem:[#allocation2 + $0xb0] sm:$0xff]
        %v5205 = vld [vmem:[#allocation2 + $0xb8] sm:$0xff]
        %v5206 = vld [vmem:[#allocation2 + $0xc0] sm:$0xff]
        %v5207 = vld [vmem:[#allocation2 + $0xc8] sm:$0xff]
        %v5208 = vld [vmem:[#allocation2 + $0xd0] sm:$0xff]
        %v5209 = vld [vmem:[#allocation2 + $0xd8] sm:$0xff]
        %v5210 = vld [vmem:[#allocation2 + $0xe0] sm:$0xff]
        %v5211 = vld [vmem:[#allocation2 + $0xe8] sm:$0xff]
        %v5212 = vld [vmem:[#allocation2 + $0xf0] sm:$0xff]
        %v5213 = vld [vmem:[#allocation2 + $0xf8] sm:$0xf]
        %v5214 = vld [vmem:[#allocation2 + $0xfc] sm:$0xff]
        %v5215 = vld [vmem:[#allocation2 + $0x104] sm:$0xff]
        %v5216 = vld [vmem:[#allocation2 + $0x10c] sm:$0xff]
        %v5217 = vld [vmem:[#allocation2 + $0x114] sm:$0xff]
        %v5218 = vld [vmem:[#allocation2 + $0x11c] sm:$0xff]
        %v5219 = vld [vmem:[#allocation2 + $0x124] sm:$0xff]
        %v5220 = vld [vmem:[#allocation2 + $0x12c] sm:$0xff]
        %v5221 = vld [vmem:[#allocation2 + $0x134] sm:$0xff]
        %v5222 = vld [vmem:[#allocation2 + $0x13c] sm:$0xff]
        %v5223 = vld [vmem:[#allocation2 + $0x144] sm:$0xff]
        %v5224 = vld [vmem:[#allocation2 + $0x14c] sm:$0xf]
        %v5225 = vld [vmem:[#allocation2 + $0x150] sm:$0xff]
        %v5226 = vld [vmem:[#allocation2 + $0x158] sm:$0xff]
        %v5227 = vld [vmem:[#allocation2 + $0x160] sm:$0xff]
        %v5228 = vld [vmem:[#allocation2 + $0x168] sm:$0xff]
        %v5229 = vld [vmem:[#allocation2 + $0x170] sm:$0xff]
        %v5230 = vld [vmem:[#allocation2 + $0x178] sm:$0xff]
        %v5231 = vld [vmem:[#allocation2 + $0x180] sm:$0xff]
        %v5232 = vld [vmem:[#allocation2 + $0x188] sm:$0xff]
        %v5233 = vld [vmem:[#allocation2 + $0x190] sm:$0xff]
        %v5234 = vld [vmem:[#allocation2 + $0x198] sm:$0xff]
        %v5235 = vld [vmem:[#allocation2 + $0x1a0] sm:$0xf]
        %v5236 = vld [vmem:[#allocation2 + $0x1a4] sm:$0xff]
        %v5237 = vld [vmem:[#allocation2 + $0x1ac] sm:$0xff]
        %v5238 = vld [vmem:[#allocation2 + $0x1b4] sm:$0xff]
        %v5239 = vld [vmem:[#allocation2 + $0x1bc] sm:$0xff]
        %v5240 = vld [vmem:[#allocation2 + $0x1c4] sm:$0xff]
        %v5241 = vld [vmem:[#allocation2 + $0x1cc] sm:$0xff]
        %v5242 = vld [vmem:[#allocation2 + $0x1d4] sm:$0xff]
        %v5243 = vld [vmem:[#allocation2 + $0x1dc] sm:$0xff]
        %v5244 = vld [vmem:[#allocation2 + $0x1e4] sm:$0xff]
        %v5245 = vld [vmem:[#allocation2 + $0x1ec] sm:$0xff]
        %v5246 = vld [vmem:[#allocation2 + $0x1f4] sm:$0xf]
        %v5247 = vld [vmem:[#allocation2 + $0x1f8] sm:$0xff]
        %v5248 = vld [vmem:[#allocation2 + $0x200] sm:$0xff]
        %v5249 = vld [vmem:[#allocation2 + $0x208] sm:$0xff]
        %v5250 = vld [vmem:[#allocation2 + $0x210] sm:$0xff]
        %v5251 = vld [vmem:[#allocation2 + $0x218] sm:$0xff]
        %v5252 = vld [vmem:[#allocation2 + $0x220] sm:$0xff]
        %v5253 = vld [vmem:[#allocation2 + $0x228] sm:$0xff]
        %v5254 = vld [vmem:[#allocation2 + $0x230] sm:$0xff]
        %v5255 = vld [vmem:[#allocation2 + $0x238] sm:$0xff]
        %v5256 = vld [vmem:[#allocation2 + $0x240] sm:$0xff]
        %v5257 = vld [vmem:[#allocation2 + $0x248] sm:$0xf]
        %v5258 = vld [vmem:[#allocation2 + $0x24c] sm:$0xff]
        %v5259 = vld [vmem:[#allocation2 + $0x254] sm:$0xff]
        %v5260 = vld [vmem:[#allocation2 + $0x25c] sm:$0xff]
        %v5261 = vld [vmem:[#allocation2 + $0x264] sm:$0xff]
        %v5262 = vld [vmem:[#allocation2 + $0x26c] sm:$0xff]
        %v5263 = vld [vmem:[#allocation2 + $0x274] sm:$0xff]
        %v5264 = vld [vmem:[#allocation2 + $0x27c] sm:$0xff]
        %v5265 = vld [vmem:[#allocation2 + $0x284] sm:$0xff]
        %v5266 = vld [vmem:[#allocation2 + $0x28c] sm:$0xff]
        %v5267 = vld [vmem:[#allocation2 + $0x294] sm:$0xff]
        %v5268 = vld [vmem:[#allocation2 + $0x29c] sm:$0xf]
        %v5269 = vld [vmem:[#allocation2 + $0x2a0] sm:$0xff]
        %v5270 = vld [vmem:[#allocation2 + $0x2a8] sm:$0xff]
        %v5271 = vld [vmem:[#allocation2 + $0x2b0] sm:$0xff]
        %v5272 = vld [vmem:[#allocation2 + $0x2b8] sm:$0xff]
        %v5273 = vld [vmem:[#allocation2 + $0x2c0] sm:$0xff]
        %v5274 = vld [vmem:[#allocation2 + $0x2c8] sm:$0xff]
        %v5275 = vld [vmem:[#allocation2 + $0x2d0] sm:$0xff]
        %v5276 = vld [vmem:[#allocation2 + $0x2d8] sm:$0xff]
        %v5277 = vld [vmem:[#allocation2 + $0x2e0] sm:$0xff]
        %v5278 = vld [vmem:[#allocation2 + $0x2e8] sm:$0xff]
        %v5279 = vld [vmem:[#allocation2 + $0x2f0] sm:$0xf]
        %v5280 = vld [vmem:[#allocation2 + $0x2f4] sm:$0xff]
        %v5281 = vld [vmem:[#allocation2 + $0x2fc] sm:$0xff]
        %v5282 = vld [vmem:[#allocation2 + $0x304] sm:$0xff]
        %v5283 = vld [vmem:[#allocation2 + $0x30c] sm:$0xff]
        %v5284 = vld [vmem:[#allocation2 + $0x314] sm:$0xff]
        %v5285 = vld [vmem:[#allocation2 + $0x31c] sm:$0xff]
        %v5286 = vld [vmem:[#allocation2 + $0x324] sm:$0xff]
        %v5287 = vld [vmem:[#allocation2 + $0x32c] sm:$0xff]
        %v5288 = vld [vmem:[#allocation2 + $0x334] sm:$0xff]
        %v5289 = vld [vmem:[#allocation2 + $0x33c] sm:$0xff]
        %v5290 = vld [vmem:[#allocation2 + $0x344] sm:$0xf]
        %v5291 = vld [vmem:[#allocation2 + $0x348] sm:$0xff]
        %v5292 = vld [vmem:[#allocation2 + $0x350] sm:$0xff]
        %v5293 = vld [vmem:[#allocation2 + $0x358] sm:$0xff]
        %v5294 = vld [vmem:[#allocation2 + $0x360] sm:$0xff]
        %v5295 = vld [vmem:[#allocation2 + $0x368] sm:$0xff]
        %v5296 = vld [vmem:[#allocation2 + $0x370] sm:$0xff]
        %v5297 = vld [vmem:[#allocation2 + $0x378] sm:$0xff]
        %v5298 = vld [vmem:[#allocation2 + $0x380] sm:$0xff]
        %v5299 = vld [vmem:[#allocation2 + $0x388] sm:$0xff]
        %v5300 = vld [vmem:[#allocation2 + $0x390] sm:$0xff]
        %v5301 = vld [vmem:[#allocation2 + $0x398] sm:$0xf]
        %v5302 = vld [vmem:[#allocation2 + $0x39c] sm:$0xff]
        %v5303 = vld [vmem:[#allocation2 + $0x3a4] sm:$0xff]
        %v5304 = vld [vmem:[#allocation2 + $0x3ac] sm:$0xff]
        %v5305 = vld [vmem:[#allocation2 + $0x3b4] sm:$0xff]
        %v5306 = vld [vmem:[#allocation2 + $0x3bc] sm:$0xff]
        %v5307 = vld [vmem:[#allocation2 + $0x3c4] sm:$0xff]
        %v5308 = vld [vmem:[#allocation2 + $0x3cc] sm:$0xff]
        %v5309 = vld [vmem:[#allocation2 + $0x3d4] sm:$0xff]
        %v5310 = vld [vmem:[#allocation2 + $0x3dc] sm:$0xff]
        %v5311 = vld [vmem:[#allocation2 + $0x3e4] sm:$0xff]
        %v5312 = vld [vmem:[#allocation2 + $0x3ec] sm:$0xf]
        %v5313 = vld [vmem:[#allocation2 + $0x3f0] sm:$0xff]
        %v5314 = vld [vmem:[#allocation2 + $0x3f8] sm:$0xff]
        %v5315 = vld [vmem:[#allocation2 + $0x400] sm:$0xff]
        %v5316 = vld [vmem:[#allocation2 + $0x408] sm:$0xff]
        %v5317 = vld [vmem:[#allocation2 + $0x410] sm:$0xff]
        %v5318 = vld [vmem:[#allocation2 + $0x418] sm:$0xff]
        %v5319 = vld [vmem:[#allocation2 + $0x420] sm:$0xff]
        %v5320 = vld [vmem:[#allocation2 + $0x428] sm:$0xff]
        %v5321 = vld [vmem:[#allocation2 + $0x430] sm:$0xff]
        %v5322 = vld [vmem:[#allocation2 + $0x438] sm:$0xff]
        %v5323 = vld [vmem:[#allocation2 + $0x440] sm:$0xf]
        %v5324 = vld [vmem:[#allocation2 + $0x444] sm:$0xff]
        %v5325 = vld [vmem:[#allocation2 + $0x44c] sm:$0xff]
        %v5326 = vld [vmem:[#allocation2 + $0x454] sm:$0xff]
        %v5327 = vld [vmem:[#allocation2 + $0x45c] sm:$0xff]
        %v5328 = vld [vmem:[#allocation2 + $0x464] sm:$0xff]
        %v5329 = vld [vmem:[#allocation2 + $0x46c] sm:$0xff]
        %v5330 = vld [vmem:[#allocation2 + $0x474] sm:$0xff]
        %v5331 = vld [vmem:[#allocation2 + $0x47c] sm:$0xff]
        %v5332 = vld [vmem:[#allocation2 + $0x484] sm:$0xff]
        %v5333 = vld [vmem:[#allocation2 + $0x48c] sm:$0xff]
        %v5334 = vld [vmem:[#allocation2 + $0x494] sm:$0xf]
        %v5335 = vld [vmem:[%s2] sm:$0xff]
        %5337 = vset.pattern.permute.xlu0 0
        %5338 = vperm.xlu0 %5337, %v5335
        %v5339 = vpop.permute.xlu0 %5338
        %v5495 = vunpack.c.l.b16 %v5181
        %v5496 = vunpack.c.h.b16 %v5181
        %v5497 = vunpack.c.l.b16 %v5182
        %v5498 = vunpack.c.h.b16 %v5182
        %v5499 = vunpack.c.l.b16 %v5183
        %v5500 = vunpack.c.h.b16 %v5183
        %v5501 = vunpack.c.l.b16 %v5184
        %v5502 = vunpack.c.h.b16 %v5184
        %v5503 = vunpack.c.l.b16 %v5185
        %v5504 = vunpack.c.h.b16 %v5185
        %v5505 = vunpack.c.l.b16 %v5186
        %v5506 = vunpack.c.h.b16 %v5186
        %v5507 = vunpack.c.l.b16 %v5187
        %v5508 = vunpack.c.h.b16 %v5187
        %v5509 = vunpack.c.l.b16 %v5188
        %v5510 = vunpack.c.h.b16 %v5188
        %v5511 = vunpack.c.l.b16 %v5189
        %v5512 = vunpack.c.h.b16 %v5189
        %v5513 = vunpack.c.l.b16 %v5190
        %v5514 = vunpack.c.h.b16 %v5190
        %v5515 = vunpack.c.l.b16 %v5191
        %v5516 = vunpack.c.l.b16 %v5192
        %v5517 = vunpack.c.h.b16 %v5192
        %v5518 = vunpack.c.l.b16 %v5193
        %v5519 = vunpack.c.h.b16 %v5193
        %v5520 = vunpack.c.l.b16 %v5194
        %v5521 = vunpack.c.h.b16 %v5194
        %v5522 = vunpack.c.l.b16 %v5195
        %v5523 = vunpack.c.h.b16 %v5195
        %v5524 = vunpack.c.l.b16 %v5196
        %v5525 = vunpack.c.h.b16 %v5196
        %v5526 = vunpack.c.l.b16 %v5197
        %v5527 = vunpack.c.h.b16 %v5197
        %v5528 = vunpack.c.l.b16 %v5198
        %v5529 = vunpack.c.h.b16 %v5198
        %v5530 = vunpack.c.l.b16 %v5199
        %v5531 = vunpack.c.h.b16 %v5199
        %v5532 = vunpack.c.l.b16 %v5200
        %v5533 = vunpack.c.h.b16 %v5200
        %v5534 = vunpack.c.l.b16 %v5201
        %v5535 = vunpack.c.h.b16 %v5201
        %v5536 = vunpack.c.l.b16 %v5202
        %v5537 = vunpack.c.l.b16 %v5203
        %v5538 = vunpack.c.h.b16 %v5203
        %v5539 = vunpack.c.l.b16 %v5204
        %v5540 = vunpack.c.h.b16 %v5204
        %v5541 = vunpack.c.l.b16 %v5205
        %v5542 = vunpack.c.h.b16 %v5205
        %v5543 = vunpack.c.l.b16 %v5206
        %v5544 = vunpack.c.h.b16 %v5206
        %v5545 = vunpack.c.l.b16 %v5207
        %v5546 = vunpack.c.h.b16 %v5207
        %v5547 = vunpack.c.l.b16 %v5208
        %v5548 = vunpack.c.h.b16 %v5208
        %v5549 = vunpack.c.l.b16 %v5209
        %v5550 = vunpack.c.h.b16 %v5209
        %v5551 = vunpack.c.l.b16 %v5210
        %v5552 = vunpack.c.h.b16 %v5210
        %v5553 = vunpack.c.l.b16 %v5211
        %v5554 = vunpack.c.h.b16 %v5211
        %v5555 = vunpack.c.l.b16 %v5212
        %v5556 = vunpack.c.h.b16 %v5212
        %v5557 = vunpack.c.l.b16 %v5213
        %v5558 = vunpack.c.l.b16 %v5214
        %v5559 = vunpack.c.h.b16 %v5214
        %v5560 = vunpack.c.l.b16 %v5215
        %v5561 = vunpack.c.h.b16 %v5215
        %v5562 = vunpack.c.l.b16 %v5216
        %v5563 = vunpack.c.h.b16 %v5216
        %v5564 = vunpack.c.l.b16 %v5217
        %v5565 = vunpack.c.h.b16 %v5217
        %v5566 = vunpack.c.l.b16 %v5218
        %v5567 = vunpack.c.h.b16 %v5218
        %v5568 = vunpack.c.l.b16 %v5219
        %v5569 = vunpack.c.h.b16 %v5219
        %v5570 = vunpack.c.l.b16 %v5220
        %v5571 = vunpack.c.h.b16 %v5220
        %v5572 = vunpack.c.l.b16 %v5221
        %v5573 = vunpack.c.h.b16 %v5221
        %v5574 = vunpack.c.l.b16 %v5222
        %v5575 = vunpack.c.h.b16 %v5222
        %v5576 = vunpack.c.l.b16 %v5223
        %v5577 = vunpack.c.h.b16 %v5223
        %v5578 = vunpack.c.l.b16 %v5224
        %v5579 = vunpack.c.l.b16 %v5225
        %v5580 = vunpack.c.h.b16 %v5225
        %v5581 = vunpack.c.l.b16 %v5226
        %v5582 = vunpack.c.h.b16 %v5226
        %v5583 = vunpack.c.l.b16 %v5227
        %v5584 = vunpack.c.h.b16 %v5227
        %v5585 = vunpack.c.l.b16 %v5228
        %v5586 = vunpack.c.h.b16 %v5228
        %v5587 = vunpack.c.l.b16 %v5229
        %v5588 = vunpack.c.h.b16 %v5229
        %v5589 = vunpack.c.l.b16 %v5230
        %v5590 = vunpack.c.h.b16 %v5230
        %v5591 = vunpack.c.l.b16 %v5231
        %v5592 = vunpack.c.h.b16 %v5231
        %v5593 = vunpack.c.l.b16 %v5232
        %v5594 = vunpack.c.h.b16 %v5232
        %v5595 = vunpack.c.l.b16 %v5233
        %v5596 = vunpack.c.h.b16 %v5233
        %v5597 = vunpack.c.l.b16 %v5234
        %v5598 = vunpack.c.h.b16 %v5234
        %v5599 = vunpack.c.l.b16 %v5235
        %v5600 = vunpack.c.l.b16 %v5236
        %v5601 = vunpack.c.h.b16 %v5236
        %v5602 = vunpack.c.l.b16 %v5237
        %v5603 = vunpack.c.h.b16 %v5237
        %v5604 = vunpack.c.l.b16 %v5238
        %v5605 = vunpack.c.h.b16 %v5238
        %v5606 = vunpack.c.l.b16 %v5239
        %v5607 = vunpack.c.h.b16 %v5239
        %v5608 = vunpack.c.l.b16 %v5240
        %v5609 = vunpack.c.h.b16 %v5240
        %v5610 = vunpack.c.l.b16 %v5241
        %v5611 = vunpack.c.h.b16 %v5241
        %v5612 = vunpack.c.l.b16 %v5242
        %v5613 = vunpack.c.h.b16 %v5242
        %v5614 = vunpack.c.l.b16 %v5243
        %v5615 = vunpack.c.h.b16 %v5243
        %v5616 = vunpack.c.l.b16 %v5244
        %v5617 = vunpack.c.h.b16 %v5244
        %v5618 = vunpack.c.l.b16 %v5245
        %v5619 = vunpack.c.h.b16 %v5245
        %v5620 = vunpack.c.l.b16 %v5246
        %v5621 = vunpack.c.l.b16 %v5247
        %v5622 = vunpack.c.h.b16 %v5247
        %v5623 = vunpack.c.l.b16 %v5248
        %v5624 = vunpack.c.h.b16 %v5248
        %v5625 = vunpack.c.l.b16 %v5249
        %v5626 = vunpack.c.h.b16 %v5249
        %v5627 = vunpack.c.l.b16 %v5250
        %v5628 = vunpack.c.h.b16 %v5250
        %v5629 = vunpack.c.l.b16 %v5251
        %v5630 = vunpack.c.h.b16 %v5251
        %v5631 = vunpack.c.l.b16 %v5252
        %v5632 = vunpack.c.h.b16 %v5252
        %v5633 = vunpack.c.l.b16 %v5253
        %v5634 = vunpack.c.h.b16 %v5253
        %v5635 = vunpack.c.l.b16 %v5254
        %v5636 = vunpack.c.h.b16 %v5254
        %v5637 = vunpack.c.l.b16 %v5255
        %v5638 = vunpack.c.h.b16 %v5255
        %v5639 = vunpack.c.l.b16 %v5256
        %v5640 = vunpack.c.h.b16 %v5256
        %v5641 = vunpack.c.l.b16 %v5257
        %v5642 = vunpack.c.l.b16 %v5258
        %v5643 = vunpack.c.h.b16 %v5258
        %v5644 = vunpack.c.l.b16 %v5259
        %v5645 = vunpack.c.h.b16 %v5259
        %v5646 = vunpack.c.l.b16 %v5260
        %v5647 = vunpack.c.h.b16 %v5260
        %v5648 = vunpack.c.l.b16 %v5261
        %v5649 = vunpack.c.h.b16 %v5261
        %v5650 = vunpack.c.l.b16 %v5262
        %v5651 = vunpack.c.h.b16 %v5262
        %v5652 = vunpack.c.l.b16 %v5263
        %v5653 = vunpack.c.h.b16 %v5263
        %v5654 = vunpack.c.l.b16 %v5264
        %v5655 = vunpack.c.h.b16 %v5264
        %v5656 = vunpack.c.l.b16 %v5265
        %v5657 = vunpack.c.h.b16 %v5265
        %v5658 = vunpack.c.l.b16 %v5266
        %v5659 = vunpack.c.h.b16 %v5266
        %v5660 = vunpack.c.l.b16 %v5267
        %v5661 = vunpack.c.h.b16 %v5267
        %v5662 = vunpack.c.l.b16 %v5268
        %v5663 = vunpack.c.l.b16 %v5269
        %v5664 = vunpack.c.h.b16 %v5269
        %v5665 = vunpack.c.l.b16 %v5270
        %v5666 = vunpack.c.h.b16 %v5270
        %v5667 = vunpack.c.l.b16 %v5271
        %v5668 = vunpack.c.h.b16 %v5271
        %v5669 = vunpack.c.l.b16 %v5272
        %v5670 = vunpack.c.h.b16 %v5272
        %v5671 = vunpack.c.l.b16 %v5273
        %v5672 = vunpack.c.h.b16 %v5273
        %v5673 = vunpack.c.l.b16 %v5274
        %v5674 = vunpack.c.h.b16 %v5274
        %v5675 = vunpack.c.l.b16 %v5275
        %v5676 = vunpack.c.h.b16 %v5275
        %v5677 = vunpack.c.l.b16 %v5276
        %v5678 = vunpack.c.h.b16 %v5276
        %v5679 = vunpack.c.l.b16 %v5277
        %v5680 = vunpack.c.h.b16 %v5277
        %v5681 = vunpack.c.l.b16 %v5278
        %v5682 = vunpack.c.h.b16 %v5278
        %v5683 = vunpack.c.l.b16 %v5279
        %v5684 = vunpack.c.l.b16 %v5280
        %v5685 = vunpack.c.h.b16 %v5280
        %v5686 = vunpack.c.l.b16 %v5281
        %v5687 = vunpack.c.h.b16 %v5281
        %v5688 = vunpack.c.l.b16 %v5282
        %v5689 = vunpack.c.h.b16 %v5282
        %v5690 = vunpack.c.l.b16 %v5283
        %v5691 = vunpack.c.h.b16 %v5283
        %v5692 = vunpack.c.l.b16 %v5284
        %v5693 = vunpack.c.h.b16 %v5284
        %v5694 = vunpack.c.l.b16 %v5285
        %v5695 = vunpack.c.h.b16 %v5285
        %v5696 = vunpack.c.l.b16 %v5286
        %v5697 = vunpack.c.h.b16 %v5286
        %v5698 = vunpack.c.l.b16 %v5287
        %v5699 = vunpack.c.h.b16 %v5287
        %v5700 = vunpack.c.l.b16 %v5288
        %v5701 = vunpack.c.h.b16 %v5288
        %v5702 = vunpack.c.l.b16 %v5289
        %v5703 = vunpack.c.h.b16 %v5289
        %v5704 = vunpack.c.l.b16 %v5290
        %v5705 = vunpack.c.l.b16 %v5291
        %v5706 = vunpack.c.h.b16 %v5291
        %v5707 = vunpack.c.l.b16 %v5292
        %v5708 = vunpack.c.h.b16 %v5292
        %v5709 = vunpack.c.l.b16 %v5293
        %v5710 = vunpack.c.h.b16 %v5293
        %v5711 = vunpack.c.l.b16 %v5294
        %v5712 = vunpack.c.h.b16 %v5294
        %v5713 = vunpack.c.l.b16 %v5295
        %v5714 = vunpack.c.h.b16 %v5295
        %v5715 = vunpack.c.l.b16 %v5296
        %v5716 = vunpack.c.h.b16 %v5296
        %v5717 = vunpack.c.l.b16 %v5297
        %v5718 = vunpack.c.h.b16 %v5297
        %v5719 = vunpack.c.l.b16 %v5298
        %v5720 = vunpack.c.h.b16 %v5298
        %v5721 = vunpack.c.l.b16 %v5299
        %v5722 = vunpack.c.h.b16 %v5299
        %v5723 = vunpack.c.l.b16 %v5300
        %v5724 = vunpack.c.h.b16 %v5300
        %v5725 = vunpack.c.l.b16 %v5301
        %v5726 = vunpack.c.l.b16 %v5302
        %v5727 = vunpack.c.h.b16 %v5302
        %v5728 = vunpack.c.l.b16 %v5303
        %v5729 = vunpack.c.h.b16 %v5303
        %v5730 = vunpack.c.l.b16 %v5304
        %v5731 = vunpack.c.h.b16 %v5304
        %v5732 = vunpack.c.l.b16 %v5305
        %v5733 = vunpack.c.h.b16 %v5305
        %v5734 = vunpack.c.l.b16 %v5306
        %v5735 = vunpack.c.h.b16 %v5306
        %v5736 = vunpack.c.l.b16 %v5307
        %v5737 = vunpack.c.h.b16 %v5307
        %v5738 = vunpack.c.l.b16 %v5308
        %v5739 = vunpack.c.h.b16 %v5308
        %v5740 = vunpack.c.l.b16 %v5309
        %v5741 = vunpack.c.h.b16 %v5309
        %v5742 = vunpack.c.l.b16 %v5310
        %v5743 = vunpack.c.h.b16 %v5310
        %v5744 = vunpack.c.l.b16 %v5311
        %v5745 = vunpack.c.h.b16 %v5311
        %v5746 = vunpack.c.l.b16 %v5312
        %v5747 = vunpack.c.l.b16 %v5313
        %v5748 = vunpack.c.h.b16 %v5313
        %v5749 = vunpack.c.l.b16 %v5314
        %v5750 = vunpack.c.h.b16 %v5314
        %v5751 = vunpack.c.l.b16 %v5315
        %v5752 = vunpack.c.h.b16 %v5315
        %v5753 = vunpack.c.l.b16 %v5316
        %v5754 = vunpack.c.h.b16 %v5316
        %v5755 = vunpack.c.l.b16 %v5317
        %v5756 = vunpack.c.h.b16 %v5317
        %v5757 = vunpack.c.l.b16 %v5318
        %v5758 = vunpack.c.h.b16 %v5318
        %v5759 = vunpack.c.l.b16 %v5319
        %v5760 = vunpack.c.h.b16 %v5319
        %v5761 = vunpack.c.l.b16 %v5320
        %v5762 = vunpack.c.h.b16 %v5320
        %v5763 = vunpack.c.l.b16 %v5321
        %v5764 = vunpack.c.h.b16 %v5321
        %v5765 = vunpack.c.l.b16 %v5322
        %v5766 = vunpack.c.h.b16 %v5322
        %v5767 = vunpack.c.l.b16 %v5323
        %v5768 = vunpack.c.l.b16 %v5324
        %v5769 = vunpack.c.h.b16 %v5324
        %v5770 = vunpack.c.l.b16 %v5325
        %v5771 = vunpack.c.h.b16 %v5325
        %v5772 = vunpack.c.l.b16 %v5326
        %v5773 = vunpack.c.h.b16 %v5326
        %v5774 = vunpack.c.l.b16 %v5327
        %v5775 = vunpack.c.h.b16 %v5327
        %v5776 = vunpack.c.l.b16 %v5328
        %v5777 = vunpack.c.h.b16 %v5328
        %v5778 = vunpack.c.l.b16 %v5329
        %v5779 = vunpack.c.h.b16 %v5329
        %v5780 = vunpack.c.l.b16 %v5330
        %v5781 = vunpack.c.h.b16 %v5330
        %v5782 = vunpack.c.l.b16 %v5331
        %v5783 = vunpack.c.h.b16 %v5331
        %v5784 = vunpack.c.l.b16 %v5332
        %v5785 = vunpack.c.h.b16 %v5332
        %v5786 = vunpack.c.l.b16 %v5333
        %v5787 = vunpack.c.h.b16 %v5333
        %v5788 = vunpack.c.l.b16 %v5334
        %v5789 = vpack.c.b16 %v5516, %v5495
        %v5790 = vpack.c.b16 %v5517, %v5496
        %v5791 = vpack.c.b16 %v5518, %v5497
        %v5792 = vpack.c.b16 %v5519, %v5498
        %v5793 = vpack.c.b16 %v5520, %v5499
        %v5794 = vpack.c.b16 %v5521, %v5500
        %v5795 = vpack.c.b16 %v5522, %v5501
        %v5796 = vpack.c.b16 %v5523, %v5502
        %v5797 = vpack.c.b16 %v5524, %v5503
        %v5798 = vpack.c.b16 %v5525, %v5504
        %v5799 = vpack.c.b16 %v5526, %v5505
        %v5800 = vpack.c.b16 %v5527, %v5506
        %v5801 = vpack.c.b16 %v5528, %v5507
        %v5802 = vpack.c.b16 %v5529, %v5508
        %v5803 = vpack.c.b16 %v5530, %v5509
        %v5804 = vpack.c.b16 %v5531, %v5510
        %v5805 = vpack.c.b16 %v5532, %v5511
        %v5806 = vpack.c.b16 %v5533, %v5512
        %v5807 = vpack.c.b16 %v5534, %v5513
        %v5808 = vpack.c.b16 %v5535, %v5514
        %v5809 = vpack.c.b16 %v5536, %v5515
        %v5810 = vpack.c.b16 %v5558, %v5537
        %v5811 = vpack.c.b16 %v5559, %v5538
        %v5812 = vpack.c.b16 %v5560, %v5539
        %v5813 = vpack.c.b16 %v5561, %v5540
        %v5814 = vpack.c.b16 %v5562, %v5541
        %v5815 = vpack.c.b16 %v5563, %v5542
        %v5816 = vpack.c.b16 %v5564, %v5543
        %v5817 = vpack.c.b16 %v5565, %v5544
        %v5818 = vpack.c.b16 %v5566, %v5545
        %v5819 = vpack.c.b16 %v5567, %v5546
        %v5820 = vpack.c.b16 %v5568, %v5547
        %v5821 = vpack.c.b16 %v5569, %v5548
        %v5822 = vpack.c.b16 %v5570, %v5549
        %v5823 = vpack.c.b16 %v5571, %v5550
        %v5824 = vpack.c.b16 %v5572, %v5551
        %v5825 = vpack.c.b16 %v5573, %v5552
        %v5826 = vpack.c.b16 %v5574, %v5553
        %v5827 = vpack.c.b16 %v5575, %v5554
        %v5828 = vpack.c.b16 %v5576, %v5555
        %v5829 = vpack.c.b16 %v5577, %v5556
        %v5830 = vpack.c.b16 %v5578, %v5557
        %v5831 = vpack.c.b16 %v5600, %v5579
        %v5832 = vpack.c.b16 %v5601, %v5580
        %v5833 = vpack.c.b16 %v5602, %v5581
        %v5834 = vpack.c.b16 %v5603, %v5582
        %v5835 = vpack.c.b16 %v5604, %v5583
        %v5836 = vpack.c.b16 %v5605, %v5584
        %v5837 = vpack.c.b16 %v5606, %v5585
        %v5838 = vpack.c.b16 %v5607, %v5586
        %v5839 = vpack.c.b16 %v5608, %v5587
        %v5840 = vpack.c.b16 %v5609, %v5588
        %v5841 = vpack.c.b16 %v5610, %v5589
        %v5842 = vpack.c.b16 %v5611, %v5590
        %v5843 = vpack.c.b16 %v5612, %v5591
        %v5844 = vpack.c.b16 %v5613, %v5592
        %v5845 = vpack.c.b16 %v5614, %v5593
        %v5846 = vpack.c.b16 %v5615, %v5594
        %v5847 = vpack.c.b16 %v5616, %v5595
        %v5848 = vpack.c.b16 %v5617, %v5596
        %v5849 = vpack.c.b16 %v5618, %v5597
        %v5850 = vpack.c.b16 %v5619, %v5598
        %v5851 = vpack.c.b16 %v5620, %v5599
        %v5852 = vpack.c.b16 %v5642, %v5621
        %v5853 = vpack.c.b16 %v5643, %v5622
        %v5854 = vpack.c.b16 %v5644, %v5623
        %v5855 = vpack.c.b16 %v5645, %v5624
        %v5856 = vpack.c.b16 %v5646, %v5625
        %v5857 = vpack.c.b16 %v5647, %v5626
        %v5858 = vpack.c.b16 %v5648, %v5627
        %v5859 = vpack.c.b16 %v5649, %v5628
        %v5860 = vpack.c.b16 %v5650, %v5629
        %v5861 = vpack.c.b16 %v5651, %v5630
        %v5862 = vpack.c.b16 %v5652, %v5631
        %v5863 = vpack.c.b16 %v5653, %v5632
        %v5864 = vpack.c.b16 %v5654, %v5633
        %v5865 = vpack.c.b16 %v5655, %v5634
        %v5866 = vpack.c.b16 %v5656, %v5635
        %v5867 = vpack.c.b16 %v5657, %v5636
        %v5868 = vpack.c.b16 %v5658, %v5637
        %v5869 = vpack.c.b16 %v5659, %v5638
        %v5870 = vpack.c.b16 %v5660, %v5639
        %v5871 = vpack.c.b16 %v5661, %v5640
        %v5872 = vpack.c.b16 %v5662, %v5641
        %v5873 = vpack.c.b16 %v5684, %v5663
        %v5874 = vpack.c.b16 %v5685, %v5664
        %v5875 = vpack.c.b16 %v5686, %v5665
        %v5876 = vpack.c.b16 %v5687, %v5666
        %v5877 = vpack.c.b16 %v5688, %v5667
        %v5878 = vpack.c.b16 %v5689, %v5668
        %v5879 = vpack.c.b16 %v5690, %v5669
        %v5880 = vpack.c.b16 %v5691, %v5670
        %v5881 = vpack.c.b16 %v5692, %v5671
        %v5882 = vpack.c.b16 %v5693, %v5672
        %v5883 = vpack.c.b16 %v5694, %v5673
        %v5884 = vpack.c.b16 %v5695, %v5674
        %v5885 = vpack.c.b16 %v5696, %v5675
        %v5886 = vpack.c.b16 %v5697, %v5676
        %v5887 = vpack.c.b16 %v5698, %v5677
        %v5888 = vpack.c.b16 %v5699, %v5678
        %v5889 = vpack.c.b16 %v5700, %v5679
        %v5890 = vpack.c.b16 %v5701, %v5680
        %v5891 = vpack.c.b16 %v5702, %v5681
        %v5892 = vpack.c.b16 %v5703, %v5682
        %v5893 = vpack.c.b16 %v5704, %v5683
        %v5894 = vpack.c.b16 %v5726, %v5705
        %v5895 = vpack.c.b16 %v5727, %v5706
        %v5896 = vpack.c.b16 %v5728, %v5707
        %v5897 = vpack.c.b16 %v5729, %v5708
        %v5898 = vpack.c.b16 %v5730, %v5709
        %v5899 = vpack.c.b16 %v5731, %v5710
        %v5900 = vpack.c.b16 %v5732, %v5711
        %v5901 = vpack.c.b16 %v5733, %v5712
        %v5902 = vpack.c.b16 %v5734, %v5713
        %v5903 = vpack.c.b16 %v5735, %v5714
        %v5904 = vpack.c.b16 %v5736, %v5715
        %v5905 = vpack.c.b16 %v5737, %v5716
        %v5906 = vpack.c.b16 %v5738, %v5717
        %v5907 = vpack.c.b16 %v5739, %v5718
        %v5908 = vpack.c.b16 %v5740, %v5719
        %v5909 = vpack.c.b16 %v5741, %v5720
        %v5910 = vpack.c.b16 %v5742, %v5721
        %v5911 = vpack.c.b16 %v5743, %v5722
        %v5912 = vpack.c.b16 %v5744, %v5723
        %v5913 = vpack.c.b16 %v5745, %v5724
        %v5914 = vpack.c.b16 %v5746, %v5725
        %v5915 = vpack.c.b16 %v5768, %v5747
        %v5916 = vpack.c.b16 %v5769, %v5748
        %v5917 = vpack.c.b16 %v5770, %v5749
        %v5918 = vpack.c.b16 %v5771, %v5750
        %v5919 = vpack.c.b16 %v5772, %v5751
        %v5920 = vpack.c.b16 %v5773, %v5752
        %v5921 = vpack.c.b16 %v5774, %v5753
        %v5922 = vpack.c.b16 %v5775, %v5754
        %v5923 = vpack.c.b16 %v5776, %v5755
        %v5924 = vpack.c.b16 %v5777, %v5756
        %v5925 = vpack.c.b16 %v5778, %v5757
        %v5926 = vpack.c.b16 %v5779, %v5758
        %v5927 = vpack.c.b16 %v5780, %v5759
        %v5928 = vpack.c.b16 %v5781, %v5760
        %v5929 = vpack.c.b16 %v5782, %v5761
        %v5930 = vpack.c.b16 %v5783, %v5762
        %v5931 = vpack.c.b16 %v5784, %v5763
        %v5932 = vpack.c.b16 %v5785, %v5764
        %v5933 = vpack.c.b16 %v5786, %v5765
        %v5934 = vpack.c.b16 %v5787, %v5766
        %v5935 = vpack.c.b16 %v5788, %v5767
        %vm6083 = vcmask 916480
        %v6085 = vsel %vm6083, %v5180, 0
        %6087 = vmatprep.subr.bf16.mxu0 0
        %6088 = vmatpush1.bf16.msra.mxu0 0
        %6089 = vmatprep.subr.bf16.mxu0 %v5916
        %6090 = vmatpush1.bf16.msra.mxu0 %v5915
        %6091 = vmatprep.subr.bf16.mxu0 %v5895
        %6092 = vmatpush1.bf16.msra.mxu0 %v5894
        %6093 = vmatprep.subr.bf16.mxu0 %v5874
        %6094 = vmatpush1.bf16.msra.mxu0 %v5873
        %6095 = vmatprep.subr.bf16.mxu0 %v5853
        %6096 = vmatpush1.bf16.msra.mxu0 %v5852
        %6097 = vmatprep.subr.bf16.mxu0 %v5832
        %6098 = vmatpush1.bf16.msra.mxu0 %v5831
        %6099 = vmatprep.subr.bf16.mxu0 %v5811
        %6100 = vmatpush1.bf16.msra.mxu0 %v5810
        %6101 = vmatprep.subr.bf16.mxu0 %v5790
        %6102 = vmatpush1.bf16.msra.mxu0 %v5789
        %6103 = vmatprep.subr.bf16.mxu0 0
        %6104 = vmatpush2.bf16.msra.mxu0 0
        %6105 = vmatprep.subr.bf16.mxu0 0
        %6106 = vmatpush2.bf16.msra.mxu0 0
        %6107 = vmatprep.subr.bf16.mxu0 0
        %6108 = vmatpush2.bf16.msra.mxu0 0
        %6109 = vmatprep.subr.bf16.mxu0 0
        %6110 = vmatpush2.bf16.msra.mxu0 0
        %6111 = vmatprep.subr.bf16.mxu0 0
        %6112 = vmatpush2.bf16.msra.mxu0 0
        %6113 = vmatprep.subr.bf16.mxu0 0
        %6114 = vmatpush2.bf16.msra.mxu0 0
        %6115 = vmatprep.subr.bf16.mxu0 0
        %6116 = vmatpush2.bf16.msra.mxu0 0
        %6117 = vmatprep.subr.bf16.mxu0 0
        %6118 = vmatpush2.bf16.msra.mxu0 0
        %6119 = vmatprep.mubr.bf16.mxu0 0
        %6120 = vmatmul.mubr.bf16.gmra.mxu0 %v6085
        %v6121 = vpop.f32.mrf.mxu0
        %v6122 = vadd.f32 %v5339, %v6121
        %v6123 = vpop.f32.mrf.mxu0
        %v6124 = vadd.f32 %v5339, %v6123
        %v6125 = vpop.f32.mrf.mxu0
        %v6126 = vpop.f32.mrf.mxu0
        %6127 = vdwg.mxu0
        %6128 = vmatprep.subr.bf16.mxu0 0
        %6129 = vmatpush1.bf16.msra.mxu0 0
        %6130 = vmatprep.subr.bf16.mxu0 %v5918
        %6131 = vmatpush1.bf16.msra.mxu0 %v5917
        %6132 = vmatprep.subr.bf16.mxu0 %v5897
        %6133 = vmatpush1.bf16.msra.mxu0 %v5896
        %6134 = vmatprep.subr.bf16.mxu0 %v5876
        %6135 = vmatpush1.bf16.msra.mxu0 %v5875
        %6136 = vmatprep.subr.bf16.mxu0 %v5855
        %6137 = vmatpush1.bf16.msra.mxu0 %v5854
        %6138 = vmatprep.subr.bf16.mxu0 %v5834
        %6139 = vmatpush1.bf16.msra.mxu0 %v5833
        %6140 = vmatprep.subr.bf16.mxu0 %v5813
        %6141 = vmatpush1.bf16.msra.mxu0 %v5812
        %6142 = vmatprep.subr.bf16.mxu0 %v5792
        %6143 = vmatpush1.bf16.msra.mxu0 %v5791
        %6144 = vmatprep.subr.bf16.mxu0 0
        %6145 = vmatpush2.bf16.msra.mxu0 0
        %6146 = vmatprep.subr.bf16.mxu0 0
        %6147 = vmatpush2.bf16.msra.mxu0 0
        %6148 = vmatprep.subr.bf16.mxu0 0
        %6149 = vmatpush2.bf16.msra.mxu0 0
        %6150 = vmatprep.subr.bf16.mxu0 0
        %6151 = vmatpush2.bf16.msra.mxu0 0
        %6152 = vmatprep.subr.bf16.mxu0 0
        %6153 = vmatpush2.bf16.msra.mxu0 0
        %6154 = vmatprep.subr.bf16.mxu0 0
        %6155 = vmatpush2.bf16.msra.mxu0 0
        %6156 = vmatprep.subr.bf16.mxu0 0
        %6157 = vmatpush2.bf16.msra.mxu0 0
        %6158 = vmatprep.subr.bf16.mxu0 0
        %6159 = vmatpush2.bf16.msra.mxu0 0
        %6160 = vmatprep.mubr.bf16.mxu0 0
        %6161 = vmatmul.mubr.bf16.gmra.mxu0 %v6085
        %v6162 = vpop.f32.mrf.mxu0
        %v6163 = vadd.f32 %v5339, %v6162
        %v6164 = vpop.f32.mrf.mxu0
        %v6165 = vadd.f32 %v5339, %v6164
        %v6166 = vpop.f32.mrf.mxu0
        %v6167 = vpop.f32.mrf.mxu0
        %6168 = vdwg.mxu0
        %6169 = vmatprep.subr.bf16.mxu0 0
        %6170 = vmatpush1.bf16.msra.mxu0 0
        %6171 = vmatprep.subr.bf16.mxu0 %v5920
        %6172 = vmatpush1.bf16.msra.mxu0 %v5919
        %6173 = vmatprep.subr.bf16.mxu0 %v5899
        %6174 = vmatpush1.bf16.msra.mxu0 %v5898
        %6175 = vmatprep.subr.bf16.mxu0 %v5878
        %6176 = vmatpush1.bf16.msra.mxu0 %v5877
        %6177 = vmatprep.subr.bf16.mxu0 %v5857
        %6178 = vmatpush1.bf16.msra.mxu0 %v5856
        %6179 = vmatprep.subr.bf16.mxu0 %v5836
        %6180 = vmatpush1.bf16.msra.mxu0 %v5835
        %6181 = vmatprep.subr.bf16.mxu0 %v5815
        %6182 = vmatpush1.bf16.msra.mxu0 %v5814
        %6183 = vmatprep.subr.bf16.mxu0 %v5794
        %6184 = vmatpush1.bf16.msra.mxu0 %v5793
        %6185 = vmatprep.subr.bf16.mxu0 0
        %6186 = vmatpush2.bf16.msra.mxu0 0
        %6187 = vmatprep.subr.bf16.mxu0 0
        %6188 = vmatpush2.bf16.msra.mxu0 0
        %6189 = vmatprep.subr.bf16.mxu0 0
        %6190 = vmatpush2.bf16.msra.mxu0 0
        %6191 = vmatprep.subr.bf16.mxu0 0
        %6192 = vmatpush2.bf16.msra.mxu0 0
        %6193 = vmatprep.subr.bf16.mxu0 0
        %6194 = vmatpush2.bf16.msra.mxu0 0
        %6195 = vmatprep.subr.bf16.mxu0 0
        %6196 = vmatpush2.bf16.msra.mxu0 0
        %6197 = vmatprep.subr.bf16.mxu0 0
        %6198 = vmatpush2.bf16.msra.mxu0 0
        %6199 = vmatprep.subr.bf16.mxu0 0
        %6200 = vmatpush2.bf16.msra.mxu0 0
        %6201 = vmatprep.mubr.bf16.mxu0 0
        %6202 = vmatmul.mubr.bf16.gmra.mxu0 %v6085
        %v6203 = vpop.f32.mrf.mxu0
        %v6204 = vadd.f32 %v5339, %v6203
        %v6205 = vpop.f32.mrf.mxu0
        %v6206 = vadd.f32 %v5339, %v6205
        %v6207 = vpop.f32.mrf.mxu0
        %v6208 = vpop.f32.mrf.mxu0
        %6209 = vdwg.mxu0
        %6210 = vmatprep.subr.bf16.mxu0 0
        %6211 = vmatpush1.bf16.msra.mxu0 0
        %6212 = vmatprep.subr.bf16.mxu0 %v5922
        %6213 = vmatpush1.bf16.msra.mxu0 %v5921
        %6214 = vmatprep.subr.bf16.mxu0 %v5901
        %6215 = vmatpush1.bf16.msra.mxu0 %v5900
        %6216 = vmatprep.subr.bf16.mxu0 %v5880
        %6217 = vmatpush1.bf16.msra.mxu0 %v5879
        %6218 = vmatprep.subr.bf16.mxu0 %v5859
        %6219 = vmatpush1.bf16.msra.mxu0 %v5858
        %6220 = vmatprep.subr.bf16.mxu0 %v5838
        %6221 = vmatpush1.bf16.msra.mxu0 %v5837
        %6222 = vmatprep.subr.bf16.mxu0 %v5817
        %6223 = vmatpush1.bf16.msra.mxu0 %v5816
        %6224 = vmatprep.subr.bf16.mxu0 %v5796
        %6225 = vmatpush1.bf16.msra.mxu0 %v5795
        %6226 = vmatprep.subr.bf16.mxu0 0
        %6227 = vmatpush2.bf16.msra.mxu0 0
        %6228 = vmatprep.subr.bf16.mxu0 0
        %6229 = vmatpush2.bf16.msra.mxu0 0
        %6230 = vmatprep.subr.bf16.mxu0 0
        %6231 = vmatpush2.bf16.msra.mxu0 0
        %6232 = vmatprep.subr.bf16.mxu0 0
        %6233 = vmatpush2.bf16.msra.mxu0 0
        %6234 = vmatprep.subr.bf16.mxu0 0
        %6235 = vmatpush2.bf16.msra.mxu0 0
        %6236 = vmatprep.subr.bf16.mxu0 0
        %6237 = vmatpush2.bf16.msra.mxu0 0
        %6238 = vmatprep.subr.bf16.mxu0 0
        %6239 = vmatpush2.bf16.msra.mxu0 0
        %6240 = vmatprep.subr.bf16.mxu0 0
        %6241 = vmatpush2.bf16.msra.mxu0 0
        %6242 = vmatprep.mubr.bf16.mxu0 0
        %6243 = vmatmul.mubr.bf16.gmra.mxu0 %v6085
        %v6244 = vpop.f32.mrf.mxu0
        %v6245 = vadd.f32 %v5339, %v6244
        %v6246 = vpop.f32.mrf.mxu0
        %v6247 = vadd.f32 %v5339, %v6246
        %v6248 = vpop.f32.mrf.mxu0
        %v6249 = vpop.f32.mrf.mxu0
        %6250 = vdwg.mxu0
        %6251 = vmatprep.subr.bf16.mxu0 0
        %6252 = vmatpush1.bf16.msra.mxu0 0
        %6253 = vmatprep.subr.bf16.mxu0 %v5924
        %6254 = vmatpush1.bf16.msra.mxu0 %v5923
        %6255 = vmatprep.subr.bf16.mxu0 %v5903
        %6256 = vmatpush1.bf16.msra.mxu0 %v5902
        %6257 = vmatprep.subr.bf16.mxu0 %v5882
        %6258 = vmatpush1.bf16.msra.mxu0 %v5881
        %6259 = vmatprep.subr.bf16.mxu0 %v5861
        %6260 = vmatpush1.bf16.msra.mxu0 %v5860
        %6261 = vmatprep.subr.bf16.mxu0 %v5840
        %6262 = vmatpush1.bf16.msra.mxu0 %v5839
        %6263 = vmatprep.subr.bf16.mxu0 %v5819
        %6264 = vmatpush1.bf16.msra.mxu0 %v5818
        %6265 = vmatprep.subr.bf16.mxu0 %v5798
        %6266 = vmatpush1.bf16.msra.mxu0 %v5797
        %6267 = vmatprep.subr.bf16.mxu0 0
        %6268 = vmatpush2.bf16.msra.mxu0 0
        %6269 = vmatprep.subr.bf16.mxu0 0
        %6270 = vmatpush2.bf16.msra.mxu0 0
        %6271 = vmatprep.subr.bf16.mxu0 0
        %6272 = vmatpush2.bf16.msra.mxu0 0
        %6273 = vmatprep.subr.bf16.mxu0 0
        %6274 = vmatpush2.bf16.msra.mxu0 0
        %6275 = vmatprep.subr.bf16.mxu0 0
        %6276 = vmatpush2.bf16.msra.mxu0 0
        %6277 = vmatprep.subr.bf16.mxu0 0
        %6278 = vmatpush2.bf16.msra.mxu0 0
        %6279 = vmatprep.subr.bf16.mxu0 0
        %6280 = vmatpush2.bf16.msra.mxu0 0
        %6281 = vmatprep.subr.bf16.mxu0 0
        %6282 = vmatpush2.bf16.msra.mxu0 0
        %6283 = vmatprep.mubr.bf16.mxu0 0
        %6284 = vmatmul.mubr.bf16.gmra.mxu0 %v6085
        %v6285 = vpop.f32.mrf.mxu0
        %v6286 = vadd.f32 %v5339, %v6285
        %v6287 = vpop.f32.mrf.mxu0
        %v6288 = vadd.f32 %v5339, %v6287
        %v6289 = vpop.f32.mrf.mxu0
        %v6290 = vpop.f32.mrf.mxu0
        %6291 = vdwg.mxu0
        %6292 = vmatprep.subr.bf16.mxu0 0
        %6293 = vmatpush1.bf16.msra.mxu0 0
        %6294 = vmatprep.subr.bf16.mxu0 %v5926
        %6295 = vmatpush1.bf16.msra.mxu0 %v5925
        %6296 = vmatprep.subr.bf16.mxu0 %v5905
        %6297 = vmatpush1.bf16.msra.mxu0 %v5904
        %6298 = vmatprep.subr.bf16.mxu0 %v5884
        %6299 = vmatpush1.bf16.msra.mxu0 %v5883
        %6300 = vmatprep.subr.bf16.mxu0 %v5863
        %6301 = vmatpush1.bf16.msra.mxu0 %v5862
        %6302 = vmatprep.subr.bf16.mxu0 %v5842
        %6303 = vmatpush1.bf16.msra.mxu0 %v5841
        %6304 = vmatprep.subr.bf16.mxu0 %v5821
        %6305 = vmatpush1.bf16.msra.mxu0 %v5820
        %6306 = vmatprep.subr.bf16.mxu0 %v5800
        %6307 = vmatpush1.bf16.msra.mxu0 %v5799
        %6308 = vmatprep.subr.bf16.mxu0 0
        %6309 = vmatpush2.bf16.msra.mxu0 0
        %6310 = vmatprep.subr.bf16.mxu0 0
        %6311 = vmatpush2.bf16.msra.mxu0 0
        %6312 = vmatprep.subr.bf16.mxu0 0
        %6313 = vmatpush2.bf16.msra.mxu0 0
        %6314 = vmatprep.subr.bf16.mxu0 0
        %6315 = vmatpush2.bf16.msra.mxu0 0
        %6316 = vmatprep.subr.bf16.mxu0 0
        %6317 = vmatpush2.bf16.msra.mxu0 0
        %6318 = vmatprep.subr.bf16.mxu0 0
        %6319 = vmatpush2.bf16.msra.mxu0 0
        %6320 = vmatprep.subr.bf16.mxu0 0
        %6321 = vmatpush2.bf16.msra.mxu0 0
        %6322 = vmatprep.subr.bf16.mxu0 0
        %6323 = vmatpush2.bf16.msra.mxu0 0
        %6324 = vmatprep.mubr.bf16.mxu0 0
        %6325 = vmatmul.mubr.bf16.gmra.mxu0 %v6085
        %v6326 = vpop.f32.mrf.mxu0
        %v6327 = vadd.f32 %v5339, %v6326
        %v6328 = vpop.f32.mrf.mxu0
        %v6329 = vadd.f32 %v5339, %v6328
        %v6330 = vpop.f32.mrf.mxu0
        %v6331 = vpop.f32.mrf.mxu0
        %6332 = vdwg.mxu0
        %6333 = vmatprep.subr.bf16.mxu0 0
        %6334 = vmatpush1.bf16.msra.mxu0 0
        %6335 = vmatprep.subr.bf16.mxu0 %v5928
        %6336 = vmatpush1.bf16.msra.mxu0 %v5927
        %6337 = vmatprep.subr.bf16.mxu0 %v5907
        %6338 = vmatpush1.bf16.msra.mxu0 %v5906
        %6339 = vmatprep.subr.bf16.mxu0 %v5886
        %6340 = vmatpush1.bf16.msra.mxu0 %v5885
        %6341 = vmatprep.subr.bf16.mxu0 %v5865
        %6342 = vmatpush1.bf16.msra.mxu0 %v5864
        %6343 = vmatprep.subr.bf16.mxu0 %v5844
        %6344 = vmatpush1.bf16.msra.mxu0 %v5843
        %6345 = vmatprep.subr.bf16.mxu0 %v5823
        %6346 = vmatpush1.bf16.msra.mxu0 %v5822
        %6347 = vmatprep.subr.bf16.mxu0 %v5802
        %6348 = vmatpush1.bf16.msra.mxu0 %v5801
        %6349 = vmatprep.subr.bf16.mxu0 0
        %6350 = vmatpush2.bf16.msra.mxu0 0
        %6351 = vmatprep.subr.bf16.mxu0 0
        %6352 = vmatpush2.bf16.msra.mxu0 0
        %6353 = vmatprep.subr.bf16.mxu0 0
        %6354 = vmatpush2.bf16.msra.mxu0 0
        %6355 = vmatprep.subr.bf16.mxu0 0
        %6356 = vmatpush2.bf16.msra.mxu0 0
        %6357 = vmatprep.subr.bf16.mxu0 0
        %6358 = vmatpush2.bf16.msra.mxu0 0
        %6359 = vmatprep.subr.bf16.mxu0 0
        %6360 = vmatpush2.bf16.msra.mxu0 0
        %6361 = vmatprep.subr.bf16.mxu0 0
        %6362 = vmatpush2.bf16.msra.mxu0 0
        %6363 = vmatprep.subr.bf16.mxu0 0
        %6364 = vmatpush2.bf16.msra.mxu0 0
        %6365 = vmatprep.mubr.bf16.mxu0 0
        %6366 = vmatmul.mubr.bf16.gmra.mxu0 %v6085
        %v6367 = vpop.f32.mrf.mxu0
        %v6368 = vadd.f32 %v5339, %v6367
        %v6369 = vpop.f32.mrf.mxu0
        %v6370 = vadd.f32 %v5339, %v6369
        %v6371 = vpop.f32.mrf.mxu0
        %v6372 = vpop.f32.mrf.mxu0
        %6373 = vdwg.mxu0
        %6374 = vmatprep.subr.bf16.mxu0 0
        %6375 = vmatpush1.bf16.msra.mxu0 0
        %6376 = vmatprep.subr.bf16.mxu0 %v5930
        %6377 = vmatpush1.bf16.msra.mxu0 %v5929
        %6378 = vmatprep.subr.bf16.mxu0 %v5909
        %6379 = vmatpush1.bf16.msra.mxu0 %v5908
        %6380 = vmatprep.subr.bf16.mxu0 %v5888
        %6381 = vmatpush1.bf16.msra.mxu0 %v5887
        %6382 = vmatprep.subr.bf16.mxu0 %v5867
        %6383 = vmatpush1.bf16.msra.mxu0 %v5866
        %6384 = vmatprep.subr.bf16.mxu0 %v5846
        %6385 = vmatpush1.bf16.msra.mxu0 %v5845
        %6386 = vmatprep.subr.bf16.mxu0 %v5825
        %6387 = vmatpush1.bf16.msra.mxu0 %v5824
        %6388 = vmatprep.subr.bf16.mxu0 %v5804
        %6389 = vmatpush1.bf16.msra.mxu0 %v5803
        %6390 = vmatprep.subr.bf16.mxu0 0
        %6391 = vmatpush2.bf16.msra.mxu0 0
        %6392 = vmatprep.subr.bf16.mxu0 0
        %6393 = vmatpush2.bf16.msra.mxu0 0
        %6394 = vmatprep.subr.bf16.mxu0 0
        %6395 = vmatpush2.bf16.msra.mxu0 0
        %6396 = vmatprep.subr.bf16.mxu0 0
        %6397 = vmatpush2.bf16.msra.mxu0 0
        %6398 = vmatprep.subr.bf16.mxu0 0
        %6399 = vmatpush2.bf16.msra.mxu0 0
        %6400 = vmatprep.subr.bf16.mxu0 0
        %6401 = vmatpush2.bf16.msra.mxu0 0
        %6402 = vmatprep.subr.bf16.mxu0 0
        %6403 = vmatpush2.bf16.msra.mxu0 0
        %6404 = vmatprep.subr.bf16.mxu0 0
        %6405 = vmatpush2.bf16.msra.mxu0 0
        %6406 = vmatprep.mubr.bf16.mxu0 0
        %6407 = vmatmul.mubr.bf16.gmra.mxu0 %v6085
        %v6408 = vpop.f32.mrf.mxu0
        %v6409 = vadd.f32 %v5339, %v6408
        %v6410 = vpop.f32.mrf.mxu0
        %v6411 = vadd.f32 %v5339, %v6410
        %v6412 = vpop.f32.mrf.mxu0
        %v6413 = vpop.f32.mrf.mxu0
        %6414 = vdwg.mxu0
        %6415 = vmatprep.subr.bf16.mxu0 0
        %6416 = vmatpush1.bf16.msra.mxu0 0
        %6417 = vmatprep.subr.bf16.mxu0 %v5932
        %6418 = vmatpush1.bf16.msra.mxu0 %v5931
        %6419 = vmatprep.subr.bf16.mxu0 %v5911
        %6420 = vmatpush1.bf16.msra.mxu0 %v5910
        %6421 = vmatprep.subr.bf16.mxu0 %v5890
        %6422 = vmatpush1.bf16.msra.mxu0 %v5889
        %6423 = vmatprep.subr.bf16.mxu0 %v5869
        %6424 = vmatpush1.bf16.msra.mxu0 %v5868
        %6425 = vmatprep.subr.bf16.mxu0 %v5848
        %6426 = vmatpush1.bf16.msra.mxu0 %v5847
        %6427 = vmatprep.subr.bf16.mxu0 %v5827
        %6428 = vmatpush1.bf16.msra.mxu0 %v5826
        %6429 = vmatprep.subr.bf16.mxu0 %v5806
        %6430 = vmatpush1.bf16.msra.mxu0 %v5805
        %6431 = vmatprep.subr.bf16.mxu0 0
        %6432 = vmatpush2.bf16.msra.mxu0 0
        %6433 = vmatprep.subr.bf16.mxu0 0
        %6434 = vmatpush2.bf16.msra.mxu0 0
        %6435 = vmatprep.subr.bf16.mxu0 0
        %6436 = vmatpush2.bf16.msra.mxu0 0
        %6437 = vmatprep.subr.bf16.mxu0 0
        %6438 = vmatpush2.bf16.msra.mxu0 0
        %6439 = vmatprep.subr.bf16.mxu0 0
        %6440 = vmatpush2.bf16.msra.mxu0 0
        %6441 = vmatprep.subr.bf16.mxu0 0
        %6442 = vmatpush2.bf16.msra.mxu0 0
        %6443 = vmatprep.subr.bf16.mxu0 0
        %6444 = vmatpush2.bf16.msra.mxu0 0
        %6445 = vmatprep.subr.bf16.mxu0 0
        %6446 = vmatpush2.bf16.msra.mxu0 0
        %6447 = vmatprep.mubr.bf16.mxu0 0
        %6448 = vmatmul.mubr.bf16.gmra.mxu0 %v6085
        %v6449 = vpop.f32.mrf.mxu0
        %v6450 = vadd.f32 %v5339, %v6449
        %v6451 = vpop.f32.mrf.mxu0
        %v6452 = vadd.f32 %v5339, %v6451
        %v6453 = vpop.f32.mrf.mxu0
        %v6454 = vpop.f32.mrf.mxu0
        %6455 = vdwg.mxu0
        %6456 = vmatprep.subr.bf16.mxu0 0
        %6457 = vmatpush1.bf16.msra.mxu0 0
        %6458 = vmatprep.subr.bf16.mxu0 %v5934
        %6459 = vmatpush1.bf16.msra.mxu0 %v5933
        %6460 = vmatprep.subr.bf16.mxu0 %v5913
        %6461 = vmatpush1.bf16.msra.mxu0 %v5912
        %6462 = vmatprep.subr.bf16.mxu0 %v5892
        %6463 = vmatpush1.bf16.msra.mxu0 %v5891
        %6464 = vmatprep.subr.bf16.mxu0 %v5871
        %6465 = vmatpush1.bf16.msra.mxu0 %v5870
        %6466 = vmatprep.subr.bf16.mxu0 %v5850
        %6467 = vmatpush1.bf16.msra.mxu0 %v5849
        %6468 = vmatprep.subr.bf16.mxu0 %v5829
        %6469 = vmatpush1.bf16.msra.mxu0 %v5828
        %6470 = vmatprep.subr.bf16.mxu0 %v5808
        %6471 = vmatpush1.bf16.msra.mxu0 %v5807
        %6472 = vmatprep.subr.bf16.mxu0 0
        %6473 = vmatpush2.bf16.msra.mxu0 0
        %6474 = vmatprep.subr.bf16.mxu0 0
        %6475 = vmatpush2.bf16.msra.mxu0 0
        %6476 = vmatprep.subr.bf16.mxu0 0
        %6477 = vmatpush2.bf16.msra.mxu0 0
        %6478 = vmatprep.subr.bf16.mxu0 0
        %6479 = vmatpush2.bf16.msra.mxu0 0
        %6480 = vmatprep.subr.bf16.mxu0 0
        %6481 = vmatpush2.bf16.msra.mxu0 0
        %6482 = vmatprep.subr.bf16.mxu0 0
        %6483 = vmatpush2.bf16.msra.mxu0 0
        %6484 = vmatprep.subr.bf16.mxu0 0
        %6485 = vmatpush2.bf16.msra.mxu0 0
        %6486 = vmatprep.subr.bf16.mxu0 0
        %6487 = vmatpush2.bf16.msra.mxu0 0
        %6488 = vmatprep.mubr.bf16.mxu0 0
        %6489 = vmatmul.mubr.bf16.gmra.mxu0 %v6085
        %v6490 = vpop.f32.mrf.mxu0
        %v6491 = vadd.f32 %v5339, %v6490
        %v6492 = vpop.f32.mrf.mxu0
        %v6493 = vadd.f32 %v5339, %v6492
        %v6494 = vpop.f32.mrf.mxu0
        %v6495 = vpop.f32.mrf.mxu0
        %6496 = vdwg.mxu0
        %6497 = vmatprep.subr.bf16.mxu0 0
        %6498 = vmatpush1.bf16.msra.mxu0 0
        %6499 = vmatprep.subr.bf16.mxu0 0
        %6500 = vmatpush1.bf16.msra.mxu0 %v5935
        %6501 = vmatprep.subr.bf16.mxu0 0
        %6502 = vmatpush1.bf16.msra.mxu0 %v5914
        %6503 = vmatprep.subr.bf16.mxu0 0
        %6504 = vmatpush1.bf16.msra.mxu0 %v5893
        %6505 = vmatprep.subr.bf16.mxu0 0
        %6506 = vmatpush1.bf16.msra.mxu0 %v5872
        %6507 = vmatprep.subr.bf16.mxu0 0
        %6508 = vmatpush1.bf16.msra.mxu0 %v5851
        %6509 = vmatprep.subr.bf16.mxu0 0
        %6510 = vmatpush1.bf16.msra.mxu0 %v5830
        %6511 = vmatprep.subr.bf16.mxu0 0
        %6512 = vmatpush1.bf16.msra.mxu0 %v5809
        %6513 = vmatprep.subr.bf16.mxu0 0
        %6514 = vmatpush2.bf16.msra.mxu0 0
        %6515 = vmatprep.subr.bf16.mxu0 0
        %6516 = vmatpush2.bf16.msra.mxu0 0
        %6517 = vmatprep.subr.bf16.mxu0 0
        %6518 = vmatpush2.bf16.msra.mxu0 0
        %6519 = vmatprep.subr.bf16.mxu0 0
        %6520 = vmatpush2.bf16.msra.mxu0 0
        %6521 = vmatprep.subr.bf16.mxu0 0
        %6522 = vmatpush2.bf16.msra.mxu0 0
        %6523 = vmatprep.subr.bf16.mxu0 0
        %6524 = vmatpush2.bf16.msra.mxu0 0
        %6525 = vmatprep.subr.bf16.mxu0 0
        %6526 = vmatpush2.bf16.msra.mxu0 0
        %6527 = vmatprep.subr.bf16.mxu0 0
        %6528 = vmatpush2.bf16.msra.mxu0 0
        %6529 = vmatprep.mubr.bf16.mxu0 0
        %6530 = vmatmul.mubr.bf16.gmra.mxu0 %v6085
        %v6531 = vpop.f32.mrf.mxu0
        %v6532 = vadd.f32 %v5339, %v6531
        %v6533 = vpop.f32.mrf.mxu0
        %v6534 = vpop.f32.mrf.mxu0
        %v6535 = vpop.f32.mrf.mxu0
        %6536 = vdwg.mxu0
        %v6537 = vmax.f32 %v6122, 0.0
        %v6538 = vmax.f32 %v6124, 0.0
        %v6539 = vmax.f32 %v6163, 0.0
        %v6540 = vmax.f32 %v6165, 0.0
        %v6541 = vmax.f32 %v6204, 0.0
        %v6542 = vmax.f32 %v6206, 0.0
        %v6543 = vmax.f32 %v6245, 0.0
        %v6544 = vmax.f32 %v6247, 0.0
        %v6545 = vmax.f32 %v6286, 0.0
        %v6546 = vmax.f32 %v6288, 0.0
        %v6547 = vmax.f32 %v6327, 0.0
        %v6548 = vmax.f32 %v6329, 0.0
        %v6549 = vmax.f32 %v6368, 0.0
        %v6550 = vmax.f32 %v6370, 0.0
        %v6551 = vmax.f32 %v6409, 0.0
        %v6552 = vmax.f32 %v6411, 0.0
        %v6553 = vmax.f32 %v6450, 0.0
        %v6554 = vmax.f32 %v6452, 0.0
        %v6555 = vmax.f32 %v6491, 0.0
        %v6556 = vmax.f32 %v6493, 0.0
        %v6557 = vmax.f32 %v6532, 0.0
        %v6558 = vld [vmem:[%s5] sm:$0xff]
        %v6559 = vld [vmem:[%s5 + $0x8] sm:$0xff]
        %v6560 = vld [vmem:[%s5 + $0x10] sm:$0x1f]
        %vm6561 = vcmp.ne.f32.partialorder %v6558, 0.0
        %vm6562 = vcmp.ne.f32.partialorder %v6559, 0.0
        %vm6563 = vcmp.ne.f32.partialorder %v6560, 0.0
        %v6564 = vsel %vm6561, 1, 0
        %v6565 = vsel %vm6562, 1, 0
        %v6566 = vsel %vm6563, 1, 0
        %v6567 = vlaneseq
        %v6568 = vshrl.u32 %v6567, 7
        %v6569 = vsub.s32 0, %v6568
        %v6570 = vrot.slane %v6564, %v6569
        %v6571 = vlaneseq
        %v6572 = vshrl.u32 %v6571, 7
        %v6573 = vsub.s32 1, %v6572
        %v6574 = vrot.slane %v6564, %v6573
        %v6575 = vlaneseq
        %v6576 = vshrl.u32 %v6575, 7
        %v6577 = vsub.s32 2, %v6576
        %v6578 = vrot.slane %v6564, %v6577
        %v6579 = vlaneseq
        %v6580 = vshrl.u32 %v6579, 7
        %v6581 = vsub.s32 3, %v6580
        %v6582 = vrot.slane %v6564, %v6581
        %v6583 = vlaneseq
        %v6584 = vshrl.u32 %v6583, 7
        %v6585 = vsub.s32 4, %v6584
        %v6586 = vrot.slane %v6564, %v6585
        %v6587 = vlaneseq
        %v6588 = vshrl.u32 %v6587, 7
        %v6589 = vsub.s32 5, %v6588
        %v6590 = vrot.slane %v6564, %v6589
        %v6591 = vlaneseq
        %v6592 = vshrl.u32 %v6591, 7
        %v6593 = vsub.s32 6, %v6592
        %v6594 = vrot.slane %v6564, %v6593
        %v6595 = vlaneseq
        %v6596 = vshrl.u32 %v6595, 7
        %v6597 = vsub.s32 7, %v6596
        %v6598 = vrot.slane %v6564, %v6597
        %v6599 = vlaneseq
        %v6600 = vshrl.u32 %v6599, 7
        %v6601 = vsub.s32 0, %v6600
        %v6602 = vrot.slane %v6565, %v6601
        %v6603 = vlaneseq
        %v6604 = vshrl.u32 %v6603, 7
        %v6605 = vsub.s32 1, %v6604
        %v6606 = vrot.slane %v6565, %v6605
        %v6607 = vlaneseq
        %v6608 = vshrl.u32 %v6607, 7
        %v6609 = vsub.s32 2, %v6608
        %v6610 = vrot.slane %v6565, %v6609
        %v6611 = vlaneseq
        %v6612 = vshrl.u32 %v6611, 7
        %v6613 = vsub.s32 3, %v6612
        %v6614 = vrot.slane %v6565, %v6613
        %v6615 = vlaneseq
        %v6616 = vshrl.u32 %v6615, 7
        %v6617 = vsub.s32 4, %v6616
        %v6618 = vrot.slane %v6565, %v6617
        %v6619 = vlaneseq
        %v6620 = vshrl.u32 %v6619, 7
        %v6621 = vsub.s32 5, %v6620
        %v6622 = vrot.slane %v6565, %v6621
        %v6623 = vlaneseq
        %v6624 = vshrl.u32 %v6623, 7
        %v6625 = vsub.s32 6, %v6624
        %v6626 = vrot.slane %v6565, %v6625
        %v6627 = vlaneseq
        %v6628 = vshrl.u32 %v6627, 7
        %v6629 = vsub.s32 7, %v6628
        %v6630 = vrot.slane %v6565, %v6629
        %v6631 = vlaneseq
        %v6632 = vshrl.u32 %v6631, 7
        %v6633 = vsub.s32 0, %v6632
        %v6634 = vrot.slane %v6566, %v6633
        %v6635 = vlaneseq
        %v6636 = vshrl.u32 %v6635, 7
        %v6637 = vsub.s32 1, %v6636
        %v6638 = vrot.slane %v6566, %v6637
        %v6639 = vlaneseq
        %v6640 = vshrl.u32 %v6639, 7
        %v6641 = vsub.s32 2, %v6640
        %v6642 = vrot.slane %v6566, %v6641
        %v6643 = vlaneseq
        %v6644 = vshrl.u32 %v6643, 7
        %v6645 = vsub.s32 3, %v6644
        %v6646 = vrot.slane %v6566, %v6645
        %v6647 = vlaneseq
        %v6648 = vshrl.u32 %v6647, 7
        %v6649 = vsub.s32 4, %v6648
        %v6650 = vrot.slane %v6566, %v6649
        %vm6651 = vcmp.eq.s32.totalorder %v6570, 1
        %vm6652 = vcmp.eq.s32.totalorder %v6574, 1
        %vm6653 = vcmp.eq.s32.totalorder %v6578, 1
        %vm6654 = vcmp.eq.s32.totalorder %v6582, 1
        %vm6655 = vcmp.eq.s32.totalorder %v6586, 1
        %vm6656 = vcmp.eq.s32.totalorder %v6590, 1
        %vm6657 = vcmp.eq.s32.totalorder %v6594, 1
        %vm6658 = vcmp.eq.s32.totalorder %v6598, 1
        %vm6659 = vcmp.eq.s32.totalorder %v6602, 1
        %vm6660 = vcmp.eq.s32.totalorder %v6606, 1
        %vm6661 = vcmp.eq.s32.totalorder %v6610, 1
        %vm6662 = vcmp.eq.s32.totalorder %v6614, 1
        %vm6663 = vcmp.eq.s32.totalorder %v6618, 1
        %vm6664 = vcmp.eq.s32.totalorder %v6622, 1
        %vm6665 = vcmp.eq.s32.totalorder %v6626, 1
        %vm6666 = vcmp.eq.s32.totalorder %v6630, 1
        %vm6667 = vcmp.eq.s32.totalorder %v6634, 1
        %vm6668 = vcmp.eq.s32.totalorder %v6638, 1
        %vm6669 = vcmp.eq.s32.totalorder %v6642, 1
        %vm6670 = vcmp.eq.s32.totalorder %v6646, 1
        %vm6671 = vcmp.eq.s32.totalorder %v6650, 1
        %v6672 = vsel %vm6651, %v6537, 0.0
        %v6673 = vsel %vm6652, %v6538, 0.0
        %v6674 = vsel %vm6653, %v6539, 0.0
        %v6675 = vsel %vm6654, %v6540, 0.0
        %v6676 = vsel %vm6655, %v6541, 0.0
        %v6677 = vsel %vm6656, %v6542, 0.0
        %v6678 = vsel %vm6657, %v6543, 0.0
        %v6679 = vsel %vm6658, %v6544, 0.0
        %v6680 = vsel %vm6659, %v6545, 0.0
        %v6681 = vsel %vm6660, %v6546, 0.0
        %v6682 = vsel %vm6661, %v6547, 0.0
        %v6683 = vsel %vm6662, %v6548, 0.0
        %v6684 = vsel %vm6663, %v6549, 0.0
        %v6685 = vsel %vm6664, %v6550, 0.0
        %v6686 = vsel %vm6665, %v6551, 0.0
        %v6687 = vsel %vm6666, %v6552, 0.0
        %v6688 = vsel %vm6667, %v6553, 0.0
        %v6689 = vsel %vm6668, %v6554, 0.0
        %v6690 = vsel %vm6669, %v6555, 0.0
        %v6691 = vsel %vm6670, %v6556, 0.0
        %v6692 = vsel %vm6671, %v6557, 0.0
        %v6693 = vpack.c.bf16 %v6672, %v6672
        %v6694 = vpack.c.bf16 %v6673, %v6673
        %v6695 = vpack.c.bf16 %v6674, %v6674
        %v6696 = vpack.c.bf16 %v6675, %v6675
        %v6697 = vpack.c.bf16 %v6676, %v6676
        %v6698 = vpack.c.bf16 %v6677, %v6677
        %v6699 = vpack.c.bf16 %v6678, %v6678
        %v6700 = vpack.c.bf16 %v6679, %v6679
        %v6701 = vpack.c.bf16 %v6680, %v6680
        %v6702 = vpack.c.bf16 %v6681, %v6681
        %v6703 = vpack.c.bf16 %v6682, %v6682
        %v6704 = vpack.c.bf16 %v6683, %v6683
        %v6705 = vpack.c.bf16 %v6684, %v6684
        %v6706 = vpack.c.bf16 %v6685, %v6685
        %v6707 = vpack.c.bf16 %v6686, %v6686
        %v6708 = vpack.c.bf16 %v6687, %v6687
        %v6709 = vpack.c.bf16 %v6688, %v6688
        %v6710 = vpack.c.bf16 %v6689, %v6689
        %v6711 = vpack.c.bf16 %v6690, %v6690
        %v6712 = vpack.c.bf16 %v6691, %v6691
        %v6713 = vpack.c.bf16 %v6692, %v6692
        %v6735 = vunpack.c.l.b16 %v6693
        %v6736 = vunpack.c.l.b16 %v6694
        %v6737 = vunpack.c.l.b16 %v6695
        %v6738 = vunpack.c.l.b16 %v6696
        %v6739 = vunpack.c.l.b16 %v6697
        %v6740 = vunpack.c.l.b16 %v6698
        %v6741 = vunpack.c.l.b16 %v6699
        %v6742 = vunpack.c.l.b16 %v6700
        %v6743 = vunpack.c.l.b16 %v6701
        %v6744 = vunpack.c.l.b16 %v6702
        %v6745 = vunpack.c.l.b16 %v6703
        %v6746 = vunpack.c.l.b16 %v6704
        %v6747 = vunpack.c.l.b16 %v6705
        %v6748 = vunpack.c.l.b16 %v6706
        %v6749 = vunpack.c.l.b16 %v6707
        %v6750 = vunpack.c.l.b16 %v6708
        %v6751 = vunpack.c.l.b16 %v6709
        %v6752 = vunpack.c.l.b16 %v6710
        %v6753 = vunpack.c.l.b16 %v6711
        %v6754 = vunpack.c.l.b16 %v6712
        %v6755 = vunpack.c.l.b16 %v6713
        %v6756 = vpack.c.b16 %v6736, %v6735
        %v6757 = vpack.c.b16 %v6738, %v6737
        %v6758 = vpack.c.b16 %v6740, %v6739
        %v6759 = vpack.c.b16 %v6742, %v6741
        %v6760 = vpack.c.b16 %v6744, %v6743
        %v6761 = vpack.c.b16 %v6746, %v6745
        %v6762 = vpack.c.b16 %v6748, %v6747
        %v6763 = vpack.c.b16 %v6750, %v6749
        %v6764 = vpack.c.b16 %v6752, %v6751
        %v6765 = vpack.c.b16 %v6754, %v6753
        %v6766 = vpack.c.b16 %v6755, %v6755
        %6767 = vrot.lane.b32.xlu0 %v6756, 87
        %v6768 = vpop.permute.xlu0 %6767
        %6769 = vrot.lane.b32.xlu0 %v6757, 87
        %v6770 = vpop.permute.xlu0 %6769
        %6771 = vrot.lane.b32.xlu0 %v6758, 87
        %v6772 = vpop.permute.xlu0 %6771
        %6773 = vrot.lane.b32.xlu0 %v6759, 87
        %v6774 = vpop.permute.xlu0 %6773
        %6775 = vrot.lane.b32.xlu0 %v6760, 87
        %v6776 = vpop.permute.xlu0 %6775
        %6777 = vrot.lane.b32.xlu0 %v6761, 87
        %v6778 = vpop.permute.xlu0 %6777
        %6779 = vrot.lane.b32.xlu0 %v6762, 87
        %v6780 = vpop.permute.xlu0 %6779
        %6781 = vrot.lane.b32.xlu0 %v6763, 87
        %v6782 = vpop.permute.xlu0 %6781
        %6783 = vrot.lane.b32.xlu0 %v6764, 87
        %v6784 = vpop.permute.xlu0 %6783
        %6785 = vrot.lane.b32.xlu0 %v6765, 87
        %v6786 = vpop.permute.xlu0 %6785
        %6787 = vrot.lane.b32.xlu0 %v6766, 87
        %v6788 = vpop.permute.xlu0 %6787
        %v6789 = vrot.slane %v6768, 4
        %v6790 = vrot.slane %v6770, 4
        %v6791 = vrot.slane %v6772, 4
        %v6792 = vrot.slane %v6774, 4
        %v6793 = vrot.slane %v6776, 4
        %v6794 = vrot.slane %v6778, 4
        %v6795 = vrot.slane %v6780, 4
        %v6796 = vrot.slane %v6782, 4
        %v6797 = vrot.slane %v6784, 4
        %v6798 = vrot.slane %v6786, 4
        %v6799 = vrot.slane %v6788, 4
        %vm6800 = vcmask 711680
        %v6801 = vsel %vm6800, %v6789, %v6768
        %v6802 = vsel %vm848, %v6789, %v6790
        %v6803 = vsel %vm6800, %v6802, %v6770
        %v6804 = vsel %vm848, %v6790, %v6791
        %v6805 = vsel %vm6800, %v6804, %v6772
        %v6806 = vsel %vm848, %v6791, %v6792
        %v6807 = vsel %vm6800, %v6806, %v6774
        %v6808 = vsel %vm848, %v6792, %v6793
        %v6809 = vsel %vm6800, %v6808, %v6776
        %v6810 = vsel %vm848, %v6793, %v6794
        %v6811 = vsel %vm6800, %v6810, %v6778
        %v6812 = vsel %vm848, %v6794, %v6795
        %v6813 = vsel %vm6800, %v6812, %v6780
        %v6814 = vsel %vm848, %v6795, %v6796
        %v6815 = vsel %vm6800, %v6814, %v6782
        %v6816 = vsel %vm848, %v6796, %v6797
        %v6817 = vsel %vm6800, %v6816, %v6784
        %v6818 = vsel %vm848, %v6797, %v6798
        %v6819 = vsel %vm6800, %v6818, %v6786
        %v6820 = vsel %vm848, %v6798, %v6799
        %v6821 = vsel %vm6800, %v6820, %v6788
        %vm6833 = vcmask 1044152
        %vm6834 = vcmask 1047556
        %vm6835 = vmor %vm6834, %vm6833
        %6836 = vst.msk [vmem:[#allocation3 + $0x8] sm:$0xff] %vm6835, %v6801
        %6837 = vst [vmem:[#allocation3 + $0x10] sm:$0xff] %v6803
        %6838 = vst [vmem:[#allocation3 + $0x18] sm:$0xff] %v6805
        %6839 = vst [vmem:[#allocation3 + $0x20] sm:$0xff] %v6807
        %6840 = vst [vmem:[#allocation3 + $0x28] sm:$0xff] %v6809
        %6841 = vst [vmem:[#allocation3 + $0x30] sm:$0xff] %v6811
        %6842 = vst [vmem:[#allocation3 + $0x38] sm:$0xff] %v6813
        %6843 = vst [vmem:[#allocation3 + $0x40] sm:$0xff] %v6815
        %6844 = vst [vmem:[#allocation3 + $0x48] sm:$0xff] %v6817
        %6845 = vst [vmem:[#allocation3 + $0x50] sm:$0xff] %v6819
        %vm6846 = vcmask 1043456
        %vm6847 = vcmask 711684
        %vm6848 = vmor %vm6847, %vm6846
        %6849 = vst.msk [vmem:[#allocation3 + $0x58] sm:$0xff] %vm6848, %v6821
        %v6850 = vld [vmem:[#allocation3] sm:$0xff]
        %v6851 = vld [vmem:[#allocation3 + $0x8] sm:$0xff]
        %v6852 = vld [vmem:[#allocation3 + $0x10] sm:$0xff]
        %v6853 = vld [vmem:[#allocation3 + $0x18] sm:$0xff]
        %v6854 = vld [vmem:[#allocation3 + $0x20] sm:$0xff]
        %v6855 = vld [vmem:[#allocation3 + $0x28] sm:$0xff]
        %v6856 = vld [vmem:[#allocation3 + $0x30] sm:$0xff]
        %v6857 = vld [vmem:[#allocation3 + $0x38] sm:$0xff]
        %v6858 = vld [vmem:[#allocation3 + $0x40] sm:$0xff]
        %v6859 = vld [vmem:[#allocation3 + $0x48] sm:$0xff]
        %v6860 = vld [vmem:[#allocation3 + $0x50] sm:$0xf]
        %6861 = vst [vmem:[#allocation2] sm:$0xff] %v6850
        %6862 = vst [vmem:[#allocation2 + $0x8] sm:$0xff] %v6851
        %6863 = vst [vmem:[#allocation2 + $0x10] sm:$0xff] %v6852
        %6864 = vst [vmem:[#allocation2 + $0x18] sm:$0xff] %v6853
        %6865 = vst [vmem:[#allocation2 + $0x20] sm:$0xff] %v6854
        %6866 = vst [vmem:[#allocation2 + $0x28] sm:$0xff] %v6855
        %6867 = vst [vmem:[#allocation2 + $0x30] sm:$0xff] %v6856
        %6868 = vst [vmem:[#allocation2 + $0x38] sm:$0xff] %v6857
        %6869 = vst [vmem:[#allocation2 + $0x40] sm:$0xff] %v6858
        %6870 = vst [vmem:[#allocation2 + $0x48] sm:$0xff] %v6859
        %6871 = vst [vmem:[#allocation2 + $0x50] sm:$0xf] %v6860
        %v6872 = vld [vmem:[#allocation3] sm:$0xff]
        %v6873 = vld [vmem:[#allocation3 + $0x8] sm:$0xff]
        %v6874 = vld [vmem:[#allocation3 + $0x10] sm:$0xff]
        %v6875 = vld [vmem:[#allocation3 + $0x18] sm:$0xff]
        %v6876 = vld [vmem:[#allocation3 + $0x20] sm:$0xff]
        %v6877 = vld [vmem:[#allocation3 + $0x28] sm:$0xff]
        %v6878 = vld [vmem:[#allocation3 + $0x30] sm:$0xff]
        %v6879 = vld [vmem:[#allocation3 + $0x38] sm:$0xff]
        %v6880 = vld [vmem:[#allocation3 + $0x40] sm:$0xff]
        %v6881 = vld [vmem:[#allocation3 + $0x48] sm:$0xff]
        %v6882 = vld [vmem:[#allocation3 + $0x50] sm:$0xff]
        %6894 = vrot.lane.b32.xlu0 %v6872, 127
        %v6895 = vpop.permute.xlu0 %6894
        %6896 = vrot.lane.b32.xlu0 %v6873, 127
        %v6897 = vpop.permute.xlu0 %6896
        %6898 = vrot.lane.b32.xlu0 %v6874, 127
        %v6899 = vpop.permute.xlu0 %6898
        %6900 = vrot.lane.b32.xlu0 %v6875, 127
        %v6901 = vpop.permute.xlu0 %6900
        %6902 = vrot.lane.b32.xlu0 %v6876, 127
        %v6903 = vpop.permute.xlu0 %6902
        %6904 = vrot.lane.b32.xlu0 %v6877, 127
        %v6905 = vpop.permute.xlu0 %6904
        %6906 = vrot.lane.b32.xlu0 %v6878, 127
        %v6907 = vpop.permute.xlu0 %6906
        %6908 = vrot.lane.b32.xlu0 %v6879, 127
        %v6909 = vpop.permute.xlu0 %6908
        %6910 = vrot.lane.b32.xlu0 %v6880, 127
        %v6911 = vpop.permute.xlu0 %6910
        %6912 = vrot.lane.b32.xlu0 %v6881, 127
        %v6913 = vpop.permute.xlu0 %6912
        %6914 = vrot.lane.b32.xlu0 %v6882, 127
        %v6915 = vpop.permute.xlu0 %6914
        %v6916 = vrot.slane %v6895, 4
        %v6917 = vrot.slane %v6897, 4
        %v6918 = vrot.slane %v6899, 4
        %v6919 = vrot.slane %v6901, 4
        %v6920 = vrot.slane %v6903, 4
        %v6921 = vrot.slane %v6905, 4
        %v6922 = vrot.slane %v6907, 4
        %v6923 = vrot.slane %v6909, 4
        %v6924 = vrot.slane %v6911, 4
        %v6925 = vrot.slane %v6913, 4
        %v6926 = vrot.slane %v6915, 4
        %v6927 = vsel %vm848, %v6916, %v6917
        %v6928 = vsel %vm850, %v6895, %v6927
        %v6929 = vsel %vm848, %v6917, %v6918
        %v6930 = vsel %vm850, %v6897, %v6929
        %v6931 = vsel %vm848, %v6918, %v6919
        %v6932 = vsel %vm850, %v6899, %v6931
        %v6933 = vsel %vm848, %v6919, %v6920
        %v6934 = vsel %vm850, %v6901, %v6933
        %v6935 = vsel %vm848, %v6920, %v6921
        %v6936 = vsel %vm850, %v6903, %v6935
        %v6937 = vsel %vm848, %v6921, %v6922
        %v6938 = vsel %vm850, %v6905, %v6937
        %v6939 = vsel %vm848, %v6922, %v6923
        %v6940 = vsel %vm850, %v6907, %v6939
        %v6941 = vsel %vm848, %v6923, %v6924
        %v6942 = vsel %vm850, %v6909, %v6941
        %v6943 = vsel %vm848, %v6924, %v6925
        %v6944 = vsel %vm850, %v6911, %v6943
        %v6945 = vsel %vm848, %v6925, %v6926
        %v6946 = vsel %vm850, %v6913, %v6945
        %v6947 = vsel %vm850, %v6915, %v6926
        %6959 = vst [vmem:[#allocation2 + $0x54] sm:$0xff] %v6928
        %6960 = vst [vmem:[#allocation2 + $0x5c] sm:$0xff] %v6930
        %6961 = vst [vmem:[#allocation2 + $0x64] sm:$0xff] %v6932
        %6962 = vst [vmem:[#allocation2 + $0x6c] sm:$0xff] %v6934
        %6963 = vst [vmem:[#allocation2 + $0x74] sm:$0xff] %v6936
        %6964 = vst [vmem:[#allocation2 + $0x7c] sm:$0xff] %v6938
        %6965 = vst [vmem:[#allocation2 + $0x84] sm:$0xff] %v6940
        %6966 = vst [vmem:[#allocation2 + $0x8c] sm:$0xff] %v6942
        %6967 = vst [vmem:[#allocation2 + $0x94] sm:$0xff] %v6944
        %6968 = vst [vmem:[#allocation2 + $0x9c] sm:$0xff] %v6946
        %6969 = vst [vmem:[#allocation2 + $0xa4] sm:$0xf] %v6947
        %v6970 = vld [vmem:[#allocation3] sm:$0xff]
        %v6971 = vld [vmem:[#allocation3 + $0x8] sm:$0xff]
        %v6972 = vld [vmem:[#allocation3 + $0x10] sm:$0xff]
        %v6973 = vld [vmem:[#allocation3 + $0x18] sm:$0xff]
        %v6974 = vld [vmem:[#allocation3 + $0x20] sm:$0xff]
        %v6975 = vld [vmem:[#allocation3 + $0x28] sm:$0xff]
        %v6976 = vld [vmem:[#allocation3 + $0x30] sm:$0xff]
        %v6977 = vld [vmem:[#allocation3 + $0x38] sm:$0xff]
        %v6978 = vld [vmem:[#allocation3 + $0x40] sm:$0xff]
        %v6979 = vld [vmem:[#allocation3 + $0x48] sm:$0xff]
        %v6980 = vld [vmem:[#allocation3 + $0x50] sm:$0xff]
        %6992 = vrot.lane.b32.xlu0 %v6970, 126
        %v6993 = vpop.permute.xlu0 %6992
        %6994 = vrot.lane.b32.xlu0 %v6971, 126
        %v6995 = vpop.permute.xlu0 %6994
        %6996 = vrot.lane.b32.xlu0 %v6972, 126
        %v6997 = vpop.permute.xlu0 %6996
        %6998 = vrot.lane.b32.xlu0 %v6973, 126
        %v6999 = vpop.permute.xlu0 %6998
        %7000 = vrot.lane.b32.xlu0 %v6974, 126
        %v7001 = vpop.permute.xlu0 %7000
        %7002 = vrot.lane.b32.xlu0 %v6975, 126
        %v7003 = vpop.permute.xlu0 %7002
        %7004 = vrot.lane.b32.xlu0 %v6976, 126
        %v7005 = vpop.permute.xlu0 %7004
        %7006 = vrot.lane.b32.xlu0 %v6977, 126
        %v7007 = vpop.permute.xlu0 %7006
        %7008 = vrot.lane.b32.xlu0 %v6978, 126
        %v7009 = vpop.permute.xlu0 %7008
        %7010 = vrot.lane.b32.xlu0 %v6979, 126
        %v7011 = vpop.permute.xlu0 %7010
        %7012 = vrot.lane.b32.xlu0 %v6980, 126
        %v7013 = vpop.permute.xlu0 %7012
        %v7014 = vrot.slane %v6993, 4
        %v7015 = vrot.slane %v6995, 4
        %v7016 = vrot.slane %v6997, 4
        %v7017 = vrot.slane %v6999, 4
        %v7018 = vrot.slane %v7001, 4
        %v7019 = vrot.slane %v7003, 4
        %v7020 = vrot.slane %v7005, 4
        %v7021 = vrot.slane %v7007, 4
        %v7022 = vrot.slane %v7009, 4
        %v7023 = vrot.slane %v7011, 4
        %v7024 = vrot.slane %v7013, 4
        %v7025 = vsel %vm848, %v7014, %v7015
        %v7026 = vsel %vm1021, %v6993, %v7025
        %v7027 = vsel %vm848, %v7015, %v7016
        %v7028 = vsel %vm1021, %v6995, %v7027
        %v7029 = vsel %vm848, %v7016, %v7017
        %v7030 = vsel %vm1021, %v6997, %v7029
        %v7031 = vsel %vm848, %v7017, %v7018
        %v7032 = vsel %vm1021, %v6999, %v7031
        %v7033 = vsel %vm848, %v7018, %v7019
        %v7034 = vsel %vm1021, %v7001, %v7033
        %v7035 = vsel %vm848, %v7019, %v7020
        %v7036 = vsel %vm1021, %v7003, %v7035
        %v7037 = vsel %vm848, %v7020, %v7021
        %v7038 = vsel %vm1021, %v7005, %v7037
        %v7039 = vsel %vm848, %v7021, %v7022
        %v7040 = vsel %vm1021, %v7007, %v7039
        %v7041 = vsel %vm848, %v7022, %v7023
        %v7042 = vsel %vm1021, %v7009, %v7041
        %v7043 = vsel %vm848, %v7023, %v7024
        %v7044 = vsel %vm1021, %v7011, %v7043
        %v7045 = vsel %vm1021, %v7013, %v7024
        %7057 = vst [vmem:[#allocation2 + $0xa8] sm:$0xff] %v7026
        %7058 = vst [vmem:[#allocation2 + $0xb0] sm:$0xff] %v7028
        %7059 = vst [vmem:[#allocation2 + $0xb8] sm:$0xff] %v7030
        %7060 = vst [vmem:[#allocation2 + $0xc0] sm:$0xff] %v7032
        %7061 = vst [vmem:[#allocation2 + $0xc8] sm:$0xff] %v7034
        %7062 = vst [vmem:[#allocation2 + $0xd0] sm:$0xff] %v7036
        %7063 = vst [vmem:[#allocation2 + $0xd8] sm:$0xff] %v7038
        %7064 = vst [vmem:[#allocation2 + $0xe0] sm:$0xff] %v7040
        %7065 = vst [vmem:[#allocation2 + $0xe8] sm:$0xff] %v7042
        %7066 = vst [vmem:[#allocation2 + $0xf0] sm:$0xff] %v7044
        %7067 = vst [vmem:[#allocation2 + $0xf8] sm:$0xf] %v7045
        %v7068 = vld [vmem:[#allocation3] sm:$0xff]
        %v7069 = vld [vmem:[#allocation3 + $0x8] sm:$0xff]
        %v7070 = vld [vmem:[#allocation3 + $0x10] sm:$0xff]
        %v7071 = vld [vmem:[#allocation3 + $0x18] sm:$0xff]
        %v7072 = vld [vmem:[#allocation3 + $0x20] sm:$0xff]
        %v7073 = vld [vmem:[#allocation3 + $0x28] sm:$0xff]
        %v7074 = vld [vmem:[#allocation3 + $0x30] sm:$0xff]
        %v7075 = vld [vmem:[#allocation3 + $0x38] sm:$0xff]
        %v7076 = vld [vmem:[#allocation3 + $0x40] sm:$0xff]
        %v7077 = vld [vmem:[#allocation3 + $0x48] sm:$0xff]
        %v7078 = vld [vmem:[#allocation3 + $0x50] sm:$0xff]
        %7090 = vrot.lane.b32.xlu0 %v7068, 110
        %v7091 = vpop.permute.xlu0 %7090
        %7092 = vrot.lane.b32.xlu0 %v7069, 110
        %v7093 = vpop.permute.xlu0 %7092
        %7094 = vrot.lane.b32.xlu0 %v7070, 110
        %v7095 = vpop.permute.xlu0 %7094
        %7096 = vrot.lane.b32.xlu0 %v7071, 110
        %v7097 = vpop.permute.xlu0 %7096
        %7098 = vrot.lane.b32.xlu0 %v7072, 110
        %v7099 = vpop.permute.xlu0 %7098
        %7100 = vrot.lane.b32.xlu0 %v7073, 110
        %v7101 = vpop.permute.xlu0 %7100
        %7102 = vrot.lane.b32.xlu0 %v7074, 110
        %v7103 = vpop.permute.xlu0 %7102
        %7104 = vrot.lane.b32.xlu0 %v7075, 110
        %v7105 = vpop.permute.xlu0 %7104
        %7106 = vrot.lane.b32.xlu0 %v7076, 110
        %v7107 = vpop.permute.xlu0 %7106
        %7108 = vrot.lane.b32.xlu0 %v7077, 110
        %v7109 = vpop.permute.xlu0 %7108
        %7110 = vrot.lane.b32.xlu0 %v7078, 110
        %v7111 = vpop.permute.xlu0 %7110
        %v7112 = vrot.slane %v7091, 4
        %v7113 = vrot.slane %v7093, 4
        %v7114 = vrot.slane %v7095, 4
        %v7115 = vrot.slane %v7097, 4
        %v7116 = vrot.slane %v7099, 4
        %v7117 = vrot.slane %v7101, 4
        %v7118 = vrot.slane %v7103, 4
        %v7119 = vrot.slane %v7105, 4
        %v7120 = vrot.slane %v7107, 4
        %v7121 = vrot.slane %v7109, 4
        %v7122 = vrot.slane %v7111, 4
        %v7123 = vsel %vm848, %v7112, %v7113
        %v7124 = vsel %vm1193, %v7091, %v7123
        %v7125 = vsel %vm848, %v7113, %v7114
        %v7126 = vsel %vm1193, %v7093, %v7125
        %v7127 = vsel %vm848, %v7114, %v7115
        %v7128 = vsel %vm1193, %v7095, %v7127
        %v7129 = vsel %vm848, %v7115, %v7116
        %v7130 = vsel %vm1193, %v7097, %v7129
        %v7131 = vsel %vm848, %v7116, %v7117
        %v7132 = vsel %vm1193, %v7099, %v7131
        %v7133 = vsel %vm848, %v7117, %v7118
        %v7134 = vsel %vm1193, %v7101, %v7133
        %v7135 = vsel %vm848, %v7118, %v7119
        %v7136 = vsel %vm1193, %v7103, %v7135
        %v7137 = vsel %vm848, %v7119, %v7120
        %v7138 = vsel %vm1193, %v7105, %v7137
        %v7139 = vsel %vm848, %v7120, %v7121
        %v7140 = vsel %vm1193, %v7107, %v7139
        %v7141 = vsel %vm848, %v7121, %v7122
        %v7142 = vsel %vm1193, %v7109, %v7141
        %v7143 = vsel %vm1193, %v7111, %v7122
        %7155 = vst [vmem:[#allocation2 + $0xfc] sm:$0xff] %v7124
        %7156 = vst [vmem:[#allocation2 + $0x104] sm:$0xff] %v7126
        %7157 = vst [vmem:[#allocation2 + $0x10c] sm:$0xff] %v7128
        %7158 = vst [vmem:[#allocation2 + $0x114] sm:$0xff] %v7130
        %7159 = vst [vmem:[#allocation2 + $0x11c] sm:$0xff] %v7132
        %7160 = vst [vmem:[#allocation2 + $0x124] sm:$0xff] %v7134
        %7161 = vst [vmem:[#allocation2 + $0x12c] sm:$0xff] %v7136
        %7162 = vst [vmem:[#allocation2 + $0x134] sm:$0xff] %v7138
        %7163 = vst [vmem:[#allocation2 + $0x13c] sm:$0xff] %v7140
        %7164 = vst [vmem:[#allocation2 + $0x144] sm:$0xff] %v7142
        %7165 = vst [vmem:[#allocation2 + $0x14c] sm:$0xf] %v7143
        %v7166 = vld [vmem:[#allocation3] sm:$0xff]
        %v7167 = vld [vmem:[#allocation3 + $0x8] sm:$0xff]
        %v7168 = vld [vmem:[#allocation3 + $0x10] sm:$0xff]
        %v7169 = vld [vmem:[#allocation3 + $0x18] sm:$0xff]
        %v7170 = vld [vmem:[#allocation3 + $0x20] sm:$0xff]
        %v7171 = vld [vmem:[#allocation3 + $0x28] sm:$0xff]
        %v7172 = vld [vmem:[#allocation3 + $0x30] sm:$0xff]
        %v7173 = vld [vmem:[#allocation3 + $0x38] sm:$0xff]
        %v7174 = vld [vmem:[#allocation3 + $0x40] sm:$0xff]
        %v7175 = vld [vmem:[#allocation3 + $0x48] sm:$0xff]
        %v7176 = vld [vmem:[#allocation3 + $0x50] sm:$0xff]
        %7188 = vrot.lane.b32.xlu0 %v7166, 109
        %v7189 = vpop.permute.xlu0 %7188
        %7190 = vrot.lane.b32.xlu0 %v7167, 109
        %v7191 = vpop.permute.xlu0 %7190
        %7192 = vrot.lane.b32.xlu0 %v7168, 109
        %v7193 = vpop.permute.xlu0 %7192
        %7194 = vrot.lane.b32.xlu0 %v7169, 109
        %v7195 = vpop.permute.xlu0 %7194
        %7196 = vrot.lane.b32.xlu0 %v7170, 109
        %v7197 = vpop.permute.xlu0 %7196
        %7198 = vrot.lane.b32.xlu0 %v7171, 109
        %v7199 = vpop.permute.xlu0 %7198
        %7200 = vrot.lane.b32.xlu0 %v7172, 109
        %v7201 = vpop.permute.xlu0 %7200
        %7202 = vrot.lane.b32.xlu0 %v7173, 109
        %v7203 = vpop.permute.xlu0 %7202
        %7204 = vrot.lane.b32.xlu0 %v7174, 109
        %v7205 = vpop.permute.xlu0 %7204
        %7206 = vrot.lane.b32.xlu0 %v7175, 109
        %v7207 = vpop.permute.xlu0 %7206
        %7208 = vrot.lane.b32.xlu0 %v7176, 109
        %v7209 = vpop.permute.xlu0 %7208
        %v7210 = vrot.slane %v7189, 4
        %v7211 = vrot.slane %v7191, 4
        %v7212 = vrot.slane %v7193, 4
        %v7213 = vrot.slane %v7195, 4
        %v7214 = vrot.slane %v7197, 4
        %v7215 = vrot.slane %v7199, 4
        %v7216 = vrot.slane %v7201, 4
        %v7217 = vrot.slane %v7203, 4
        %v7218 = vrot.slane %v7205, 4
        %v7219 = vrot.slane %v7207, 4
        %v7220 = vrot.slane %v7209, 4
        %v7221 = vsel %vm848, %v7210, %v7211
        %v7222 = vsel %vm1364, %v7189, %v7221
        %v7223 = vsel %vm848, %v7211, %v7212
        %v7224 = vsel %vm1364, %v7191, %v7223
        %v7225 = vsel %vm848, %v7212, %v7213
        %v7226 = vsel %vm1364, %v7193, %v7225
        %v7227 = vsel %vm848, %v7213, %v7214
        %v7228 = vsel %vm1364, %v7195, %v7227
        %v7229 = vsel %vm848, %v7214, %v7215
        %v7230 = vsel %vm1364, %v7197, %v7229
        %v7231 = vsel %vm848, %v7215, %v7216
        %v7232 = vsel %vm1364, %v7199, %v7231
        %v7233 = vsel %vm848, %v7216, %v7217
        %v7234 = vsel %vm1364, %v7201, %v7233
        %v7235 = vsel %vm848, %v7217, %v7218
        %v7236 = vsel %vm1364, %v7203, %v7235
        %v7237 = vsel %vm848, %v7218, %v7219
        %v7238 = vsel %vm1364, %v7205, %v7237
        %v7239 = vsel %vm848, %v7219, %v7220
        %v7240 = vsel %vm1364, %v7207, %v7239
        %v7241 = vsel %vm1364, %v7209, %v7220
        %7253 = vst [vmem:[#allocation2 + $0x150] sm:$0xff] %v7222
        %7254 = vst [vmem:[#allocation2 + $0x158] sm:$0xff] %v7224
        %7255 = vst [vmem:[#allocation2 + $0x160] sm:$0xff] %v7226
        %7256 = vst [vmem:[#allocation2 + $0x168] sm:$0xff] %v7228
        %7257 = vst [vmem:[#allocation2 + $0x170] sm:$0xff] %v7230
        %7258 = vst [vmem:[#allocation2 + $0x178] sm:$0xff] %v7232
        %7259 = vst [vmem:[#allocation2 + $0x180] sm:$0xff] %v7234
        %7260 = vst [vmem:[#allocation2 + $0x188] sm:$0xff] %v7236
        %7261 = vst [vmem:[#allocation2 + $0x190] sm:$0xff] %v7238
        %7262 = vst [vmem:[#allocation2 + $0x198] sm:$0xff] %v7240
        %7263 = vst [vmem:[#allocation2 + $0x1a0] sm:$0xf] %v7241
        %v7264 = vld [vmem:[#allocation3] sm:$0xff]
        %v7265 = vld [vmem:[#allocation3 + $0x8] sm:$0xff]
        %v7266 = vld [vmem:[#allocation3 + $0x10] sm:$0xff]
        %v7267 = vld [vmem:[#allocation3 + $0x18] sm:$0xff]
        %v7268 = vld [vmem:[#allocation3 + $0x20] sm:$0xff]
        %v7269 = vld [vmem:[#allocation3 + $0x28] sm:$0xff]
        %v7270 = vld [vmem:[#allocation3 + $0x30] sm:$0xff]
        %v7271 = vld [vmem:[#allocation3 + $0x38] sm:$0xff]
        %v7272 = vld [vmem:[#allocation3 + $0x40] sm:$0xff]
        %v7273 = vld [vmem:[#allocation3 + $0x48] sm:$0xff]
        %v7274 = vld [vmem:[#allocation3 + $0x50] sm:$0xff]
        %7286 = vrot.lane.b32.xlu0 %v7264, 108
        %v7287 = vpop.permute.xlu0 %7286
        %7288 = vrot.lane.b32.xlu0 %v7265, 108
        %v7289 = vpop.permute.xlu0 %7288
        %7290 = vrot.lane.b32.xlu0 %v7266, 108
        %v7291 = vpop.permute.xlu0 %7290
        %7292 = vrot.lane.b32.xlu0 %v7267, 108
        %v7293 = vpop.permute.xlu0 %7292
        %7294 = vrot.lane.b32.xlu0 %v7268, 108
        %v7295 = vpop.permute.xlu0 %7294
        %7296 = vrot.lane.b32.xlu0 %v7269, 108
        %v7297 = vpop.permute.xlu0 %7296
        %7298 = vrot.lane.b32.xlu0 %v7270, 108
        %v7299 = vpop.permute.xlu0 %7298
        %7300 = vrot.lane.b32.xlu0 %v7271, 108
        %v7301 = vpop.permute.xlu0 %7300
        %7302 = vrot.lane.b32.xlu0 %v7272, 108
        %v7303 = vpop.permute.xlu0 %7302
        %7304 = vrot.lane.b32.xlu0 %v7273, 108
        %v7305 = vpop.permute.xlu0 %7304
        %7306 = vrot.lane.b32.xlu0 %v7274, 108
        %v7307 = vpop.permute.xlu0 %7306
        %v7308 = vrot.slane %v7287, 4
        %v7309 = vrot.slane %v7289, 4
        %v7310 = vrot.slane %v7291, 4
        %v7311 = vrot.slane %v7293, 4
        %v7312 = vrot.slane %v7295, 4
        %v7313 = vrot.slane %v7297, 4
        %v7314 = vrot.slane %v7299, 4
        %v7315 = vrot.slane %v7301, 4
        %v7316 = vrot.slane %v7303, 4
        %v7317 = vrot.slane %v7305, 4
        %v7318 = vrot.slane %v7307, 4
        %v7319 = vsel %vm848, %v7308, %v7309
        %v7320 = vsel %vm1536, %v7287, %v7319
        %v7321 = vsel %vm848, %v7309, %v7310
        %v7322 = vsel %vm1536, %v7289, %v7321
        %v7323 = vsel %vm848, %v7310, %v7311
        %v7324 = vsel %vm1536, %v7291, %v7323
        %v7325 = vsel %vm848, %v7311, %v7312
        %v7326 = vsel %vm1536, %v7293, %v7325
        %v7327 = vsel %vm848, %v7312, %v7313
        %v7328 = vsel %vm1536, %v7295, %v7327
        %v7329 = vsel %vm848, %v7313, %v7314
        %v7330 = vsel %vm1536, %v7297, %v7329
        %v7331 = vsel %vm848, %v7314, %v7315
        %v7332 = vsel %vm1536, %v7299, %v7331
        %v7333 = vsel %vm848, %v7315, %v7316
        %v7334 = vsel %vm1536, %v7301, %v7333
        %v7335 = vsel %vm848, %v7316, %v7317
        %v7336 = vsel %vm1536, %v7303, %v7335
        %v7337 = vsel %vm848, %v7317, %v7318
        %v7338 = vsel %vm1536, %v7305, %v7337
        %v7339 = vsel %vm1536, %v7307, %v7318
        %7351 = vst [vmem:[#allocation2 + $0x1a4] sm:$0xff] %v7320
        %7352 = vst [vmem:[#allocation2 + $0x1ac] sm:$0xff] %v7322
        %7353 = vst [vmem:[#allocation2 + $0x1b4] sm:$0xff] %v7324
        %7354 = vst [vmem:[#allocation2 + $0x1bc] sm:$0xff] %v7326
        %7355 = vst [vmem:[#allocation2 + $0x1c4] sm:$0xff] %v7328
        %7356 = vst [vmem:[#allocation2 + $0x1cc] sm:$0xff] %v7330
        %7357 = vst [vmem:[#allocation2 + $0x1d4] sm:$0xff] %v7332
        %7358 = vst [vmem:[#allocation2 + $0x1dc] sm:$0xff] %v7334
        %7359 = vst [vmem:[#allocation2 + $0x1e4] sm:$0xff] %v7336
        %7360 = vst [vmem:[#allocation2 + $0x1ec] sm:$0xff] %v7338
        %7361 = vst [vmem:[#allocation2 + $0x1f4] sm:$0xf] %v7339
        %v7362 = vld [vmem:[#allocation3] sm:$0xff]
        %v7363 = vld [vmem:[#allocation3 + $0x8] sm:$0xff]
        %v7364 = vld [vmem:[#allocation3 + $0x10] sm:$0xff]
        %v7365 = vld [vmem:[#allocation3 + $0x18] sm:$0xff]
        %v7366 = vld [vmem:[#allocation3 + $0x20] sm:$0xff]
        %v7367 = vld [vmem:[#allocation3 + $0x28] sm:$0xff]
        %v7368 = vld [vmem:[#allocation3 + $0x30] sm:$0xff]
        %v7369 = vld [vmem:[#allocation3 + $0x38] sm:$0xff]
        %v7370 = vld [vmem:[#allocation3 + $0x40] sm:$0xff]
        %v7371 = vld [vmem:[#allocation3 + $0x48] sm:$0xff]
        %v7372 = vld [vmem:[#allocation3 + $0x50] sm:$0xff]
        %7384 = vrot.lane.b32.xlu0 %v7362, 92
        %v7385 = vpop.permute.xlu0 %7384
        %7386 = vrot.lane.b32.xlu0 %v7363, 92
        %v7387 = vpop.permute.xlu0 %7386
        %7388 = vrot.lane.b32.xlu0 %v7364, 92
        %v7389 = vpop.permute.xlu0 %7388
        %7390 = vrot.lane.b32.xlu0 %v7365, 92
        %v7391 = vpop.permute.xlu0 %7390
        %7392 = vrot.lane.b32.xlu0 %v7366, 92
        %v7393 = vpop.permute.xlu0 %7392
        %7394 = vrot.lane.b32.xlu0 %v7367, 92
        %v7395 = vpop.permute.xlu0 %7394
        %7396 = vrot.lane.b32.xlu0 %v7368, 92
        %v7397 = vpop.permute.xlu0 %7396
        %7398 = vrot.lane.b32.xlu0 %v7369, 92
        %v7399 = vpop.permute.xlu0 %7398
        %7400 = vrot.lane.b32.xlu0 %v7370, 92
        %v7401 = vpop.permute.xlu0 %7400
        %7402 = vrot.lane.b32.xlu0 %v7371, 92
        %v7403 = vpop.permute.xlu0 %7402
        %7404 = vrot.lane.b32.xlu0 %v7372, 92
        %v7405 = vpop.permute.xlu0 %7404
        %v7406 = vrot.slane %v7385, 4
        %v7407 = vrot.slane %v7387, 4
        %v7408 = vrot.slane %v7389, 4
        %v7409 = vrot.slane %v7391, 4
        %v7410 = vrot.slane %v7393, 4
        %v7411 = vrot.slane %v7395, 4
        %v7412 = vrot.slane %v7397, 4
        %v7413 = vrot.slane %v7399, 4
        %v7414 = vrot.slane %v7401, 4
        %v7415 = vrot.slane %v7403, 4
        %v7416 = vrot.slane %v7405, 4
        %v7417 = vsel %vm848, %v7406, %v7407
        %v7418 = vsel %vm1707, %v7385, %v7417
        %v7419 = vsel %vm848, %v7407, %v7408
        %v7420 = vsel %vm1707, %v7387, %v7419
        %v7421 = vsel %vm848, %v7408, %v7409
        %v7422 = vsel %vm1707, %v7389, %v7421
        %v7423 = vsel %vm848, %v7409, %v7410
        %v7424 = vsel %vm1707, %v7391, %v7423
        %v7425 = vsel %vm848, %v7410, %v7411
        %v7426 = vsel %vm1707, %v7393, %v7425
        %v7427 = vsel %vm848, %v7411, %v7412
        %v7428 = vsel %vm1707, %v7395, %v7427
        %v7429 = vsel %vm848, %v7412, %v7413
        %v7430 = vsel %vm1707, %v7397, %v7429
        %v7431 = vsel %vm848, %v7413, %v7414
        %v7432 = vsel %vm1707, %v7399, %v7431
        %v7433 = vsel %vm848, %v7414, %v7415
        %v7434 = vsel %vm1707, %v7401, %v7433
        %v7435 = vsel %vm848, %v7415, %v7416
        %v7436 = vsel %vm1707, %v7403, %v7435
        %v7437 = vsel %vm1707, %v7405, %v7416
        %7449 = vst [vmem:[#allocation2 + $0x1f8] sm:$0xff] %v7418
        %7450 = vst [vmem:[#allocation2 + $0x200] sm:$0xff] %v7420
        %7451 = vst [vmem:[#allocation2 + $0x208] sm:$0xff] %v7422
        %7452 = vst [vmem:[#allocation2 + $0x210] sm:$0xff] %v7424
        %7453 = vst [vmem:[#allocation2 + $0x218] sm:$0xff] %v7426
        %7454 = vst [vmem:[#allocation2 + $0x220] sm:$0xff] %v7428
        %7455 = vst [vmem:[#allocation2 + $0x228] sm:$0xff] %v7430
        %7456 = vst [vmem:[#allocation2 + $0x230] sm:$0xff] %v7432
        %7457 = vst [vmem:[#allocation2 + $0x238] sm:$0xff] %v7434
        %7458 = vst [vmem:[#allocation2 + $0x240] sm:$0xff] %v7436
        %7459 = vst [vmem:[#allocation2 + $0x248] sm:$0xf] %v7437
        %v7460 = vld [vmem:[#allocation3] sm:$0xff]
        %v7461 = vld [vmem:[#allocation3 + $0x8] sm:$0xff]
        %v7462 = vld [vmem:[#allocation3 + $0x10] sm:$0xff]
        %v7463 = vld [vmem:[#allocation3 + $0x18] sm:$0xff]
        %v7464 = vld [vmem:[#allocation3 + $0x20] sm:$0xff]
        %v7465 = vld [vmem:[#allocation3 + $0x28] sm:$0xff]
        %v7466 = vld [vmem:[#allocation3 + $0x30] sm:$0xff]
        %v7467 = vld [vmem:[#allocation3 + $0x38] sm:$0xff]
        %v7468 = vld [vmem:[#allocation3 + $0x40] sm:$0xff]
        %v7469 = vld [vmem:[#allocation3 + $0x48] sm:$0xff]
        %v7470 = vld [vmem:[#allocation3 + $0x50] sm:$0xff]
        %7482 = vrot.lane.b32.xlu0 %v7460, 91
        %v7483 = vpop.permute.xlu0 %7482
        %7484 = vrot.lane.b32.xlu0 %v7461, 91
        %v7485 = vpop.permute.xlu0 %7484
        %7486 = vrot.lane.b32.xlu0 %v7462, 91
        %v7487 = vpop.permute.xlu0 %7486
        %7488 = vrot.lane.b32.xlu0 %v7463, 91
        %v7489 = vpop.permute.xlu0 %7488
        %7490 = vrot.lane.b32.xlu0 %v7464, 91
        %v7491 = vpop.permute.xlu0 %7490
        %7492 = vrot.lane.b32.xlu0 %v7465, 91
        %v7493 = vpop.permute.xlu0 %7492
        %7494 = vrot.lane.b32.xlu0 %v7466, 91
        %v7495 = vpop.permute.xlu0 %7494
        %7496 = vrot.lane.b32.xlu0 %v7467, 91
        %v7497 = vpop.permute.xlu0 %7496
        %7498 = vrot.lane.b32.xlu0 %v7468, 91
        %v7499 = vpop.permute.xlu0 %7498
        %7500 = vrot.lane.b32.xlu0 %v7469, 91
        %v7501 = vpop.permute.xlu0 %7500
        %7502 = vrot.lane.b32.xlu0 %v7470, 91
        %v7503 = vpop.permute.xlu0 %7502
        %v7504 = vrot.slane %v7483, 4
        %v7505 = vrot.slane %v7485, 4
        %v7506 = vrot.slane %v7487, 4
        %v7507 = vrot.slane %v7489, 4
        %v7508 = vrot.slane %v7491, 4
        %v7509 = vrot.slane %v7493, 4
        %v7510 = vrot.slane %v7495, 4
        %v7511 = vrot.slane %v7497, 4
        %v7512 = vrot.slane %v7499, 4
        %v7513 = vrot.slane %v7501, 4
        %v7514 = vrot.slane %v7503, 4
        %v7515 = vsel %vm848, %v7504, %v7505
        %v7516 = vsel %vm1879, %v7483, %v7515
        %v7517 = vsel %vm848, %v7505, %v7506
        %v7518 = vsel %vm1879, %v7485, %v7517
        %v7519 = vsel %vm848, %v7506, %v7507
        %v7520 = vsel %vm1879, %v7487, %v7519
        %v7521 = vsel %vm848, %v7507, %v7508
        %v7522 = vsel %vm1879, %v7489, %v7521
        %v7523 = vsel %vm848, %v7508, %v7509
        %v7524 = vsel %vm1879, %v7491, %v7523
        %v7525 = vsel %vm848, %v7509, %v7510
        %v7526 = vsel %vm1879, %v7493, %v7525
        %v7527 = vsel %vm848, %v7510, %v7511
        %v7528 = vsel %vm1879, %v7495, %v7527
        %v7529 = vsel %vm848, %v7511, %v7512
        %v7530 = vsel %vm1879, %v7497, %v7529
        %v7531 = vsel %vm848, %v7512, %v7513
        %v7532 = vsel %vm1879, %v7499, %v7531
        %v7533 = vsel %vm848, %v7513, %v7514
        %v7534 = vsel %vm1879, %v7501, %v7533
        %v7535 = vsel %vm1879, %v7503, %v7514
        %7547 = vst [vmem:[#allocation2 + $0x24c] sm:$0xff] %v7516
        %7548 = vst [vmem:[#allocation2 + $0x254] sm:$0xff] %v7518
        %7549 = vst [vmem:[#allocation2 + $0x25c] sm:$0xff] %v7520
        %7550 = vst [vmem:[#allocation2 + $0x264] sm:$0xff] %v7522
        %7551 = vst [vmem:[#allocation2 + $0x26c] sm:$0xff] %v7524
        %7552 = vst [vmem:[#allocation2 + $0x274] sm:$0xff] %v7526
        %7553 = vst [vmem:[#allocation2 + $0x27c] sm:$0xff] %v7528
        %7554 = vst [vmem:[#allocation2 + $0x284] sm:$0xff] %v7530
        %7555 = vst [vmem:[#allocation2 + $0x28c] sm:$0xff] %v7532
        %7556 = vst [vmem:[#allocation2 + $0x294] sm:$0xff] %v7534
        %7557 = vst [vmem:[#allocation2 + $0x29c] sm:$0xf] %v7535
        %v7558 = vld [vmem:[#allocation3] sm:$0xff]
        %v7559 = vld [vmem:[#allocation3 + $0x8] sm:$0xff]
        %v7560 = vld [vmem:[#allocation3 + $0x10] sm:$0xff]
        %v7561 = vld [vmem:[#allocation3 + $0x18] sm:$0xff]
        %v7562 = vld [vmem:[#allocation3 + $0x20] sm:$0xff]
        %v7563 = vld [vmem:[#allocation3 + $0x28] sm:$0xff]
        %v7564 = vld [vmem:[#allocation3 + $0x30] sm:$0xff]
        %v7565 = vld [vmem:[#allocation3 + $0x38] sm:$0xff]
        %v7566 = vld [vmem:[#allocation3 + $0x40] sm:$0xff]
        %v7567 = vld [vmem:[#allocation3 + $0x48] sm:$0xff]
        %v7568 = vld [vmem:[#allocation3 + $0x50] sm:$0xff]
        %7580 = vrot.lane.b32.xlu0 %v7558, 90
        %v7581 = vpop.permute.xlu0 %7580
        %7582 = vrot.lane.b32.xlu0 %v7559, 90
        %v7583 = vpop.permute.xlu0 %7582
        %7584 = vrot.lane.b32.xlu0 %v7560, 90
        %v7585 = vpop.permute.xlu0 %7584
        %7586 = vrot.lane.b32.xlu0 %v7561, 90
        %v7587 = vpop.permute.xlu0 %7586
        %7588 = vrot.lane.b32.xlu0 %v7562, 90
        %v7589 = vpop.permute.xlu0 %7588
        %7590 = vrot.lane.b32.xlu0 %v7563, 90
        %v7591 = vpop.permute.xlu0 %7590
        %7592 = vrot.lane.b32.xlu0 %v7564, 90
        %v7593 = vpop.permute.xlu0 %7592
        %7594 = vrot.lane.b32.xlu0 %v7565, 90
        %v7595 = vpop.permute.xlu0 %7594
        %7596 = vrot.lane.b32.xlu0 %v7566, 90
        %v7597 = vpop.permute.xlu0 %7596
        %7598 = vrot.lane.b32.xlu0 %v7567, 90
        %v7599 = vpop.permute.xlu0 %7598
        %7600 = vrot.lane.b32.xlu0 %v7568, 90
        %v7601 = vpop.permute.xlu0 %7600
        %v7602 = vrot.slane %v7581, 4
        %v7603 = vrot.slane %v7583, 4
        %v7604 = vrot.slane %v7585, 4
        %v7605 = vrot.slane %v7587, 4
        %v7606 = vrot.slane %v7589, 4
        %v7607 = vrot.slane %v7591, 4
        %v7608 = vrot.slane %v7593, 4
        %v7609 = vrot.slane %v7595, 4
        %v7610 = vrot.slane %v7597, 4
        %v7611 = vrot.slane %v7599, 4
        %v7612 = vrot.slane %v7601, 4
        %v7613 = vsel %vm848, %v7602, %v7603
        %v7614 = vsel %vm2050, %v7581, %v7613
        %v7615 = vsel %vm848, %v7603, %v7604
        %v7616 = vsel %vm2050, %v7583, %v7615
        %v7617 = vsel %vm848, %v7604, %v7605
        %v7618 = vsel %vm2050, %v7585, %v7617
        %v7619 = vsel %vm848, %v7605, %v7606
        %v7620 = vsel %vm2050, %v7587, %v7619
        %v7621 = vsel %vm848, %v7606, %v7607
        %v7622 = vsel %vm2050, %v7589, %v7621
        %v7623 = vsel %vm848, %v7607, %v7608
        %v7624 = vsel %vm2050, %v7591, %v7623
        %v7625 = vsel %vm848, %v7608, %v7609
        %v7626 = vsel %vm2050, %v7593, %v7625
        %v7627 = vsel %vm848, %v7609, %v7610
        %v7628 = vsel %vm2050, %v7595, %v7627
        %v7629 = vsel %vm848, %v7610, %v7611
        %v7630 = vsel %vm2050, %v7597, %v7629
        %v7631 = vsel %vm848, %v7611, %v7612
        %v7632 = vsel %vm2050, %v7599, %v7631
        %v7633 = vsel %vm2050, %v7601, %v7612
        %7645 = vst [vmem:[#allocation2 + $0x2a0] sm:$0xff] %v7614
        %7646 = vst [vmem:[#allocation2 + $0x2a8] sm:$0xff] %v7616
        %7647 = vst [vmem:[#allocation2 + $0x2b0] sm:$0xff] %v7618
        %7648 = vst [vmem:[#allocation2 + $0x2b8] sm:$0xff] %v7620
        %7649 = vst [vmem:[#allocation2 + $0x2c0] sm:$0xff] %v7622
        %7650 = vst [vmem:[#allocation2 + $0x2c8] sm:$0xff] %v7624
        %7651 = vst [vmem:[#allocation2 + $0x2d0] sm:$0xff] %v7626
        %7652 = vst [vmem:[#allocation2 + $0x2d8] sm:$0xff] %v7628
        %7653 = vst [vmem:[#allocation2 + $0x2e0] sm:$0xff] %v7630
        %7654 = vst [vmem:[#allocation2 + $0x2e8] sm:$0xff] %v7632
        %7655 = vst [vmem:[#allocation2 + $0x2f0] sm:$0xf] %v7633
        %v7656 = vld [vmem:[#allocation3 + $0x8] sm:$0xff]
        %v7657 = vld [vmem:[#allocation3 + $0x10] sm:$0xff]
        %v7658 = vld [vmem:[#allocation3 + $0x18] sm:$0xff]
        %v7659 = vld [vmem:[#allocation3 + $0x20] sm:$0xff]
        %v7660 = vld [vmem:[#allocation3 + $0x28] sm:$0xff]
        %v7661 = vld [vmem:[#allocation3 + $0x30] sm:$0xff]
        %v7662 = vld [vmem:[#allocation3 + $0x38] sm:$0xff]
        %v7663 = vld [vmem:[#allocation3 + $0x40] sm:$0xff]
        %v7664 = vld [vmem:[#allocation3 + $0x48] sm:$0xff]
        %v7665 = vld [vmem:[#allocation3 + $0x50] sm:$0xff]
        %v7666 = vld [vmem:[#allocation3 + $0x58] sm:$0xff]
        %7678 = vrot.lane.b32.xlu0 %v7656, 60
        %v7679 = vpop.permute.xlu0 %7678
        %7680 = vrot.lane.b32.xlu0 %v7657, 60
        %v7681 = vpop.permute.xlu0 %7680
        %7682 = vrot.lane.b32.xlu0 %v7658, 60
        %v7683 = vpop.permute.xlu0 %7682
        %7684 = vrot.lane.b32.xlu0 %v7659, 60
        %v7685 = vpop.permute.xlu0 %7684
        %7686 = vrot.lane.b32.xlu0 %v7660, 60
        %v7687 = vpop.permute.xlu0 %7686
        %7688 = vrot.lane.b32.xlu0 %v7661, 60
        %v7689 = vpop.permute.xlu0 %7688
        %7690 = vrot.lane.b32.xlu0 %v7662, 60
        %v7691 = vpop.permute.xlu0 %7690
        %7692 = vrot.lane.b32.xlu0 %v7663, 60
        %v7693 = vpop.permute.xlu0 %7692
        %7694 = vrot.lane.b32.xlu0 %v7664, 60
        %v7695 = vpop.permute.xlu0 %7694
        %7696 = vrot.lane.b32.xlu0 %v7665, 60
        %v7697 = vpop.permute.xlu0 %7696
        %7698 = vrot.lane.b32.xlu0 %v7666, 60
        %v7699 = vpop.permute.xlu0 %7698
        %v7700 = vrot.slane %v7679, 4
        %v7701 = vrot.slane %v7681, 4
        %v7702 = vrot.slane %v7683, 4
        %v7703 = vrot.slane %v7685, 4
        %v7704 = vrot.slane %v7687, 4
        %v7705 = vrot.slane %v7689, 4
        %v7706 = vrot.slane %v7691, 4
        %v7707 = vrot.slane %v7693, 4
        %v7708 = vrot.slane %v7695, 4
        %v7709 = vrot.slane %v7697, 4
        %v7710 = vrot.slane %v7699, 4
        %v7711 = vsel %vm848, %v7700, %v7701
        %v7712 = vsel %vm2222, %v7679, %v7711
        %v7713 = vsel %vm848, %v7701, %v7702
        %v7714 = vsel %vm2222, %v7681, %v7713
        %v7715 = vsel %vm848, %v7702, %v7703
        %v7716 = vsel %vm2222, %v7683, %v7715
        %v7717 = vsel %vm848, %v7703, %v7704
        %v7718 = vsel %vm2222, %v7685, %v7717
        %v7719 = vsel %vm848, %v7704, %v7705
        %v7720 = vsel %vm2222, %v7687, %v7719
        %v7721 = vsel %vm848, %v7705, %v7706
        %v7722 = vsel %vm2222, %v7689, %v7721
        %v7723 = vsel %vm848, %v7706, %v7707
        %v7724 = vsel %vm2222, %v7691, %v7723
        %v7725 = vsel %vm848, %v7707, %v7708
        %v7726 = vsel %vm2222, %v7693, %v7725
        %v7727 = vsel %vm848, %v7708, %v7709
        %v7728 = vsel %vm2222, %v7695, %v7727
        %v7729 = vsel %vm848, %v7709, %v7710
        %v7730 = vsel %vm2222, %v7697, %v7729
        %v7731 = vsel %vm2222, %v7699, %v7710
        %7743 = vst [vmem:[#allocation2 + $0x2f4] sm:$0xff] %v7712
        %7744 = vst [vmem:[#allocation2 + $0x2fc] sm:$0xff] %v7714
        %7745 = vst [vmem:[#allocation2 + $0x304] sm:$0xff] %v7716
        %7746 = vst [vmem:[#allocation2 + $0x30c] sm:$0xff] %v7718
        %7747 = vst [vmem:[#allocation2 + $0x314] sm:$0xff] %v7720
        %7748 = vst [vmem:[#allocation2 + $0x31c] sm:$0xff] %v7722
        %7749 = vst [vmem:[#allocation2 + $0x324] sm:$0xff] %v7724
        %7750 = vst [vmem:[#allocation2 + $0x32c] sm:$0xff] %v7726
        %7751 = vst [vmem:[#allocation2 + $0x334] sm:$0xff] %v7728
        %7752 = vst [vmem:[#allocation2 + $0x33c] sm:$0xff] %v7730
        %7753 = vst [vmem:[#allocation2 + $0x344] sm:$0xf] %v7731
        %v7754 = vld [vmem:[#allocation3 + $0x8] sm:$0xff]
        %v7755 = vld [vmem:[#allocation3 + $0x10] sm:$0xff]
        %v7756 = vld [vmem:[#allocation3 + $0x18] sm:$0xff]
        %v7757 = vld [vmem:[#allocation3 + $0x20] sm:$0xff]
        %v7758 = vld [vmem:[#allocation3 + $0x28] sm:$0xff]
        %v7759 = vld [vmem:[#allocation3 + $0x30] sm:$0xff]
        %v7760 = vld [vmem:[#allocation3 + $0x38] sm:$0xff]
        %v7761 = vld [vmem:[#allocation3 + $0x40] sm:$0xff]
        %v7762 = vld [vmem:[#allocation3 + $0x48] sm:$0xff]
        %v7763 = vld [vmem:[#allocation3 + $0x50] sm:$0xff]
        %v7764 = vld [vmem:[#allocation3 + $0x58] sm:$0xff]
        %7776 = vrot.lane.b32.xlu0 %v7754, 59
        %v7777 = vpop.permute.xlu0 %7776
        %7778 = vrot.lane.b32.xlu0 %v7755, 59
        %v7779 = vpop.permute.xlu0 %7778
        %7780 = vrot.lane.b32.xlu0 %v7756, 59
        %v7781 = vpop.permute.xlu0 %7780
        %7782 = vrot.lane.b32.xlu0 %v7757, 59
        %v7783 = vpop.permute.xlu0 %7782
        %7784 = vrot.lane.b32.xlu0 %v7758, 59
        %v7785 = vpop.permute.xlu0 %7784
        %7786 = vrot.lane.b32.xlu0 %v7759, 59
        %v7787 = vpop.permute.xlu0 %7786
        %7788 = vrot.lane.b32.xlu0 %v7760, 59
        %v7789 = vpop.permute.xlu0 %7788
        %7790 = vrot.lane.b32.xlu0 %v7761, 59
        %v7791 = vpop.permute.xlu0 %7790
        %7792 = vrot.lane.b32.xlu0 %v7762, 59
        %v7793 = vpop.permute.xlu0 %7792
        %7794 = vrot.lane.b32.xlu0 %v7763, 59
        %v7795 = vpop.permute.xlu0 %7794
        %7796 = vrot.lane.b32.xlu0 %v7764, 59
        %v7797 = vpop.permute.xlu0 %7796
        %v7798 = vrot.slane %v7777, 4
        %v7799 = vrot.slane %v7779, 4
        %v7800 = vrot.slane %v7781, 4
        %v7801 = vrot.slane %v7783, 4
        %v7802 = vrot.slane %v7785, 4
        %v7803 = vrot.slane %v7787, 4
        %v7804 = vrot.slane %v7789, 4
        %v7805 = vrot.slane %v7791, 4
        %v7806 = vrot.slane %v7793, 4
        %v7807 = vrot.slane %v7795, 4
        %v7808 = vrot.slane %v7797, 4
        %v7809 = vsel %vm848, %v7798, %v7799
        %v7810 = vsel %vm2393, %v7777, %v7809
        %v7811 = vsel %vm848, %v7799, %v7800
        %v7812 = vsel %vm2393, %v7779, %v7811
        %v7813 = vsel %vm848, %v7800, %v7801
        %v7814 = vsel %vm2393, %v7781, %v7813
        %v7815 = vsel %vm848, %v7801, %v7802
        %v7816 = vsel %vm2393, %v7783, %v7815
        %v7817 = vsel %vm848, %v7802, %v7803
        %v7818 = vsel %vm2393, %v7785, %v7817
        %v7819 = vsel %vm848, %v7803, %v7804
        %v7820 = vsel %vm2393, %v7787, %v7819
        %v7821 = vsel %vm848, %v7804, %v7805
        %v7822 = vsel %vm2393, %v7789, %v7821
        %v7823 = vsel %vm848, %v7805, %v7806
        %v7824 = vsel %vm2393, %v7791, %v7823
        %v7825 = vsel %vm848, %v7806, %v7807
        %v7826 = vsel %vm2393, %v7793, %v7825
        %v7827 = vsel %vm848, %v7807, %v7808
        %v7828 = vsel %vm2393, %v7795, %v7827
        %v7829 = vsel %vm2393, %v7797, %v7808
        %7841 = vst [vmem:[#allocation2 + $0x348] sm:$0xff] %v7810
        %7842 = vst [vmem:[#allocation2 + $0x350] sm:$0xff] %v7812
        %7843 = vst [vmem:[#allocation2 + $0x358] sm:$0xff] %v7814
        %7844 = vst [vmem:[#allocation2 + $0x360] sm:$0xff] %v7816
        %7845 = vst [vmem:[#allocation2 + $0x368] sm:$0xff] %v7818
        %7846 = vst [vmem:[#allocation2 + $0x370] sm:$0xff] %v7820
        %7847 = vst [vmem:[#allocation2 + $0x378] sm:$0xff] %v7822
        %7848 = vst [vmem:[#allocation2 + $0x380] sm:$0xff] %v7824
        %7849 = vst [vmem:[#allocation2 + $0x388] sm:$0xff] %v7826
        %7850 = vst [vmem:[#allocation2 + $0x390] sm:$0xff] %v7828
        %7851 = vst [vmem:[#allocation2 + $0x398] sm:$0xf] %v7829
        %v7852 = vld [vmem:[#allocation3 + $0x8] sm:$0xff]
        %v7853 = vld [vmem:[#allocation3 + $0x10] sm:$0xff]
        %v7854 = vld [vmem:[#allocation3 + $0x18] sm:$0xff]
        %v7855 = vld [vmem:[#allocation3 + $0x20] sm:$0xff]
        %v7856 = vld [vmem:[#allocation3 + $0x28] sm:$0xff]
        %v7857 = vld [vmem:[#allocation3 + $0x30] sm:$0xff]
        %v7858 = vld [vmem:[#allocation3 + $0x38] sm:$0xff]
        %v7859 = vld [vmem:[#allocation3 + $0x40] sm:$0xff]
        %v7860 = vld [vmem:[#allocation3 + $0x48] sm:$0xff]
        %v7861 = vld [vmem:[#allocation3 + $0x50] sm:$0xff]
        %v7862 = vld [vmem:[#allocation3 + $0x58] sm:$0xff]
        %7874 = vrot.lane.b32.xlu0 %v7852, 58
        %v7875 = vpop.permute.xlu0 %7874
        %7876 = vrot.lane.b32.xlu0 %v7853, 58
        %v7877 = vpop.permute.xlu0 %7876
        %7878 = vrot.lane.b32.xlu0 %v7854, 58
        %v7879 = vpop.permute.xlu0 %7878
        %7880 = vrot.lane.b32.xlu0 %v7855, 58
        %v7881 = vpop.permute.xlu0 %7880
        %7882 = vrot.lane.b32.xlu0 %v7856, 58
        %v7883 = vpop.permute.xlu0 %7882
        %7884 = vrot.lane.b32.xlu0 %v7857, 58
        %v7885 = vpop.permute.xlu0 %7884
        %7886 = vrot.lane.b32.xlu0 %v7858, 58
        %v7887 = vpop.permute.xlu0 %7886
        %7888 = vrot.lane.b32.xlu0 %v7859, 58
        %v7889 = vpop.permute.xlu0 %7888
        %7890 = vrot.lane.b32.xlu0 %v7860, 58
        %v7891 = vpop.permute.xlu0 %7890
        %7892 = vrot.lane.b32.xlu0 %v7861, 58
        %v7893 = vpop.permute.xlu0 %7892
        %7894 = vrot.lane.b32.xlu0 %v7862, 58
        %v7895 = vpop.permute.xlu0 %7894
        %v7896 = vrot.slane %v7875, 4
        %v7897 = vrot.slane %v7877, 4
        %v7898 = vrot.slane %v7879, 4
        %v7899 = vrot.slane %v7881, 4
        %v7900 = vrot.slane %v7883, 4
        %v7901 = vrot.slane %v7885, 4
        %v7902 = vrot.slane %v7887, 4
        %v7903 = vrot.slane %v7889, 4
        %v7904 = vrot.slane %v7891, 4
        %v7905 = vrot.slane %v7893, 4
        %v7906 = vrot.slane %v7895, 4
        %v7907 = vsel %vm848, %v7896, %v7897
        %v7908 = vsel %vm2565, %v7875, %v7907
        %v7909 = vsel %vm848, %v7897, %v7898
        %v7910 = vsel %vm2565, %v7877, %v7909
        %v7911 = vsel %vm848, %v7898, %v7899
        %v7912 = vsel %vm2565, %v7879, %v7911
        %v7913 = vsel %vm848, %v7899, %v7900
        %v7914 = vsel %vm2565, %v7881, %v7913
        %v7915 = vsel %vm848, %v7900, %v7901
        %v7916 = vsel %vm2565, %v7883, %v7915
        %v7917 = vsel %vm848, %v7901, %v7902
        %v7918 = vsel %vm2565, %v7885, %v7917
        %v7919 = vsel %vm848, %v7902, %v7903
        %v7920 = vsel %vm2565, %v7887, %v7919
        %v7921 = vsel %vm848, %v7903, %v7904
        %v7922 = vsel %vm2565, %v7889, %v7921
        %v7923 = vsel %vm848, %v7904, %v7905
        %v7924 = vsel %vm2565, %v7891, %v7923
        %v7925 = vsel %vm848, %v7905, %v7906
        %v7926 = vsel %vm2565, %v7893, %v7925
        %v7927 = vsel %vm2565, %v7895, %v7906
        %7939 = vst [vmem:[#allocation2 + $0x39c] sm:$0xff] %v7908
        %7940 = vst [vmem:[#allocation2 + $0x3a4] sm:$0xff] %v7910
        %7941 = vst [vmem:[#allocation2 + $0x3ac] sm:$0xff] %v7912
        %7942 = vst [vmem:[#allocation2 + $0x3b4] sm:$0xff] %v7914
        %7943 = vst [vmem:[#allocation2 + $0x3bc] sm:$0xff] %v7916
        %7944 = vst [vmem:[#allocation2 + $0x3c4] sm:$0xff] %v7918
        %7945 = vst [vmem:[#allocation2 + $0x3cc] sm:$0xff] %v7920
        %7946 = vst [vmem:[#allocation2 + $0x3d4] sm:$0xff] %v7922
        %7947 = vst [vmem:[#allocation2 + $0x3dc] sm:$0xff] %v7924
        %7948 = vst [vmem:[#allocation2 + $0x3e4] sm:$0xff] %v7926
        %7949 = vst [vmem:[#allocation2 + $0x3ec] sm:$0xf] %v7927
        %v7950 = vld [vmem:[#allocation3 + $0x8] sm:$0xff]
        %v7951 = vld [vmem:[#allocation3 + $0x10] sm:$0xff]
        %v7952 = vld [vmem:[#allocation3 + $0x18] sm:$0xff]
        %v7953 = vld [vmem:[#allocation3 + $0x20] sm:$0xff]
        %v7954 = vld [vmem:[#allocation3 + $0x28] sm:$0xff]
        %v7955 = vld [vmem:[#allocation3 + $0x30] sm:$0xff]
        %v7956 = vld [vmem:[#allocation3 + $0x38] sm:$0xff]
        %v7957 = vld [vmem:[#allocation3 + $0x40] sm:$0xff]
        %v7958 = vld [vmem:[#allocation3 + $0x48] sm:$0xff]
        %v7959 = vld [vmem:[#allocation3 + $0x50] sm:$0xff]
        %v7960 = vld [vmem:[#allocation3 + $0x58] sm:$0xff]
        %7972 = vrot.lane.b32.xlu0 %v7950, 42
        %v7973 = vpop.permute.xlu0 %7972
        %7974 = vrot.lane.b32.xlu0 %v7951, 42
        %v7975 = vpop.permute.xlu0 %7974
        %7976 = vrot.lane.b32.xlu0 %v7952, 42
        %v7977 = vpop.permute.xlu0 %7976
        %7978 = vrot.lane.b32.xlu0 %v7953, 42
        %v7979 = vpop.permute.xlu0 %7978
        %7980 = vrot.lane.b32.xlu0 %v7954, 42
        %v7981 = vpop.permute.xlu0 %7980
        %7982 = vrot.lane.b32.xlu0 %v7955, 42
        %v7983 = vpop.permute.xlu0 %7982
        %7984 = vrot.lane.b32.xlu0 %v7956, 42
        %v7985 = vpop.permute.xlu0 %7984
        %7986 = vrot.lane.b32.xlu0 %v7957, 42
        %v7987 = vpop.permute.xlu0 %7986
        %7988 = vrot.lane.b32.xlu0 %v7958, 42
        %v7989 = vpop.permute.xlu0 %7988
        %7990 = vrot.lane.b32.xlu0 %v7959, 42
        %v7991 = vpop.permute.xlu0 %7990
        %7992 = vrot.lane.b32.xlu0 %v7960, 42
        %v7993 = vpop.permute.xlu0 %7992
        %v7994 = vrot.slane %v7973, 4
        %v7995 = vrot.slane %v7975, 4
        %v7996 = vrot.slane %v7977, 4
        %v7997 = vrot.slane %v7979, 4
        %v7998 = vrot.slane %v7981, 4
        %v7999 = vrot.slane %v7983, 4
        %v8000 = vrot.slane %v7985, 4
        %v8001 = vrot.slane %v7987, 4
        %v8002 = vrot.slane %v7989, 4
        %v8003 = vrot.slane %v7991, 4
        %v8004 = vrot.slane %v7993, 4
        %v8005 = vsel %vm848, %v7994, %v7995
        %v8006 = vsel %vm2736, %v7973, %v8005
        %v8007 = vsel %vm848, %v7995, %v7996
        %v8008 = vsel %vm2736, %v7975, %v8007
        %v8009 = vsel %vm848, %v7996, %v7997
        %v8010 = vsel %vm2736, %v7977, %v8009
        %v8011 = vsel %vm848, %v7997, %v7998
        %v8012 = vsel %vm2736, %v7979, %v8011
        %v8013 = vsel %vm848, %v7998, %v7999
        %v8014 = vsel %vm2736, %v7981, %v8013
        %v8015 = vsel %vm848, %v7999, %v8000
        %v8016 = vsel %vm2736, %v7983, %v8015
        %v8017 = vsel %vm848, %v8000, %v8001
        %v8018 = vsel %vm2736, %v7985, %v8017
        %v8019 = vsel %vm848, %v8001, %v8002
        %v8020 = vsel %vm2736, %v7987, %v8019
        %v8021 = vsel %vm848, %v8002, %v8003
        %v8022 = vsel %vm2736, %v7989, %v8021
        %v8023 = vsel %vm848, %v8003, %v8004
        %v8024 = vsel %vm2736, %v7991, %v8023
        %v8025 = vsel %vm2736, %v7993, %v8004
        %8037 = vst [vmem:[#allocation2 + $0x3f0] sm:$0xff] %v8006
        %8038 = vst [vmem:[#allocation2 + $0x3f8] sm:$0xff] %v8008
        %8039 = vst [vmem:[#allocation2 + $0x400] sm:$0xff] %v8010
        %8040 = vst [vmem:[#allocation2 + $0x408] sm:$0xff] %v8012
        %8041 = vst [vmem:[#allocation2 + $0x410] sm:$0xff] %v8014
        %8042 = vst [vmem:[#allocation2 + $0x418] sm:$0xff] %v8016
        %8043 = vst [vmem:[#allocation2 + $0x420] sm:$0xff] %v8018
        %8044 = vst [vmem:[#allocation2 + $0x428] sm:$0xff] %v8020
        %8045 = vst [vmem:[#allocation2 + $0x430] sm:$0xff] %v8022
        %8046 = vst [vmem:[#allocation2 + $0x438] sm:$0xff] %v8024
        %8047 = vst [vmem:[#allocation2 + $0x440] sm:$0xf] %v8025
        %v8048 = vld [vmem:[#allocation3 + $0x8] sm:$0xff]
        %v8049 = vld [vmem:[#allocation3 + $0x10] sm:$0xff]
        %v8050 = vld [vmem:[#allocation3 + $0x18] sm:$0xff]
        %v8051 = vld [vmem:[#allocation3 + $0x20] sm:$0xff]
        %v8052 = vld [vmem:[#allocation3 + $0x28] sm:$0xff]
        %v8053 = vld [vmem:[#allocation3 + $0x30] sm:$0xff]
        %v8054 = vld [vmem:[#allocation3 + $0x38] sm:$0xff]
        %v8055 = vld [vmem:[#allocation3 + $0x40] sm:$0xff]
        %v8056 = vld [vmem:[#allocation3 + $0x48] sm:$0xff]
        %v8057 = vld [vmem:[#allocation3 + $0x50] sm:$0xff]
        %v8058 = vld [vmem:[#allocation3 + $0x58] sm:$0xff]
        %8070 = vrot.lane.b32.xlu0 %v8048, 41
        %v8071 = vpop.permute.xlu0 %8070
        %8072 = vrot.lane.b32.xlu0 %v8049, 41
        %v8073 = vpop.permute.xlu0 %8072
        %8074 = vrot.lane.b32.xlu0 %v8050, 41
        %v8075 = vpop.permute.xlu0 %8074
        %8076 = vrot.lane.b32.xlu0 %v8051, 41
        %v8077 = vpop.permute.xlu0 %8076
        %8078 = vrot.lane.b32.xlu0 %v8052, 41
        %v8079 = vpop.permute.xlu0 %8078
        %8080 = vrot.lane.b32.xlu0 %v8053, 41
        %v8081 = vpop.permute.xlu0 %8080
        %8082 = vrot.lane.b32.xlu0 %v8054, 41
        %v8083 = vpop.permute.xlu0 %8082
        %8084 = vrot.lane.b32.xlu0 %v8055, 41
        %v8085 = vpop.permute.xlu0 %8084
        %8086 = vrot.lane.b32.xlu0 %v8056, 41
        %v8087 = vpop.permute.xlu0 %8086
        %8088 = vrot.lane.b32.xlu0 %v8057, 41
        %v8089 = vpop.permute.xlu0 %8088
        %8090 = vrot.lane.b32.xlu0 %v8058, 41
        %v8091 = vpop.permute.xlu0 %8090
        %v8092 = vrot.slane %v8071, 4
        %v8093 = vrot.slane %v8073, 4
        %v8094 = vrot.slane %v8075, 4
        %v8095 = vrot.slane %v8077, 4
        %v8096 = vrot.slane %v8079, 4
        %v8097 = vrot.slane %v8081, 4
        %v8098 = vrot.slane %v8083, 4
        %v8099 = vrot.slane %v8085, 4
        %v8100 = vrot.slane %v8087, 4
        %v8101 = vrot.slane %v8089, 4
        %v8102 = vrot.slane %v8091, 4
        %v8103 = vsel %vm848, %v8092, %v8093
        %v8104 = vsel %vm2908, %v8071, %v8103
        %v8105 = vsel %vm848, %v8093, %v8094
        %v8106 = vsel %vm2908, %v8073, %v8105
        %v8107 = vsel %vm848, %v8094, %v8095
        %v8108 = vsel %vm2908, %v8075, %v8107
        %v8109 = vsel %vm848, %v8095, %v8096
        %v8110 = vsel %vm2908, %v8077, %v8109
        %v8111 = vsel %vm848, %v8096, %v8097
        %v8112 = vsel %vm2908, %v8079, %v8111
        %v8113 = vsel %vm848, %v8097, %v8098
        %v8114 = vsel %vm2908, %v8081, %v8113
        %v8115 = vsel %vm848, %v8098, %v8099
        %v8116 = vsel %vm2908, %v8083, %v8115
        %v8117 = vsel %vm848, %v8099, %v8100
        %v8118 = vsel %vm2908, %v8085, %v8117
        %v8119 = vsel %vm848, %v8100, %v8101
        %v8120 = vsel %vm2908, %v8087, %v8119
        %v8121 = vsel %vm848, %v8101, %v8102
        %v8122 = vsel %vm2908, %v8089, %v8121
        %v8123 = vsel %vm2908, %v8091, %v8102
        %8135 = vst [vmem:[#allocation2 + $0x444] sm:$0xff] %v8104
        %8136 = vst [vmem:[#allocation2 + $0x44c] sm:$0xff] %v8106
        %8137 = vst [vmem:[#allocation2 + $0x454] sm:$0xff] %v8108
        %8138 = vst [vmem:[#allocation2 + $0x45c] sm:$0xff] %v8110
        %8139 = vst [vmem:[#allocation2 + $0x464] sm:$0xff] %v8112
        %8140 = vst [vmem:[#allocation2 + $0x46c] sm:$0xff] %v8114
        %8141 = vst [vmem:[#allocation2 + $0x474] sm:$0xff] %v8116
        %8142 = vst [vmem:[#allocation2 + $0x47c] sm:$0xff] %v8118
        %8143 = vst [vmem:[#allocation2 + $0x484] sm:$0xff] %v8120
        %8144 = vst [vmem:[#allocation2 + $0x48c] sm:$0xff] %v8122
        %8145 = vst [vmem:[#allocation2 + $0x494] sm:$0xf] %v8123
        %v8146 = vld [vmem:[#allocation3 + $0x8] sm:$0xff]
        %v8147 = vld [vmem:[#allocation3 + $0x10] sm:$0xff]
        %v8148 = vld [vmem:[#allocation3 + $0x18] sm:$0xff]
        %v8149 = vld [vmem:[#allocation3 + $0x20] sm:$0xff]
        %v8150 = vld [vmem:[#allocation3 + $0x28] sm:$0xff]
        %v8151 = vld [vmem:[#allocation3 + $0x30] sm:$0xff]
        %v8152 = vld [vmem:[#allocation3 + $0x38] sm:$0xff]
        %v8153 = vld [vmem:[#allocation3 + $0x40] sm:$0xff]
        %v8154 = vld [vmem:[#allocation3 + $0x48] sm:$0xff]
        %v8155 = vld [vmem:[#allocation3 + $0x50] sm:$0xff]
        %v8156 = vld [vmem:[#allocation3 + $0x58] sm:$0xff]
        %8168 = vrot.lane.b32.xlu0 %v8146, 40
        %v8169 = vpop.permute.xlu0 %8168
        %8170 = vrot.lane.b32.xlu0 %v8147, 40
        %v8171 = vpop.permute.xlu0 %8170
        %8172 = vrot.lane.b32.xlu0 %v8148, 40
        %v8173 = vpop.permute.xlu0 %8172
        %8174 = vrot.lane.b32.xlu0 %v8149, 40
        %v8175 = vpop.permute.xlu0 %8174
        %8176 = vrot.lane.b32.xlu0 %v8150, 40
        %v8177 = vpop.permute.xlu0 %8176
        %8178 = vrot.lane.b32.xlu0 %v8151, 40
        %v8179 = vpop.permute.xlu0 %8178
        %8180 = vrot.lane.b32.xlu0 %v8152, 40
        %v8181 = vpop.permute.xlu0 %8180
        %8182 = vrot.lane.b32.xlu0 %v8153, 40
        %v8183 = vpop.permute.xlu0 %8182
        %8184 = vrot.lane.b32.xlu0 %v8154, 40
        %v8185 = vpop.permute.xlu0 %8184
        %8186 = vrot.lane.b32.xlu0 %v8155, 40
        %v8187 = vpop.permute.xlu0 %8186
        %8188 = vrot.lane.b32.xlu0 %v8156, 40
        %v8189 = vpop.permute.xlu0 %8188
        %v8190 = vrot.slane %v8169, 4
        %v8191 = vrot.slane %v8171, 4
        %v8192 = vrot.slane %v8173, 4
        %v8193 = vrot.slane %v8175, 4
        %v8194 = vrot.slane %v8177, 4
        %v8195 = vrot.slane %v8179, 4
        %v8196 = vrot.slane %v8181, 4
        %v8197 = vrot.slane %v8183, 4
        %v8198 = vrot.slane %v8185, 4
        %v8199 = vrot.slane %v8187, 4
        %v8200 = vrot.slane %v8189, 4
        %v8201 = vsel %vm848, %v8190, %v8191
        %v8202 = vsel %vm3079, %v8169, %v8201
        %v8203 = vsel %vm848, %v8191, %v8192
        %v8204 = vsel %vm3079, %v8171, %v8203
        %v8205 = vsel %vm848, %v8192, %v8193
        %v8206 = vsel %vm3079, %v8173, %v8205
        %v8207 = vsel %vm848, %v8193, %v8194
        %v8208 = vsel %vm3079, %v8175, %v8207
        %v8209 = vsel %vm848, %v8194, %v8195
        %v8210 = vsel %vm3079, %v8177, %v8209
        %v8211 = vsel %vm848, %v8195, %v8196
        %v8212 = vsel %vm3079, %v8179, %v8211
        %v8213 = vsel %vm848, %v8196, %v8197
        %v8214 = vsel %vm3079, %v8181, %v8213
        %v8215 = vsel %vm848, %v8197, %v8198
        %v8216 = vsel %vm3079, %v8183, %v8215
        %v8217 = vsel %vm848, %v8198, %v8199
        %v8218 = vsel %vm3079, %v8185, %v8217
        %v8219 = vsel %vm848, %v8199, %v8200
        %v8220 = vsel %vm3079, %v8187, %v8219
        %v8221 = vsel %vm3079, %v8189, %v8200
        %8233 = vst [vmem:[#allocation2 + $0x498] sm:$0xff] %v8202
        %8234 = vst [vmem:[#allocation2 + $0x4a0] sm:$0xff] %v8204
        %8235 = vst [vmem:[#allocation2 + $0x4a8] sm:$0xff] %v8206
        %8236 = vst [vmem:[#allocation2 + $0x4b0] sm:$0xff] %v8208
        %8237 = vst [vmem:[#allocation2 + $0x4b8] sm:$0xff] %v8210
        %8238 = vst [vmem:[#allocation2 + $0x4c0] sm:$0xff] %v8212
        %8239 = vst [vmem:[#allocation2 + $0x4c8] sm:$0xff] %v8214
        %8240 = vst [vmem:[#allocation2 + $0x4d0] sm:$0xff] %v8216
        %8241 = vst [vmem:[#allocation2 + $0x4d8] sm:$0xff] %v8218
        %8242 = vst [vmem:[#allocation2 + $0x4e0] sm:$0xff] %v8220
        %8243 = vst [vmem:[#allocation2 + $0x4e8] sm:$0xf] %v8221
        %v8244 = vld [vmem:[#allocation3 + $0x8] sm:$0xff]
        %v8245 = vld [vmem:[#allocation3 + $0x10] sm:$0xff]
        %v8246 = vld [vmem:[#allocation3 + $0x18] sm:$0xff]
        %v8247 = vld [vmem:[#allocation3 + $0x20] sm:$0xff]
        %v8248 = vld [vmem:[#allocation3 + $0x28] sm:$0xff]
        %v8249 = vld [vmem:[#allocation3 + $0x30] sm:$0xff]
        %v8250 = vld [vmem:[#allocation3 + $0x38] sm:$0xff]
        %v8251 = vld [vmem:[#allocation3 + $0x40] sm:$0xff]
        %v8252 = vld [vmem:[#allocation3 + $0x48] sm:$0xff]
        %v8253 = vld [vmem:[#allocation3 + $0x50] sm:$0xff]
        %v8254 = vld [vmem:[#allocation3 + $0x58] sm:$0xff]
        %8266 = vrot.lane.b32.xlu0 %v8244, 24
        %v8267 = vpop.permute.xlu0 %8266
        %8268 = vrot.lane.b32.xlu0 %v8245, 24
        %v8269 = vpop.permute.xlu0 %8268
        %8270 = vrot.lane.b32.xlu0 %v8246, 24
        %v8271 = vpop.permute.xlu0 %8270
        %8272 = vrot.lane.b32.xlu0 %v8247, 24
        %v8273 = vpop.permute.xlu0 %8272
        %8274 = vrot.lane.b32.xlu0 %v8248, 24
        %v8275 = vpop.permute.xlu0 %8274
        %8276 = vrot.lane.b32.xlu0 %v8249, 24
        %v8277 = vpop.permute.xlu0 %8276
        %8278 = vrot.lane.b32.xlu0 %v8250, 24
        %v8279 = vpop.permute.xlu0 %8278
        %8280 = vrot.lane.b32.xlu0 %v8251, 24
        %v8281 = vpop.permute.xlu0 %8280
        %8282 = vrot.lane.b32.xlu0 %v8252, 24
        %v8283 = vpop.permute.xlu0 %8282
        %8284 = vrot.lane.b32.xlu0 %v8253, 24
        %v8285 = vpop.permute.xlu0 %8284
        %8286 = vrot.lane.b32.xlu0 %v8254, 24
        %v8287 = vpop.permute.xlu0 %8286
        %v8288 = vrot.slane %v8267, 4
        %v8289 = vrot.slane %v8269, 4
        %v8290 = vrot.slane %v8271, 4
        %v8291 = vrot.slane %v8273, 4
        %v8292 = vrot.slane %v8275, 4
        %v8293 = vrot.slane %v8277, 4
        %v8294 = vrot.slane %v8279, 4
        %v8295 = vrot.slane %v8281, 4
        %v8296 = vrot.slane %v8283, 4
        %v8297 = vrot.slane %v8285, 4
        %v8298 = vrot.slane %v8287, 4
        %v8299 = vsel %vm848, %v8288, %v8289
        %v8300 = vsel %vm3251, %v8267, %v8299
        %v8301 = vsel %vm848, %v8289, %v8290
        %v8302 = vsel %vm3251, %v8269, %v8301
        %v8303 = vsel %vm848, %v8290, %v8291
        %v8304 = vsel %vm3251, %v8271, %v8303
        %v8305 = vsel %vm848, %v8291, %v8292
        %v8306 = vsel %vm3251, %v8273, %v8305
        %v8307 = vsel %vm848, %v8292, %v8293
        %v8308 = vsel %vm3251, %v8275, %v8307
        %v8309 = vsel %vm848, %v8293, %v8294
        %v8310 = vsel %vm3251, %v8277, %v8309
        %v8311 = vsel %vm848, %v8294, %v8295
        %v8312 = vsel %vm3251, %v8279, %v8311
        %v8313 = vsel %vm848, %v8295, %v8296
        %v8314 = vsel %vm3251, %v8281, %v8313
        %v8315 = vsel %vm848, %v8296, %v8297
        %v8316 = vsel %vm3251, %v8283, %v8315
        %v8317 = vsel %vm848, %v8297, %v8298
        %v8318 = vsel %vm3251, %v8285, %v8317
        %v8319 = vsel %vm3251, %v8287, %v8298
        %8331 = vst [vmem:[#allocation2 + $0x4ec] sm:$0xff] %v8300
        %8332 = vst [vmem:[#allocation2 + $0x4f4] sm:$0xff] %v8302
        %8333 = vst [vmem:[#allocation2 + $0x4fc] sm:$0xff] %v8304
        %8334 = vst [vmem:[#allocation2 + $0x504] sm:$0xff] %v8306
        %8335 = vst [vmem:[#allocation2 + $0x50c] sm:$0xff] %v8308
        %8336 = vst [vmem:[#allocation2 + $0x514] sm:$0xff] %v8310
        %8337 = vst [vmem:[#allocation2 + $0x51c] sm:$0xff] %v8312
        %8338 = vst [vmem:[#allocation2 + $0x524] sm:$0xff] %v8314
        %8339 = vst [vmem:[#allocation2 + $0x52c] sm:$0xff] %v8316
        %8340 = vst [vmem:[#allocation2 + $0x534] sm:$0xff] %v8318
        %8341 = vst [vmem:[#allocation2 + $0x53c] sm:$0xf] %v8319
        %v8342 = vld [vmem:[#allocation3 + $0x8] sm:$0xff]
        %v8343 = vld [vmem:[#allocation3 + $0x10] sm:$0xff]
        %v8344 = vld [vmem:[#allocation3 + $0x18] sm:$0xff]
        %v8345 = vld [vmem:[#allocation3 + $0x20] sm:$0xff]
        %v8346 = vld [vmem:[#allocation3 + $0x28] sm:$0xff]
        %v8347 = vld [vmem:[#allocation3 + $0x30] sm:$0xff]
        %v8348 = vld [vmem:[#allocation3 + $0x38] sm:$0xff]
        %v8349 = vld [vmem:[#allocation3 + $0x40] sm:$0xff]
        %v8350 = vld [vmem:[#allocation3 + $0x48] sm:$0xff]
        %v8351 = vld [vmem:[#allocation3 + $0x50] sm:$0xff]
        %v8352 = vld [vmem:[#allocation3 + $0x58] sm:$0xff]
        %8364 = vrot.lane.b32.xlu0 %v8342, 23
        %v8365 = vpop.permute.xlu0 %8364
        %8366 = vrot.lane.b32.xlu0 %v8343, 23
        %v8367 = vpop.permute.xlu0 %8366
        %8368 = vrot.lane.b32.xlu0 %v8344, 23
        %v8369 = vpop.permute.xlu0 %8368
        %8370 = vrot.lane.b32.xlu0 %v8345, 23
        %v8371 = vpop.permute.xlu0 %8370
        %8372 = vrot.lane.b32.xlu0 %v8346, 23
        %v8373 = vpop.permute.xlu0 %8372
        %8374 = vrot.lane.b32.xlu0 %v8347, 23
        %v8375 = vpop.permute.xlu0 %8374
        %8376 = vrot.lane.b32.xlu0 %v8348, 23
        %v8377 = vpop.permute.xlu0 %8376
        %8378 = vrot.lane.b32.xlu0 %v8349, 23
        %v8379 = vpop.permute.xlu0 %8378
        %8380 = vrot.lane.b32.xlu0 %v8350, 23
        %v8381 = vpop.permute.xlu0 %8380
        %8382 = vrot.lane.b32.xlu0 %v8351, 23
        %v8383 = vpop.permute.xlu0 %8382
        %8384 = vrot.lane.b32.xlu0 %v8352, 23
        %v8385 = vpop.permute.xlu0 %8384
        %v8386 = vrot.slane %v8365, 4
        %v8387 = vrot.slane %v8367, 4
        %v8388 = vrot.slane %v8369, 4
        %v8389 = vrot.slane %v8371, 4
        %v8390 = vrot.slane %v8373, 4
        %v8391 = vrot.slane %v8375, 4
        %v8392 = vrot.slane %v8377, 4
        %v8393 = vrot.slane %v8379, 4
        %v8394 = vrot.slane %v8381, 4
        %v8395 = vrot.slane %v8383, 4
        %v8396 = vrot.slane %v8385, 4
        %v8397 = vsel %vm848, %v8386, %v8387
        %v8398 = vsel %vm3422, %v8365, %v8397
        %v8399 = vsel %vm848, %v8387, %v8388
        %v8400 = vsel %vm3422, %v8367, %v8399
        %v8401 = vsel %vm848, %v8388, %v8389
        %v8402 = vsel %vm3422, %v8369, %v8401
        %v8403 = vsel %vm848, %v8389, %v8390
        %v8404 = vsel %vm3422, %v8371, %v8403
        %v8405 = vsel %vm848, %v8390, %v8391
        %v8406 = vsel %vm3422, %v8373, %v8405
        %v8407 = vsel %vm848, %v8391, %v8392
        %v8408 = vsel %vm3422, %v8375, %v8407
        %v8409 = vsel %vm848, %v8392, %v8393
        %v8410 = vsel %vm3422, %v8377, %v8409
        %v8411 = vsel %vm848, %v8393, %v8394
        %v8412 = vsel %vm3422, %v8379, %v8411
        %v8413 = vsel %vm848, %v8394, %v8395
        %v8414 = vsel %vm3422, %v8381, %v8413
        %v8415 = vsel %vm848, %v8395, %v8396
        %v8416 = vsel %vm3422, %v8383, %v8415
        %v8417 = vsel %vm3422, %v8385, %v8396
        %8429 = vst [vmem:[#allocation2 + $0x540] sm:$0xff] %v8398
        %8430 = vst [vmem:[#allocation2 + $0x548] sm:$0xff] %v8400
        %8431 = vst [vmem:[#allocation2 + $0x550] sm:$0xff] %v8402
        %8432 = vst [vmem:[#allocation2 + $0x558] sm:$0xff] %v8404
        %8433 = vst [vmem:[#allocation2 + $0x560] sm:$0xff] %v8406
        %8434 = vst [vmem:[#allocation2 + $0x568] sm:$0xff] %v8408
        %8435 = vst [vmem:[#allocation2 + $0x570] sm:$0xff] %v8410
        %8436 = vst [vmem:[#allocation2 + $0x578] sm:$0xff] %v8412
        %8437 = vst [vmem:[#allocation2 + $0x580] sm:$0xff] %v8414
        %8438 = vst [vmem:[#allocation2 + $0x588] sm:$0xff] %v8416
        %8439 = vst [vmem:[#allocation2 + $0x590] sm:$0xf] %v8417
        %v8440 = vld [vmem:[#allocation3 + $0x8] sm:$0xff]
        %v8441 = vld [vmem:[#allocation3 + $0x10] sm:$0xff]
        %v8442 = vld [vmem:[#allocation3 + $0x18] sm:$0xff]
        %v8443 = vld [vmem:[#allocation3 + $0x20] sm:$0xff]
        %v8444 = vld [vmem:[#allocation3 + $0x28] sm:$0xff]
        %v8445 = vld [vmem:[#allocation3 + $0x30] sm:$0xff]
        %v8446 = vld [vmem:[#allocation3 + $0x38] sm:$0xff]
        %v8447 = vld [vmem:[#allocation3 + $0x40] sm:$0xff]
        %v8448 = vld [vmem:[#allocation3 + $0x48] sm:$0xff]
        %v8449 = vld [vmem:[#allocation3 + $0x50] sm:$0xff]
        %v8450 = vld [vmem:[#allocation3 + $0x58] sm:$0xff]
        %8462 = vrot.lane.b32.xlu0 %v8440, 22
        %v8463 = vpop.permute.xlu0 %8462
        %8464 = vrot.lane.b32.xlu0 %v8441, 22
        %v8465 = vpop.permute.xlu0 %8464
        %8466 = vrot.lane.b32.xlu0 %v8442, 22
        %v8467 = vpop.permute.xlu0 %8466
        %8468 = vrot.lane.b32.xlu0 %v8443, 22
        %v8469 = vpop.permute.xlu0 %8468
        %8470 = vrot.lane.b32.xlu0 %v8444, 22
        %v8471 = vpop.permute.xlu0 %8470
        %8472 = vrot.lane.b32.xlu0 %v8445, 22
        %v8473 = vpop.permute.xlu0 %8472
        %8474 = vrot.lane.b32.xlu0 %v8446, 22
        %v8475 = vpop.permute.xlu0 %8474
        %8476 = vrot.lane.b32.xlu0 %v8447, 22
        %v8477 = vpop.permute.xlu0 %8476
        %8478 = vrot.lane.b32.xlu0 %v8448, 22
        %v8479 = vpop.permute.xlu0 %8478
        %8480 = vrot.lane.b32.xlu0 %v8449, 22
        %v8481 = vpop.permute.xlu0 %8480
        %8482 = vrot.lane.b32.xlu0 %v8450, 22
        %v8483 = vpop.permute.xlu0 %8482
        %v8484 = vrot.slane %v8463, 4
        %v8485 = vrot.slane %v8465, 4
        %v8486 = vrot.slane %v8467, 4
        %v8487 = vrot.slane %v8469, 4
        %v8488 = vrot.slane %v8471, 4
        %v8489 = vrot.slane %v8473, 4
        %v8490 = vrot.slane %v8475, 4
        %v8491 = vrot.slane %v8477, 4
        %v8492 = vrot.slane %v8479, 4
        %v8493 = vrot.slane %v8481, 4
        %v8494 = vrot.slane %v8483, 4
        %v8495 = vsel %vm848, %v8484, %v8485
        %v8496 = vsel %vm3594, %v8463, %v8495
        %v8497 = vsel %vm848, %v8485, %v8486
        %v8498 = vsel %vm3594, %v8465, %v8497
        %v8499 = vsel %vm848, %v8486, %v8487
        %v8500 = vsel %vm3594, %v8467, %v8499
        %v8501 = vsel %vm848, %v8487, %v8488
        %v8502 = vsel %vm3594, %v8469, %v8501
        %v8503 = vsel %vm848, %v8488, %v8489
        %v8504 = vsel %vm3594, %v8471, %v8503
        %v8505 = vsel %vm848, %v8489, %v8490
        %v8506 = vsel %vm3594, %v8473, %v8505
        %v8507 = vsel %vm848, %v8490, %v8491
        %v8508 = vsel %vm3594, %v8475, %v8507
        %v8509 = vsel %vm848, %v8491, %v8492
        %v8510 = vsel %vm3594, %v8477, %v8509
        %v8511 = vsel %vm848, %v8492, %v8493
        %v8512 = vsel %vm3594, %v8479, %v8511
        %v8513 = vsel %vm848, %v8493, %v8494
        %v8514 = vsel %vm3594, %v8481, %v8513
        %v8515 = vsel %vm3594, %v8483, %v8494
        %8527 = vst [vmem:[#allocation2 + $0x594] sm:$0xff] %v8496
        %8528 = vst [vmem:[#allocation2 + $0x59c] sm:$0xff] %v8498
        %8529 = vst [vmem:[#allocation2 + $0x5a4] sm:$0xff] %v8500
        %8530 = vst [vmem:[#allocation2 + $0x5ac] sm:$0xff] %v8502
        %8531 = vst [vmem:[#allocation2 + $0x5b4] sm:$0xff] %v8504
        %8532 = vst [vmem:[#allocation2 + $0x5bc] sm:$0xff] %v8506
        %8533 = vst [vmem:[#allocation2 + $0x5c4] sm:$0xff] %v8508
        %8534 = vst [vmem:[#allocation2 + $0x5cc] sm:$0xff] %v8510
        %8535 = vst [vmem:[#allocation2 + $0x5d4] sm:$0xff] %v8512
        %8536 = vst [vmem:[#allocation2 + $0x5dc] sm:$0xff] %v8514
        %8537 = vst [vmem:[#allocation2 + $0x5e4] sm:$0xf] %v8515
        %v8538 = vld [vmem:[#allocation3 + $0x14] sm:$0xff]
        %v8539 = vld [vmem:[#allocation3 + $0x1c] sm:$0xff]
        %v8540 = vld [vmem:[#allocation3 + $0x24] sm:$0xff]
        %v8541 = vld [vmem:[#allocation3 + $0x2c] sm:$0xff]
        %v8542 = vld [vmem:[#allocation3 + $0x34] sm:$0xff]
        %v8543 = vld [vmem:[#allocation3 + $0x3c] sm:$0xff]
        %v8544 = vld [vmem:[#allocation3 + $0x44] sm:$0xff]
        %v8545 = vld [vmem:[#allocation3 + $0x4c] sm:$0xff]
        %v8546 = vld [vmem:[#allocation3 + $0x54] sm:$0xff]
        %v8547 = vld [vmem:[#allocation3 + $0x5c] sm:$0xff]
        %v8548 = vld [vmem:[#allocation3 + $0x64] sm:$0xff]
        %8560 = vrot.lane.b32.xlu0 %v8538, 120
        %v8561 = vpop.permute.xlu0 %8560
        %8562 = vrot.lane.b32.xlu0 %v8539, 120
        %v8563 = vpop.permute.xlu0 %8562
        %8564 = vrot.lane.b32.xlu0 %v8540, 120
        %v8565 = vpop.permute.xlu0 %8564
        %8566 = vrot.lane.b32.xlu0 %v8541, 120
        %v8567 = vpop.permute.xlu0 %8566
        %8568 = vrot.lane.b32.xlu0 %v8542, 120
        %v8569 = vpop.permute.xlu0 %8568
        %8570 = vrot.lane.b32.xlu0 %v8543, 120
        %v8571 = vpop.permute.xlu0 %8570
        %8572 = vrot.lane.b32.xlu0 %v8544, 120
        %v8573 = vpop.permute.xlu0 %8572
        %8574 = vrot.lane.b32.xlu0 %v8545, 120
        %v8575 = vpop.permute.xlu0 %8574
        %8576 = vrot.lane.b32.xlu0 %v8546, 120
        %v8577 = vpop.permute.xlu0 %8576
        %8578 = vrot.lane.b32.xlu0 %v8547, 120
        %v8579 = vpop.permute.xlu0 %8578
        %8580 = vrot.lane.b32.xlu0 %v8548, 120
        %v8581 = vpop.permute.xlu0 %8580
        %v8582 = vrot.slane %v8561, 4
        %v8583 = vrot.slane %v8563, 4
        %v8584 = vrot.slane %v8565, 4
        %v8585 = vrot.slane %v8567, 4
        %v8586 = vrot.slane %v8569, 4
        %v8587 = vrot.slane %v8571, 4
        %v8588 = vrot.slane %v8573, 4
        %v8589 = vrot.slane %v8575, 4
        %v8590 = vrot.slane %v8577, 4
        %v8591 = vrot.slane %v8579, 4
        %v8592 = vrot.slane %v8581, 4
        %v8593 = vsel %vm848, %v8582, %v8583
        %v8594 = vsel %vm3765, %v8561, %v8593
        %v8595 = vsel %vm848, %v8583, %v8584
        %v8596 = vsel %vm3765, %v8563, %v8595
        %v8597 = vsel %vm848, %v8584, %v8585
        %v8598 = vsel %vm3765, %v8565, %v8597
        %v8599 = vsel %vm848, %v8585, %v8586
        %v8600 = vsel %vm3765, %v8567, %v8599
        %v8601 = vsel %vm848, %v8586, %v8587
        %v8602 = vsel %vm3765, %v8569, %v8601
        %v8603 = vsel %vm848, %v8587, %v8588
        %v8604 = vsel %vm3765, %v8571, %v8603
        %v8605 = vsel %vm848, %v8588, %v8589
        %v8606 = vsel %vm3765, %v8573, %v8605
        %v8607 = vsel %vm848, %v8589, %v8590
        %v8608 = vsel %vm3765, %v8575, %v8607
        %v8609 = vsel %vm848, %v8590, %v8591
        %v8610 = vsel %vm3765, %v8577, %v8609
        %v8611 = vsel %vm848, %v8591, %v8592
        %v8612 = vsel %vm3765, %v8579, %v8611
        %v8613 = vsel %vm3765, %v8581, %v8592
        %8625 = vst [vmem:[#allocation2 + $0x5e8] sm:$0xff] %v8594
        %8626 = vst [vmem:[#allocation2 + $0x5f0] sm:$0xff] %v8596
        %8627 = vst [vmem:[#allocation2 + $0x5f8] sm:$0xff] %v8598
        %8628 = vst [vmem:[#allocation2 + $0x600] sm:$0xff] %v8600
        %8629 = vst [vmem:[#allocation2 + $0x608] sm:$0xff] %v8602
        %8630 = vst [vmem:[#allocation2 + $0x610] sm:$0xff] %v8604
        %8631 = vst [vmem:[#allocation2 + $0x618] sm:$0xff] %v8606
        %8632 = vst [vmem:[#allocation2 + $0x620] sm:$0xff] %v8608
        %8633 = vst [vmem:[#allocation2 + $0x628] sm:$0xff] %v8610
        %8634 = vst [vmem:[#allocation2 + $0x630] sm:$0xff] %v8612
        %8635 = vst [vmem:[#allocation2 + $0x638] sm:$0xf] %v8613
        %v8636 = vld [vmem:[#allocation3 + $0x14] sm:$0xff]
        %v8637 = vld [vmem:[#allocation3 + $0x1c] sm:$0xff]
        %v8638 = vld [vmem:[#allocation3 + $0x24] sm:$0xff]
        %v8639 = vld [vmem:[#allocation3 + $0x2c] sm:$0xff]
        %v8640 = vld [vmem:[#allocation3 + $0x34] sm:$0xff]
        %v8641 = vld [vmem:[#allocation3 + $0x3c] sm:$0xff]
        %v8642 = vld [vmem:[#allocation3 + $0x44] sm:$0xff]
        %v8643 = vld [vmem:[#allocation3 + $0x4c] sm:$0xff]
        %v8644 = vld [vmem:[#allocation3 + $0x54] sm:$0xff]
        %v8645 = vld [vmem:[#allocation3 + $0x5c] sm:$0xff]
        %v8646 = vld [vmem:[#allocation3 + $0x64] sm:$0xff]
        %8658 = vrot.lane.b32.xlu0 %v8636, 119
        %v8659 = vpop.permute.xlu0 %8658
        %8660 = vrot.lane.b32.xlu0 %v8637, 119
        %v8661 = vpop.permute.xlu0 %8660
        %8662 = vrot.lane.b32.xlu0 %v8638, 119
        %v8663 = vpop.permute.xlu0 %8662
        %8664 = vrot.lane.b32.xlu0 %v8639, 119
        %v8665 = vpop.permute.xlu0 %8664
        %8666 = vrot.lane.b32.xlu0 %v8640, 119
        %v8667 = vpop.permute.xlu0 %8666
        %8668 = vrot.lane.b32.xlu0 %v8641, 119
        %v8669 = vpop.permute.xlu0 %8668
        %8670 = vrot.lane.b32.xlu0 %v8642, 119
        %v8671 = vpop.permute.xlu0 %8670
        %8672 = vrot.lane.b32.xlu0 %v8643, 119
        %v8673 = vpop.permute.xlu0 %8672
        %8674 = vrot.lane.b32.xlu0 %v8644, 119
        %v8675 = vpop.permute.xlu0 %8674
        %8676 = vrot.lane.b32.xlu0 %v8645, 119
        %v8677 = vpop.permute.xlu0 %8676
        %8678 = vrot.lane.b32.xlu0 %v8646, 119
        %v8679 = vpop.permute.xlu0 %8678
        %v8680 = vrot.slane %v8659, 4
        %v8681 = vrot.slane %v8661, 4
        %v8682 = vrot.slane %v8663, 4
        %v8683 = vrot.slane %v8665, 4
        %v8684 = vrot.slane %v8667, 4
        %v8685 = vrot.slane %v8669, 4
        %v8686 = vrot.slane %v8671, 4
        %v8687 = vrot.slane %v8673, 4
        %v8688 = vrot.slane %v8675, 4
        %v8689 = vrot.slane %v8677, 4
        %v8690 = vrot.slane %v8679, 4
        %v8691 = vsel %vm848, %v8680, %v8681
        %v8692 = vsel %vm3937, %v8659, %v8691
        %v8693 = vsel %vm848, %v8681, %v8682
        %v8694 = vsel %vm3937, %v8661, %v8693
        %v8695 = vsel %vm848, %v8682, %v8683
        %v8696 = vsel %vm3937, %v8663, %v8695
        %v8697 = vsel %vm848, %v8683, %v8684
        %v8698 = vsel %vm3937, %v8665, %v8697
        %v8699 = vsel %vm848, %v8684, %v8685
        %v8700 = vsel %vm3937, %v8667, %v8699
        %v8701 = vsel %vm848, %v8685, %v8686
        %v8702 = vsel %vm3937, %v8669, %v8701
        %v8703 = vsel %vm848, %v8686, %v8687
        %v8704 = vsel %vm3937, %v8671, %v8703
        %v8705 = vsel %vm848, %v8687, %v8688
        %v8706 = vsel %vm3937, %v8673, %v8705
        %v8707 = vsel %vm848, %v8688, %v8689
        %v8708 = vsel %vm3937, %v8675, %v8707
        %v8709 = vsel %vm848, %v8689, %v8690
        %v8710 = vsel %vm3937, %v8677, %v8709
        %v8711 = vsel %vm3937, %v8679, %v8690
        %8723 = vst [vmem:[#allocation2 + $0x63c] sm:$0xff] %v8692
        %8724 = vst [vmem:[#allocation2 + $0x644] sm:$0xff] %v8694
        %8725 = vst [vmem:[#allocation2 + $0x64c] sm:$0xff] %v8696
        %8726 = vst [vmem:[#allocation2 + $0x654] sm:$0xff] %v8698
        %8727 = vst [vmem:[#allocation2 + $0x65c] sm:$0xff] %v8700
        %8728 = vst [vmem:[#allocation2 + $0x664] sm:$0xff] %v8702
        %8729 = vst [vmem:[#allocation2 + $0x66c] sm:$0xff] %v8704
        %8730 = vst [vmem:[#allocation2 + $0x674] sm:$0xff] %v8706
        %8731 = vst [vmem:[#allocation2 + $0x67c] sm:$0xff] %v8708
        %8732 = vst [vmem:[#allocation2 + $0x684] sm:$0xff] %v8710
        %8733 = vst [vmem:[#allocation2 + $0x68c] sm:$0xf] %v8711
        %v8734 = vld [vmem:[#allocation3 + $0x14] sm:$0xff]
        %v8735 = vld [vmem:[#allocation3 + $0x1c] sm:$0xff]
        %v8736 = vld [vmem:[#allocation3 + $0x24] sm:$0xff]
        %v8737 = vld [vmem:[#allocation3 + $0x2c] sm:$0xff]
        %v8738 = vld [vmem:[#allocation3 + $0x34] sm:$0xff]
        %v8739 = vld [vmem:[#allocation3 + $0x3c] sm:$0xff]
        %v8740 = vld [vmem:[#allocation3 + $0x44] sm:$0xff]
        %v8741 = vld [vmem:[#allocation3 + $0x4c] sm:$0xff]
        %v8742 = vld [vmem:[#allocation3 + $0x54] sm:$0xff]
        %v8743 = vld [vmem:[#allocation3 + $0x5c] sm:$0xff]
        %v8744 = vld [vmem:[#allocation3 + $0x64] sm:$0xff]
        %8756 = vrot.lane.b32.xlu0 %v8734, 118
        %v8757 = vpop.permute.xlu0 %8756
        %8758 = vrot.lane.b32.xlu0 %v8735, 118
        %v8759 = vpop.permute.xlu0 %8758
        %8760 = vrot.lane.b32.xlu0 %v8736, 118
        %v8761 = vpop.permute.xlu0 %8760
        %8762 = vrot.lane.b32.xlu0 %v8737, 118
        %v8763 = vpop.permute.xlu0 %8762
        %8764 = vrot.lane.b32.xlu0 %v8738, 118
        %v8765 = vpop.permute.xlu0 %8764
        %8766 = vrot.lane.b32.xlu0 %v8739, 118
        %v8767 = vpop.permute.xlu0 %8766
        %8768 = vrot.lane.b32.xlu0 %v8740, 118
        %v8769 = vpop.permute.xlu0 %8768
        %8770 = vrot.lane.b32.xlu0 %v8741, 118
        %v8771 = vpop.permute.xlu0 %8770
        %8772 = vrot.lane.b32.xlu0 %v8742, 118
        %v8773 = vpop.permute.xlu0 %8772
        %8774 = vrot.lane.b32.xlu0 %v8743, 118
        %v8775 = vpop.permute.xlu0 %8774
        %8776 = vrot.lane.b32.xlu0 %v8744, 118
        %v8777 = vpop.permute.xlu0 %8776
        %v8778 = vrot.slane %v8757, 4
        %v8779 = vrot.slane %v8759, 4
        %v8780 = vrot.slane %v8761, 4
        %v8781 = vrot.slane %v8763, 4
        %v8782 = vrot.slane %v8765, 4
        %v8783 = vrot.slane %v8767, 4
        %v8784 = vrot.slane %v8769, 4
        %v8785 = vrot.slane %v8771, 4
        %v8786 = vrot.slane %v8773, 4
        %v8787 = vrot.slane %v8775, 4
        %v8788 = vrot.slane %v8777, 4
        %v8789 = vsel %vm848, %v8778, %v8779
        %v8790 = vsel %vm4108, %v8757, %v8789
        %v8791 = vsel %vm848, %v8779, %v8780
        %v8792 = vsel %vm4108, %v8759, %v8791
        %v8793 = vsel %vm848, %v8780, %v8781
        %v8794 = vsel %vm4108, %v8761, %v8793
        %v8795 = vsel %vm848, %v8781, %v8782
        %v8796 = vsel %vm4108, %v8763, %v8795
        %v8797 = vsel %vm848, %v8782, %v8783
        %v8798 = vsel %vm4108, %v8765, %v8797
        %v8799 = vsel %vm848, %v8783, %v8784
        %v8800 = vsel %vm4108, %v8767, %v8799
        %v8801 = vsel %vm848, %v8784, %v8785
        %v8802 = vsel %vm4108, %v8769, %v8801
        %v8803 = vsel %vm848, %v8785, %v8786
        %v8804 = vsel %vm4108, %v8771, %v8803
        %v8805 = vsel %vm848, %v8786, %v8787
        %v8806 = vsel %vm4108, %v8773, %v8805
        %v8807 = vsel %vm848, %v8787, %v8788
        %v8808 = vsel %vm4108, %v8775, %v8807
        %v8809 = vsel %vm4108, %v8777, %v8788
        %8821 = vst [vmem:[#allocation2 + $0x690] sm:$0xff] %v8790
        %8822 = vst [vmem:[#allocation2 + $0x698] sm:$0xff] %v8792
        %8823 = vst [vmem:[#allocation2 + $0x6a0] sm:$0xff] %v8794
        %8824 = vst [vmem:[#allocation2 + $0x6a8] sm:$0xff] %v8796
        %8825 = vst [vmem:[#allocation2 + $0x6b0] sm:$0xff] %v8798
        %8826 = vst [vmem:[#allocation2 + $0x6b8] sm:$0xff] %v8800
        %8827 = vst [vmem:[#allocation2 + $0x6c0] sm:$0xff] %v8802
        %8828 = vst [vmem:[#allocation2 + $0x6c8] sm:$0xff] %v8804
        %8829 = vst [vmem:[#allocation2 + $0x6d0] sm:$0xff] %v8806
        %8830 = vst [vmem:[#allocation2 + $0x6d8] sm:$0xff] %v8808
        %8831 = vst [vmem:[#allocation2 + $0x6e0] sm:$0xf] %v8809
        %v8832 = vld [vmem:[#allocation3 + $0x14] sm:$0xff]
        %v8833 = vld [vmem:[#allocation3 + $0x1c] sm:$0xff]
        %v8834 = vld [vmem:[#allocation3 + $0x24] sm:$0xff]
        %v8835 = vld [vmem:[#allocation3 + $0x2c] sm:$0xff]
        %v8836 = vld [vmem:[#allocation3 + $0x34] sm:$0xff]
        %v8837 = vld [vmem:[#allocation3 + $0x3c] sm:$0xff]
        %v8838 = vld [vmem:[#allocation3 + $0x44] sm:$0xff]
        %v8839 = vld [vmem:[#allocation3 + $0x4c] sm:$0xff]
        %v8840 = vld [vmem:[#allocation3 + $0x54] sm:$0xff]
        %v8841 = vld [vmem:[#allocation3 + $0x5c] sm:$0xff]
        %v8842 = vld [vmem:[#allocation3 + $0x64] sm:$0xff]
        %8854 = vrot.lane.b32.xlu0 %v8832, 102
        %v8855 = vpop.permute.xlu0 %8854
        %8856 = vrot.lane.b32.xlu0 %v8833, 102
        %v8857 = vpop.permute.xlu0 %8856
        %8858 = vrot.lane.b32.xlu0 %v8834, 102
        %v8859 = vpop.permute.xlu0 %8858
        %8860 = vrot.lane.b32.xlu0 %v8835, 102
        %v8861 = vpop.permute.xlu0 %8860
        %8862 = vrot.lane.b32.xlu0 %v8836, 102
        %v8863 = vpop.permute.xlu0 %8862
        %8864 = vrot.lane.b32.xlu0 %v8837, 102
        %v8865 = vpop.permute.xlu0 %8864
        %8866 = vrot.lane.b32.xlu0 %v8838, 102
        %v8867 = vpop.permute.xlu0 %8866
        %8868 = vrot.lane.b32.xlu0 %v8839, 102
        %v8869 = vpop.permute.xlu0 %8868
        %8870 = vrot.lane.b32.xlu0 %v8840, 102
        %v8871 = vpop.permute.xlu0 %8870
        %8872 = vrot.lane.b32.xlu0 %v8841, 102
        %v8873 = vpop.permute.xlu0 %8872
        %8874 = vrot.lane.b32.xlu0 %v8842, 102
        %v8875 = vpop.permute.xlu0 %8874
        %v8876 = vrot.slane %v8855, 4
        %v8877 = vrot.slane %v8857, 4
        %v8878 = vrot.slane %v8859, 4
        %v8879 = vrot.slane %v8861, 4
        %v8880 = vrot.slane %v8863, 4
        %v8881 = vrot.slane %v8865, 4
        %v8882 = vrot.slane %v8867, 4
        %v8883 = vrot.slane %v8869, 4
        %v8884 = vrot.slane %v8871, 4
        %v8885 = vrot.slane %v8873, 4
        %v8886 = vrot.slane %v8875, 4
        %v8887 = vsel %vm848, %v8876, %v8877
        %v8888 = vsel %vm4280, %v8855, %v8887
        %v8889 = vsel %vm848, %v8877, %v8878
        %v8890 = vsel %vm4280, %v8857, %v8889
        %v8891 = vsel %vm848, %v8878, %v8879
        %v8892 = vsel %vm4280, %v8859, %v8891
        %v8893 = vsel %vm848, %v8879, %v8880
        %v8894 = vsel %vm4280, %v8861, %v8893
        %v8895 = vsel %vm848, %v8880, %v8881
        %v8896 = vsel %vm4280, %v8863, %v8895
        %v8897 = vsel %vm848, %v8881, %v8882
        %v8898 = vsel %vm4280, %v8865, %v8897
        %v8899 = vsel %vm848, %v8882, %v8883
        %v8900 = vsel %vm4280, %v8867, %v8899
        %v8901 = vsel %vm848, %v8883, %v8884
        %v8902 = vsel %vm4280, %v8869, %v8901
        %v8903 = vsel %vm848, %v8884, %v8885
        %v8904 = vsel %vm4280, %v8871, %v8903
        %v8905 = vsel %vm848, %v8885, %v8886
        %v8906 = vsel %vm4280, %v8873, %v8905
        %v8907 = vsel %vm4280, %v8875, %v8886
        %8919 = vst [vmem:[#allocation2 + $0x6e4] sm:$0xff] %v8888
        %8920 = vst [vmem:[#allocation2 + $0x6ec] sm:$0xff] %v8890
        %8921 = vst [vmem:[#allocation2 + $0x6f4] sm:$0xff] %v8892
        %8922 = vst [vmem:[#allocation2 + $0x6fc] sm:$0xff] %v8894
        %8923 = vst [vmem:[#allocation2 + $0x704] sm:$0xff] %v8896
        %8924 = vst [vmem:[#allocation2 + $0x70c] sm:$0xff] %v8898
        %8925 = vst [vmem:[#allocation2 + $0x714] sm:$0xff] %v8900
        %8926 = vst [vmem:[#allocation2 + $0x71c] sm:$0xff] %v8902
        %8927 = vst [vmem:[#allocation2 + $0x724] sm:$0xff] %v8904
        %8928 = vst [vmem:[#allocation2 + $0x72c] sm:$0xff] %v8906
        %8929 = vst [vmem:[#allocation2 + $0x734] sm:$0xf] %v8907
        %v8930 = vld [vmem:[#allocation3 + $0x14] sm:$0xff]
        %v8931 = vld [vmem:[#allocation3 + $0x1c] sm:$0xff]
        %v8932 = vld [vmem:[#allocation3 + $0x24] sm:$0xff]
        %v8933 = vld [vmem:[#allocation3 + $0x2c] sm:$0xff]
        %v8934 = vld [vmem:[#allocation3 + $0x34] sm:$0xff]
        %v8935 = vld [vmem:[#allocation3 + $0x3c] sm:$0xff]
        %v8936 = vld [vmem:[#allocation3 + $0x44] sm:$0xff]
        %v8937 = vld [vmem:[#allocation3 + $0x4c] sm:$0xff]
        %v8938 = vld [vmem:[#allocation3 + $0x54] sm:$0xff]
        %v8939 = vld [vmem:[#allocation3 + $0x5c] sm:$0xff]
        %v8940 = vld [vmem:[#allocation3 + $0x64] sm:$0xff]
        %8952 = vrot.lane.b32.xlu0 %v8930, 101
        %v8953 = vpop.permute.xlu0 %8952
        %8954 = vrot.lane.b32.xlu0 %v8931, 101
        %v8955 = vpop.permute.xlu0 %8954
        %8956 = vrot.lane.b32.xlu0 %v8932, 101
        %v8957 = vpop.permute.xlu0 %8956
        %8958 = vrot.lane.b32.xlu0 %v8933, 101
        %v8959 = vpop.permute.xlu0 %8958
        %8960 = vrot.lane.b32.xlu0 %v8934, 101
        %v8961 = vpop.permute.xlu0 %8960
        %8962 = vrot.lane.b32.xlu0 %v8935, 101
        %v8963 = vpop.permute.xlu0 %8962
        %8964 = vrot.lane.b32.xlu0 %v8936, 101
        %v8965 = vpop.permute.xlu0 %8964
        %8966 = vrot.lane.b32.xlu0 %v8937, 101
        %v8967 = vpop.permute.xlu0 %8966
        %8968 = vrot.lane.b32.xlu0 %v8938, 101
        %v8969 = vpop.permute.xlu0 %8968
        %8970 = vrot.lane.b32.xlu0 %v8939, 101
        %v8971 = vpop.permute.xlu0 %8970
        %8972 = vrot.lane.b32.xlu0 %v8940, 101
        %v8973 = vpop.permute.xlu0 %8972
        %v8974 = vrot.slane %v8953, 4
        %v8975 = vrot.slane %v8955, 4
        %v8976 = vrot.slane %v8957, 4
        %v8977 = vrot.slane %v8959, 4
        %v8978 = vrot.slane %v8961, 4
        %v8979 = vrot.slane %v8963, 4
        %v8980 = vrot.slane %v8965, 4
        %v8981 = vrot.slane %v8967, 4
        %v8982 = vrot.slane %v8969, 4
        %v8983 = vrot.slane %v8971, 4
        %v8984 = vrot.slane %v8973, 4
        %v8985 = vsel %vm848, %v8974, %v8975
        %v8986 = vsel %vm4451, %v8953, %v8985
        %v8987 = vsel %vm848, %v8975, %v8976
        %v8988 = vsel %vm4451, %v8955, %v8987
        %v8989 = vsel %vm848, %v8976, %v8977
        %v8990 = vsel %vm4451, %v8957, %v8989
        %v8991 = vsel %vm848, %v8977, %v8978
        %v8992 = vsel %vm4451, %v8959, %v8991
        %v8993 = vsel %vm848, %v8978, %v8979
        %v8994 = vsel %vm4451, %v8961, %v8993
        %v8995 = vsel %vm848, %v8979, %v8980
        %v8996 = vsel %vm4451, %v8963, %v8995
        %v8997 = vsel %vm848, %v8980, %v8981
        %v8998 = vsel %vm4451, %v8965, %v8997
        %v8999 = vsel %vm848, %v8981, %v8982
        %v9000 = vsel %vm4451, %v8967, %v8999
        %v9001 = vsel %vm848, %v8982, %v8983
        %v9002 = vsel %vm4451, %v8969, %v9001
        %v9003 = vsel %vm848, %v8983, %v8984
        %v9004 = vsel %vm4451, %v8971, %v9003
        %v9005 = vsel %vm4451, %v8973, %v8984
        %9017 = vst [vmem:[#allocation2 + $0x738] sm:$0xff] %v8986
        %9018 = vst [vmem:[#allocation2 + $0x740] sm:$0xff] %v8988
        %9019 = vst [vmem:[#allocation2 + $0x748] sm:$0xff] %v8990
        %9020 = vst [vmem:[#allocation2 + $0x750] sm:$0xff] %v8992
        %9021 = vst [vmem:[#allocation2 + $0x758] sm:$0xff] %v8994
        %9022 = vst [vmem:[#allocation2 + $0x760] sm:$0xff] %v8996
        %9023 = vst [vmem:[#allocation2 + $0x768] sm:$0xff] %v8998
        %9024 = vst [vmem:[#allocation2 + $0x770] sm:$0xff] %v9000
        %9025 = vst [vmem:[#allocation2 + $0x778] sm:$0xff] %v9002
        %9026 = vst [vmem:[#allocation2 + $0x780] sm:$0xff] %v9004
        %9027 = vst [vmem:[#allocation2 + $0x788] sm:$0xf] %v9005
        %v9028 = vld [vmem:[#allocation3 + $0x14] sm:$0xff]
        %v9029 = vld [vmem:[#allocation3 + $0x1c] sm:$0xff]
        %v9030 = vld [vmem:[#allocation3 + $0x24] sm:$0xff]
        %v9031 = vld [vmem:[#allocation3 + $0x2c] sm:$0xff]
        %v9032 = vld [vmem:[#allocation3 + $0x34] sm:$0xff]
        %v9033 = vld [vmem:[#allocation3 + $0x3c] sm:$0xff]
        %v9034 = vld [vmem:[#allocation3 + $0x44] sm:$0xff]
        %v9035 = vld [vmem:[#allocation3 + $0x4c] sm:$0xff]
        %v9036 = vld [vmem:[#allocation3 + $0x54] sm:$0xff]
        %v9037 = vld [vmem:[#allocation3 + $0x5c] sm:$0xff]
        %v9038 = vld [vmem:[#allocation3 + $0x64] sm:$0xff]
        %9050 = vrot.lane.b32.xlu0 %v9028, 100
        %v9051 = vpop.permute.xlu0 %9050
        %9052 = vrot.lane.b32.xlu0 %v9029, 100
        %v9053 = vpop.permute.xlu0 %9052
        %9054 = vrot.lane.b32.xlu0 %v9030, 100
        %v9055 = vpop.permute.xlu0 %9054
        %9056 = vrot.lane.b32.xlu0 %v9031, 100
        %v9057 = vpop.permute.xlu0 %9056
        %9058 = vrot.lane.b32.xlu0 %v9032, 100
        %v9059 = vpop.permute.xlu0 %9058
        %9060 = vrot.lane.b32.xlu0 %v9033, 100
        %v9061 = vpop.permute.xlu0 %9060
        %9062 = vrot.lane.b32.xlu0 %v9034, 100
        %v9063 = vpop.permute.xlu0 %9062
        %9064 = vrot.lane.b32.xlu0 %v9035, 100
        %v9065 = vpop.permute.xlu0 %9064
        %9066 = vrot.lane.b32.xlu0 %v9036, 100
        %v9067 = vpop.permute.xlu0 %9066
        %9068 = vrot.lane.b32.xlu0 %v9037, 100
        %v9069 = vpop.permute.xlu0 %9068
        %9070 = vrot.lane.b32.xlu0 %v9038, 100
        %v9071 = vpop.permute.xlu0 %9070
        %v9072 = vrot.slane %v9051, 4
        %v9073 = vrot.slane %v9053, 4
        %v9074 = vrot.slane %v9055, 4
        %v9075 = vrot.slane %v9057, 4
        %v9076 = vrot.slane %v9059, 4
        %v9077 = vrot.slane %v9061, 4
        %v9078 = vrot.slane %v9063, 4
        %v9079 = vrot.slane %v9065, 4
        %v9080 = vrot.slane %v9067, 4
        %v9081 = vrot.slane %v9069, 4
        %v9082 = vrot.slane %v9071, 4
        %v9083 = vsel %vm848, %v9072, %v9073
        %v9084 = vsel %vm4623, %v9051, %v9083
        %v9085 = vsel %vm848, %v9073, %v9074
        %v9086 = vsel %vm4623, %v9053, %v9085
        %v9087 = vsel %vm848, %v9074, %v9075
        %v9088 = vsel %vm4623, %v9055, %v9087
        %v9089 = vsel %vm848, %v9075, %v9076
        %v9090 = vsel %vm4623, %v9057, %v9089
        %v9091 = vsel %vm848, %v9076, %v9077
        %v9092 = vsel %vm4623, %v9059, %v9091
        %v9093 = vsel %vm848, %v9077, %v9078
        %v9094 = vsel %vm4623, %v9061, %v9093
        %v9095 = vsel %vm848, %v9078, %v9079
        %v9096 = vsel %vm4623, %v9063, %v9095
        %v9097 = vsel %vm848, %v9079, %v9080
        %v9098 = vsel %vm4623, %v9065, %v9097
        %v9099 = vsel %vm848, %v9080, %v9081
        %v9100 = vsel %vm4623, %v9067, %v9099
        %v9101 = vsel %vm848, %v9081, %v9082
        %v9102 = vsel %vm4623, %v9069, %v9101
        %v9103 = vsel %vm4623, %v9071, %v9082
        %9115 = vst [vmem:[#allocation2 + $0x78c] sm:$0xff] %v9084
        %9116 = vst [vmem:[#allocation2 + $0x794] sm:$0xff] %v9086
        %9117 = vst [vmem:[#allocation2 + $0x79c] sm:$0xff] %v9088
        %9118 = vst [vmem:[#allocation2 + $0x7a4] sm:$0xff] %v9090
        %9119 = vst [vmem:[#allocation2 + $0x7ac] sm:$0xff] %v9092
        %9120 = vst [vmem:[#allocation2 + $0x7b4] sm:$0xff] %v9094
        %9121 = vst [vmem:[#allocation2 + $0x7bc] sm:$0xff] %v9096
        %9122 = vst [vmem:[#allocation2 + $0x7c4] sm:$0xff] %v9098
        %9123 = vst [vmem:[#allocation2 + $0x7cc] sm:$0xff] %v9100
        %9124 = vst [vmem:[#allocation2 + $0x7d4] sm:$0xff] %v9102
        %9125 = vst [vmem:[#allocation2 + $0x7dc] sm:$0xf] %v9103
        %v9126 = vld [vmem:[#allocation3 + $0x14] sm:$0xff]
        %v9127 = vld [vmem:[#allocation3 + $0x1c] sm:$0xff]
        %v9128 = vld [vmem:[#allocation3 + $0x24] sm:$0xff]
        %v9129 = vld [vmem:[#allocation3 + $0x2c] sm:$0xff]
        %v9130 = vld [vmem:[#allocation3 + $0x34] sm:$0xff]
        %v9131 = vld [vmem:[#allocation3 + $0x3c] sm:$0xff]
        %v9132 = vld [vmem:[#allocation3 + $0x44] sm:$0xff]
        %v9133 = vld [vmem:[#allocation3 + $0x4c] sm:$0xff]
        %v9134 = vld [vmem:[#allocation3 + $0x54] sm:$0xff]
        %v9135 = vld [vmem:[#allocation3 + $0x5c] sm:$0xff]
        %v9136 = vld [vmem:[#allocation3 + $0x64] sm:$0xff]
        %9148 = vrot.lane.b32.xlu0 %v9126, 84
        %v9149 = vpop.permute.xlu0 %9148
        %9150 = vrot.lane.b32.xlu0 %v9127, 84
        %v9151 = vpop.permute.xlu0 %9150
        %9152 = vrot.lane.b32.xlu0 %v9128, 84
        %v9153 = vpop.permute.xlu0 %9152
        %9154 = vrot.lane.b32.xlu0 %v9129, 84
        %v9155 = vpop.permute.xlu0 %9154
        %9156 = vrot.lane.b32.xlu0 %v9130, 84
        %v9157 = vpop.permute.xlu0 %9156
        %9158 = vrot.lane.b32.xlu0 %v9131, 84
        %v9159 = vpop.permute.xlu0 %9158
        %9160 = vrot.lane.b32.xlu0 %v9132, 84
        %v9161 = vpop.permute.xlu0 %9160
        %9162 = vrot.lane.b32.xlu0 %v9133, 84
        %v9163 = vpop.permute.xlu0 %9162
        %9164 = vrot.lane.b32.xlu0 %v9134, 84
        %v9165 = vpop.permute.xlu0 %9164
        %9166 = vrot.lane.b32.xlu0 %v9135, 84
        %v9167 = vpop.permute.xlu0 %9166
        %9168 = vrot.lane.b32.xlu0 %v9136, 84
        %v9169 = vpop.permute.xlu0 %9168
        %v9170 = vrot.slane %v9149, 4
        %v9171 = vrot.slane %v9151, 4
        %v9172 = vrot.slane %v9153, 4
        %v9173 = vrot.slane %v9155, 4
        %v9174 = vrot.slane %v9157, 4
        %v9175 = vrot.slane %v9159, 4
        %v9176 = vrot.slane %v9161, 4
        %v9177 = vrot.slane %v9163, 4
        %v9178 = vrot.slane %v9165, 4
        %v9179 = vrot.slane %v9167, 4
        %v9180 = vrot.slane %v9169, 4
        %v9181 = vsel %vm848, %v9170, %v9171
        %v9182 = vsel %vm4794, %v9149, %v9181
        %v9183 = vsel %vm848, %v9171, %v9172
        %v9184 = vsel %vm4794, %v9151, %v9183
        %v9185 = vsel %vm848, %v9172, %v9173
        %v9186 = vsel %vm4794, %v9153, %v9185
        %v9187 = vsel %vm848, %v9173, %v9174
        %v9188 = vsel %vm4794, %v9155, %v9187
        %v9189 = vsel %vm848, %v9174, %v9175
        %v9190 = vsel %vm4794, %v9157, %v9189
        %v9191 = vsel %vm848, %v9175, %v9176
        %v9192 = vsel %vm4794, %v9159, %v9191
        %v9193 = vsel %vm848, %v9176, %v9177
        %v9194 = vsel %vm4794, %v9161, %v9193
        %v9195 = vsel %vm848, %v9177, %v9178
        %v9196 = vsel %vm4794, %v9163, %v9195
        %v9197 = vsel %vm848, %v9178, %v9179
        %v9198 = vsel %vm4794, %v9165, %v9197
        %v9199 = vsel %vm848, %v9179, %v9180
        %v9200 = vsel %vm4794, %v9167, %v9199
        %v9201 = vsel %vm4794, %v9169, %v9180
        %9213 = vst [vmem:[#allocation2 + $0x7e0] sm:$0xff] %v9182
        %9214 = vst [vmem:[#allocation2 + $0x7e8] sm:$0xff] %v9184
        %9215 = vst [vmem:[#allocation2 + $0x7f0] sm:$0xff] %v9186
        %9216 = vst [vmem:[#allocation2 + $0x7f8] sm:$0xff] %v9188
        %9217 = vst [vmem:[#allocation2 + $0x800] sm:$0xff] %v9190
        %9218 = vst [vmem:[#allocation2 + $0x808] sm:$0xff] %v9192
        %9219 = vst [vmem:[#allocation2 + $0x810] sm:$0xff] %v9194
        %9220 = vst [vmem:[#allocation2 + $0x818] sm:$0xff] %v9196
        %9221 = vst [vmem:[#allocation2 + $0x820] sm:$0xff] %v9198
        %9222 = vst [vmem:[#allocation2 + $0x828] sm:$0xff] %v9200
        %9223 = vst [vmem:[#allocation2 + $0x830] sm:$0xf] %v9201
        %v9224 = vld [vmem:[#allocation3 + $0x14] sm:$0xff]
        %v9225 = vld [vmem:[#allocation3 + $0x1c] sm:$0xff]
        %v9226 = vld [vmem:[#allocation3 + $0x24] sm:$0xff]
        %v9227 = vld [vmem:[#allocation3 + $0x2c] sm:$0xff]
        %v9228 = vld [vmem:[#allocation3 + $0x34] sm:$0xff]
        %v9229 = vld [vmem:[#allocation3 + $0x3c] sm:$0xff]
        %v9230 = vld [vmem:[#allocation3 + $0x44] sm:$0xff]
        %v9231 = vld [vmem:[#allocation3 + $0x4c] sm:$0xff]
        %v9232 = vld [vmem:[#allocation3 + $0x54] sm:$0xff]
        %v9233 = vld [vmem:[#allocation3 + $0x5c] sm:$0xff]
        %v9234 = vld [vmem:[#allocation3 + $0x64] sm:$0xff]
        %9246 = vrot.lane.b32.xlu0 %v9224, 83
        %v9247 = vpop.permute.xlu0 %9246
        %9248 = vrot.lane.b32.xlu0 %v9225, 83
        %v9249 = vpop.permute.xlu0 %9248
        %9250 = vrot.lane.b32.xlu0 %v9226, 83
        %v9251 = vpop.permute.xlu0 %9250
        %9252 = vrot.lane.b32.xlu0 %v9227, 83
        %v9253 = vpop.permute.xlu0 %9252
        %9254 = vrot.lane.b32.xlu0 %v9228, 83
        %v9255 = vpop.permute.xlu0 %9254
        %9256 = vrot.lane.b32.xlu0 %v9229, 83
        %v9257 = vpop.permute.xlu0 %9256
        %9258 = vrot.lane.b32.xlu0 %v9230, 83
        %v9259 = vpop.permute.xlu0 %9258
        %9260 = vrot.lane.b32.xlu0 %v9231, 83
        %v9261 = vpop.permute.xlu0 %9260
        %9262 = vrot.lane.b32.xlu0 %v9232, 83
        %v9263 = vpop.permute.xlu0 %9262
        %9264 = vrot.lane.b32.xlu0 %v9233, 83
        %v9265 = vpop.permute.xlu0 %9264
        %9266 = vrot.lane.b32.xlu0 %v9234, 83
        %v9267 = vpop.permute.xlu0 %9266
        %v9268 = vrot.slane %v9247, 4
        %v9269 = vrot.slane %v9249, 4
        %v9270 = vrot.slane %v9251, 4
        %v9271 = vrot.slane %v9253, 4
        %v9272 = vrot.slane %v9255, 4
        %v9273 = vrot.slane %v9257, 4
        %v9274 = vrot.slane %v9259, 4
        %v9275 = vrot.slane %v9261, 4
        %v9276 = vrot.slane %v9263, 4
        %v9277 = vrot.slane %v9265, 4
        %v9278 = vrot.slane %v9267, 4
        %v9279 = vsel %vm848, %v9268, %v9269
        %v9280 = vsel %vm4966, %v9247, %v9279
        %v9281 = vsel %vm848, %v9269, %v9270
        %v9282 = vsel %vm4966, %v9249, %v9281
        %v9283 = vsel %vm848, %v9270, %v9271
        %v9284 = vsel %vm4966, %v9251, %v9283
        %v9285 = vsel %vm848, %v9271, %v9272
        %v9286 = vsel %vm4966, %v9253, %v9285
        %v9287 = vsel %vm848, %v9272, %v9273
        %v9288 = vsel %vm4966, %v9255, %v9287
        %v9289 = vsel %vm848, %v9273, %v9274
        %v9290 = vsel %vm4966, %v9257, %v9289
        %v9291 = vsel %vm848, %v9274, %v9275
        %v9292 = vsel %vm4966, %v9259, %v9291
        %v9293 = vsel %vm848, %v9275, %v9276
        %v9294 = vsel %vm4966, %v9261, %v9293
        %v9295 = vsel %vm848, %v9276, %v9277
        %v9296 = vsel %vm4966, %v9263, %v9295
        %v9297 = vsel %vm848, %v9277, %v9278
        %v9298 = vsel %vm4966, %v9265, %v9297
        %v9299 = vsel %vm4966, %v9267, %v9278
        %9311 = vst [vmem:[#allocation2 + $0x834] sm:$0xff] %v9280
        %9312 = vst [vmem:[#allocation2 + $0x83c] sm:$0xff] %v9282
        %9313 = vst [vmem:[#allocation2 + $0x844] sm:$0xff] %v9284
        %9314 = vst [vmem:[#allocation2 + $0x84c] sm:$0xff] %v9286
        %9315 = vst [vmem:[#allocation2 + $0x854] sm:$0xff] %v9288
        %9316 = vst [vmem:[#allocation2 + $0x85c] sm:$0xff] %v9290
        %9317 = vst [vmem:[#allocation2 + $0x864] sm:$0xff] %v9292
        %9318 = vst [vmem:[#allocation2 + $0x86c] sm:$0xff] %v9294
        %9319 = vst [vmem:[#allocation2 + $0x874] sm:$0xff] %v9296
        %9320 = vst [vmem:[#allocation2 + $0x87c] sm:$0xff] %v9298
        %9321 = vst [vmem:[#allocation2 + $0x884] sm:$0xf] %v9299
        %v9322 = vld [vmem:[#allocation3 + $0x14] sm:$0xff]
        %v9323 = vld [vmem:[#allocation3 + $0x1c] sm:$0xff]
        %v9324 = vld [vmem:[#allocation3 + $0x24] sm:$0xff]
        %v9325 = vld [vmem:[#allocation3 + $0x2c] sm:$0xff]
        %v9326 = vld [vmem:[#allocation3 + $0x34] sm:$0xff]
        %v9327 = vld [vmem:[#allocation3 + $0x3c] sm:$0xff]
        %v9328 = vld [vmem:[#allocation3 + $0x44] sm:$0xff]
        %v9329 = vld [vmem:[#allocation3 + $0x4c] sm:$0xff]
        %v9330 = vld [vmem:[#allocation3 + $0x54] sm:$0xff]
        %v9331 = vld [vmem:[#allocation3 + $0x5c] sm:$0xff]
        %v9332 = vld [vmem:[#allocation3 + $0x64] sm:$0xff]
        %9344 = vrot.lane.b32.xlu0 %v9322, 82
        %v9345 = vpop.permute.xlu0 %9344
        %9346 = vrot.lane.b32.xlu0 %v9323, 82
        %v9347 = vpop.permute.xlu0 %9346
        %9348 = vrot.lane.b32.xlu0 %v9324, 82
        %v9349 = vpop.permute.xlu0 %9348
        %9350 = vrot.lane.b32.xlu0 %v9325, 82
        %v9351 = vpop.permute.xlu0 %9350
        %9352 = vrot.lane.b32.xlu0 %v9326, 82
        %v9353 = vpop.permute.xlu0 %9352
        %9354 = vrot.lane.b32.xlu0 %v9327, 82
        %v9355 = vpop.permute.xlu0 %9354
        %9356 = vrot.lane.b32.xlu0 %v9328, 82
        %v9357 = vpop.permute.xlu0 %9356
        %9358 = vrot.lane.b32.xlu0 %v9329, 82
        %v9359 = vpop.permute.xlu0 %9358
        %9360 = vrot.lane.b32.xlu0 %v9330, 82
        %v9361 = vpop.permute.xlu0 %9360
        %9362 = vrot.lane.b32.xlu0 %v9331, 82
        %v9363 = vpop.permute.xlu0 %9362
        %9364 = vrot.lane.b32.xlu0 %v9332, 82
        %v9365 = vpop.permute.xlu0 %9364
        %v9366 = vrot.slane %v9345, 4
        %v9367 = vrot.slane %v9347, 4
        %v9368 = vrot.slane %v9349, 4
        %v9369 = vrot.slane %v9351, 4
        %v9370 = vrot.slane %v9353, 4
        %v9371 = vrot.slane %v9355, 4
        %v9372 = vrot.slane %v9357, 4
        %v9373 = vrot.slane %v9359, 4
        %v9374 = vrot.slane %v9361, 4
        %v9375 = vrot.slane %v9363, 4
        %v9376 = vrot.slane %v9365, 4
        %v9377 = vsel %vm848, %v9366, %v9367
        %v9378 = vsel %vm5137, %v9345, %v9377
        %v9379 = vsel %vm848, %v9367, %v9368
        %v9380 = vsel %vm5137, %v9347, %v9379
        %v9381 = vsel %vm848, %v9368, %v9369
        %v9382 = vsel %vm5137, %v9349, %v9381
        %v9383 = vsel %vm848, %v9369, %v9370
        %v9384 = vsel %vm5137, %v9351, %v9383
        %v9385 = vsel %vm848, %v9370, %v9371
        %v9386 = vsel %vm5137, %v9353, %v9385
        %v9387 = vsel %vm848, %v9371, %v9372
        %v9388 = vsel %vm5137, %v9355, %v9387
        %v9389 = vsel %vm848, %v9372, %v9373
        %v9390 = vsel %vm5137, %v9357, %v9389
        %v9391 = vsel %vm848, %v9373, %v9374
        %v9392 = vsel %vm5137, %v9359, %v9391
        %v9393 = vsel %vm848, %v9374, %v9375
        %v9394 = vsel %vm5137, %v9361, %v9393
        %v9395 = vsel %vm848, %v9375, %v9376
        %v9396 = vsel %vm5137, %v9363, %v9395
        %v9397 = vsel %vm5137, %v9365, %v9376
        %9409 = vst [vmem:[#allocation2 + $0x888] sm:$0xff] %v9378
        %9410 = vst [vmem:[#allocation2 + $0x890] sm:$0xff] %v9380
        %9411 = vst [vmem:[#allocation2 + $0x898] sm:$0xff] %v9382
        %9412 = vst [vmem:[#allocation2 + $0x8a0] sm:$0xff] %v9384
        %9413 = vst [vmem:[#allocation2 + $0x8a8] sm:$0xff] %v9386
        %9414 = vst [vmem:[#allocation2 + $0x8b0] sm:$0xff] %v9388
        %9415 = vst [vmem:[#allocation2 + $0x8b8] sm:$0xff] %v9390
        %9416 = vst [vmem:[#allocation2 + $0x8c0] sm:$0xff] %v9392
        %9417 = vst [vmem:[#allocation2 + $0x8c8] sm:$0xff] %v9394
        %9418 = vst [vmem:[#allocation2 + $0x8d0] sm:$0xff] %v9396
        %9419 = vst [vmem:[#allocation2 + $0x8d8] sm:$0xf] %v9397
        %v9420 = vld [vmem:[#allocation7] sm:$0xff]
        %v9421 = vld [vmem:[#allocation2] sm:$0xff]
        %v9422 = vld [vmem:[#allocation2 + $0x8] sm:$0xff]
        %v9423 = vld [vmem:[#allocation2 + $0x10] sm:$0xff]
        %v9424 = vld [vmem:[#allocation2 + $0x18] sm:$0xff]
        %v9425 = vld [vmem:[#allocation2 + $0x20] sm:$0xff]
        %v9426 = vld [vmem:[#allocation2 + $0x28] sm:$0xff]
        %v9427 = vld [vmem:[#allocation2 + $0x30] sm:$0xff]
        %v9428 = vld [vmem:[#allocation2 + $0x38] sm:$0xff]
        %v9429 = vld [vmem:[#allocation2 + $0x40] sm:$0xff]
        %v9430 = vld [vmem:[#allocation2 + $0x48] sm:$0xff]
        %v9431 = vld [vmem:[#allocation2 + $0x50] sm:$0xf]
        %v9432 = vld [vmem:[#allocation2 + $0x54] sm:$0xff]
        %v9433 = vld [vmem:[#allocation2 + $0x5c] sm:$0xff]
        %v9434 = vld [vmem:[#allocation2 + $0x64] sm:$0xff]
        %v9435 = vld [vmem:[#allocation2 + $0x6c] sm:$0xff]
        %v9436 = vld [vmem:[#allocation2 + $0x74] sm:$0xff]
        %v9437 = vld [vmem:[#allocation2 + $0x7c] sm:$0xff]
        %v9438 = vld [vmem:[#allocation2 + $0x84] sm:$0xff]
        %v9439 = vld [vmem:[#allocation2 + $0x8c] sm:$0xff]
        %v9440 = vld [vmem:[#allocation2 + $0x94] sm:$0xff]
        %v9441 = vld [vmem:[#allocation2 + $0x9c] sm:$0xff]
        %v9442 = vld [vmem:[#allocation2 + $0xa4] sm:$0xf]
        %v9443 = vld [vmem:[#allocation2 + $0xa8] sm:$0xff]
        %v9444 = vld [vmem:[#allocation2 + $0xb0] sm:$0xff]
        %v9445 = vld [vmem:[#allocation2 + $0xb8] sm:$0xff]
        %v9446 = vld [vmem:[#allocation2 + $0xc0] sm:$0xff]
        %v9447 = vld [vmem:[#allocation2 + $0xc8] sm:$0xff]
        %v9448 = vld [vmem:[#allocation2 + $0xd0] sm:$0xff]
        %v9449 = vld [vmem:[#allocation2 + $0xd8] sm:$0xff]
        %v9450 = vld [vmem:[#allocation2 + $0xe0] sm:$0xff]
        %v9451 = vld [vmem:[#allocation2 + $0xe8] sm:$0xff]
        %v9452 = vld [vmem:[#allocation2 + $0xf0] sm:$0xff]
        %v9453 = vld [vmem:[#allocation2 + $0xf8] sm:$0xf]
        %v9454 = vld [vmem:[#allocation2 + $0xfc] sm:$0xff]
        %v9455 = vld [vmem:[#allocation2 + $0x104] sm:$0xff]
        %v9456 = vld [vmem:[#allocation2 + $0x10c] sm:$0xff]
        %v9457 = vld [vmem:[#allocation2 + $0x114] sm:$0xff]
        %v9458 = vld [vmem:[#allocation2 + $0x11c] sm:$0xff]
        %v9459 = vld [vmem:[#allocation2 + $0x124] sm:$0xff]
        %v9460 = vld [vmem:[#allocation2 + $0x12c] sm:$0xff]
        %v9461 = vld [vmem:[#allocation2 + $0x134] sm:$0xff]
        %v9462 = vld [vmem:[#allocation2 + $0x13c] sm:$0xff]
        %v9463 = vld [vmem:[#allocation2 + $0x144] sm:$0xff]
        %v9464 = vld [vmem:[#allocation2 + $0x14c] sm:$0xf]
        %v9465 = vld [vmem:[#allocation2 + $0x150] sm:$0xff]
        %v9466 = vld [vmem:[#allocation2 + $0x158] sm:$0xff]
        %v9467 = vld [vmem:[#allocation2 + $0x160] sm:$0xff]
        %v9468 = vld [vmem:[#allocation2 + $0x168] sm:$0xff]
        %v9469 = vld [vmem:[#allocation2 + $0x170] sm:$0xff]
        %v9470 = vld [vmem:[#allocation2 + $0x178] sm:$0xff]
        %v9471 = vld [vmem:[#allocation2 + $0x180] sm:$0xff]
        %v9472 = vld [vmem:[#allocation2 + $0x188] sm:$0xff]
        %v9473 = vld [vmem:[#allocation2 + $0x190] sm:$0xff]
        %v9474 = vld [vmem:[#allocation2 + $0x198] sm:$0xff]
        %v9475 = vld [vmem:[#allocation2 + $0x1a0] sm:$0xf]
        %v9476 = vld [vmem:[#allocation2 + $0x1a4] sm:$0xff]
        %v9477 = vld [vmem:[#allocation2 + $0x1ac] sm:$0xff]
        %v9478 = vld [vmem:[#allocation2 + $0x1b4] sm:$0xff]
        %v9479 = vld [vmem:[#allocation2 + $0x1bc] sm:$0xff]
        %v9480 = vld [vmem:[#allocation2 + $0x1c4] sm:$0xff]
        %v9481 = vld [vmem:[#allocation2 + $0x1cc] sm:$0xff]
        %v9482 = vld [vmem:[#allocation2 + $0x1d4] sm:$0xff]
        %v9483 = vld [vmem:[#allocation2 + $0x1dc] sm:$0xff]
        %v9484 = vld [vmem:[#allocation2 + $0x1e4] sm:$0xff]
        %v9485 = vld [vmem:[#allocation2 + $0x1ec] sm:$0xff]
        %v9486 = vld [vmem:[#allocation2 + $0x1f4] sm:$0xf]
        %v9487 = vld [vmem:[#allocation2 + $0x1f8] sm:$0xff]
        %v9488 = vld [vmem:[#allocation2 + $0x200] sm:$0xff]
        %v9489 = vld [vmem:[#allocation2 + $0x208] sm:$0xff]
        %v9490 = vld [vmem:[#allocation2 + $0x210] sm:$0xff]
        %v9491 = vld [vmem:[#allocation2 + $0x218] sm:$0xff]
        %v9492 = vld [vmem:[#allocation2 + $0x220] sm:$0xff]
        %v9493 = vld [vmem:[#allocation2 + $0x228] sm:$0xff]
        %v9494 = vld [vmem:[#allocation2 + $0x230] sm:$0xff]
        %v9495 = vld [vmem:[#allocation2 + $0x238] sm:$0xff]
        %v9496 = vld [vmem:[#allocation2 + $0x240] sm:$0xff]
        %v9497 = vld [vmem:[#allocation2 + $0x248] sm:$0xf]
        %v9498 = vld [vmem:[#allocation2 + $0x24c] sm:$0xff]
        %v9499 = vld [vmem:[#allocation2 + $0x254] sm:$0xff]
        %v9500 = vld [vmem:[#allocation2 + $0x25c] sm:$0xff]
        %v9501 = vld [vmem:[#allocation2 + $0x264] sm:$0xff]
        %v9502 = vld [vmem:[#allocation2 + $0x26c] sm:$0xff]
        %v9503 = vld [vmem:[#allocation2 + $0x274] sm:$0xff]
        %v9504 = vld [vmem:[#allocation2 + $0x27c] sm:$0xff]
        %v9505 = vld [vmem:[#allocation2 + $0x284] sm:$0xff]
        %v9506 = vld [vmem:[#allocation2 + $0x28c] sm:$0xff]
        %v9507 = vld [vmem:[#allocation2 + $0x294] sm:$0xff]
        %v9508 = vld [vmem:[#allocation2 + $0x29c] sm:$0xf]
        %v9509 = vld [vmem:[#allocation2 + $0x2a0] sm:$0xff]
        %v9510 = vld [vmem:[#allocation2 + $0x2a8] sm:$0xff]
        %v9511 = vld [vmem:[#allocation2 + $0x2b0] sm:$0xff]
        %v9512 = vld [vmem:[#allocation2 + $0x2b8] sm:$0xff]
        %v9513 = vld [vmem:[#allocation2 + $0x2c0] sm:$0xff]
        %v9514 = vld [vmem:[#allocation2 + $0x2c8] sm:$0xff]
        %v9515 = vld [vmem:[#allocation2 + $0x2d0] sm:$0xff]
        %v9516 = vld [vmem:[#allocation2 + $0x2d8] sm:$0xff]
        %v9517 = vld [vmem:[#allocation2 + $0x2e0] sm:$0xff]
        %v9518 = vld [vmem:[#allocation2 + $0x2e8] sm:$0xff]
        %v9519 = vld [vmem:[#allocation2 + $0x2f0] sm:$0xf]
        %v9520 = vld [vmem:[#allocation2 + $0x2f4] sm:$0xff]
        %v9521 = vld [vmem:[#allocation2 + $0x2fc] sm:$0xff]
        %v9522 = vld [vmem:[#allocation2 + $0x304] sm:$0xff]
        %v9523 = vld [vmem:[#allocation2 + $0x30c] sm:$0xff]
        %v9524 = vld [vmem:[#allocation2 + $0x314] sm:$0xff]
        %v9525 = vld [vmem:[#allocation2 + $0x31c] sm:$0xff]
        %v9526 = vld [vmem:[#allocation2 + $0x324] sm:$0xff]
        %v9527 = vld [vmem:[#allocation2 + $0x32c] sm:$0xff]
        %v9528 = vld [vmem:[#allocation2 + $0x334] sm:$0xff]
        %v9529 = vld [vmem:[#allocation2 + $0x33c] sm:$0xff]
        %v9530 = vld [vmem:[#allocation2 + $0x344] sm:$0xf]
        %v9531 = vld [vmem:[#allocation2 + $0x348] sm:$0xff]
        %v9532 = vld [vmem:[#allocation2 + $0x350] sm:$0xff]
        %v9533 = vld [vmem:[#allocation2 + $0x358] sm:$0xff]
        %v9534 = vld [vmem:[#allocation2 + $0x360] sm:$0xff]
        %v9535 = vld [vmem:[#allocation2 + $0x368] sm:$0xff]
        %v9536 = vld [vmem:[#allocation2 + $0x370] sm:$0xff]
        %v9537 = vld [vmem:[#allocation2 + $0x378] sm:$0xff]
        %v9538 = vld [vmem:[#allocation2 + $0x380] sm:$0xff]
        %v9539 = vld [vmem:[#allocation2 + $0x388] sm:$0xff]
        %v9540 = vld [vmem:[#allocation2 + $0x390] sm:$0xff]
        %v9541 = vld [vmem:[#allocation2 + $0x398] sm:$0xf]
        %v9542 = vld [vmem:[#allocation2 + $0x39c] sm:$0xff]
        %v9543 = vld [vmem:[#allocation2 + $0x3a4] sm:$0xff]
        %v9544 = vld [vmem:[#allocation2 + $0x3ac] sm:$0xff]
        %v9545 = vld [vmem:[#allocation2 + $0x3b4] sm:$0xff]
        %v9546 = vld [vmem:[#allocation2 + $0x3bc] sm:$0xff]
        %v9547 = vld [vmem:[#allocation2 + $0x3c4] sm:$0xff]
        %v9548 = vld [vmem:[#allocation2 + $0x3cc] sm:$0xff]
        %v9549 = vld [vmem:[#allocation2 + $0x3d4] sm:$0xff]
        %v9550 = vld [vmem:[#allocation2 + $0x3dc] sm:$0xff]
        %v9551 = vld [vmem:[#allocation2 + $0x3e4] sm:$0xff]
        %v9552 = vld [vmem:[#allocation2 + $0x3ec] sm:$0xf]
        %v9553 = vld [vmem:[#allocation2 + $0x3f0] sm:$0xff]
        %v9554 = vld [vmem:[#allocation2 + $0x3f8] sm:$0xff]
        %v9555 = vld [vmem:[#allocation2 + $0x400] sm:$0xff]
        %v9556 = vld [vmem:[#allocation2 + $0x408] sm:$0xff]
        %v9557 = vld [vmem:[#allocation2 + $0x410] sm:$0xff]
        %v9558 = vld [vmem:[#allocation2 + $0x418] sm:$0xff]
        %v9559 = vld [vmem:[#allocation2 + $0x420] sm:$0xff]
        %v9560 = vld [vmem:[#allocation2 + $0x428] sm:$0xff]
        %v9561 = vld [vmem:[#allocation2 + $0x430] sm:$0xff]
        %v9562 = vld [vmem:[#allocation2 + $0x438] sm:$0xff]
        %v9563 = vld [vmem:[#allocation2 + $0x440] sm:$0xf]
        %v9564 = vld [vmem:[#allocation2 + $0x444] sm:$0xff]
        %v9565 = vld [vmem:[#allocation2 + $0x44c] sm:$0xff]
        %v9566 = vld [vmem:[#allocation2 + $0x454] sm:$0xff]
        %v9567 = vld [vmem:[#allocation2 + $0x45c] sm:$0xff]
        %v9568 = vld [vmem:[#allocation2 + $0x464] sm:$0xff]
        %v9569 = vld [vmem:[#allocation2 + $0x46c] sm:$0xff]
        %v9570 = vld [vmem:[#allocation2 + $0x474] sm:$0xff]
        %v9571 = vld [vmem:[#allocation2 + $0x47c] sm:$0xff]
        %v9572 = vld [vmem:[#allocation2 + $0x484] sm:$0xff]
        %v9573 = vld [vmem:[#allocation2 + $0x48c] sm:$0xff]
        %v9574 = vld [vmem:[#allocation2 + $0x494] sm:$0xf]
        %v9575 = vld [vmem:[#allocation2 + $0x498] sm:$0xff]
        %v9576 = vld [vmem:[#allocation2 + $0x4a0] sm:$0xff]
        %v9577 = vld [vmem:[#allocation2 + $0x4a8] sm:$0xff]
        %v9578 = vld [vmem:[#allocation2 + $0x4b0] sm:$0xff]
        %v9579 = vld [vmem:[#allocation2 + $0x4b8] sm:$0xff]
        %v9580 = vld [vmem:[#allocation2 + $0x4c0] sm:$0xff]
        %v9581 = vld [vmem:[#allocation2 + $0x4c8] sm:$0xff]
        %v9582 = vld [vmem:[#allocation2 + $0x4d0] sm:$0xff]
        %v9583 = vld [vmem:[#allocation2 + $0x4d8] sm:$0xff]
        %v9584 = vld [vmem:[#allocation2 + $0x4e0] sm:$0xff]
        %v9585 = vld [vmem:[#allocation2 + $0x4e8] sm:$0xf]
        %v9586 = vld [vmem:[#allocation2 + $0x4ec] sm:$0xff]
        %v9587 = vld [vmem:[#allocation2 + $0x4f4] sm:$0xff]
        %v9588 = vld [vmem:[#allocation2 + $0x4fc] sm:$0xff]
        %v9589 = vld [vmem:[#allocation2 + $0x504] sm:$0xff]
        %v9590 = vld [vmem:[#allocation2 + $0x50c] sm:$0xff]
        %v9591 = vld [vmem:[#allocation2 + $0x514] sm:$0xff]
        %v9592 = vld [vmem:[#allocation2 + $0x51c] sm:$0xff]
        %v9593 = vld [vmem:[#allocation2 + $0x524] sm:$0xff]
        %v9594 = vld [vmem:[#allocation2 + $0x52c] sm:$0xff]
        %v9595 = vld [vmem:[#allocation2 + $0x534] sm:$0xff]
        %v9596 = vld [vmem:[#allocation2 + $0x53c] sm:$0xf]
        %v9597 = vld [vmem:[#allocation2 + $0x540] sm:$0xff]
        %v9598 = vld [vmem:[#allocation2 + $0x548] sm:$0xff]
        %v9599 = vld [vmem:[#allocation2 + $0x550] sm:$0xff]
        %v9600 = vld [vmem:[#allocation2 + $0x558] sm:$0xff]
        %v9601 = vld [vmem:[#allocation2 + $0x560] sm:$0xff]
        %v9602 = vld [vmem:[#allocation2 + $0x568] sm:$0xff]
        %v9603 = vld [vmem:[#allocation2 + $0x570] sm:$0xff]
        %v9604 = vld [vmem:[#allocation2 + $0x578] sm:$0xff]
        %v9605 = vld [vmem:[#allocation2 + $0x580] sm:$0xff]
        %v9606 = vld [vmem:[#allocation2 + $0x588] sm:$0xff]
        %v9607 = vld [vmem:[#allocation2 + $0x590] sm:$0xf]
        %v9608 = vld [vmem:[#allocation2 + $0x594] sm:$0xff]
        %v9609 = vld [vmem:[#allocation2 + $0x59c] sm:$0xff]
        %v9610 = vld [vmem:[#allocation2 + $0x5a4] sm:$0xff]
        %v9611 = vld [vmem:[#allocation2 + $0x5ac] sm:$0xff]
        %v9612 = vld [vmem:[#allocation2 + $0x5b4] sm:$0xff]
        %v9613 = vld [vmem:[#allocation2 + $0x5bc] sm:$0xff]
        %v9614 = vld [vmem:[#allocation2 + $0x5c4] sm:$0xff]
        %v9615 = vld [vmem:[#allocation2 + $0x5cc] sm:$0xff]
        %v9616 = vld [vmem:[#allocation2 + $0x5d4] sm:$0xff]
        %v9617 = vld [vmem:[#allocation2 + $0x5dc] sm:$0xff]
        %v9618 = vld [vmem:[#allocation2 + $0x5e4] sm:$0xf]
        %v9619 = vld [vmem:[#allocation2 + $0x5e8] sm:$0xff]
        %v9620 = vld [vmem:[#allocation2 + $0x5f0] sm:$0xff]
        %v9621 = vld [vmem:[#allocation2 + $0x5f8] sm:$0xff]
        %v9622 = vld [vmem:[#allocation2 + $0x600] sm:$0xff]
        %v9623 = vld [vmem:[#allocation2 + $0x608] sm:$0xff]
        %v9624 = vld [vmem:[#allocation2 + $0x610] sm:$0xff]
        %v9625 = vld [vmem:[#allocation2 + $0x618] sm:$0xff]
        %v9626 = vld [vmem:[#allocation2 + $0x620] sm:$0xff]
        %v9627 = vld [vmem:[#allocation2 + $0x628] sm:$0xff]
        %v9628 = vld [vmem:[#allocation2 + $0x630] sm:$0xff]
        %v9629 = vld [vmem:[#allocation2 + $0x638] sm:$0xf]
        %v9630 = vld [vmem:[#allocation2 + $0x63c] sm:$0xff]
        %v9631 = vld [vmem:[#allocation2 + $0x644] sm:$0xff]
        %v9632 = vld [vmem:[#allocation2 + $0x64c] sm:$0xff]
        %v9633 = vld [vmem:[#allocation2 + $0x654] sm:$0xff]
        %v9634 = vld [vmem:[#allocation2 + $0x65c] sm:$0xff]
        %v9635 = vld [vmem:[#allocation2 + $0x664] sm:$0xff]
        %v9636 = vld [vmem:[#allocation2 + $0x66c] sm:$0xff]
        %v9637 = vld [vmem:[#allocation2 + $0x674] sm:$0xff]
        %v9638 = vld [vmem:[#allocation2 + $0x67c] sm:$0xff]
        %v9639 = vld [vmem:[#allocation2 + $0x684] sm:$0xff]
        %v9640 = vld [vmem:[#allocation2 + $0x68c] sm:$0xf]
        %v9641 = vld [vmem:[#allocation2 + $0x690] sm:$0xff]
        %v9642 = vld [vmem:[#allocation2 + $0x698] sm:$0xff]
        %v9643 = vld [vmem:[#allocation2 + $0x6a0] sm:$0xff]
        %v9644 = vld [vmem:[#allocation2 + $0x6a8] sm:$0xff]
        %v9645 = vld [vmem:[#allocation2 + $0x6b0] sm:$0xff]
        %v9646 = vld [vmem:[#allocation2 + $0x6b8] sm:$0xff]
        %v9647 = vld [vmem:[#allocation2 + $0x6c0] sm:$0xff]
        %v9648 = vld [vmem:[#allocation2 + $0x6c8] sm:$0xff]
        %v9649 = vld [vmem:[#allocation2 + $0x6d0] sm:$0xff]
        %v9650 = vld [vmem:[#allocation2 + $0x6d8] sm:$0xff]
        %v9651 = vld [vmem:[#allocation2 + $0x6e0] sm:$0xf]
        %v9652 = vld [vmem:[#allocation2 + $0x6e4] sm:$0xff]
        %v9653 = vld [vmem:[#allocation2 + $0x6ec] sm:$0xff]
        %v9654 = vld [vmem:[#allocation2 + $0x6f4] sm:$0xff]
        %v9655 = vld [vmem:[#allocation2 + $0x6fc] sm:$0xff]
        %v9656 = vld [vmem:[#allocation2 + $0x704] sm:$0xff]
        %v9657 = vld [vmem:[#allocation2 + $0x70c] sm:$0xff]
        %v9658 = vld [vmem:[#allocation2 + $0x714] sm:$0xff]
        %v9659 = vld [vmem:[#allocation2 + $0x71c] sm:$0xff]
        %v9660 = vld [vmem:[#allocation2 + $0x724] sm:$0xff]
        %v9661 = vld [vmem:[#allocation2 + $0x72c] sm:$0xff]
        %v9662 = vld [vmem:[#allocation2 + $0x734] sm:$0xf]
        %v9663 = vld [vmem:[#allocation2 + $0x738] sm:$0xff]
        %v9664 = vld [vmem:[#allocation2 + $0x740] sm:$0xff]
        %v9665 = vld [vmem:[#allocation2 + $0x748] sm:$0xff]
        %v9666 = vld [vmem:[#allocation2 + $0x750] sm:$0xff]
        %v9667 = vld [vmem:[#allocation2 + $0x758] sm:$0xff]
        %v9668 = vld [vmem:[#allocation2 + $0x760] sm:$0xff]
        %v9669 = vld [vmem:[#allocation2 + $0x768] sm:$0xff]
        %v9670 = vld [vmem:[#allocation2 + $0x770] sm:$0xff]
        %v9671 = vld [vmem:[#allocation2 + $0x778] sm:$0xff]
        %v9672 = vld [vmem:[#allocation2 + $0x780] sm:$0xff]
        %v9673 = vld [vmem:[#allocation2 + $0x788] sm:$0xf]
        %v9674 = vld [vmem:[#allocation2 + $0x78c] sm:$0xff]
        %v9675 = vld [vmem:[#allocation2 + $0x794] sm:$0xff]
        %v9676 = vld [vmem:[#allocation2 + $0x79c] sm:$0xff]
        %v9677 = vld [vmem:[#allocation2 + $0x7a4] sm:$0xff]
        %v9678 = vld [vmem:[#allocation2 + $0x7ac] sm:$0xff]
        %v9679 = vld [vmem:[#allocation2 + $0x7b4] sm:$0xff]
        %v9680 = vld [vmem:[#allocation2 + $0x7bc] sm:$0xff]
        %v9681 = vld [vmem:[#allocation2 + $0x7c4] sm:$0xff]
        %v9682 = vld [vmem:[#allocation2 + $0x7cc] sm:$0xff]
        %v9683 = vld [vmem:[#allocation2 + $0x7d4] sm:$0xff]
        %v9684 = vld [vmem:[#allocation2 + $0x7dc] sm:$0xf]
        %v9685 = vld [vmem:[#allocation2 + $0x7e0] sm:$0xff]
        %v9686 = vld [vmem:[#allocation2 + $0x7e8] sm:$0xff]
        %v9687 = vld [vmem:[#allocation2 + $0x7f0] sm:$0xff]
        %v9688 = vld [vmem:[#allocation2 + $0x7f8] sm:$0xff]
        %v9689 = vld [vmem:[#allocation2 + $0x800] sm:$0xff]
        %v9690 = vld [vmem:[#allocation2 + $0x808] sm:$0xff]
        %v9691 = vld [vmem:[#allocation2 + $0x810] sm:$0xff]
        %v9692 = vld [vmem:[#allocation2 + $0x818] sm:$0xff]
        %v9693 = vld [vmem:[#allocation2 + $0x820] sm:$0xff]
        %v9694 = vld [vmem:[#allocation2 + $0x828] sm:$0xff]
        %v9695 = vld [vmem:[#allocation2 + $0x830] sm:$0xf]
        %v9696 = vld [vmem:[#allocation2 + $0x834] sm:$0xff]
        %v9697 = vld [vmem:[#allocation2 + $0x83c] sm:$0xff]
        %v9698 = vld [vmem:[#allocation2 + $0x844] sm:$0xff]
        %v9699 = vld [vmem:[#allocation2 + $0x84c] sm:$0xff]
        %v9700 = vld [vmem:[#allocation2 + $0x854] sm:$0xff]
        %v9701 = vld [vmem:[#allocation2 + $0x85c] sm:$0xff]
        %v9702 = vld [vmem:[#allocation2 + $0x864] sm:$0xff]
        %v9703 = vld [vmem:[#allocation2 + $0x86c] sm:$0xff]
        %v9704 = vld [vmem:[#allocation2 + $0x874] sm:$0xff]
        %v9705 = vld [vmem:[#allocation2 + $0x87c] sm:$0xff]
        %v9706 = vld [vmem:[#allocation2 + $0x884] sm:$0xf]
        %v9707 = vld [vmem:[#allocation2 + $0x888] sm:$0xff]
        %v9708 = vld [vmem:[#allocation2 + $0x890] sm:$0xff]
        %v9709 = vld [vmem:[#allocation2 + $0x898] sm:$0xff]
        %v9710 = vld [vmem:[#allocation2 + $0x8a0] sm:$0xff]
        %v9711 = vld [vmem:[#allocation2 + $0x8a8] sm:$0xff]
        %v9712 = vld [vmem:[#allocation2 + $0x8b0] sm:$0xff]
        %v9713 = vld [vmem:[#allocation2 + $0x8b8] sm:$0xff]
        %v9714 = vld [vmem:[#allocation2 + $0x8c0] sm:$0xff]
        %v9715 = vld [vmem:[#allocation2 + $0x8c8] sm:$0xff]
        %v9716 = vld [vmem:[#allocation2 + $0x8d0] sm:$0xff]
        %v9717 = vld [vmem:[#allocation2 + $0x8d8] sm:$0xf]
        %v9718 = vld [vmem:[#allocation2 + $0x8dc] sm:$0xff]
        %v9719 = vld [vmem:[#allocation2 + $0x8e4] sm:$0xff]
        %v9720 = vld [vmem:[#allocation2 + $0x8ec] sm:$0xff]
        %v9721 = vld [vmem:[#allocation2 + $0x8f4] sm:$0xff]
        %v9722 = vld [vmem:[#allocation2 + $0x8fc] sm:$0xff]
        %v9723 = vld [vmem:[#allocation2 + $0x904] sm:$0xff]
        %v9724 = vld [vmem:[#allocation2 + $0x90c] sm:$0xff]
        %v9725 = vld [vmem:[#allocation2 + $0x914] sm:$0xff]
        %v9726 = vld [vmem:[#allocation2 + $0x91c] sm:$0xff]
        %v9727 = vld [vmem:[#allocation2 + $0x924] sm:$0xff]
        %v9728 = vld [vmem:[#allocation2 + $0x92c] sm:$0xf]
        %v9729 = vld [vmem:[%s4] sm:$0xff]
        %9731 = vset.pattern.permute.xlu0 0
        %9732 = vperm.xlu0 %9731, %v9729
        %v9733 = vpop.permute.xlu0 %9732
        %v9736 = vunpack.c.l.b16 %v9420
        %v9737 = vunpack.c.h.b16 %v9420
        %v9738 = vpack.c.b16 %v9736, %v9736
        %v9739 = vpack.c.b16 %v9737, %v9737
        %v10049 = vunpack.c.l.b16 %v9421
        %v10050 = vunpack.c.h.b16 %v9421
        %v10051 = vunpack.c.l.b16 %v9422
        %v10052 = vunpack.c.h.b16 %v9422
        %v10053 = vunpack.c.l.b16 %v9423
        %v10054 = vunpack.c.h.b16 %v9423
        %v10055 = vunpack.c.l.b16 %v9424
        %v10056 = vunpack.c.h.b16 %v9424
        %v10057 = vunpack.c.l.b16 %v9425
        %v10058 = vunpack.c.h.b16 %v9425
        %v10059 = vunpack.c.l.b16 %v9426
        %v10060 = vunpack.c.h.b16 %v9426
        %v10061 = vunpack.c.l.b16 %v9427
        %v10062 = vunpack.c.h.b16 %v9427
        %v10063 = vunpack.c.l.b16 %v9428
        %v10064 = vunpack.c.h.b16 %v9428
        %v10065 = vunpack.c.l.b16 %v9429
        %v10066 = vunpack.c.h.b16 %v9429
        %v10067 = vunpack.c.l.b16 %v9430
        %v10068 = vunpack.c.h.b16 %v9430
        %v10069 = vunpack.c.l.b16 %v9431
        %v10070 = vunpack.c.l.b16 %v9432
        %v10071 = vunpack.c.h.b16 %v9432
        %v10072 = vunpack.c.l.b16 %v9433
        %v10073 = vunpack.c.h.b16 %v9433
        %v10074 = vunpack.c.l.b16 %v9434
        %v10075 = vunpack.c.h.b16 %v9434
        %v10076 = vunpack.c.l.b16 %v9435
        %v10077 = vunpack.c.h.b16 %v9435
        %v10078 = vunpack.c.l.b16 %v9436
        %v10079 = vunpack.c.h.b16 %v9436
        %v10080 = vunpack.c.l.b16 %v9437
        %v10081 = vunpack.c.h.b16 %v9437
        %v10082 = vunpack.c.l.b16 %v9438
        %v10083 = vunpack.c.h.b16 %v9438
        %v10084 = vunpack.c.l.b16 %v9439
        %v10085 = vunpack.c.h.b16 %v9439
        %v10086 = vunpack.c.l.b16 %v9440
        %v10087 = vunpack.c.h.b16 %v9440
        %v10088 = vunpack.c.l.b16 %v9441
        %v10089 = vunpack.c.h.b16 %v9441
        %v10090 = vunpack.c.l.b16 %v9442
        %v10091 = vunpack.c.l.b16 %v9443
        %v10092 = vunpack.c.h.b16 %v9443
        %v10093 = vunpack.c.l.b16 %v9444
        %v10094 = vunpack.c.h.b16 %v9444
        %v10095 = vunpack.c.l.b16 %v9445
        %v10096 = vunpack.c.h.b16 %v9445
        %v10097 = vunpack.c.l.b16 %v9446
        %v10098 = vunpack.c.h.b16 %v9446
        %v10099 = vunpack.c.l.b16 %v9447
        %v10100 = vunpack.c.h.b16 %v9447
        %v10101 = vunpack.c.l.b16 %v9448
        %v10102 = vunpack.c.h.b16 %v9448
        %v10103 = vunpack.c.l.b16 %v9449
        %v10104 = vunpack.c.h.b16 %v9449
        %v10105 = vunpack.c.l.b16 %v9450
        %v10106 = vunpack.c.h.b16 %v9450
        %v10107 = vunpack.c.l.b16 %v9451
        %v10108 = vunpack.c.h.b16 %v9451
        %v10109 = vunpack.c.l.b16 %v9452
        %v10110 = vunpack.c.h.b16 %v9452
        %v10111 = vunpack.c.l.b16 %v9453
        %v10112 = vunpack.c.l.b16 %v9454
        %v10113 = vunpack.c.h.b16 %v9454
        %v10114 = vunpack.c.l.b16 %v9455
        %v10115 = vunpack.c.h.b16 %v9455
        %v10116 = vunpack.c.l.b16 %v9456
        %v10117 = vunpack.c.h.b16 %v9456
        %v10118 = vunpack.c.l.b16 %v9457
        %v10119 = vunpack.c.h.b16 %v9457
        %v10120 = vunpack.c.l.b16 %v9458
        %v10121 = vunpack.c.h.b16 %v9458
        %v10122 = vunpack.c.l.b16 %v9459
        %v10123 = vunpack.c.h.b16 %v9459
        %v10124 = vunpack.c.l.b16 %v9460
        %v10125 = vunpack.c.h.b16 %v9460
        %v10126 = vunpack.c.l.b16 %v9461
        %v10127 = vunpack.c.h.b16 %v9461
        %v10128 = vunpack.c.l.b16 %v9462
        %v10129 = vunpack.c.h.b16 %v9462
        %v10130 = vunpack.c.l.b16 %v9463
        %v10131 = vunpack.c.h.b16 %v9463
        %v10132 = vunpack.c.l.b16 %v9464
        %v10133 = vunpack.c.l.b16 %v9465
        %v10134 = vunpack.c.h.b16 %v9465
        %v10135 = vunpack.c.l.b16 %v9466
        %v10136 = vunpack.c.h.b16 %v9466
        %v10137 = vunpack.c.l.b16 %v9467
        %v10138 = vunpack.c.h.b16 %v9467
        %v10139 = vunpack.c.l.b16 %v9468
        %v10140 = vunpack.c.h.b16 %v9468
        %v10141 = vunpack.c.l.b16 %v9469
        %v10142 = vunpack.c.h.b16 %v9469
        %v10143 = vunpack.c.l.b16 %v9470
        %v10144 = vunpack.c.h.b16 %v9470
        %v10145 = vunpack.c.l.b16 %v9471
        %v10146 = vunpack.c.h.b16 %v9471
        %v10147 = vunpack.c.l.b16 %v9472
        %v10148 = vunpack.c.h.b16 %v9472
        %v10149 = vunpack.c.l.b16 %v9473
        %v10150 = vunpack.c.h.b16 %v9473
        %v10151 = vunpack.c.l.b16 %v9474
        %v10152 = vunpack.c.h.b16 %v9474
        %v10153 = vunpack.c.l.b16 %v9475
        %v10154 = vunpack.c.l.b16 %v9476
        %v10155 = vunpack.c.h.b16 %v9476
        %v10156 = vunpack.c.l.b16 %v9477
        %v10157 = vunpack.c.h.b16 %v9477
        %v10158 = vunpack.c.l.b16 %v9478
        %v10159 = vunpack.c.h.b16 %v9478
        %v10160 = vunpack.c.l.b16 %v9479
        %v10161 = vunpack.c.h.b16 %v9479
        %v10162 = vunpack.c.l.b16 %v9480
        %v10163 = vunpack.c.h.b16 %v9480
        %v10164 = vunpack.c.l.b16 %v9481
        %v10165 = vunpack.c.h.b16 %v9481
        %v10166 = vunpack.c.l.b16 %v9482
        %v10167 = vunpack.c.h.b16 %v9482
        %v10168 = vunpack.c.l.b16 %v9483
        %v10169 = vunpack.c.h.b16 %v9483
        %v10170 = vunpack.c.l.b16 %v9484
        %v10171 = vunpack.c.h.b16 %v9484
        %v10172 = vunpack.c.l.b16 %v9485
        %v10173 = vunpack.c.h.b16 %v9485
        %v10174 = vunpack.c.l.b16 %v9486
        %v10175 = vunpack.c.l.b16 %v9487
        %v10176 = vunpack.c.h.b16 %v9487
        %v10177 = vunpack.c.l.b16 %v9488
        %v10178 = vunpack.c.h.b16 %v9488
        %v10179 = vunpack.c.l.b16 %v9489
        %v10180 = vunpack.c.h.b16 %v9489
        %v10181 = vunpack.c.l.b16 %v9490
        %v10182 = vunpack.c.h.b16 %v9490
        %v10183 = vunpack.c.l.b16 %v9491
        %v10184 = vunpack.c.h.b16 %v9491
        %v10185 = vunpack.c.l.b16 %v9492
        %v10186 = vunpack.c.h.b16 %v9492
        %v10187 = vunpack.c.l.b16 %v9493
        %v10188 = vunpack.c.h.b16 %v9493
        %v10189 = vunpack.c.l.b16 %v9494
        %v10190 = vunpack.c.h.b16 %v9494
        %v10191 = vunpack.c.l.b16 %v9495
        %v10192 = vunpack.c.h.b16 %v9495
        %v10193 = vunpack.c.l.b16 %v9496
        %v10194 = vunpack.c.h.b16 %v9496
        %v10195 = vunpack.c.l.b16 %v9497
        %v10196 = vunpack.c.l.b16 %v9498
        %v10197 = vunpack.c.h.b16 %v9498
        %v10198 = vunpack.c.l.b16 %v9499
        %v10199 = vunpack.c.h.b16 %v9499
        %v10200 = vunpack.c.l.b16 %v9500
        %v10201 = vunpack.c.h.b16 %v9500
        %v10202 = vunpack.c.l.b16 %v9501
        %v10203 = vunpack.c.h.b16 %v9501
        %v10204 = vunpack.c.l.b16 %v9502
        %v10205 = vunpack.c.h.b16 %v9502
        %v10206 = vunpack.c.l.b16 %v9503
        %v10207 = vunpack.c.h.b16 %v9503
        %v10208 = vunpack.c.l.b16 %v9504
        %v10209 = vunpack.c.h.b16 %v9504
        %v10210 = vunpack.c.l.b16 %v9505
        %v10211 = vunpack.c.h.b16 %v9505
        %v10212 = vunpack.c.l.b16 %v9506
        %v10213 = vunpack.c.h.b16 %v9506
        %v10214 = vunpack.c.l.b16 %v9507
        %v10215 = vunpack.c.h.b16 %v9507
        %v10216 = vunpack.c.l.b16 %v9508
        %v10217 = vunpack.c.l.b16 %v9509
        %v10218 = vunpack.c.h.b16 %v9509
        %v10219 = vunpack.c.l.b16 %v9510
        %v10220 = vunpack.c.h.b16 %v9510
        %v10221 = vunpack.c.l.b16 %v9511
        %v10222 = vunpack.c.h.b16 %v9511
        %v10223 = vunpack.c.l.b16 %v9512
        %v10224 = vunpack.c.h.b16 %v9512
        %v10225 = vunpack.c.l.b16 %v9513
        %v10226 = vunpack.c.h.b16 %v9513
        %v10227 = vunpack.c.l.b16 %v9514
        %v10228 = vunpack.c.h.b16 %v9514
        %v10229 = vunpack.c.l.b16 %v9515
        %v10230 = vunpack.c.h.b16 %v9515
        %v10231 = vunpack.c.l.b16 %v9516
        %v10232 = vunpack.c.h.b16 %v9516
        %v10233 = vunpack.c.l.b16 %v9517
        %v10234 = vunpack.c.h.b16 %v9517
        %v10235 = vunpack.c.l.b16 %v9518
        %v10236 = vunpack.c.h.b16 %v9518
        %v10237 = vunpack.c.l.b16 %v9519
        %v10238 = vunpack.c.l.b16 %v9520
        %v10239 = vunpack.c.h.b16 %v9520
        %v10240 = vunpack.c.l.b16 %v9521
        %v10241 = vunpack.c.h.b16 %v9521
        %v10242 = vunpack.c.l.b16 %v9522
        %v10243 = vunpack.c.h.b16 %v9522
        %v10244 = vunpack.c.l.b16 %v9523
        %v10245 = vunpack.c.h.b16 %v9523
        %v10246 = vunpack.c.l.b16 %v9524
        %v10247 = vunpack.c.h.b16 %v9524
        %v10248 = vunpack.c.l.b16 %v9525
        %v10249 = vunpack.c.h.b16 %v9525
        %v10250 = vunpack.c.l.b16 %v9526
        %v10251 = vunpack.c.h.b16 %v9526
        %v10252 = vunpack.c.l.b16 %v9527
        %v10253 = vunpack.c.h.b16 %v9527
        %v10254 = vunpack.c.l.b16 %v9528
        %v10255 = vunpack.c.h.b16 %v9528
        %v10256 = vunpack.c.l.b16 %v9529
        %v10257 = vunpack.c.h.b16 %v9529
        %v10258 = vunpack.c.l.b16 %v9530
        %v10259 = vunpack.c.l.b16 %v9531
        %v10260 = vunpack.c.h.b16 %v9531
        %v10261 = vunpack.c.l.b16 %v9532
        %v10262 = vunpack.c.h.b16 %v9532
        %v10263 = vunpack.c.l.b16 %v9533
        %v10264 = vunpack.c.h.b16 %v9533
        %v10265 = vunpack.c.l.b16 %v9534
        %v10266 = vunpack.c.h.b16 %v9534
        %v10267 = vunpack.c.l.b16 %v9535
        %v10268 = vunpack.c.h.b16 %v9535
        %v10269 = vunpack.c.l.b16 %v9536
        %v10270 = vunpack.c.h.b16 %v9536
        %v10271 = vunpack.c.l.b16 %v9537
        %v10272 = vunpack.c.h.b16 %v9537
        %v10273 = vunpack.c.l.b16 %v9538
        %v10274 = vunpack.c.h.b16 %v9538
        %v10275 = vunpack.c.l.b16 %v9539
        %v10276 = vunpack.c.h.b16 %v9539
        %v10277 = vunpack.c.l.b16 %v9540
        %v10278 = vunpack.c.h.b16 %v9540
        %v10279 = vunpack.c.l.b16 %v9541
        %v10280 = vunpack.c.l.b16 %v9542
        %v10281 = vunpack.c.h.b16 %v9542
        %v10282 = vunpack.c.l.b16 %v9543
        %v10283 = vunpack.c.h.b16 %v9543
        %v10284 = vunpack.c.l.b16 %v9544
        %v10285 = vunpack.c.h.b16 %v9544
        %v10286 = vunpack.c.l.b16 %v9545
        %v10287 = vunpack.c.h.b16 %v9545
        %v10288 = vunpack.c.l.b16 %v9546
        %v10289 = vunpack.c.h.b16 %v9546
        %v10290 = vunpack.c.l.b16 %v9547
        %v10291 = vunpack.c.h.b16 %v9547
        %v10292 = vunpack.c.l.b16 %v9548
        %v10293 = vunpack.c.h.b16 %v9548
        %v10294 = vunpack.c.l.b16 %v9549
        %v10295 = vunpack.c.h.b16 %v9549
        %v10296 = vunpack.c.l.b16 %v9550
        %v10297 = vunpack.c.h.b16 %v9550
        %v10298 = vunpack.c.l.b16 %v9551
        %v10299 = vunpack.c.h.b16 %v9551
        %v10300 = vunpack.c.l.b16 %v9552
        %v10301 = vunpack.c.l.b16 %v9553
        %v10302 = vunpack.c.h.b16 %v9553
        %v10303 = vunpack.c.l.b16 %v9554
        %v10304 = vunpack.c.h.b16 %v9554
        %v10305 = vunpack.c.l.b16 %v9555
        %v10306 = vunpack.c.h.b16 %v9555
        %v10307 = vunpack.c.l.b16 %v9556
        %v10308 = vunpack.c.h.b16 %v9556
        %v10309 = vunpack.c.l.b16 %v9557
        %v10310 = vunpack.c.h.b16 %v9557
        %v10311 = vunpack.c.l.b16 %v9558
        %v10312 = vunpack.c.h.b16 %v9558
        %v10313 = vunpack.c.l.b16 %v9559
        %v10314 = vunpack.c.h.b16 %v9559
        %v10315 = vunpack.c.l.b16 %v9560
        %v10316 = vunpack.c.h.b16 %v9560
        %v10317 = vunpack.c.l.b16 %v9561
        %v10318 = vunpack.c.h.b16 %v9561
        %v10319 = vunpack.c.l.b16 %v9562
        %v10320 = vunpack.c.h.b16 %v9562
        %v10321 = vunpack.c.l.b16 %v9563
        %v10322 = vunpack.c.l.b16 %v9564
        %v10323 = vunpack.c.h.b16 %v9564
        %v10324 = vunpack.c.l.b16 %v9565
        %v10325 = vunpack.c.h.b16 %v9565
        %v10326 = vunpack.c.l.b16 %v9566
        %v10327 = vunpack.c.h.b16 %v9566
        %v10328 = vunpack.c.l.b16 %v9567
        %v10329 = vunpack.c.h.b16 %v9567
        %v10330 = vunpack.c.l.b16 %v9568
        %v10331 = vunpack.c.h.b16 %v9568
        %v10332 = vunpack.c.l.b16 %v9569
        %v10333 = vunpack.c.h.b16 %v9569
        %v10334 = vunpack.c.l.b16 %v9570
        %v10335 = vunpack.c.h.b16 %v9570
        %v10336 = vunpack.c.l.b16 %v9571
        %v10337 = vunpack.c.h.b16 %v9571
        %v10338 = vunpack.c.l.b16 %v9572
        %v10339 = vunpack.c.h.b16 %v9572
        %v10340 = vunpack.c.l.b16 %v9573
        %v10341 = vunpack.c.h.b16 %v9573
        %v10342 = vunpack.c.l.b16 %v9574
        %v10343 = vunpack.c.l.b16 %v9575
        %v10344 = vunpack.c.h.b16 %v9575
        %v10345 = vunpack.c.l.b16 %v9576
        %v10346 = vunpack.c.h.b16 %v9576
        %v10347 = vunpack.c.l.b16 %v9577
        %v10348 = vunpack.c.h.b16 %v9577
        %v10349 = vunpack.c.l.b16 %v9578
        %v10350 = vunpack.c.h.b16 %v9578
        %v10351 = vunpack.c.l.b16 %v9579
        %v10352 = vunpack.c.h.b16 %v9579
        %v10353 = vunpack.c.l.b16 %v9580
        %v10354 = vunpack.c.h.b16 %v9580
        %v10355 = vunpack.c.l.b16 %v9581
        %v10356 = vunpack.c.h.b16 %v9581
        %v10357 = vunpack.c.l.b16 %v9582
        %v10358 = vunpack.c.h.b16 %v9582
        %v10359 = vunpack.c.l.b16 %v9583
        %v10360 = vunpack.c.h.b16 %v9583
        %v10361 = vunpack.c.l.b16 %v9584
        %v10362 = vunpack.c.h.b16 %v9584
        %v10363 = vunpack.c.l.b16 %v9585
        %v10364 = vunpack.c.l.b16 %v9586
        %v10365 = vunpack.c.h.b16 %v9586
        %v10366 = vunpack.c.l.b16 %v9587
        %v10367 = vunpack.c.h.b16 %v9587
        %v10368 = vunpack.c.l.b16 %v9588
        %v10369 = vunpack.c.h.b16 %v9588
        %v10370 = vunpack.c.l.b16 %v9589
        %v10371 = vunpack.c.h.b16 %v9589
        %v10372 = vunpack.c.l.b16 %v9590
        %v10373 = vunpack.c.h.b16 %v9590
        %v10374 = vunpack.c.l.b16 %v9591
        %v10375 = vunpack.c.h.b16 %v9591
        %v10376 = vunpack.c.l.b16 %v9592
        %v10377 = vunpack.c.h.b16 %v9592
        %v10378 = vunpack.c.l.b16 %v9593
        %v10379 = vunpack.c.h.b16 %v9593
        %v10380 = vunpack.c.l.b16 %v9594
        %v10381 = vunpack.c.h.b16 %v9594
        %v10382 = vunpack.c.l.b16 %v9595
        %v10383 = vunpack.c.h.b16 %v9595
        %v10384 = vunpack.c.l.b16 %v9596
        %v10385 = vunpack.c.l.b16 %v9597
        %v10386 = vunpack.c.h.b16 %v9597
        %v10387 = vunpack.c.l.b16 %v9598
        %v10388 = vunpack.c.h.b16 %v9598
        %v10389 = vunpack.c.l.b16 %v9599
        %v10390 = vunpack.c.h.b16 %v9599
        %v10391 = vunpack.c.l.b16 %v9600
        %v10392 = vunpack.c.h.b16 %v9600
        %v10393 = vunpack.c.l.b16 %v9601
        %v10394 = vunpack.c.h.b16 %v9601
        %v10395 = vunpack.c.l.b16 %v9602
        %v10396 = vunpack.c.h.b16 %v9602
        %v10397 = vunpack.c.l.b16 %v9603
        %v10398 = vunpack.c.h.b16 %v9603
        %v10399 = vunpack.c.l.b16 %v9604
        %v10400 = vunpack.c.h.b16 %v9604
        %v10401 = vunpack.c.l.b16 %v9605
        %v10402 = vunpack.c.h.b16 %v9605
        %v10403 = vunpack.c.l.b16 %v9606
        %v10404 = vunpack.c.h.b16 %v9606
        %v10405 = vunpack.c.l.b16 %v9607
        %v10406 = vunpack.c.l.b16 %v9608
        %v10407 = vunpack.c.h.b16 %v9608
        %v10408 = vunpack.c.l.b16 %v9609
        %v10409 = vunpack.c.h.b16 %v9609
        %v10410 = vunpack.c.l.b16 %v9610
        %v10411 = vunpack.c.h.b16 %v9610
        %v10412 = vunpack.c.l.b16 %v9611
        %v10413 = vunpack.c.h.b16 %v9611
        %v10414 = vunpack.c.l.b16 %v9612
        %v10415 = vunpack.c.h.b16 %v9612
        %v10416 = vunpack.c.l.b16 %v9613
        %v10417 = vunpack.c.h.b16 %v9613
        %v10418 = vunpack.c.l.b16 %v9614
        %v10419 = vunpack.c.h.b16 %v9614
        %v10420 = vunpack.c.l.b16 %v9615
        %v10421 = vunpack.c.h.b16 %v9615
        %v10422 = vunpack.c.l.b16 %v9616
        %v10423 = vunpack.c.h.b16 %v9616
        %v10424 = vunpack.c.l.b16 %v9617
        %v10425 = vunpack.c.h.b16 %v9617
        %v10426 = vunpack.c.l.b16 %v9618
        %v10427 = vunpack.c.l.b16 %v9619
        %v10428 = vunpack.c.h.b16 %v9619
        %v10429 = vunpack.c.l.b16 %v9620
        %v10430 = vunpack.c.h.b16 %v9620
        %v10431 = vunpack.c.l.b16 %v9621
        %v10432 = vunpack.c.h.b16 %v9621
        %v10433 = vunpack.c.l.b16 %v9622
        %v10434 = vunpack.c.h.b16 %v9622
        %v10435 = vunpack.c.l.b16 %v9623
        %v10436 = vunpack.c.h.b16 %v9623
        %v10437 = vunpack.c.l.b16 %v9624
        %v10438 = vunpack.c.h.b16 %v9624
        %v10439 = vunpack.c.l.b16 %v9625
        %v10440 = vunpack.c.h.b16 %v9625
        %v10441 = vunpack.c.l.b16 %v9626
        %v10442 = vunpack.c.h.b16 %v9626
        %v10443 = vunpack.c.l.b16 %v9627
        %v10444 = vunpack.c.h.b16 %v9627
        %v10445 = vunpack.c.l.b16 %v9628
        %v10446 = vunpack.c.h.b16 %v9628
        %v10447 = vunpack.c.l.b16 %v9629
        %v10448 = vunpack.c.l.b16 %v9630
        %v10449 = vunpack.c.h.b16 %v9630
        %v10450 = vunpack.c.l.b16 %v9631
        %v10451 = vunpack.c.h.b16 %v9631
        %v10452 = vunpack.c.l.b16 %v9632
        %v10453 = vunpack.c.h.b16 %v9632
        %v10454 = vunpack.c.l.b16 %v9633
        %v10455 = vunpack.c.h.b16 %v9633
        %v10456 = vunpack.c.l.b16 %v9634
        %v10457 = vunpack.c.h.b16 %v9634
        %v10458 = vunpack.c.l.b16 %v9635
        %v10459 = vunpack.c.h.b16 %v9635
        %v10460 = vunpack.c.l.b16 %v9636
        %v10461 = vunpack.c.h.b16 %v9636
        %v10462 = vunpack.c.l.b16 %v9637
        %v10463 = vunpack.c.h.b16 %v9637
        %v10464 = vunpack.c.l.b16 %v9638
        %v10465 = vunpack.c.h.b16 %v9638
        %v10466 = vunpack.c.l.b16 %v9639
        %v10467 = vunpack.c.h.b16 %v9639
        %v10468 = vunpack.c.l.b16 %v9640
        %v10469 = vunpack.c.l.b16 %v9641
        %v10470 = vunpack.c.h.b16 %v9641
        %v10471 = vunpack.c.l.b16 %v9642
        %v10472 = vunpack.c.h.b16 %v9642
        %v10473 = vunpack.c.l.b16 %v9643
        %v10474 = vunpack.c.h.b16 %v9643
        %v10475 = vunpack.c.l.b16 %v9644
        %v10476 = vunpack.c.h.b16 %v9644
        %v10477 = vunpack.c.l.b16 %v9645
        %v10478 = vunpack.c.h.b16 %v9645
        %v10479 = vunpack.c.l.b16 %v9646
        %v10480 = vunpack.c.h.b16 %v9646
        %v10481 = vunpack.c.l.b16 %v9647
        %v10482 = vunpack.c.h.b16 %v9647
        %v10483 = vunpack.c.l.b16 %v9648
        %v10484 = vunpack.c.h.b16 %v9648
        %v10485 = vunpack.c.l.b16 %v9649
        %v10486 = vunpack.c.h.b16 %v9649
        %v10487 = vunpack.c.l.b16 %v9650
        %v10488 = vunpack.c.h.b16 %v9650
        %v10489 = vunpack.c.l.b16 %v9651
        %v10490 = vunpack.c.l.b16 %v9652
        %v10491 = vunpack.c.h.b16 %v9652
        %v10492 = vunpack.c.l.b16 %v9653
        %v10493 = vunpack.c.h.b16 %v9653
        %v10494 = vunpack.c.l.b16 %v9654
        %v10495 = vunpack.c.h.b16 %v9654
        %v10496 = vunpack.c.l.b16 %v9655
        %v10497 = vunpack.c.h.b16 %v9655
        %v10498 = vunpack.c.l.b16 %v9656
        %v10499 = vunpack.c.h.b16 %v9656
        %v10500 = vunpack.c.l.b16 %v9657
        %v10501 = vunpack.c.h.b16 %v9657
        %v10502 = vunpack.c.l.b16 %v9658
        %v10503 = vunpack.c.h.b16 %v9658
        %v10504 = vunpack.c.l.b16 %v9659
        %v10505 = vunpack.c.h.b16 %v9659
        %v10506 = vunpack.c.l.b16 %v9660
        %v10507 = vunpack.c.h.b16 %v9660
        %v10508 = vunpack.c.l.b16 %v9661
        %v10509 = vunpack.c.h.b16 %v9661
        %v10510 = vunpack.c.l.b16 %v9662
        %v10511 = vunpack.c.l.b16 %v9663
        %v10512 = vunpack.c.h.b16 %v9663
        %v10513 = vunpack.c.l.b16 %v9664
        %v10514 = vunpack.c.h.b16 %v9664
        %v10515 = vunpack.c.l.b16 %v9665
        %v10516 = vunpack.c.h.b16 %v9665
        %v10517 = vunpack.c.l.b16 %v9666
        %v10518 = vunpack.c.h.b16 %v9666
        %v10519 = vunpack.c.l.b16 %v9667
        %v10520 = vunpack.c.h.b16 %v9667
        %v10521 = vunpack.c.l.b16 %v9668
        %v10522 = vunpack.c.h.b16 %v9668
        %v10523 = vunpack.c.l.b16 %v9669
        %v10524 = vunpack.c.h.b16 %v9669
        %v10525 = vunpack.c.l.b16 %v9670
        %v10526 = vunpack.c.h.b16 %v9670
        %v10527 = vunpack.c.l.b16 %v9671
        %v10528 = vunpack.c.h.b16 %v9671
        %v10529 = vunpack.c.l.b16 %v9672
        %v10530 = vunpack.c.h.b16 %v9672
        %v10531 = vunpack.c.l.b16 %v9673
        %v10532 = vunpack.c.l.b16 %v9674
        %v10533 = vunpack.c.h.b16 %v9674
        %v10534 = vunpack.c.l.b16 %v9675
        %v10535 = vunpack.c.h.b16 %v9675
        %v10536 = vunpack.c.l.b16 %v9676
        %v10537 = vunpack.c.h.b16 %v9676
        %v10538 = vunpack.c.l.b16 %v9677
        %v10539 = vunpack.c.h.b16 %v9677
        %v10540 = vunpack.c.l.b16 %v9678
        %v10541 = vunpack.c.h.b16 %v9678
        %v10542 = vunpack.c.l.b16 %v9679
        %v10543 = vunpack.c.h.b16 %v9679
        %v10544 = vunpack.c.l.b16 %v9680
        %v10545 = vunpack.c.h.b16 %v9680
        %v10546 = vunpack.c.l.b16 %v9681
        %v10547 = vunpack.c.h.b16 %v9681
        %v10548 = vunpack.c.l.b16 %v9682
        %v10549 = vunpack.c.h.b16 %v9682
        %v10550 = vunpack.c.l.b16 %v9683
        %v10551 = vunpack.c.h.b16 %v9683
        %v10552 = vunpack.c.l.b16 %v9684
        %v10553 = vunpack.c.l.b16 %v9685
        %v10554 = vunpack.c.h.b16 %v9685
        %v10555 = vunpack.c.l.b16 %v9686
        %v10556 = vunpack.c.h.b16 %v9686
        %v10557 = vunpack.c.l.b16 %v9687
        %v10558 = vunpack.c.h.b16 %v9687
        %v10559 = vunpack.c.l.b16 %v9688
        %v10560 = vunpack.c.h.b16 %v9688
        %v10561 = vunpack.c.l.b16 %v9689
        %v10562 = vunpack.c.h.b16 %v9689
        %v10563 = vunpack.c.l.b16 %v9690
        %v10564 = vunpack.c.h.b16 %v9690
        %v10565 = vunpack.c.l.b16 %v9691
        %v10566 = vunpack.c.h.b16 %v9691
        %v10567 = vunpack.c.l.b16 %v9692
        %v10568 = vunpack.c.h.b16 %v9692
        %v10569 = vunpack.c.l.b16 %v9693
        %v10570 = vunpack.c.h.b16 %v9693
        %v10571 = vunpack.c.l.b16 %v9694
        %v10572 = vunpack.c.h.b16 %v9694
        %v10573 = vunpack.c.l.b16 %v9695
        %v10574 = vunpack.c.l.b16 %v9696
        %v10575 = vunpack.c.h.b16 %v9696
        %v10576 = vunpack.c.l.b16 %v9697
        %v10577 = vunpack.c.h.b16 %v9697
        %v10578 = vunpack.c.l.b16 %v9698
        %v10579 = vunpack.c.h.b16 %v9698
        %v10580 = vunpack.c.l.b16 %v9699
        %v10581 = vunpack.c.h.b16 %v9699
        %v10582 = vunpack.c.l.b16 %v9700
        %v10583 = vunpack.c.h.b16 %v9700
        %v10584 = vunpack.c.l.b16 %v9701
        %v10585 = vunpack.c.h.b16 %v9701
        %v10586 = vunpack.c.l.b16 %v9702
        %v10587 = vunpack.c.h.b16 %v9702
        %v10588 = vunpack.c.l.b16 %v9703
        %v10589 = vunpack.c.h.b16 %v9703
        %v10590 = vunpack.c.l.b16 %v9704
        %v10591 = vunpack.c.h.b16 %v9704
        %v10592 = vunpack.c.l.b16 %v9705
        %v10593 = vunpack.c.h.b16 %v9705
        %v10594 = vunpack.c.l.b16 %v9706
        %v10595 = vunpack.c.l.b16 %v9707
        %v10596 = vunpack.c.h.b16 %v9707
        %v10597 = vunpack.c.l.b16 %v9708
        %v10598 = vunpack.c.h.b16 %v9708
        %v10599 = vunpack.c.l.b16 %v9709
        %v10600 = vunpack.c.h.b16 %v9709
        %v10601 = vunpack.c.l.b16 %v9710
        %v10602 = vunpack.c.h.b16 %v9710
        %v10603 = vunpack.c.l.b16 %v9711
        %v10604 = vunpack.c.h.b16 %v9711
        %v10605 = vunpack.c.l.b16 %v9712
        %v10606 = vunpack.c.h.b16 %v9712
        %v10607 = vunpack.c.l.b16 %v9713
        %v10608 = vunpack.c.h.b16 %v9713
        %v10609 = vunpack.c.l.b16 %v9714
        %v10610 = vunpack.c.h.b16 %v9714
        %v10611 = vunpack.c.l.b16 %v9715
        %v10612 = vunpack.c.h.b16 %v9715
        %v10613 = vunpack.c.l.b16 %v9716
        %v10614 = vunpack.c.h.b16 %v9716
        %v10615 = vunpack.c.l.b16 %v9717
        %v10616 = vunpack.c.l.b16 %v9718
        %v10617 = vunpack.c.h.b16 %v9718
        %v10618 = vunpack.c.l.b16 %v9719
        %v10619 = vunpack.c.h.b16 %v9719
        %v10620 = vunpack.c.l.b16 %v9720
        %v10621 = vunpack.c.h.b16 %v9720
        %v10622 = vunpack.c.l.b16 %v9721
        %v10623 = vunpack.c.h.b16 %v9721
        %v10624 = vunpack.c.l.b16 %v9722
        %v10625 = vunpack.c.h.b16 %v9722
        %v10626 = vunpack.c.l.b16 %v9723
        %v10627 = vunpack.c.h.b16 %v9723
        %v10628 = vunpack.c.l.b16 %v9724
        %v10629 = vunpack.c.h.b16 %v9724
        %v10630 = vunpack.c.l.b16 %v9725
        %v10631 = vunpack.c.h.b16 %v9725
        %v10632 = vunpack.c.l.b16 %v9726
        %v10633 = vunpack.c.h.b16 %v9726
        %v10634 = vunpack.c.l.b16 %v9727
        %v10635 = vunpack.c.h.b16 %v9727
        %v10636 = vunpack.c.l.b16 %v9728
        %v10637 = vpack.c.b16 %v10070, %v10049
        %v10638 = vpack.c.b16 %v10071, %v10050
        %v10639 = vpack.c.b16 %v10072, %v10051
        %v10640 = vpack.c.b16 %v10073, %v10052
        %v10641 = vpack.c.b16 %v10074, %v10053
        %v10642 = vpack.c.b16 %v10075, %v10054
        %v10643 = vpack.c.b16 %v10076, %v10055
        %v10644 = vpack.c.b16 %v10077, %v10056
        %v10645 = vpack.c.b16 %v10078, %v10057
        %v10646 = vpack.c.b16 %v10079, %v10058
        %v10647 = vpack.c.b16 %v10080, %v10059
        %v10648 = vpack.c.b16 %v10081, %v10060
        %v10649 = vpack.c.b16 %v10082, %v10061
        %v10650 = vpack.c.b16 %v10083, %v10062
        %v10651 = vpack.c.b16 %v10084, %v10063
        %v10652 = vpack.c.b16 %v10085, %v10064
        %v10653 = vpack.c.b16 %v10086, %v10065
        %v10654 = vpack.c.b16 %v10087, %v10066
        %v10655 = vpack.c.b16 %v10088, %v10067
        %v10656 = vpack.c.b16 %v10089, %v10068
        %v10657 = vpack.c.b16 %v10090, %v10069
        %v10658 = vpack.c.b16 %v10112, %v10091
        %v10659 = vpack.c.b16 %v10113, %v10092
        %v10660 = vpack.c.b16 %v10114, %v10093
        %v10661 = vpack.c.b16 %v10115, %v10094
        %v10662 = vpack.c.b16 %v10116, %v10095
        %v10663 = vpack.c.b16 %v10117, %v10096
        %v10664 = vpack.c.b16 %v10118, %v10097
        %v10665 = vpack.c.b16 %v10119, %v10098
        %v10666 = vpack.c.b16 %v10120, %v10099
        %v10667 = vpack.c.b16 %v10121, %v10100
        %v10668 = vpack.c.b16 %v10122, %v10101
        %v10669 = vpack.c.b16 %v10123, %v10102
        %v10670 = vpack.c.b16 %v10124, %v10103
        %v10671 = vpack.c.b16 %v10125, %v10104
        %v10672 = vpack.c.b16 %v10126, %v10105
        %v10673 = vpack.c.b16 %v10127, %v10106
        %v10674 = vpack.c.b16 %v10128, %v10107
        %v10675 = vpack.c.b16 %v10129, %v10108
        %v10676 = vpack.c.b16 %v10130, %v10109
        %v10677 = vpack.c.b16 %v10131, %v10110
        %v10678 = vpack.c.b16 %v10132, %v10111
        %v10679 = vpack.c.b16 %v10154, %v10133
        %v10680 = vpack.c.b16 %v10155, %v10134
        %v10681 = vpack.c.b16 %v10156, %v10135
        %v10682 = vpack.c.b16 %v10157, %v10136
        %v10683 = vpack.c.b16 %v10158, %v10137
        %v10684 = vpack.c.b16 %v10159, %v10138
        %v10685 = vpack.c.b16 %v10160, %v10139
        %v10686 = vpack.c.b16 %v10161, %v10140
        %v10687 = vpack.c.b16 %v10162, %v10141
        %v10688 = vpack.c.b16 %v10163, %v10142
        %v10689 = vpack.c.b16 %v10164, %v10143
        %v10690 = vpack.c.b16 %v10165, %v10144
        %v10691 = vpack.c.b16 %v10166, %v10145
        %v10692 = vpack.c.b16 %v10167, %v10146
        %v10693 = vpack.c.b16 %v10168, %v10147
        %v10694 = vpack.c.b16 %v10169, %v10148
        %v10695 = vpack.c.b16 %v10170, %v10149
        %v10696 = vpack.c.b16 %v10171, %v10150
        %v10697 = vpack.c.b16 %v10172, %v10151
        %v10698 = vpack.c.b16 %v10173, %v10152
        %v10699 = vpack.c.b16 %v10174, %v10153
        %v10700 = vpack.c.b16 %v10196, %v10175
        %v10701 = vpack.c.b16 %v10197, %v10176
        %v10702 = vpack.c.b16 %v10198, %v10177
        %v10703 = vpack.c.b16 %v10199, %v10178
        %v10704 = vpack.c.b16 %v10200, %v10179
        %v10705 = vpack.c.b16 %v10201, %v10180
        %v10706 = vpack.c.b16 %v10202, %v10181
        %v10707 = vpack.c.b16 %v10203, %v10182
        %v10708 = vpack.c.b16 %v10204, %v10183
        %v10709 = vpack.c.b16 %v10205, %v10184
        %v10710 = vpack.c.b16 %v10206, %v10185
        %v10711 = vpack.c.b16 %v10207, %v10186
        %v10712 = vpack.c.b16 %v10208, %v10187
        %v10713 = vpack.c.b16 %v10209, %v10188
        %v10714 = vpack.c.b16 %v10210, %v10189
        %v10715 = vpack.c.b16 %v10211, %v10190
        %v10716 = vpack.c.b16 %v10212, %v10191
        %v10717 = vpack.c.b16 %v10213, %v10192
        %v10718 = vpack.c.b16 %v10214, %v10193
        %v10719 = vpack.c.b16 %v10215, %v10194
        %v10720 = vpack.c.b16 %v10216, %v10195
        %v10721 = vpack.c.b16 %v10238, %v10217
        %v10722 = vpack.c.b16 %v10239, %v10218
        %v10723 = vpack.c.b16 %v10240, %v10219
        %v10724 = vpack.c.b16 %v10241, %v10220
        %v10725 = vpack.c.b16 %v10242, %v10221
        %v10726 = vpack.c.b16 %v10243, %v10222
        %v10727 = vpack.c.b16 %v10244, %v10223
        %v10728 = vpack.c.b16 %v10245, %v10224
        %v10729 = vpack.c.b16 %v10246, %v10225
        %v10730 = vpack.c.b16 %v10247, %v10226
        %v10731 = vpack.c.b16 %v10248, %v10227
        %v10732 = vpack.c.b16 %v10249, %v10228
        %v10733 = vpack.c.b16 %v10250, %v10229
        %v10734 = vpack.c.b16 %v10251, %v10230
        %v10735 = vpack.c.b16 %v10252, %v10231
        %v10736 = vpack.c.b16 %v10253, %v10232
        %v10737 = vpack.c.b16 %v10254, %v10233
        %v10738 = vpack.c.b16 %v10255, %v10234
        %v10739 = vpack.c.b16 %v10256, %v10235
        %v10740 = vpack.c.b16 %v10257, %v10236
        %v10741 = vpack.c.b16 %v10258, %v10237
        %v10742 = vpack.c.b16 %v10280, %v10259
        %v10743 = vpack.c.b16 %v10281, %v10260
        %v10744 = vpack.c.b16 %v10282, %v10261
        %v10745 = vpack.c.b16 %v10283, %v10262
        %v10746 = vpack.c.b16 %v10284, %v10263
        %v10747 = vpack.c.b16 %v10285, %v10264
        %v10748 = vpack.c.b16 %v10286, %v10265
        %v10749 = vpack.c.b16 %v10287, %v10266
        %v10750 = vpack.c.b16 %v10288, %v10267
        %v10751 = vpack.c.b16 %v10289, %v10268
        %v10752 = vpack.c.b16 %v10290, %v10269
        %v10753 = vpack.c.b16 %v10291, %v10270
        %v10754 = vpack.c.b16 %v10292, %v10271
        %v10755 = vpack.c.b16 %v10293, %v10272
        %v10756 = vpack.c.b16 %v10294, %v10273
        %v10757 = vpack.c.b16 %v10295, %v10274
        %v10758 = vpack.c.b16 %v10296, %v10275
        %v10759 = vpack.c.b16 %v10297, %v10276
        %v10760 = vpack.c.b16 %v10298, %v10277
        %v10761 = vpack.c.b16 %v10299, %v10278
        %v10762 = vpack.c.b16 %v10300, %v10279
        %v10763 = vpack.c.b16 %v10322, %v10301
        %v10764 = vpack.c.b16 %v10323, %v10302
        %v10765 = vpack.c.b16 %v10324, %v10303
        %v10766 = vpack.c.b16 %v10325, %v10304
        %v10767 = vpack.c.b16 %v10326, %v10305
        %v10768 = vpack.c.b16 %v10327, %v10306
        %v10769 = vpack.c.b16 %v10328, %v10307
        %v10770 = vpack.c.b16 %v10329, %v10308
        %v10771 = vpack.c.b16 %v10330, %v10309
        %v10772 = vpack.c.b16 %v10331, %v10310
        %v10773 = vpack.c.b16 %v10332, %v10311
        %v10774 = vpack.c.b16 %v10333, %v10312
        %v10775 = vpack.c.b16 %v10334, %v10313
        %v10776 = vpack.c.b16 %v10335, %v10314
        %v10777 = vpack.c.b16 %v10336, %v10315
        %v10778 = vpack.c.b16 %v10337, %v10316
        %v10779 = vpack.c.b16 %v10338, %v10317
        %v10780 = vpack.c.b16 %v10339, %v10318
        %v10781 = vpack.c.b16 %v10340, %v10319
        %v10782 = vpack.c.b16 %v10341, %v10320
        %v10783 = vpack.c.b16 %v10342, %v10321
        %v10784 = vpack.c.b16 %v10364, %v10343
        %v10785 = vpack.c.b16 %v10365, %v10344
        %v10786 = vpack.c.b16 %v10366, %v10345
        %v10787 = vpack.c.b16 %v10367, %v10346
        %v10788 = vpack.c.b16 %v10368, %v10347
        %v10789 = vpack.c.b16 %v10369, %v10348
        %v10790 = vpack.c.b16 %v10370, %v10349
        %v10791 = vpack.c.b16 %v10371, %v10350
        %v10792 = vpack.c.b16 %v10372, %v10351
        %v10793 = vpack.c.b16 %v10373, %v10352
        %v10794 = vpack.c.b16 %v10374, %v10353
        %v10795 = vpack.c.b16 %v10375, %v10354
        %v10796 = vpack.c.b16 %v10376, %v10355
        %v10797 = vpack.c.b16 %v10377, %v10356
        %v10798 = vpack.c.b16 %v10378, %v10357
        %v10799 = vpack.c.b16 %v10379, %v10358
        %v10800 = vpack.c.b16 %v10380, %v10359
        %v10801 = vpack.c.b16 %v10381, %v10360
        %v10802 = vpack.c.b16 %v10382, %v10361
        %v10803 = vpack.c.b16 %v10383, %v10362
        %v10804 = vpack.c.b16 %v10384, %v10363
        %v10805 = vpack.c.b16 %v10406, %v10385
        %v10806 = vpack.c.b16 %v10407, %v10386
        %v10807 = vpack.c.b16 %v10408, %v10387
        %v10808 = vpack.c.b16 %v10409, %v10388
        %v10809 = vpack.c.b16 %v10410, %v10389
        %v10810 = vpack.c.b16 %v10411, %v10390
        %v10811 = vpack.c.b16 %v10412, %v10391
        %v10812 = vpack.c.b16 %v10413, %v10392
        %v10813 = vpack.c.b16 %v10414, %v10393
        %v10814 = vpack.c.b16 %v10415, %v10394
        %v10815 = vpack.c.b16 %v10416, %v10395
        %v10816 = vpack.c.b16 %v10417, %v10396
        %v10817 = vpack.c.b16 %v10418, %v10397
        %v10818 = vpack.c.b16 %v10419, %v10398
        %v10819 = vpack.c.b16 %v10420, %v10399
        %v10820 = vpack.c.b16 %v10421, %v10400
        %v10821 = vpack.c.b16 %v10422, %v10401
        %v10822 = vpack.c.b16 %v10423, %v10402
        %v10823 = vpack.c.b16 %v10424, %v10403
        %v10824 = vpack.c.b16 %v10425, %v10404
        %v10825 = vpack.c.b16 %v10426, %v10405
        %v10826 = vpack.c.b16 %v10448, %v10427
        %v10827 = vpack.c.b16 %v10449, %v10428
        %v10828 = vpack.c.b16 %v10450, %v10429
        %v10829 = vpack.c.b16 %v10451, %v10430
        %v10830 = vpack.c.b16 %v10452, %v10431
        %v10831 = vpack.c.b16 %v10453, %v10432
        %v10832 = vpack.c.b16 %v10454, %v10433
        %v10833 = vpack.c.b16 %v10455, %v10434
        %v10834 = vpack.c.b16 %v10456, %v10435
        %v10835 = vpack.c.b16 %v10457, %v10436
        %v10836 = vpack.c.b16 %v10458, %v10437
        %v10837 = vpack.c.b16 %v10459, %v10438
        %v10838 = vpack.c.b16 %v10460, %v10439
        %v10839 = vpack.c.b16 %v10461, %v10440
        %v10840 = vpack.c.b16 %v10462, %v10441
        %v10841 = vpack.c.b16 %v10463, %v10442
        %v10842 = vpack.c.b16 %v10464, %v10443
        %v10843 = vpack.c.b16 %v10465, %v10444
        %v10844 = vpack.c.b16 %v10466, %v10445
        %v10845 = vpack.c.b16 %v10467, %v10446
        %v10846 = vpack.c.b16 %v10468, %v10447
        %v10847 = vpack.c.b16 %v10490, %v10469
        %v10848 = vpack.c.b16 %v10491, %v10470
        %v10849 = vpack.c.b16 %v10492, %v10471
        %v10850 = vpack.c.b16 %v10493, %v10472
        %v10851 = vpack.c.b16 %v10494, %v10473
        %v10852 = vpack.c.b16 %v10495, %v10474
        %v10853 = vpack.c.b16 %v10496, %v10475
        %v10854 = vpack.c.b16 %v10497, %v10476
        %v10855 = vpack.c.b16 %v10498, %v10477
        %v10856 = vpack.c.b16 %v10499, %v10478
        %v10857 = vpack.c.b16 %v10500, %v10479
        %v10858 = vpack.c.b16 %v10501, %v10480
        %v10859 = vpack.c.b16 %v10502, %v10481
        %v10860 = vpack.c.b16 %v10503, %v10482
        %v10861 = vpack.c.b16 %v10504, %v10483
        %v10862 = vpack.c.b16 %v10505, %v10484
        %v10863 = vpack.c.b16 %v10506, %v10485
        %v10864 = vpack.c.b16 %v10507, %v10486
        %v10865 = vpack.c.b16 %v10508, %v10487
        %v10866 = vpack.c.b16 %v10509, %v10488
        %v10867 = vpack.c.b16 %v10510, %v10489
        %v10868 = vpack.c.b16 %v10532, %v10511
        %v10869 = vpack.c.b16 %v10533, %v10512
        %v10870 = vpack.c.b16 %v10534, %v10513
        %v10871 = vpack.c.b16 %v10535, %v10514
        %v10872 = vpack.c.b16 %v10536, %v10515
        %v10873 = vpack.c.b16 %v10537, %v10516
        %v10874 = vpack.c.b16 %v10538, %v10517
        %v10875 = vpack.c.b16 %v10539, %v10518
        %v10876 = vpack.c.b16 %v10540, %v10519
        %v10877 = vpack.c.b16 %v10541, %v10520
        %v10878 = vpack.c.b16 %v10542, %v10521
        %v10879 = vpack.c.b16 %v10543, %v10522
        %v10880 = vpack.c.b16 %v10544, %v10523
        %v10881 = vpack.c.b16 %v10545, %v10524
        %v10882 = vpack.c.b16 %v10546, %v10525
        %v10883 = vpack.c.b16 %v10547, %v10526
        %v10884 = vpack.c.b16 %v10548, %v10527
        %v10885 = vpack.c.b16 %v10549, %v10528
        %v10886 = vpack.c.b16 %v10550, %v10529
        %v10887 = vpack.c.b16 %v10551, %v10530
        %v10888 = vpack.c.b16 %v10552, %v10531
        %v10889 = vpack.c.b16 %v10574, %v10553
        %v10890 = vpack.c.b16 %v10575, %v10554
        %v10891 = vpack.c.b16 %v10576, %v10555
        %v10892 = vpack.c.b16 %v10577, %v10556
        %v10893 = vpack.c.b16 %v10578, %v10557
        %v10894 = vpack.c.b16 %v10579, %v10558
        %v10895 = vpack.c.b16 %v10580, %v10559
        %v10896 = vpack.c.b16 %v10581, %v10560
        %v10897 = vpack.c.b16 %v10582, %v10561
        %v10898 = vpack.c.b16 %v10583, %v10562
        %v10899 = vpack.c.b16 %v10584, %v10563
        %v10900 = vpack.c.b16 %v10585, %v10564
        %v10901 = vpack.c.b16 %v10586, %v10565
        %v10902 = vpack.c.b16 %v10587, %v10566
        %v10903 = vpack.c.b16 %v10588, %v10567
        %v10904 = vpack.c.b16 %v10589, %v10568
        %v10905 = vpack.c.b16 %v10590, %v10569
        %v10906 = vpack.c.b16 %v10591, %v10570
        %v10907 = vpack.c.b16 %v10592, %v10571
        %v10908 = vpack.c.b16 %v10593, %v10572
        %v10909 = vpack.c.b16 %v10594, %v10573
        %v10910 = vpack.c.b16 %v10616, %v10595
        %v10911 = vpack.c.b16 %v10617, %v10596
        %v10912 = vpack.c.b16 %v10618, %v10597
        %v10913 = vpack.c.b16 %v10619, %v10598
        %v10914 = vpack.c.b16 %v10620, %v10599
        %v10915 = vpack.c.b16 %v10621, %v10600
        %v10916 = vpack.c.b16 %v10622, %v10601
        %v10917 = vpack.c.b16 %v10623, %v10602
        %v10918 = vpack.c.b16 %v10624, %v10603
        %v10919 = vpack.c.b16 %v10625, %v10604
        %v10920 = vpack.c.b16 %v10626, %v10605
        %v10921 = vpack.c.b16 %v10627, %v10606
        %v10922 = vpack.c.b16 %v10628, %v10607
        %v10923 = vpack.c.b16 %v10629, %v10608
        %v10924 = vpack.c.b16 %v10630, %v10609
        %v10925 = vpack.c.b16 %v10631, %v10610
        %v10926 = vpack.c.b16 %v10632, %v10611
        %v10927 = vpack.c.b16 %v10633, %v10612
        %v10928 = vpack.c.b16 %v10634, %v10613
        %v10929 = vpack.c.b16 %v10635, %v10614
        %v10930 = vpack.c.b16 %v10636, %v10615
        %vm11225 = vcmask 785408
        %v11227 = vsel %vm11225, %v9739, 0
        %11229 = vmatprep.subr.bf16.mxu0 %v10785
        %11230 = vmatpush1.bf16.msra.mxu0 %v10784
        %11231 = vmatprep.subr.bf16.mxu0 %v10764
        %11232 = vmatpush1.bf16.msra.mxu0 %v10763
        %11233 = vmatprep.subr.bf16.mxu0 %v10743
        %11234 = vmatpush1.bf16.msra.mxu0 %v10742
        %11235 = vmatprep.subr.bf16.mxu0 %v10722
        %11236 = vmatpush1.bf16.msra.mxu0 %v10721
        %11237 = vmatprep.subr.bf16.mxu0 %v10701
        %11238 = vmatpush1.bf16.msra.mxu0 %v10700
        %11239 = vmatprep.subr.bf16.mxu0 %v10680
        %11240 = vmatpush1.bf16.msra.mxu0 %v10679
        %11241 = vmatprep.subr.bf16.mxu0 %v10659
        %11242 = vmatpush1.bf16.msra.mxu0 %v10658
        %11243 = vmatprep.subr.bf16.mxu0 %v10638
        %11244 = vmatpush1.bf16.msra.mxu0 %v10637
        %11245 = vmatprep.subr.bf16.mxu0 0
        %11246 = vmatpush2.bf16.msra.mxu0 0
        %11247 = vmatprep.subr.bf16.mxu0 0
        %11248 = vmatpush2.bf16.msra.mxu0 0
        %11249 = vmatprep.subr.bf16.mxu0 %v10911
        %11250 = vmatpush2.bf16.msra.mxu0 %v10910
        %11251 = vmatprep.subr.bf16.mxu0 %v10890
        %11252 = vmatpush2.bf16.msra.mxu0 %v10889
        %11253 = vmatprep.subr.bf16.mxu0 %v10869
        %11254 = vmatpush2.bf16.msra.mxu0 %v10868
        %11255 = vmatprep.subr.bf16.mxu0 %v10848
        %11256 = vmatpush2.bf16.msra.mxu0 %v10847
        %11257 = vmatprep.subr.bf16.mxu0 %v10827
        %11258 = vmatpush2.bf16.msra.mxu0 %v10826
        %11259 = vmatprep.subr.bf16.mxu0 %v10806
        %11260 = vmatpush2.bf16.msra.mxu0 %v10805
        %11261 = vmatprep.mubr.bf16.mxu0 %v11227
        %11262 = vmatmul.mubr.bf16.gmra.mxu0 %v9738
        %v11263 = vpop.f32.mrf.mxu0
        %v11264 = vadd.f32 %v9733, %v11263
        %v11265 = vpop.f32.mrf.mxu0
        %v11266 = vadd.f32 %v9733, %v11265
        %v11267 = vpop.f32.mrf.mxu0
        %v11268 = vpop.f32.mrf.mxu0
        %11269 = vdwg.mxu0
        %11270 = vmatprep.subr.bf16.mxu0 %v10787
        %11271 = vmatpush1.bf16.msra.mxu0 %v10786
        %11272 = vmatprep.subr.bf16.mxu0 %v10766
        %11273 = vmatpush1.bf16.msra.mxu0 %v10765
        %11274 = vmatprep.subr.bf16.mxu0 %v10745
        %11275 = vmatpush1.bf16.msra.mxu0 %v10744
        %11276 = vmatprep.subr.bf16.mxu0 %v10724
        %11277 = vmatpush1.bf16.msra.mxu0 %v10723
        %11278 = vmatprep.subr.bf16.mxu0 %v10703
        %11279 = vmatpush1.bf16.msra.mxu0 %v10702
        %11280 = vmatprep.subr.bf16.mxu0 %v10682
        %11281 = vmatpush1.bf16.msra.mxu0 %v10681
        %11282 = vmatprep.subr.bf16.mxu0 %v10661
        %11283 = vmatpush1.bf16.msra.mxu0 %v10660
        %11284 = vmatprep.subr.bf16.mxu0 %v10640
        %11285 = vmatpush1.bf16.msra.mxu0 %v10639
        %11286 = vmatprep.subr.bf16.mxu0 0
        %11287 = vmatpush2.bf16.msra.mxu0 0
        %11288 = vmatprep.subr.bf16.mxu0 0
        %11289 = vmatpush2.bf16.msra.mxu0 0
        %11290 = vmatprep.subr.bf16.mxu0 %v10913
        %11291 = vmatpush2.bf16.msra.mxu0 %v10912
        %11292 = vmatprep.subr.bf16.mxu0 %v10892
        %11293 = vmatpush2.bf16.msra.mxu0 %v10891
        %11294 = vmatprep.subr.bf16.mxu0 %v10871
        %11295 = vmatpush2.bf16.msra.mxu0 %v10870
        %11296 = vmatprep.subr.bf16.mxu0 %v10850
        %11297 = vmatpush2.bf16.msra.mxu0 %v10849
        %11298 = vmatprep.subr.bf16.mxu0 %v10829
        %11299 = vmatpush2.bf16.msra.mxu0 %v10828
        %11300 = vmatprep.subr.bf16.mxu0 %v10808
        %11301 = vmatpush2.bf16.msra.mxu0 %v10807
        %11302 = vmatprep.mubr.bf16.mxu0 %v11227
        %11303 = vmatmul.mubr.bf16.gmra.mxu0 %v9738
        %v11304 = vpop.f32.mrf.mxu0
        %v11305 = vadd.f32 %v9733, %v11304
        %v11306 = vpop.f32.mrf.mxu0
        %v11307 = vadd.f32 %v9733, %v11306
        %v11308 = vpop.f32.mrf.mxu0
        %v11309 = vpop.f32.mrf.mxu0
        %11310 = vdwg.mxu0
        %11311 = vmatprep.subr.bf16.mxu0 %v10789
        %11312 = vmatpush1.bf16.msra.mxu0 %v10788
        %11313 = vmatprep.subr.bf16.mxu0 %v10768
        %11314 = vmatpush1.bf16.msra.mxu0 %v10767
        %11315 = vmatprep.subr.bf16.mxu0 %v10747
        %11316 = vmatpush1.bf16.msra.mxu0 %v10746
        %11317 = vmatprep.subr.bf16.mxu0 %v10726
        %11318 = vmatpush1.bf16.msra.mxu0 %v10725
        %11319 = vmatprep.subr.bf16.mxu0 %v10705
        %11320 = vmatpush1.bf16.msra.mxu0 %v10704
        %11321 = vmatprep.subr.bf16.mxu0 %v10684
        %11322 = vmatpush1.bf16.msra.mxu0 %v10683
        %11323 = vmatprep.subr.bf16.mxu0 %v10663
        %11324 = vmatpush1.bf16.msra.mxu0 %v10662
        %11325 = vmatprep.subr.bf16.mxu0 %v10642
        %11326 = vmatpush1.bf16.msra.mxu0 %v10641
        %11327 = vmatprep.subr.bf16.mxu0 0
        %11328 = vmatpush2.bf16.msra.mxu0 0
        %11329 = vmatprep.subr.bf16.mxu0 0
        %11330 = vmatpush2.bf16.msra.mxu0 0
        %11331 = vmatprep.subr.bf16.mxu0 %v10915
        %11332 = vmatpush2.bf16.msra.mxu0 %v10914
        %11333 = vmatprep.subr.bf16.mxu0 %v10894
        %11334 = vmatpush2.bf16.msra.mxu0 %v10893
        %11335 = vmatprep.subr.bf16.mxu0 %v10873
        %11336 = vmatpush2.bf16.msra.mxu0 %v10872
        %11337 = vmatprep.subr.bf16.mxu0 %v10852
        %11338 = vmatpush2.bf16.msra.mxu0 %v10851
        %11339 = vmatprep.subr.bf16.mxu0 %v10831
        %11340 = vmatpush2.bf16.msra.mxu0 %v10830
        %11341 = vmatprep.subr.bf16.mxu0 %v10810
        %11342 = vmatpush2.bf16.msra.mxu0 %v10809
        %11343 = vmatprep.mubr.bf16.mxu0 %v11227
        %11344 = vmatmul.mubr.bf16.gmra.mxu0 %v9738
        %v11345 = vpop.f32.mrf.mxu0
        %v11346 = vadd.f32 %v9733, %v11345
        %v11347 = vpop.f32.mrf.mxu0
        %v11348 = vadd.f32 %v9733, %v11347
        %v11349 = vpop.f32.mrf.mxu0
        %v11350 = vpop.f32.mrf.mxu0
        %11351 = vdwg.mxu0
        %11352 = vmatprep.subr.bf16.mxu0 %v10791
        %11353 = vmatpush1.bf16.msra.mxu0 %v10790
        %11354 = vmatprep.subr.bf16.mxu0 %v10770
        %11355 = vmatpush1.bf16.msra.mxu0 %v10769
        %11356 = vmatprep.subr.bf16.mxu0 %v10749
        %11357 = vmatpush1.bf16.msra.mxu0 %v10748
        %11358 = vmatprep.subr.bf16.mxu0 %v10728
        %11359 = vmatpush1.bf16.msra.mxu0 %v10727
        %11360 = vmatprep.subr.bf16.mxu0 %v10707
        %11361 = vmatpush1.bf16.msra.mxu0 %v10706
        %11362 = vmatprep.subr.bf16.mxu0 %v10686
        %11363 = vmatpush1.bf16.msra.mxu0 %v10685
        %11364 = vmatprep.subr.bf16.mxu0 %v10665
        %11365 = vmatpush1.bf16.msra.mxu0 %v10664
        %11366 = vmatprep.subr.bf16.mxu0 %v10644
        %11367 = vmatpush1.bf16.msra.mxu0 %v10643
        %11368 = vmatprep.subr.bf16.mxu0 0
        %11369 = vmatpush2.bf16.msra.mxu0 0
        %11370 = vmatprep.subr.bf16.mxu0 0
        %11371 = vmatpush2.bf16.msra.mxu0 0
        %11372 = vmatprep.subr.bf16.mxu0 %v10917
        %11373 = vmatpush2.bf16.msra.mxu0 %v10916
        %11374 = vmatprep.subr.bf16.mxu0 %v10896
        %11375 = vmatpush2.bf16.msra.mxu0 %v10895
        %11376 = vmatprep.subr.bf16.mxu0 %v10875
        %11377 = vmatpush2.bf16.msra.mxu0 %v10874
        %11378 = vmatprep.subr.bf16.mxu0 %v10854
        %11379 = vmatpush2.bf16.msra.mxu0 %v10853
        %11380 = vmatprep.subr.bf16.mxu0 %v10833
        %11381 = vmatpush2.bf16.msra.mxu0 %v10832
        %11382 = vmatprep.subr.bf16.mxu0 %v10812
        %11383 = vmatpush2.bf16.msra.mxu0 %v10811
        %11384 = vmatprep.mubr.bf16.mxu0 %v11227
        %11385 = vmatmul.mubr.bf16.gmra.mxu0 %v9738
        %v11386 = vpop.f32.mrf.mxu0
        %v11387 = vadd.f32 %v9733, %v11386
        %v11388 = vpop.f32.mrf.mxu0
        %v11389 = vadd.f32 %v9733, %v11388
        %v11390 = vpop.f32.mrf.mxu0
        %v11391 = vpop.f32.mrf.mxu0
        %11392 = vdwg.mxu0
        %11393 = vmatprep.subr.bf16.mxu0 %v10793
        %11394 = vmatpush1.bf16.msra.mxu0 %v10792
        %11395 = vmatprep.subr.bf16.mxu0 %v10772
        %11396 = vmatpush1.bf16.msra.mxu0 %v10771
        %11397 = vmatprep.subr.bf16.mxu0 %v10751
        %11398 = vmatpush1.bf16.msra.mxu0 %v10750
        %11399 = vmatprep.subr.bf16.mxu0 %v10730
        %11400 = vmatpush1.bf16.msra.mxu0 %v10729
        %11401 = vmatprep.subr.bf16.mxu0 %v10709
        %11402 = vmatpush1.bf16.msra.mxu0 %v10708
        %11403 = vmatprep.subr.bf16.mxu0 %v10688
        %11404 = vmatpush1.bf16.msra.mxu0 %v10687
        %11405 = vmatprep.subr.bf16.mxu0 %v10667
        %11406 = vmatpush1.bf16.msra.mxu0 %v10666
        %11407 = vmatprep.subr.bf16.mxu0 %v10646
        %11408 = vmatpush1.bf16.msra.mxu0 %v10645
        %11409 = vmatprep.subr.bf16.mxu0 0
        %11410 = vmatpush2.bf16.msra.mxu0 0
        %11411 = vmatprep.subr.bf16.mxu0 0
        %11412 = vmatpush2.bf16.msra.mxu0 0
        %11413 = vmatprep.subr.bf16.mxu0 %v10919
        %11414 = vmatpush2.bf16.msra.mxu0 %v10918
        %11415 = vmatprep.subr.bf16.mxu0 %v10898
        %11416 = vmatpush2.bf16.msra.mxu0 %v10897
        %11417 = vmatprep.subr.bf16.mxu0 %v10877
        %11418 = vmatpush2.bf16.msra.mxu0 %v10876
        %11419 = vmatprep.subr.bf16.mxu0 %v10856
        %11420 = vmatpush2.bf16.msra.mxu0 %v10855
        %11421 = vmatprep.subr.bf16.mxu0 %v10835
        %11422 = vmatpush2.bf16.msra.mxu0 %v10834
        %11423 = vmatprep.subr.bf16.mxu0 %v10814
        %11424 = vmatpush2.bf16.msra.mxu0 %v10813
        %11425 = vmatprep.mubr.bf16.mxu0 %v11227
        %11426 = vmatmul.mubr.bf16.gmra.mxu0 %v9738
        %v11427 = vpop.f32.mrf.mxu0
        %v11428 = vadd.f32 %v9733, %v11427
        %v11429 = vpop.f32.mrf.mxu0
        %v11430 = vadd.f32 %v9733, %v11429
        %v11431 = vpop.f32.mrf.mxu0
        %v11432 = vpop.f32.mrf.mxu0
        %11433 = vdwg.mxu0
        %11434 = vmatprep.subr.bf16.mxu0 %v10795
        %11435 = vmatpush1.bf16.msra.mxu0 %v10794
        %11436 = vmatprep.subr.bf16.mxu0 %v10774
        %11437 = vmatpush1.bf16.msra.mxu0 %v10773
        %11438 = vmatprep.subr.bf16.mxu0 %v10753
        %11439 = vmatpush1.bf16.msra.mxu0 %v10752
        %11440 = vmatprep.subr.bf16.mxu0 %v10732
        %11441 = vmatpush1.bf16.msra.mxu0 %v10731
        %11442 = vmatprep.subr.bf16.mxu0 %v10711
        %11443 = vmatpush1.bf16.msra.mxu0 %v10710
        %11444 = vmatprep.subr.bf16.mxu0 %v10690
        %11445 = vmatpush1.bf16.msra.mxu0 %v10689
        %11446 = vmatprep.subr.bf16.mxu0 %v10669
        %11447 = vmatpush1.bf16.msra.mxu0 %v10668
        %11448 = vmatprep.subr.bf16.mxu0 %v10648
        %11449 = vmatpush1.bf16.msra.mxu0 %v10647
        %11450 = vmatprep.subr.bf16.mxu0 0
        %11451 = vmatpush2.bf16.msra.mxu0 0
        %11452 = vmatprep.subr.bf16.mxu0 0
        %11453 = vmatpush2.bf16.msra.mxu0 0
        %11454 = vmatprep.subr.bf16.mxu0 %v10921
        %11455 = vmatpush2.bf16.msra.mxu0 %v10920
        %11456 = vmatprep.subr.bf16.mxu0 %v10900
        %11457 = vmatpush2.bf16.msra.mxu0 %v10899
        %11458 = vmatprep.subr.bf16.mxu0 %v10879
        %11459 = vmatpush2.bf16.msra.mxu0 %v10878
        %11460 = vmatprep.subr.bf16.mxu0 %v10858
        %11461 = vmatpush2.bf16.msra.mxu0 %v10857
        %11462 = vmatprep.subr.bf16.mxu0 %v10837
        %11463 = vmatpush2.bf16.msra.mxu0 %v10836
        %11464 = vmatprep.subr.bf16.mxu0 %v10816
        %11465 = vmatpush2.bf16.msra.mxu0 %v10815
        %11466 = vmatprep.mubr.bf16.mxu0 %v11227
        %11467 = vmatmul.mubr.bf16.gmra.mxu0 %v9738
        %v11468 = vpop.f32.mrf.mxu0
        %v11469 = vadd.f32 %v9733, %v11468
        %v11470 = vpop.f32.mrf.mxu0
        %v11471 = vadd.f32 %v9733, %v11470
        %v11472 = vpop.f32.mrf.mxu0
        %v11473 = vpop.f32.mrf.mxu0
        %11474 = vdwg.mxu0
        %11475 = vmatprep.subr.bf16.mxu0 %v10797
        %11476 = vmatpush1.bf16.msra.mxu0 %v10796
        %11477 = vmatprep.subr.bf16.mxu0 %v10776
        %11478 = vmatpush1.bf16.msra.mxu0 %v10775
        %11479 = vmatprep.subr.bf16.mxu0 %v10755
        %11480 = vmatpush1.bf16.msra.mxu0 %v10754
        %11481 = vmatprep.subr.bf16.mxu0 %v10734
        %11482 = vmatpush1.bf16.msra.mxu0 %v10733
        %11483 = vmatprep.subr.bf16.mxu0 %v10713
        %11484 = vmatpush1.bf16.msra.mxu0 %v10712
        %11485 = vmatprep.subr.bf16.mxu0 %v10692
        %11486 = vmatpush1.bf16.msra.mxu0 %v10691
        %11487 = vmatprep.subr.bf16.mxu0 %v10671
        %11488 = vmatpush1.bf16.msra.mxu0 %v10670
        %11489 = vmatprep.subr.bf16.mxu0 %v10650
        %11490 = vmatpush1.bf16.msra.mxu0 %v10649
        %11491 = vmatprep.subr.bf16.mxu0 0
        %11492 = vmatpush2.bf16.msra.mxu0 0
        %11493 = vmatprep.subr.bf16.mxu0 0
        %11494 = vmatpush2.bf16.msra.mxu0 0
        %11495 = vmatprep.subr.bf16.mxu0 %v10923
        %11496 = vmatpush2.bf16.msra.mxu0 %v10922
        %11497 = vmatprep.subr.bf16.mxu0 %v10902
        %11498 = vmatpush2.bf16.msra.mxu0 %v10901
        %11499 = vmatprep.subr.bf16.mxu0 %v10881
        %11500 = vmatpush2.bf16.msra.mxu0 %v10880
        %11501 = vmatprep.subr.bf16.mxu0 %v10860
        %11502 = vmatpush2.bf16.msra.mxu0 %v10859
        %11503 = vmatprep.subr.bf16.mxu0 %v10839
        %11504 = vmatpush2.bf16.msra.mxu0 %v10838
        %11505 = vmatprep.subr.bf16.mxu0 %v10818
        %11506 = vmatpush2.bf16.msra.mxu0 %v10817
        %11507 = vmatprep.mubr.bf16.mxu0 %v11227
        %11508 = vmatmul.mubr.bf16.gmra.mxu0 %v9738
        %v11509 = vpop.f32.mrf.mxu0
        %v11510 = vadd.f32 %v9733, %v11509
        %v11511 = vpop.f32.mrf.mxu0
        %v11512 = vadd.f32 %v9733, %v11511
        %v11513 = vpop.f32.mrf.mxu0
        %v11514 = vpop.f32.mrf.mxu0
        %11515 = vdwg.mxu0
        %11516 = vmatprep.subr.bf16.mxu0 %v10799
        %11517 = vmatpush1.bf16.msra.mxu0 %v10798
        %11518 = vmatprep.subr.bf16.mxu0 %v10778
        %11519 = vmatpush1.bf16.msra.mxu0 %v10777
        %11520 = vmatprep.subr.bf16.mxu0 %v10757
        %11521 = vmatpush1.bf16.msra.mxu0 %v10756
        %11522 = vmatprep.subr.bf16.mxu0 %v10736
        %11523 = vmatpush1.bf16.msra.mxu0 %v10735
        %11524 = vmatprep.subr.bf16.mxu0 %v10715
        %11525 = vmatpush1.bf16.msra.mxu0 %v10714
        %11526 = vmatprep.subr.bf16.mxu0 %v10694
        %11527 = vmatpush1.bf16.msra.mxu0 %v10693
        %11528 = vmatprep.subr.bf16.mxu0 %v10673
        %11529 = vmatpush1.bf16.msra.mxu0 %v10672
        %11530 = vmatprep.subr.bf16.mxu0 %v10652
        %11531 = vmatpush1.bf16.msra.mxu0 %v10651
        %11532 = vmatprep.subr.bf16.mxu0 0
        %11533 = vmatpush2.bf16.msra.mxu0 0
        %11534 = vmatprep.subr.bf16.mxu0 0
        %11535 = vmatpush2.bf16.msra.mxu0 0
        %11536 = vmatprep.subr.bf16.mxu0 %v10925
        %11537 = vmatpush2.bf16.msra.mxu0 %v10924
        %11538 = vmatprep.subr.bf16.mxu0 %v10904
        %11539 = vmatpush2.bf16.msra.mxu0 %v10903
        %11540 = vmatprep.subr.bf16.mxu0 %v10883
        %11541 = vmatpush2.bf16.msra.mxu0 %v10882
        %11542 = vmatprep.subr.bf16.mxu0 %v10862
        %11543 = vmatpush2.bf16.msra.mxu0 %v10861
        %11544 = vmatprep.subr.bf16.mxu0 %v10841
        %11545 = vmatpush2.bf16.msra.mxu0 %v10840
        %11546 = vmatprep.subr.bf16.mxu0 %v10820
        %11547 = vmatpush2.bf16.msra.mxu0 %v10819
        %11548 = vmatprep.mubr.bf16.mxu0 %v11227
        %11549 = vmatmul.mubr.bf16.gmra.mxu0 %v9738
        %v11550 = vpop.f32.mrf.mxu0
        %v11551 = vadd.f32 %v9733, %v11550
        %v11552 = vpop.f32.mrf.mxu0
        %v11553 = vadd.f32 %v9733, %v11552
        %v11554 = vpop.f32.mrf.mxu0
        %v11555 = vpop.f32.mrf.mxu0
        %11556 = vdwg.mxu0
        %11557 = vmatprep.subr.bf16.mxu0 %v10801
        %11558 = vmatpush1.bf16.msra.mxu0 %v10800
        %11559 = vmatprep.subr.bf16.mxu0 %v10780
        %11560 = vmatpush1.bf16.msra.mxu0 %v10779
        %11561 = vmatprep.subr.bf16.mxu0 %v10759
        %11562 = vmatpush1.bf16.msra.mxu0 %v10758
        %11563 = vmatprep.subr.bf16.mxu0 %v10738
        %11564 = vmatpush1.bf16.msra.mxu0 %v10737
        %11565 = vmatprep.subr.bf16.mxu0 %v10717
        %11566 = vmatpush1.bf16.msra.mxu0 %v10716
        %11567 = vmatprep.subr.bf16.mxu0 %v10696
        %11568 = vmatpush1.bf16.msra.mxu0 %v10695
        %11569 = vmatprep.subr.bf16.mxu0 %v10675
        %11570 = vmatpush1.bf16.msra.mxu0 %v10674
        %11571 = vmatprep.subr.bf16.mxu0 %v10654
        %11572 = vmatpush1.bf16.msra.mxu0 %v10653
        %11573 = vmatprep.subr.bf16.mxu0 0
        %11574 = vmatpush2.bf16.msra.mxu0 0
        %11575 = vmatprep.subr.bf16.mxu0 0
        %11576 = vmatpush2.bf16.msra.mxu0 0
        %11577 = vmatprep.subr.bf16.mxu0 %v10927
        %11578 = vmatpush2.bf16.msra.mxu0 %v10926
        %11579 = vmatprep.subr.bf16.mxu0 %v10906
        %11580 = vmatpush2.bf16.msra.mxu0 %v10905
        %11581 = vmatprep.subr.bf16.mxu0 %v10885
        %11582 = vmatpush2.bf16.msra.mxu0 %v10884
        %11583 = vmatprep.subr.bf16.mxu0 %v10864
        %11584 = vmatpush2.bf16.msra.mxu0 %v10863
        %11585 = vmatprep.subr.bf16.mxu0 %v10843
        %11586 = vmatpush2.bf16.msra.mxu0 %v10842
        %11587 = vmatprep.subr.bf16.mxu0 %v10822
        %11588 = vmatpush2.bf16.msra.mxu0 %v10821
        %11589 = vmatprep.mubr.bf16.mxu0 %v11227
        %11590 = vmatmul.mubr.bf16.gmra.mxu0 %v9738
        %v11591 = vpop.f32.mrf.mxu0
        %v11592 = vadd.f32 %v9733, %v11591
        %v11593 = vpop.f32.mrf.mxu0
        %v11594 = vadd.f32 %v9733, %v11593
        %v11595 = vpop.f32.mrf.mxu0
        %v11596 = vpop.f32.mrf.mxu0
        %11597 = vdwg.mxu0
        %11598 = vmatprep.subr.bf16.mxu0 %v10803
        %11599 = vmatpush1.bf16.msra.mxu0 %v10802
        %11600 = vmatprep.subr.bf16.mxu0 %v10782
        %11601 = vmatpush1.bf16.msra.mxu0 %v10781
        %11602 = vmatprep.subr.bf16.mxu0 %v10761
        %11603 = vmatpush1.bf16.msra.mxu0 %v10760
        %11604 = vmatprep.subr.bf16.mxu0 %v10740
        %11605 = vmatpush1.bf16.msra.mxu0 %v10739
        %11606 = vmatprep.subr.bf16.mxu0 %v10719
        %11607 = vmatpush1.bf16.msra.mxu0 %v10718
        %11608 = vmatprep.subr.bf16.mxu0 %v10698
        %11609 = vmatpush1.bf16.msra.mxu0 %v10697
        %11610 = vmatprep.subr.bf16.mxu0 %v10677
        %11611 = vmatpush1.bf16.msra.mxu0 %v10676
        %11612 = vmatprep.subr.bf16.mxu0 %v10656
        %11613 = vmatpush1.bf16.msra.mxu0 %v10655
        %11614 = vmatprep.subr.bf16.mxu0 0
        %11615 = vmatpush2.bf16.msra.mxu0 0
        %11616 = vmatprep.subr.bf16.mxu0 0
        %11617 = vmatpush2.bf16.msra.mxu0 0
        %11618 = vmatprep.subr.bf16.mxu0 %v10929
        %11619 = vmatpush2.bf16.msra.mxu0 %v10928
        %11620 = vmatprep.subr.bf16.mxu0 %v10908
        %11621 = vmatpush2.bf16.msra.mxu0 %v10907
        %11622 = vmatprep.subr.bf16.mxu0 %v10887
        %11623 = vmatpush2.bf16.msra.mxu0 %v10886
        %11624 = vmatprep.subr.bf16.mxu0 %v10866
        %11625 = vmatpush2.bf16.msra.mxu0 %v10865
        %11626 = vmatprep.subr.bf16.mxu0 %v10845
        %11627 = vmatpush2.bf16.msra.mxu0 %v10844
        %11628 = vmatprep.subr.bf16.mxu0 %v10824
        %11629 = vmatpush2.bf16.msra.mxu0 %v10823
        %11630 = vmatprep.mubr.bf16.mxu0 %v11227
        %11631 = vmatmul.mubr.bf16.gmra.mxu0 %v9738
        %v11632 = vpop.f32.mrf.mxu0
        %v11633 = vadd.f32 %v9733, %v11632
        %v11634 = vpop.f32.mrf.mxu0
        %v11635 = vadd.f32 %v9733, %v11634
        %v11636 = vpop.f32.mrf.mxu0
        %v11637 = vpop.f32.mrf.mxu0
        %11638 = vdwg.mxu0
        %11639 = vmatprep.subr.bf16.mxu0 0
        %11640 = vmatpush1.bf16.msra.mxu0 %v10804
        %11641 = vmatprep.subr.bf16.mxu0 0
        %11642 = vmatpush1.bf16.msra.mxu0 %v10783
        %11643 = vmatprep.subr.bf16.mxu0 0
        %11644 = vmatpush1.bf16.msra.mxu0 %v10762
        %11645 = vmatprep.subr.bf16.mxu0 0
        %11646 = vmatpush1.bf16.msra.mxu0 %v10741
        %11647 = vmatprep.subr.bf16.mxu0 0
        %11648 = vmatpush1.bf16.msra.mxu0 %v10720
        %11649 = vmatprep.subr.bf16.mxu0 0
        %11650 = vmatpush1.bf16.msra.mxu0 %v10699
        %11651 = vmatprep.subr.bf16.mxu0 0
        %11652 = vmatpush1.bf16.msra.mxu0 %v10678
        %11653 = vmatprep.subr.bf16.mxu0 0
        %11654 = vmatpush1.bf16.msra.mxu0 %v10657
        %11655 = vmatprep.subr.bf16.mxu0 0
        %11656 = vmatpush2.bf16.msra.mxu0 0
        %11657 = vmatprep.subr.bf16.mxu0 0
        %11658 = vmatpush2.bf16.msra.mxu0 0
        %11659 = vmatprep.subr.bf16.mxu0 0
        %11660 = vmatpush2.bf16.msra.mxu0 %v10930
        %11661 = vmatprep.subr.bf16.mxu0 0
        %11662 = vmatpush2.bf16.msra.mxu0 %v10909
        %11663 = vmatprep.subr.bf16.mxu0 0
        %11664 = vmatpush2.bf16.msra.mxu0 %v10888
        %11665 = vmatprep.subr.bf16.mxu0 0
        %11666 = vmatpush2.bf16.msra.mxu0 %v10867
        %11667 = vmatprep.subr.bf16.mxu0 0
        %11668 = vmatpush2.bf16.msra.mxu0 %v10846
        %11669 = vmatprep.subr.bf16.mxu0 0
        %11670 = vmatpush2.bf16.msra.mxu0 %v10825
        %11671 = vmatprep.mubr.bf16.mxu0 %v11227
        %11672 = vmatmul.mubr.bf16.gmra.mxu0 %v9738
        %v11673 = vpop.f32.mrf.mxu0
        %v11674 = vadd.f32 %v9733, %v11673
        %v11675 = vpop.f32.mrf.mxu0
        %v11676 = vpop.f32.mrf.mxu0
        %v11677 = vpop.f32.mrf.mxu0
        %11678 = vdwg.mxu0
        %v11679 = vmax.f32 %v11264, 0.0
        %v11680 = vmax.f32 %v11266, 0.0
        %v11681 = vmax.f32 %v11305, 0.0
        %v11682 = vmax.f32 %v11307, 0.0
        %v11683 = vmax.f32 %v11346, 0.0
        %v11684 = vmax.f32 %v11348, 0.0
        %v11685 = vmax.f32 %v11387, 0.0
        %v11686 = vmax.f32 %v11389, 0.0
        %v11687 = vmax.f32 %v11428, 0.0
        %v11688 = vmax.f32 %v11430, 0.0
        %v11689 = vmax.f32 %v11469, 0.0
        %v11690 = vmax.f32 %v11471, 0.0
        %v11691 = vmax.f32 %v11510, 0.0
        %v11692 = vmax.f32 %v11512, 0.0
        %v11693 = vmax.f32 %v11551, 0.0
        %v11694 = vmax.f32 %v11553, 0.0
        %v11695 = vmax.f32 %v11592, 0.0
        %v11696 = vmax.f32 %v11594, 0.0
        %v11697 = vmax.f32 %v11633, 0.0
        %v11698 = vmax.f32 %v11635, 0.0
        %v11699 = vmax.f32 %v11674, 0.0
        %11700 = vst [vmem:[%s280] sm:$0xff] %v11679
        %11701 = vst [vmem:[%s280 + $0x8] sm:$0xff] %v11680
        %11702 = vst [vmem:[%s280 + $0x10] sm:$0xff] %v11681
        %11703 = vst [vmem:[%s280 + $0x18] sm:$0xff] %v11682
        %11704 = vst [vmem:[%s280 + $0x20] sm:$0xff] %v11683
        %11705 = vst [vmem:[%s280 + $0x28] sm:$0xff] %v11684
        %11706 = vst [vmem:[%s280 + $0x30] sm:$0xff] %v11685
        %11707 = vst [vmem:[%s280 + $0x38] sm:$0xff] %v11686
        %11708 = vst [vmem:[%s280 + $0x40] sm:$0xff] %v11687
        %11709 = vst [vmem:[%s280 + $0x48] sm:$0xff] %v11688
        %11710 = vst [vmem:[%s280 + $0x50] sm:$0xff] %v11689
        %11711 = vst [vmem:[%s280 + $0x58] sm:$0xff] %v11690
        %11712 = vst [vmem:[%s280 + $0x60] sm:$0xff] %v11691
        %11713 = vst [vmem:[%s280 + $0x68] sm:$0xff] %v11692
        %11714 = vst [vmem:[%s280 + $0x70] sm:$0xff] %v11693
        %11715 = vst [vmem:[%s280 + $0x78] sm:$0xff] %v11694
        %11716 = vst [vmem:[%s280 + $0x80] sm:$0xff] %v11695
        %11717 = vst [vmem:[%s280 + $0x88] sm:$0xff] %v11696
        %11718 = vst [vmem:[%s280 + $0x90] sm:$0xff] %v11697
        %11719 = vst [vmem:[%s280 + $0x98] sm:$0xff] %v11698
        %11720 = vst [vmem:[%s280 + $0xa0] sm:$0xff] %v11699
        %s11721 = sand.u32 %s163, 1
        %s11722 = scalar_lea.sflag [#allocation6], %s11721
        %s11723 = sand.u32 %s163, 1
        %s11724 = smul.addr %s11723, 168
        %s11725 = scalar_lea.vmem [#allocation9], %s11724
        // Predicated region
        $region53: #{tpu_custom_call.1} parent=43 // pred_check
          %p11726 = pneg %p173
        $region54: #{tpu_custom_call.1} parent=43 // pred_check_branch
          %11728 = sbr.rel (%p11726) target = $region56
        $region55: #{tpu_custom_call.1} parent=43 // pred_region
          %s11730 = ssub.s32 2688, 2688
          %11731 = vsyncadd %s11722, %s11730
          %s11732 = smul.addr %s24, 21
          %s11733 = smul.addr %s11732, 128
          %s11734 = scalar_lea.hbm %s6, %s11733
          %s11736 = sshll.u32 %s11725, 4
          %s11737 = int_to_ptr.vmem [resolvable:$true] %s11736
          %11739 = dma.vmem_to_hbm [thread:$0]  %s11737, 2688, %s11734, %s11722
        $region56: #{tpu_custom_call.1} parent=43 // pred_fallthru
          _
      $region44: #{tpu_custom_call.1} parent=5 // pred_fallthru
        _
      %p11740 = scmp.le.s32.totalorder 2, %s19
      // Predicated region
      $region57: #{tpu_custom_call.1} parent=5 // pred_check
        %p11741 = pneg %p11740
      $region58: #{tpu_custom_call.1} parent=5 // pred_check_branch
        %11743 = sbr.rel (%p11741) target = $region60
      $region59: #{tpu_custom_call.1} parent=5 // pred_region
        %s11744 = ssub.s32 %s19, 2
        // Predicated region
        $region61: #{tpu_custom_call.1} parent=59 // pred_check
          %p11745 = pneg %p179
        $region62: #{tpu_custom_call.1} parent=59 // pred_check_branch
          %11747 = sbr.rel (%p11745) target = $region64
        $region63: #{tpu_custom_call.1} parent=59 // pred_region
          %s11748 = sand.u32 %s164, 1
          %s11749 = scalar_lea.sflag [#allocation6], %s11748
          %s11750 = sand.u32 %s164, 1
          %s11751 = smul.addr %s11750, 168
          %s11752 = scalar_lea.vmem [#allocation9], %s11751
          %11753 = dma.done %s11749, 2688
        $region64: #{tpu_custom_call.1} parent=59 // pred_fallthru
          _
      $region60: #{tpu_custom_call.1} parent=5 // pred_fallthru
        _
    $region6: #{tpu_custom_call.1} parent=1 // loop_footer
      %s23 = sadd.s32 1, %s19
    $region7: #{tpu_custom_call.1} parent=1 // loop_footer_branch
      %18 = sbr.rel target = $region3
    $region8: #{tpu_custom_call.1} parent=1 // loop_exit
      _
    %11754 = vsyncpa [#allocation5], 1
    %s11755 = scalar_lea.sflag [#allocation5], 1
    %11756 = vsyncpa %s11755, 1
    %11757 = vsyncpa [#allocation8], 1
    %11758 = vsyncpa [#allocation6], 1
    %s11759 = scalar_lea.sflag [#allocation6], 1
    %11760 = vsyncpa %s11759, 1

</llo_original>
